<compile_context>
chip_gen: v5e
topology: v5e:2x2
jax: 0.10.0
libtpu: 0.0.40
codegen_flags: <defaults>
</compile_context>

<pallas_src>
import functools

import jax
import jax.numpy as jnp
from jax.experimental import pallas as pl
from jax.experimental.pallas import tpu as pltpu  # noqa: F401  (TPU backend assumed)


# ----------------------------- Pallas kernels ------------------------------

def _conv_pool_relu_kernel(x00, x01, x10, x11, w_ref, b_ref, o_ref, *, pw, ksize):
    """Fused conv(k=ksize, stride 1) + bias + 2x2 max-pool + ReLU.

    x00..x11: the four 2x2 polyphase components of the (padded) input grid, each
              flattened per phase to (C_in, batch*pw*pw + shift_pad), lane-dense.
    w_ref:    (ksize*ksize, C_out, C_in) tap-major weights.
    b_ref:    (C_out, 1) bias.
    o_ref:    (C_out, batch*pw*pw) pooled+relu output (valid region is the
              leading pooled window of each per-image pw x pw tile).
    The conv is accumulated directly on the pooled grid as 4 output-parity
    accumulators; their elementwise max is the 2x2 max-pool.
    """
    xph = ((x00, x01), (x10, x11))
    co = o_ref.shape[0]
    m = o_ref.shape[1]
    pooled = None
    for p in range(2):
        for q in range(2):
            acc = jnp.zeros((co, m), jnp.float32)
            for di in range(ksize):
                for dj in range(ksize):
                    r, u0 = (p + di) % 2, (p + di) // 2
                    s, v0 = (q + dj) % 2, (q + dj) // 2
                    shift = u0 * pw + v0                    # static lane offset
                    t = di * ksize + dj
                    w_t = w_ref[t]                          # (C_out, C_in)
                    slab = xph[r][s][:, shift:shift + m]    # (C_in, M) lane-dense
                    if w_t.shape[1] == 1:
                        # C_in == 1: outer product == broadcast multiply (VPU).
                        acc = acc + (w_t * slab).astype(jnp.float32)
                    else:
                        acc = acc + jnp.dot(w_t, slab,
                                            preferred_element_type=jnp.float32)
            pooled = acc if pooled is None else jnp.maximum(pooled, acc)
    # bias once after the max (max is invariant to a shared additive bias); ReLU.
    out = jnp.maximum(pooled + b_ref[...], 0.0)
    o_ref[...] = out.astype(o_ref.dtype)


def conv_pool_relu(x_phases, w_taps, bias, *, pw, m, ksize=5,
                   out_dtype=jnp.bfloat16):
    co = w_taps.shape[1]
    kernel = functools.partial(_conv_pool_relu_kernel, pw=pw, ksize=ksize)
    in_specs = ([pl.BlockSpec(p.shape, lambda: (0, 0)) for p in x_phases] +
                [pl.BlockSpec(w_taps.shape, lambda: (0, 0, 0)),
                 pl.BlockSpec(bias.shape, lambda: (0, 0))])
    return pl.pallas_call(
        kernel,
        out_shape=jax.ShapeDtypeStruct((co, m), out_dtype),
        in_specs=in_specs,
        out_specs=pl.BlockSpec((co, m), lambda: (0, 0)),
    )(*x_phases, w_taps, bias)


def _fc_logsoftmax_kernel(x_ref, w_ref, b_ref, o_ref):
    logits = jnp.dot(x_ref[...], w_ref[...],
                     preferred_element_type=jnp.float32) + b_ref[...]
    mx = jnp.max(logits, axis=-1, keepdims=True)
    s = logits - mx
    lse = jnp.log(jnp.sum(jnp.exp(s), axis=-1, keepdims=True))
    o_ref[...] = s - lse


def fc_logsoftmax(x, w, bias):
    """(B, K) @ (K, N) + bias, then log_softmax along the last axis (N padded to 128)."""
    b_rows, k = x.shape
    k2, n_out = w.shape
    assert k == k2
    return pl.pallas_call(
        _fc_logsoftmax_kernel,
        out_shape=jax.ShapeDtypeStruct((b_rows, n_out), jnp.float32),
        in_specs=[pl.BlockSpec((b_rows, k), lambda: (0, 0)),
                  pl.BlockSpec((k, n_out), lambda: (0, 0)),
                  pl.BlockSpec((1, n_out), lambda: (0, 0))],
        out_specs=pl.BlockSpec((b_rows, n_out), lambda: (0, 0)),
    )(x, w, bias)


# ------------------------------- JAX glue ----------------------------------

def _polyphase_flat(x, ph, pw, shift_pad, dtype):
    """x: (C, N, 2*ph, 2*pw) -> 4 phase arrays (C, N*ph*pw + shift_pad).

    A partition of the input (each element appears exactly once), so there is no
    HBM duplication; shift_pad trailing zeros give the in-kernel tap slices room.
    """
    c, n = x.shape[0], x.shape[1]
    xr = x.reshape(c, n, ph, 2, pw, 2)
    out = []
    for r in range(2):
        for s in range(2):
            phase = xr[:, :, :, r, :, s].reshape(c, n * ph * pw).astype(dtype)
            out.append(jnp.pad(phase, ((0, 0), (0, shift_pad))))
    return out


def net_forward(x, params):
    n = x.shape[0]

    # ----- conv1 block: Conv2d(1,10,k=5,pad=1) + maxpool2 + relu -> (10, n, 13, 13)
    xc = x.transpose(1, 0, 2, 3)                              # (1, n, 28, 28) channel-major
    xpad = jnp.pad(xc, ((0, 0), (0, 0), (1, 1), (1, 1)))       # (1, n, 30, 30)
    x_ph = _polyphase_flat(xpad, 15, 15, 2 * 15 + 2, jnp.float32)   # 4 x (1, n*225 + 32)
    w1t = params["w1"].reshape(10, 25).T.reshape(25, 10, 1)    # (tap, C_out, C_in)
    b1 = params["b1"].reshape(10, 1)
    h1p = conv_pool_relu(x_ph, w1t, b1, pw=15, m=n * 225)      # (10, n*225) bf16

    # ----- conv2 block: Conv2d(10,10,k=5) + maxpool2 + relu -> (10, n, 4, 4)
    h1g = h1p.reshape(10, n, 15, 15)        # valid pooled conv1 output lives in [:13, :13]
    h1g = jnp.pad(h1g, ((0, 0), (0, 0), (0, 1), (0, 1)))       # (10, n, 16, 16)
    h_ph = _polyphase_flat(h1g, 8, 8, 2 * 8 + 2, jnp.bfloat16)  # 4 x (10, n*64 + 18)
    w2t = (params["w2"].transpose(2, 3, 0, 1)
           .reshape(25, 10, 10).astype(jnp.bfloat16))           # (tap, C_out, C_in)
    b2 = params["b2"].reshape(10, 1)
    h2p = conv_pool_relu(h_ph, w2t, b2, pw=8, m=n * 64)         # (10, n*64) bf16

    # ----- flatten (torch NCHW .view order) + fc(160->10) + log_softmax(dim=1)
    h2 = h2p.reshape(10, n, 8, 8)[:, :, :4, :4]                 # (10, n, 4, 4) valid
    flat = h2.transpose(1, 0, 2, 3).reshape(n, 160)             # (n, 160) bf16 (tiny)
    wf_pad = jnp.zeros((128, 160), jnp.float32).at[:10].set(params["wf"])
    wfT = wf_pad.T.astype(jnp.bfloat16)                         # (160, 128)
    bf_pad = jnp.full((1, 128), -1e30, jnp.float32).at[0, :10].set(params["bf"])
    logp = fc_logsoftmax(flat, wfT, bf_pad)                     # (n, 128) f32
    return logp[:, :10]                                         # drop padded classes


def init_params(key):
    ks = jax.random.split(key, 6)

    def u(k, shape, fan_in):
        bound = 1.0 / jnp.sqrt(float(fan_in))
        return jax.random.uniform(k, shape, jnp.float32, -bound, bound)

    return dict(
        w1=u(ks[0], (10, 1, 5, 5), 1 * 5 * 5),
        b1=u(ks[1], (10,), 1 * 5 * 5),
        w2=u(ks[2], (10, 10, 5, 5), 10 * 5 * 5),
        b2=u(ks[3], (10,), 10 * 5 * 5),
        wf=u(ks[4], (10, 160), 160),
        bf=u(ks[5], (10,), 160),
    )


if __name__ == "__main__":
    key = jax.random.PRNGKey(0)
    kx, kp = jax.random.split(key)
    # MNIST-like input: batch=2, 1 channel, 28x28 (required so flatten -> 160).
    x = jax.random.normal(kx, (2, 1, 28, 28), jnp.float32)
    params = init_params(kp)

    out = jax.jit(net_forward)(x, params)
    jax.block_until_ready(out)
    assert out.shape == (2, 10)
    print("KERNEL_OK")
</pallas_src>

<mosaic_0001>
module attributes {stable_mosaic.version = 11 : i64} {
  func.func @_conv_pool_relu_kernel(%arg0: memref<1x482xf32, #tpu.memory_space<vmem>>, %arg1: memref<1x482xf32, #tpu.memory_space<vmem>>, %arg2: memref<1x482xf32, #tpu.memory_space<vmem>>, %arg3: memref<1x482xf32, #tpu.memory_space<vmem>>, %arg4: memref<25x10x1xf32, #tpu.memory_space<vmem>>, %arg5: memref<10x1xf32, #tpu.memory_space<vmem>>, %arg6: memref<10x450xbf16, #tpu.memory_space<vmem>>) attributes {dimension_semantics = [], scalar_prefetch = 0 : i64, scratch_operands = 0 : i64, tpu.core_type = #tpu.core_type<tc>} {
    %cst = arith.constant 0.000000e+00 : f32
    %0 = vector.broadcast %cst : f32 to vector<10x450xf32>
    %c0 = arith.constant 0 : index
    %c0_0 = arith.constant 0 : index
    %c0_1 = arith.constant 0 : index
    %1 = vector.load %arg4[%c0, %c0_0, %c0_1] : memref<25x10x1xf32, #tpu.memory_space<vmem>>, vector<1x10x1xf32>
    %2 = vector.shape_cast %1 : vector<1x10x1xf32> to vector<10x1xf32>
    %c0_2 = arith.constant 0 : index
    %c0_3 = arith.constant 0 : index
    %3 = vector.load %arg0[%c0_2, %c0_3] : memref<1x482xf32, #tpu.memory_space<vmem>>, vector<1x450xf32>
    %4 = vector.broadcast %2 : vector<10x1xf32> to vector<10x450xf32>
    %5 = vector.broadcast %3 : vector<1x450xf32> to vector<10x450xf32>
    %6 = arith.mulf %4, %5 : vector<10x450xf32>
    %7 = arith.addf %0, %6 : vector<10x450xf32>
    %c1 = arith.constant 1 : index
    %c0_4 = arith.constant 0 : index
    %c0_5 = arith.constant 0 : index
    %8 = vector.load %arg4[%c1, %c0_4, %c0_5] : memref<25x10x1xf32, #tpu.memory_space<vmem>>, vector<1x10x1xf32>
    %9 = vector.shape_cast %8 : vector<1x10x1xf32> to vector<10x1xf32>
    %c0_6 = arith.constant 0 : index
    %c0_7 = arith.constant 0 : index
    %10 = vector.load %arg1[%c0_6, %c0_7] : memref<1x482xf32, #tpu.memory_space<vmem>>, vector<1x450xf32>
    %11 = vector.broadcast %9 : vector<10x1xf32> to vector<10x450xf32>
    %12 = vector.broadcast %10 : vector<1x450xf32> to vector<10x450xf32>
    %13 = arith.mulf %11, %12 : vector<10x450xf32>
    %14 = arith.addf %7, %13 : vector<10x450xf32>
    %c2 = arith.constant 2 : index
    %c0_8 = arith.constant 0 : index
    %c0_9 = arith.constant 0 : index
    %15 = vector.load %arg4[%c2, %c0_8, %c0_9] : memref<25x10x1xf32, #tpu.memory_space<vmem>>, vector<1x10x1xf32>
    %16 = vector.shape_cast %15 : vector<1x10x1xf32> to vector<10x1xf32>
    %c0_10 = arith.constant 0 : index
    %c1_11 = arith.constant 1 : index
    %17 = vector.load %arg0[%c0_10, %c1_11] : memref<1x482xf32, #tpu.memory_space<vmem>>, vector<1x450xf32>
    %18 = vector.broadcast %16 : vector<10x1xf32> to vector<10x450xf32>
    %19 = vector.broadcast %17 : vector<1x450xf32> to vector<10x450xf32>
    %20 = arith.mulf %18, %19 : vector<10x450xf32>
    %21 = arith.addf %14, %20 : vector<10x450xf32>
    %c3 = arith.constant 3 : index
    %c0_12 = arith.constant 0 : index
    %c0_13 = arith.constant 0 : index
    %22 = vector.load %arg4[%c3, %c0_12, %c0_13] : memref<25x10x1xf32, #tpu.memory_space<vmem>>, vector<1x10x1xf32>
    %23 = vector.shape_cast %22 : vector<1x10x1xf32> to vector<10x1xf32>
    %c0_14 = arith.constant 0 : index
    %c1_15 = arith.constant 1 : index
    %24 = vector.load %arg1[%c0_14, %c1_15] : memref<1x482xf32, #tpu.memory_space<vmem>>, vector<1x450xf32>
    %25 = vector.broadcast %23 : vector<10x1xf32> to vector<10x450xf32>
    %26 = vector.broadcast %24 : vector<1x450xf32> to vector<10x450xf32>
    %27 = arith.mulf %25, %26 : vector<10x450xf32>
    %28 = arith.addf %21, %27 : vector<10x450xf32>
    %c4 = arith.constant 4 : index
    %c0_16 = arith.constant 0 : index
    %c0_17 = arith.constant 0 : index
    %29 = vector.load %arg4[%c4, %c0_16, %c0_17] : memref<25x10x1xf32, #tpu.memory_space<vmem>>, vector<1x10x1xf32>
    %30 = vector.shape_cast %29 : vector<1x10x1xf32> to vector<10x1xf32>
    %c0_18 = arith.constant 0 : index
    %c2_19 = arith.constant 2 : index
    %31 = vector.load %arg0[%c0_18, %c2_19] : memref<1x482xf32, #tpu.memory_space<vmem>>, vector<1x450xf32>
    %32 = vector.broadcast %30 : vector<10x1xf32> to vector<10x450xf32>
    %33 = vector.broadcast %31 : vector<1x450xf32> to vector<10x450xf32>
    %34 = arith.mulf %32, %33 : vector<10x450xf32>
    %35 = arith.addf %28, %34 : vector<10x450xf32>
    %c5 = arith.constant 5 : index
    %c0_20 = arith.constant 0 : index
    %c0_21 = arith.constant 0 : index
    %36 = vector.load %arg4[%c5, %c0_20, %c0_21] : memref<25x10x1xf32, #tpu.memory_space<vmem>>, vector<1x10x1xf32>
    %37 = vector.shape_cast %36 : vector<1x10x1xf32> to vector<10x1xf32>
    %c0_22 = arith.constant 0 : index
    %c0_23 = arith.constant 0 : index
    %38 = vector.load %arg2[%c0_22, %c0_23] : memref<1x482xf32, #tpu.memory_space<vmem>>, vector<1x450xf32>
    %39 = vector.broadcast %37 : vector<10x1xf32> to vector<10x450xf32>
    %40 = vector.broadcast %38 : vector<1x450xf32> to vector<10x450xf32>
    %41 = arith.mulf %39, %40 : vector<10x450xf32>
    %42 = arith.addf %35, %41 : vector<10x450xf32>
    %c6 = arith.constant 6 : index
    %c0_24 = arith.constant 0 : index
    %c0_25 = arith.constant 0 : index
    %43 = vector.load %arg4[%c6, %c0_24, %c0_25] : memref<25x10x1xf32, #tpu.memory_space<vmem>>, vector<1x10x1xf32>
    %44 = vector.shape_cast %43 : vector<1x10x1xf32> to vector<10x1xf32>
    %c0_26 = arith.constant 0 : index
    %c0_27 = arith.constant 0 : index
    %45 = vector.load %arg3[%c0_26, %c0_27] : memref<1x482xf32, #tpu.memory_space<vmem>>, vector<1x450xf32>
    %46 = vector.broadcast %44 : vector<10x1xf32> to vector<10x450xf32>
    %47 = vector.broadcast %45 : vector<1x450xf32> to vector<10x450xf32>
    %48 = arith.mulf %46, %47 : vector<10x450xf32>
    %49 = arith.addf %42, %48 : vector<10x450xf32>
    %c7 = arith.constant 7 : index
    %c0_28 = arith.constant 0 : index
    %c0_29 = arith.constant 0 : index
    %50 = vector.load %arg4[%c7, %c0_28, %c0_29] : memref<25x10x1xf32, #tpu.memory_space<vmem>>, vector<1x10x1xf32>
    %51 = vector.shape_cast %50 : vector<1x10x1xf32> to vector<10x1xf32>
    %c0_30 = arith.constant 0 : index
    %c1_31 = arith.constant 1 : index
    %52 = vector.load %arg2[%c0_30, %c1_31] : memref<1x482xf32, #tpu.memory_space<vmem>>, vector<1x450xf32>
    %53 = vector.broadcast %51 : vector<10x1xf32> to vector<10x450xf32>
    %54 = vector.broadcast %52 : vector<1x450xf32> to vector<10x450xf32>
    %55 = arith.mulf %53, %54 : vector<10x450xf32>
    %56 = arith.addf %49, %55 : vector<10x450xf32>
    %c8 = arith.constant 8 : index
    %c0_32 = arith.constant 0 : index
    %c0_33 = arith.constant 0 : index
    %57 = vector.load %arg4[%c8, %c0_32, %c0_33] : memref<25x10x1xf32, #tpu.memory_space<vmem>>, vector<1x10x1xf32>
    %58 = vector.shape_cast %57 : vector<1x10x1xf32> to vector<10x1xf32>
    %c0_34 = arith.constant 0 : index
    %c1_35 = arith.constant 1 : index
    %59 = vector.load %arg3[%c0_34, %c1_35] : memref<1x482xf32, #tpu.memory_space<vmem>>, vector<1x450xf32>
    %60 = vector.broadcast %58 : vector<10x1xf32> to vector<10x450xf32>
    %61 = vector.broadcast %59 : vector<1x450xf32> to vector<10x450xf32>
    %62 = arith.mulf %60, %61 : vector<10x450xf32>
    %63 = arith.addf %56, %62 : vector<10x450xf32>
    %c9 = arith.constant 9 : index
    %c0_36 = arith.constant 0 : index
    %c0_37 = arith.constant 0 : index
    %64 = vector.load %arg4[%c9, %c0_36, %c0_37] : memref<25x10x1xf32, #tpu.memory_space<vmem>>, vector<1x10x1xf32>
    %65 = vector.shape_cast %64 : vector<1x10x1xf32> to vector<10x1xf32>
    %c0_38 = arith.constant 0 : index
    %c2_39 = arith.constant 2 : index
    %66 = vector.load %arg2[%c0_38, %c2_39] : memref<1x482xf32, #tpu.memory_space<vmem>>, vector<1x450xf32>
    %67 = vector.broadcast %65 : vector<10x1xf32> to vector<10x450xf32>
    %68 = vector.broadcast %66 : vector<1x450xf32> to vector<10x450xf32>
    %69 = arith.mulf %67, %68 : vector<10x450xf32>
    %70 = arith.addf %63, %69 : vector<10x450xf32>
    %c10 = arith.constant 10 : index
    %c0_40 = arith.constant 0 : index
    %c0_41 = arith.constant 0 : index
    %71 = vector.load %arg4[%c10, %c0_40, %c0_41] : memref<25x10x1xf32, #tpu.memory_space<vmem>>, vector<1x10x1xf32>
    %72 = vector.shape_cast %71 : vector<1x10x1xf32> to vector<10x1xf32>
    %c0_42 = arith.constant 0 : index
    %c15 = arith.constant 15 : index
    %73 = vector.load %arg0[%c0_42, %c15] : memref<1x482xf32, #tpu.memory_space<vmem>>, vector<1x450xf32>
    %74 = vector.broadcast %72 : vector<10x1xf32> to vector<10x450xf32>
    %75 = vector.broadcast %73 : vector<1x450xf32> to vector<10x450xf32>
    %76 = arith.mulf %74, %75 : vector<10x450xf32>
    %77 = arith.addf %70, %76 : vector<10x450xf32>
    %c11 = arith.constant 11 : index
    %c0_43 = arith.constant 0 : index
    %c0_44 = arith.constant 0 : index
    %78 = vector.load %arg4[%c11, %c0_43, %c0_44] : memref<25x10x1xf32, #tpu.memory_space<vmem>>, vector<1x10x1xf32>
    %79 = vector.shape_cast %78 : vector<1x10x1xf32> to vector<10x1xf32>
    %c0_45 = arith.constant 0 : index
    %c15_46 = arith.constant 15 : index
    %80 = vector.load %arg1[%c0_45, %c15_46] : memref<1x482xf32, #tpu.memory_space<vmem>>, vector<1x450xf32>
    %81 = vector.broadcast %79 : vector<10x1xf32> to vector<10x450xf32>
    %82 = vector.broadcast %80 : vector<1x450xf32> to vector<10x450xf32>
    %83 = arith.mulf %81, %82 : vector<10x450xf32>
    %84 = arith.addf %77, %83 : vector<10x450xf32>
    %c12 = arith.constant 12 : index
    %c0_47 = arith.constant 0 : index
    %c0_48 = arith.constant 0 : index
    %85 = vector.load %arg4[%c12, %c0_47, %c0_48] : memref<25x10x1xf32, #tpu.memory_space<vmem>>, vector<1x10x1xf32>
    %86 = vector.shape_cast %85 : vector<1x10x1xf32> to vector<10x1xf32>
    %c0_49 = arith.constant 0 : index
    %c16 = arith.constant 16 : index
    %87 = vector.load %arg0[%c0_49, %c16] : memref<1x482xf32, #tpu.memory_space<vmem>>, vector<1x450xf32>
    %88 = vector.broadcast %86 : vector<10x1xf32> to vector<10x450xf32>
    %89 = vector.broadcast %87 : vector<1x450xf32> to vector<10x450xf32>
    %90 = arith.mulf %88, %89 : vector<10x450xf32>
    %91 = arith.addf %84, %90 : vector<10x450xf32>
    %c13 = arith.constant 13 : index
    %c0_50 = arith.constant 0 : index
    %c0_51 = arith.constant 0 : index
    %92 = vector.load %arg4[%c13, %c0_50, %c0_51] : memref<25x10x1xf32, #tpu.memory_space<vmem>>, vector<1x10x1xf32>
    %93 = vector.shape_cast %92 : vector<1x10x1xf32> to vector<10x1xf32>
    %c0_52 = arith.constant 0 : index
    %c16_53 = arith.constant 16 : index
    %94 = vector.load %arg1[%c0_52, %c16_53] : memref<1x482xf32, #tpu.memory_space<vmem>>, vector<1x450xf32>
    %95 = vector.broadcast %93 : vector<10x1xf32> to vector<10x450xf32>
    %96 = vector.broadcast %94 : vector<1x450xf32> to vector<10x450xf32>
    %97 = arith.mulf %95, %96 : vector<10x450xf32>
    %98 = arith.addf %91, %97 : vector<10x450xf32>
    %c14 = arith.constant 14 : index
    %c0_54 = arith.constant 0 : index
    %c0_55 = arith.constant 0 : index
    %99 = vector.load %arg4[%c14, %c0_54, %c0_55] : memref<25x10x1xf32, #tpu.memory_space<vmem>>, vector<1x10x1xf32>
    %100 = vector.shape_cast %99 : vector<1x10x1xf32> to vector<10x1xf32>
    %c0_56 = arith.constant 0 : index
    %c17 = arith.constant 17 : index
    %101 = vector.load %arg0[%c0_56, %c17] : memref<1x482xf32, #tpu.memory_space<vmem>>, vector<1x450xf32>
    %102 = vector.broadcast %100 : vector<10x1xf32> to vector<10x450xf32>
    %103 = vector.broadcast %101 : vector<1x450xf32> to vector<10x450xf32>
    %104 = arith.mulf %102, %103 : vector<10x450xf32>
    %105 = arith.addf %98, %104 : vector<10x450xf32>
    %c15_57 = arith.constant 15 : index
    %c0_58 = arith.constant 0 : index
    %c0_59 = arith.constant 0 : index
    %106 = vector.load %arg4[%c15_57, %c0_58, %c0_59] : memref<25x10x1xf32, #tpu.memory_space<vmem>>, vector<1x10x1xf32>
    %107 = vector.shape_cast %106 : vector<1x10x1xf32> to vector<10x1xf32>
    %c0_60 = arith.constant 0 : index
    %c15_61 = arith.constant 15 : index
    %108 = vector.load %arg2[%c0_60, %c15_61] : memref<1x482xf32, #tpu.memory_space<vmem>>, vector<1x450xf32>
    %109 = vector.broadcast %107 : vector<10x1xf32> to vector<10x450xf32>
    %110 = vector.broadcast %108 : vector<1x450xf32> to vector<10x450xf32>
    %111 = arith.mulf %109, %110 : vector<10x450xf32>
    %112 = arith.addf %105, %111 : vector<10x450xf32>
    %c16_62 = arith.constant 16 : index
    %c0_63 = arith.constant 0 : index
    %c0_64 = arith.constant 0 : index
    %113 = vector.load %arg4[%c16_62, %c0_63, %c0_64] : memref<25x10x1xf32, #tpu.memory_space<vmem>>, vector<1x10x1xf32>
    %114 = vector.shape_cast %113 : vector<1x10x1xf32> to vector<10x1xf32>
    %c0_65 = arith.constant 0 : index
    %c15_66 = arith.constant 15 : index
    %115 = vector.load %arg3[%c0_65, %c15_66] : memref<1x482xf32, #tpu.memory_space<vmem>>, vector<1x450xf32>
    %116 = vector.broadcast %114 : vector<10x1xf32> to vector<10x450xf32>
    %117 = vector.broadcast %115 : vector<1x450xf32> to vector<10x450xf32>
    %118 = arith.mulf %116, %117 : vector<10x450xf32>
    %119 = arith.addf %112, %118 : vector<10x450xf32>
    %c17_67 = arith.constant 17 : index
    %c0_68 = arith.constant 0 : index
    %c0_69 = arith.constant 0 : index
    %120 = vector.load %arg4[%c17_67, %c0_68, %c0_69] : memref<25x10x1xf32, #tpu.memory_space<vmem>>, vector<1x10x1xf32>
    %121 = vector.shape_cast %120 : vector<1x10x1xf32> to vector<10x1xf32>
    %c0_70 = arith.constant 0 : index
    %c16_71 = arith.constant 16 : index
    %122 = vector.load %arg2[%c0_70, %c16_71] : memref<1x482xf32, #tpu.memory_space<vmem>>, vector<1x450xf32>
    %123 = vector.broadcast %121 : vector<10x1xf32> to vector<10x450xf32>
    %124 = vector.broadcast %122 : vector<1x450xf32> to vector<10x450xf32>
    %125 = arith.mulf %123, %124 : vector<10x450xf32>
    %126 = arith.addf %119, %125 : vector<10x450xf32>
    %c18 = arith.constant 18 : index
    %c0_72 = arith.constant 0 : index
    %c0_73 = arith.constant 0 : index
    %127 = vector.load %arg4[%c18, %c0_72, %c0_73] : memref<25x10x1xf32, #tpu.memory_space<vmem>>, vector<1x10x1xf32>
    %128 = vector.shape_cast %127 : vector<1x10x1xf32> to vector<10x1xf32>
    %c0_74 = arith.constant 0 : index
    %c16_75 = arith.constant 16 : index
    %129 = vector.load %arg3[%c0_74, %c16_75] : memref<1x482xf32, #tpu.memory_space<vmem>>, vector<1x450xf32>
    %130 = vector.broadcast %128 : vector<10x1xf32> to vector<10x450xf32>
    %131 = vector.broadcast %129 : vector<1x450xf32> to vector<10x450xf32>
    %132 = arith.mulf %130, %131 : vector<10x450xf32>
    %133 = arith.addf %126, %132 : vector<10x450xf32>
    %c19 = arith.constant 19 : index
    %c0_76 = arith.constant 0 : index
    %c0_77 = arith.constant 0 : index
    %134 = vector.load %arg4[%c19, %c0_76, %c0_77] : memref<25x10x1xf32, #tpu.memory_space<vmem>>, vector<1x10x1xf32>
    %135 = vector.shape_cast %134 : vector<1x10x1xf32> to vector<10x1xf32>
    %c0_78 = arith.constant 0 : index
    %c17_79 = arith.constant 17 : index
    %136 = vector.load %arg2[%c0_78, %c17_79] : memref<1x482xf32, #tpu.memory_space<vmem>>, vector<1x450xf32>
    %137 = vector.broadcast %135 : vector<10x1xf32> to vector<10x450xf32>
    %138 = vector.broadcast %136 : vector<1x450xf32> to vector<10x450xf32>
    %139 = arith.mulf %137, %138 : vector<10x450xf32>
    %140 = arith.addf %133, %139 : vector<10x450xf32>
    %c20 = arith.constant 20 : index
    %c0_80 = arith.constant 0 : index
    %c0_81 = arith.constant 0 : index
    %141 = vector.load %arg4[%c20, %c0_80, %c0_81] : memref<25x10x1xf32, #tpu.memory_space<vmem>>, vector<1x10x1xf32>
    %142 = vector.shape_cast %141 : vector<1x10x1xf32> to vector<10x1xf32>
    %c0_82 = arith.constant 0 : index
    %c30 = arith.constant 30 : index
    %143 = vector.load %arg0[%c0_82, %c30] : memref<1x482xf32, #tpu.memory_space<vmem>>, vector<1x450xf32>
    %144 = vector.broadcast %142 : vector<10x1xf32> to vector<10x450xf32>
    %145 = vector.broadcast %143 : vector<1x450xf32> to vector<10x450xf32>
    %146 = arith.mulf %144, %145 : vector<10x450xf32>
    %147 = arith.addf %140, %146 : vector<10x450xf32>
    %c21 = arith.constant 21 : index
    %c0_83 = arith.constant 0 : index
    %c0_84 = arith.constant 0 : index
    %148 = vector.load %arg4[%c21, %c0_83, %c0_84] : memref<25x10x1xf32, #tpu.memory_space<vmem>>, vector<1x10x1xf32>
    %149 = vector.shape_cast %148 : vector<1x10x1xf32> to vector<10x1xf32>
    %c0_85 = arith.constant 0 : index
    %c30_86 = arith.constant 30 : index
    %150 = vector.load %arg1[%c0_85, %c30_86] : memref<1x482xf32, #tpu.memory_space<vmem>>, vector<1x450xf32>
    %151 = vector.broadcast %149 : vector<10x1xf32> to vector<10x450xf32>
    %152 = vector.broadcast %150 : vector<1x450xf32> to vector<10x450xf32>
    %153 = arith.mulf %151, %152 : vector<10x450xf32>
    %154 = arith.addf %147, %153 : vector<10x450xf32>
    %c22 = arith.constant 22 : index
    %c0_87 = arith.constant 0 : index
    %c0_88 = arith.constant 0 : index
    %155 = vector.load %arg4[%c22, %c0_87, %c0_88] : memref<25x10x1xf32, #tpu.memory_space<vmem>>, vector<1x10x1xf32>
    %156 = vector.shape_cast %155 : vector<1x10x1xf32> to vector<10x1xf32>
    %c0_89 = arith.constant 0 : index
    %c31 = arith.constant 31 : index
    %157 = vector.load %arg0[%c0_89, %c31] : memref<1x482xf32, #tpu.memory_space<vmem>>, vector<1x450xf32>
    %158 = vector.broadcast %156 : vector<10x1xf32> to vector<10x450xf32>
    %159 = vector.broadcast %157 : vector<1x450xf32> to vector<10x450xf32>
    %160 = arith.mulf %158, %159 : vector<10x450xf32>
    %161 = arith.addf %154, %160 : vector<10x450xf32>
    %c23 = arith.constant 23 : index
    %c0_90 = arith.constant 0 : index
    %c0_91 = arith.constant 0 : index
    %162 = vector.load %arg4[%c23, %c0_90, %c0_91] : memref<25x10x1xf32, #tpu.memory_space<vmem>>, vector<1x10x1xf32>
    %163 = vector.shape_cast %162 : vector<1x10x1xf32> to vector<10x1xf32>
    %c0_92 = arith.constant 0 : index
    %c31_93 = arith.constant 31 : index
    %164 = vector.load %arg1[%c0_92, %c31_93] : memref<1x482xf32, #tpu.memory_space<vmem>>, vector<1x450xf32>
    %165 = vector.broadcast %163 : vector<10x1xf32> to vector<10x450xf32>
    %166 = vector.broadcast %164 : vector<1x450xf32> to vector<10x450xf32>
    %167 = arith.mulf %165, %166 : vector<10x450xf32>
    %168 = arith.addf %161, %167 : vector<10x450xf32>
    %c24 = arith.constant 24 : index
    %c0_94 = arith.constant 0 : index
    %c0_95 = arith.constant 0 : index
    %169 = vector.load %arg4[%c24, %c0_94, %c0_95] : memref<25x10x1xf32, #tpu.memory_space<vmem>>, vector<1x10x1xf32>
    %170 = vector.shape_cast %169 : vector<1x10x1xf32> to vector<10x1xf32>
    %c0_96 = arith.constant 0 : index
    %c32 = arith.constant 32 : index
    %171 = vector.load %arg0[%c0_96, %c32] : memref<1x482xf32, #tpu.memory_space<vmem>>, vector<1x450xf32>
    %172 = vector.broadcast %170 : vector<10x1xf32> to vector<10x450xf32>
    %173 = vector.broadcast %171 : vector<1x450xf32> to vector<10x450xf32>
    %174 = arith.mulf %172, %173 : vector<10x450xf32>
    %175 = arith.addf %168, %174 : vector<10x450xf32>
    %cst_97 = arith.constant 0.000000e+00 : f32
    %176 = vector.broadcast %cst_97 : f32 to vector<10x450xf32>
    %c0_98 = arith.constant 0 : index
    %c0_99 = arith.constant 0 : index
    %c0_100 = arith.constant 0 : index
    %177 = vector.load %arg4[%c0_98, %c0_99, %c0_100] : memref<25x10x1xf32, #tpu.memory_space<vmem>>, vector<1x10x1xf32>
    %178 = vector.shape_cast %177 : vector<1x10x1xf32> to vector<10x1xf32>
    %c0_101 = arith.constant 0 : index
    %c0_102 = arith.constant 0 : index
    %179 = vector.load %arg1[%c0_101, %c0_102] : memref<1x482xf32, #tpu.memory_space<vmem>>, vector<1x450xf32>
    %180 = vector.broadcast %178 : vector<10x1xf32> to vector<10x450xf32>
    %181 = vector.broadcast %179 : vector<1x450xf32> to vector<10x450xf32>
    %182 = arith.mulf %180, %181 : vector<10x450xf32>
    %183 = arith.addf %176, %182 : vector<10x450xf32>
    %c1_103 = arith.constant 1 : index
    %c0_104 = arith.constant 0 : index
    %c0_105 = arith.constant 0 : index
    %184 = vector.load %arg4[%c1_103, %c0_104, %c0_105] : memref<25x10x1xf32, #tpu.memory_space<vmem>>, vector<1x10x1xf32>
    %185 = vector.shape_cast %184 : vector<1x10x1xf32> to vector<10x1xf32>
    %c0_106 = arith.constant 0 : index
    %c1_107 = arith.constant 1 : index
    %186 = vector.load %arg0[%c0_106, %c1_107] : memref<1x482xf32, #tpu.memory_space<vmem>>, vector<1x450xf32>
    %187 = vector.broadcast %185 : vector<10x1xf32> to vector<10x450xf32>
    %188 = vector.broadcast %186 : vector<1x450xf32> to vector<10x450xf32>
    %189 = arith.mulf %187, %188 : vector<10x450xf32>
    %190 = arith.addf %183, %189 : vector<10x450xf32>
    %c2_108 = arith.constant 2 : index
    %c0_109 = arith.constant 0 : index
    %c0_110 = arith.constant 0 : index
    %191 = vector.load %arg4[%c2_108, %c0_109, %c0_110] : memref<25x10x1xf32, #tpu.memory_space<vmem>>, vector<1x10x1xf32>
    %192 = vector.shape_cast %191 : vector<1x10x1xf32> to vector<10x1xf32>
    %c0_111 = arith.constant 0 : index
    %c1_112 = arith.constant 1 : index
    %193 = vector.load %arg1[%c0_111, %c1_112] : memref<1x482xf32, #tpu.memory_space<vmem>>, vector<1x450xf32>
    %194 = vector.broadcast %192 : vector<10x1xf32> to vector<10x450xf32>
    %195 = vector.broadcast %193 : vector<1x450xf32> to vector<10x450xf32>
    %196 = arith.mulf %194, %195 : vector<10x450xf32>
    %197 = arith.addf %190, %196 : vector<10x450xf32>
    %c3_113 = arith.constant 3 : index
    %c0_114 = arith.constant 0 : index
    %c0_115 = arith.constant 0 : index
    %198 = vector.load %arg4[%c3_113, %c0_114, %c0_115] : memref<25x10x1xf32, #tpu.memory_space<vmem>>, vector<1x10x1xf32>
    %199 = vector.shape_cast %198 : vector<1x10x1xf32> to vector<10x1xf32>
    %c0_116 = arith.constant 0 : index
    %c2_117 = arith.constant 2 : index
    %200 = vector.load %arg0[%c0_116, %c2_117] : memref<1x482xf32, #tpu.memory_space<vmem>>, vector<1x450xf32>
    %201 = vector.broadcast %199 : vector<10x1xf32> to vector<10x450xf32>
    %202 = vector.broadcast %200 : vector<1x450xf32> to vector<10x450xf32>
    %203 = arith.mulf %201, %202 : vector<10x450xf32>
    %204 = arith.addf %197, %203 : vector<10x450xf32>
    %c4_118 = arith.constant 4 : index
    %c0_119 = arith.constant 0 : index
    %c0_120 = arith.constant 0 : index
    %205 = vector.load %arg4[%c4_118, %c0_119, %c0_120] : memref<25x10x1xf32, #tpu.memory_space<vmem>>, vector<1x10x1xf32>
    %206 = vector.shape_cast %205 : vector<1x10x1xf32> to vector<10x1xf32>
    %c0_121 = arith.constant 0 : index
    %c2_122 = arith.constant 2 : index
    %207 = vector.load %arg1[%c0_121, %c2_122] : memref<1x482xf32, #tpu.memory_space<vmem>>, vector<1x450xf32>
    %208 = vector.broadcast %206 : vector<10x1xf32> to vector<10x450xf32>
    %209 = vector.broadcast %207 : vector<1x450xf32> to vector<10x450xf32>
    %210 = arith.mulf %208, %209 : vector<10x450xf32>
    %211 = arith.addf %204, %210 : vector<10x450xf32>
    %c5_123 = arith.constant 5 : index
    %c0_124 = arith.constant 0 : index
    %c0_125 = arith.constant 0 : index
    %212 = vector.load %arg4[%c5_123, %c0_124, %c0_125] : memref<25x10x1xf32, #tpu.memory_space<vmem>>, vector<1x10x1xf32>
    %213 = vector.shape_cast %212 : vector<1x10x1xf32> to vector<10x1xf32>
    %c0_126 = arith.constant 0 : index
    %c0_127 = arith.constant 0 : index
    %214 = vector.load %arg3[%c0_126, %c0_127] : memref<1x482xf32, #tpu.memory_space<vmem>>, vector<1x450xf32>
    %215 = vector.broadcast %213 : vector<10x1xf32> to vector<10x450xf32>
    %216 = vector.broadcast %214 : vector<1x450xf32> to vector<10x450xf32>
    %217 = arith.mulf %215, %216 : vector<10x450xf32>
    %218 = arith.addf %211, %217 : vector<10x450xf32>
    %c6_128 = arith.constant 6 : index
    %c0_129 = arith.constant 0 : index
    %c0_130 = arith.constant 0 : index
    %219 = vector.load %arg4[%c6_128, %c0_129, %c0_130] : memref<25x10x1xf32, #tpu.memory_space<vmem>>, vector<1x10x1xf32>
    %220 = vector.shape_cast %219 : vector<1x10x1xf32> to vector<10x1xf32>
    %c0_131 = arith.constant 0 : index
    %c1_132 = arith.constant 1 : index
    %221 = vector.load %arg2[%c0_131, %c1_132] : memref<1x482xf32, #tpu.memory_space<vmem>>, vector<1x450xf32>
    %222 = vector.broadcast %220 : vector<10x1xf32> to vector<10x450xf32>
    %223 = vector.broadcast %221 : vector<1x450xf32> to vector<10x450xf32>
    %224 = arith.mulf %222, %223 : vector<10x450xf32>
    %225 = arith.addf %218, %224 : vector<10x450xf32>
    %c7_133 = arith.constant 7 : index
    %c0_134 = arith.constant 0 : index
    %c0_135 = arith.constant 0 : index
    %226 = vector.load %arg4[%c7_133, %c0_134, %c0_135] : memref<25x10x1xf32, #tpu.memory_space<vmem>>, vector<1x10x1xf32>
    %227 = vector.shape_cast %226 : vector<1x10x1xf32> to vector<10x1xf32>
    %c0_136 = arith.constant 0 : index
    %c1_137 = arith.constant 1 : index
    %228 = vector.load %arg3[%c0_136, %c1_137] : memref<1x482xf32, #tpu.memory_space<vmem>>, vector<1x450xf32>
    %229 = vector.broadcast %227 : vector<10x1xf32> to vector<10x450xf32>
    %230 = vector.broadcast %228 : vector<1x450xf32> to vector<10x450xf32>
    %231 = arith.mulf %229, %230 : vector<10x450xf32>
    %232 = arith.addf %225, %231 : vector<10x450xf32>
    %c8_138 = arith.constant 8 : index
    %c0_139 = arith.constant 0 : index
    %c0_140 = arith.constant 0 : index
    %233 = vector.load %arg4[%c8_138, %c0_139, %c0_140] : memref<25x10x1xf32, #tpu.memory_space<vmem>>, vector<1x10x1xf32>
    %234 = vector.shape_cast %233 : vector<1x10x1xf32> to vector<10x1xf32>
    %c0_141 = arith.constant 0 : index
    %c2_142 = arith.constant 2 : index
    %235 = vector.load %arg2[%c0_141, %c2_142] : memref<1x482xf32, #tpu.memory_space<vmem>>, vector<1x450xf32>
    %236 = vector.broadcast %234 : vector<10x1xf32> to vector<10x450xf32>
    %237 = vector.broadcast %235 : vector<1x450xf32> to vector<10x450xf32>
    %238 = arith.mulf %236, %237 : vector<10x450xf32>
    %239 = arith.addf %232, %238 : vector<10x450xf32>
    %c9_143 = arith.constant 9 : index
    %c0_144 = arith.constant 0 : index
    %c0_145 = arith.constant 0 : index
    %240 = vector.load %arg4[%c9_143, %c0_144, %c0_145] : memref<25x10x1xf32, #tpu.memory_space<vmem>>, vector<1x10x1xf32>
    %241 = vector.shape_cast %240 : vector<1x10x1xf32> to vector<10x1xf32>
    %c0_146 = arith.constant 0 : index
    %c2_147 = arith.constant 2 : index
    %242 = vector.load %arg3[%c0_146, %c2_147] : memref<1x482xf32, #tpu.memory_space<vmem>>, vector<1x450xf32>
    %243 = vector.broadcast %241 : vector<10x1xf32> to vector<10x450xf32>
    %244 = vector.broadcast %242 : vector<1x450xf32> to vector<10x450xf32>
    %245 = arith.mulf %243, %244 : vector<10x450xf32>
    %246 = arith.addf %239, %245 : vector<10x450xf32>
    %c10_148 = arith.constant 10 : index
    %c0_149 = arith.constant 0 : index
    %c0_150 = arith.constant 0 : index
    %247 = vector.load %arg4[%c10_148, %c0_149, %c0_150] : memref<25x10x1xf32, #tpu.memory_space<vmem>>, vector<1x10x1xf32>
    %248 = vector.shape_cast %247 : vector<1x10x1xf32> to vector<10x1xf32>
    %c0_151 = arith.constant 0 : index
    %c15_152 = arith.constant 15 : index
    %249 = vector.load %arg1[%c0_151, %c15_152] : memref<1x482xf32, #tpu.memory_space<vmem>>, vector<1x450xf32>
    %250 = vector.broadcast %248 : vector<10x1xf32> to vector<10x450xf32>
    %251 = vector.broadcast %249 : vector<1x450xf32> to vector<10x450xf32>
    %252 = arith.mulf %250, %251 : vector<10x450xf32>
    %253 = arith.addf %246, %252 : vector<10x450xf32>
    %c11_153 = arith.constant 11 : index
    %c0_154 = arith.constant 0 : index
    %c0_155 = arith.constant 0 : index
    %254 = vector.load %arg4[%c11_153, %c0_154, %c0_155] : memref<25x10x1xf32, #tpu.memory_space<vmem>>, vector<1x10x1xf32>
    %255 = vector.shape_cast %254 : vector<1x10x1xf32> to vector<10x1xf32>
    %c0_156 = arith.constant 0 : index
    %c16_157 = arith.constant 16 : index
    %256 = vector.load %arg0[%c0_156, %c16_157] : memref<1x482xf32, #tpu.memory_space<vmem>>, vector<1x450xf32>
    %257 = vector.broadcast %255 : vector<10x1xf32> to vector<10x450xf32>
    %258 = vector.broadcast %256 : vector<1x450xf32> to vector<10x450xf32>
    %259 = arith.mulf %257, %258 : vector<10x450xf32>
    %260 = arith.addf %253, %259 : vector<10x450xf32>
    %c12_158 = arith.constant 12 : index
    %c0_159 = arith.constant 0 : index
    %c0_160 = arith.constant 0 : index
    %261 = vector.load %arg4[%c12_158, %c0_159, %c0_160] : memref<25x10x1xf32, #tpu.memory_space<vmem>>, vector<1x10x1xf32>
    %262 = vector.shape_cast %261 : vector<1x10x1xf32> to vector<10x1xf32>
    %c0_161 = arith.constant 0 : index
    %c16_162 = arith.constant 16 : index
    %263 = vector.load %arg1[%c0_161, %c16_162] : memref<1x482xf32, #tpu.memory_space<vmem>>, vector<1x450xf32>
    %264 = vector.broadcast %262 : vector<10x1xf32> to vector<10x450xf32>
    %265 = vector.broadcast %263 : vector<1x450xf32> to vector<10x450xf32>
    %266 = arith.mulf %264, %265 : vector<10x450xf32>
    %267 = arith.addf %260, %266 : vector<10x450xf32>
    %c13_163 = arith.constant 13 : index
    %c0_164 = arith.constant 0 : index
    %c0_165 = arith.constant 0 : index
    %268 = vector.load %arg4[%c13_163, %c0_164, %c0_165] : memref<25x10x1xf32, #tpu.memory_space<vmem>>, vector<1x10x1xf32>
    %269 = vector.shape_cast %268 : vector<1x10x1xf32> to vector<10x1xf32>
    %c0_166 = arith.constant 0 : index
    %c17_167 = arith.constant 17 : index
    %270 = vector.load %arg0[%c0_166, %c17_167] : memref<1x482xf32, #tpu.memory_space<vmem>>, vector<1x450xf32>
    %271 = vector.broadcast %269 : vector<10x1xf32> to vector<10x450xf32>
    %272 = vector.broadcast %270 : vector<1x450xf32> to vector<10x450xf32>
    %273 = arith.mulf %271, %272 : vector<10x450xf32>
    %274 = arith.addf %267, %273 : vector<10x450xf32>
    %c14_168 = arith.constant 14 : index
    %c0_169 = arith.constant 0 : index
    %c0_170 = arith.constant 0 : index
    %275 = vector.load %arg4[%c14_168, %c0_169, %c0_170] : memref<25x10x1xf32, #tpu.memory_space<vmem>>, vector<1x10x1xf32>
    %276 = vector.shape_cast %275 : vector<1x10x1xf32> to vector<10x1xf32>
    %c0_171 = arith.constant 0 : index
    %c17_172 = arith.constant 17 : index
    %277 = vector.load %arg1[%c0_171, %c17_172] : memref<1x482xf32, #tpu.memory_space<vmem>>, vector<1x450xf32>
    %278 = vector.broadcast %276 : vector<10x1xf32> to vector<10x450xf32>
    %279 = vector.broadcast %277 : vector<1x450xf32> to vector<10x450xf32>
    %280 = arith.mulf %278, %279 : vector<10x450xf32>
    %281 = arith.addf %274, %280 : vector<10x450xf32>
    %c15_173 = arith.constant 15 : index
    %c0_174 = arith.constant 0 : index
    %c0_175 = arith.constant 0 : index
    %282 = vector.load %arg4[%c15_173, %c0_174, %c0_175] : memref<25x10x1xf32, #tpu.memory_space<vmem>>, vector<1x10x1xf32>
    %283 = vector.shape_cast %282 : vector<1x10x1xf32> to vector<10x1xf32>
    %c0_176 = arith.constant 0 : index
    %c15_177 = arith.constant 15 : index
    %284 = vector.load %arg3[%c0_176, %c15_177] : memref<1x482xf32, #tpu.memory_space<vmem>>, vector<1x450xf32>
    %285 = vector.broadcast %283 : vector<10x1xf32> to vector<10x450xf32>
    %286 = vector.broadcast %284 : vector<1x450xf32> to vector<10x450xf32>
    %287 = arith.mulf %285, %286 : vector<10x450xf32>
    %288 = arith.addf %281, %287 : vector<10x450xf32>
    %c16_178 = arith.constant 16 : index
    %c0_179 = arith.constant 0 : index
    %c0_180 = arith.constant 0 : index
    %289 = vector.load %arg4[%c16_178, %c0_179, %c0_180] : memref<25x10x1xf32, #tpu.memory_space<vmem>>, vector<1x10x1xf32>
    %290 = vector.shape_cast %289 : vector<1x10x1xf32> to vector<10x1xf32>
    %c0_181 = arith.constant 0 : index
    %c16_182 = arith.constant 16 : index
    %291 = vector.load %arg2[%c0_181, %c16_182] : memref<1x482xf32, #tpu.memory_space<vmem>>, vector<1x450xf32>
    %292 = vector.broadcast %290 : vector<10x1xf32> to vector<10x450xf32>
    %293 = vector.broadcast %291 : vector<1x450xf32> to vector<10x450xf32>
    %294 = arith.mulf %292, %293 : vector<10x450xf32>
    %295 = arith.addf %288, %294 : vector<10x450xf32>
    %c17_183 = arith.constant 17 : index
    %c0_184 = arith.constant 0 : index
    %c0_185 = arith.constant 0 : index
    %296 = vector.load %arg4[%c17_183, %c0_184, %c0_185] : memref<25x10x1xf32, #tpu.memory_space<vmem>>, vector<1x10x1xf32>
    %297 = vector.shape_cast %296 : vector<1x10x1xf32> to vector<10x1xf32>
    %c0_186 = arith.constant 0 : index
    %c16_187 = arith.constant 16 : index
    %298 = vector.load %arg3[%c0_186, %c16_187] : memref<1x482xf32, #tpu.memory_space<vmem>>, vector<1x450xf32>
    %299 = vector.broadcast %297 : vector<10x1xf32> to vector<10x450xf32>
    %300 = vector.broadcast %298 : vector<1x450xf32> to vector<10x450xf32>
    %301 = arith.mulf %299, %300 : vector<10x450xf32>
    %302 = arith.addf %295, %301 : vector<10x450xf32>
    %c18_188 = arith.constant 18 : index
    %c0_189 = arith.constant 0 : index
    %c0_190 = arith.constant 0 : index
    %303 = vector.load %arg4[%c18_188, %c0_189, %c0_190] : memref<25x10x1xf32, #tpu.memory_space<vmem>>, vector<1x10x1xf32>
    %304 = vector.shape_cast %303 : vector<1x10x1xf32> to vector<10x1xf32>
    %c0_191 = arith.constant 0 : index
    %c17_192 = arith.constant 17 : index
    %305 = vector.load %arg2[%c0_191, %c17_192] : memref<1x482xf32, #tpu.memory_space<vmem>>, vector<1x450xf32>
    %306 = vector.broadcast %304 : vector<10x1xf32> to vector<10x450xf32>
    %307 = vector.broadcast %305 : vector<1x450xf32> to vector<10x450xf32>
    %308 = arith.mulf %306, %307 : vector<10x450xf32>
    %309 = arith.addf %302, %308 : vector<10x450xf32>
    %c19_193 = arith.constant 19 : index
    %c0_194 = arith.constant 0 : index
    %c0_195 = arith.constant 0 : index
    %310 = vector.load %arg4[%c19_193, %c0_194, %c0_195] : memref<25x10x1xf32, #tpu.memory_space<vmem>>, vector<1x10x1xf32>
    %311 = vector.shape_cast %310 : vector<1x10x1xf32> to vector<10x1xf32>
    %c0_196 = arith.constant 0 : index
    %c17_197 = arith.constant 17 : index
    %312 = vector.load %arg3[%c0_196, %c17_197] : memref<1x482xf32, #tpu.memory_space<vmem>>, vector<1x450xf32>
    %313 = vector.broadcast %311 : vector<10x1xf32> to vector<10x450xf32>
    %314 = vector.broadcast %312 : vector<1x450xf32> to vector<10x450xf32>
    %315 = arith.mulf %313, %314 : vector<10x450xf32>
    %316 = arith.addf %309, %315 : vector<10x450xf32>
    %c20_198 = arith.constant 20 : index
    %c0_199 = arith.constant 0 : index
    %c0_200 = arith.constant 0 : index
    %317 = vector.load %arg4[%c20_198, %c0_199, %c0_200] : memref<25x10x1xf32, #tpu.memory_space<vmem>>, vector<1x10x1xf32>
    %318 = vector.shape_cast %317 : vector<1x10x1xf32> to vector<10x1xf32>
    %c0_201 = arith.constant 0 : index
    %c30_202 = arith.constant 30 : index
    %319 = vector.load %arg1[%c0_201, %c30_202] : memref<1x482xf32, #tpu.memory_space<vmem>>, vector<1x450xf32>
    %320 = vector.broadcast %318 : vector<10x1xf32> to vector<10x450xf32>
    %321 = vector.broadcast %319 : vector<1x450xf32> to vector<10x450xf32>
    %322 = arith.mulf %320, %321 : vector<10x450xf32>
    %323 = arith.addf %316, %322 : vector<10x450xf32>
    %c21_203 = arith.constant 21 : index
    %c0_204 = arith.constant 0 : index
    %c0_205 = arith.constant 0 : index
    %324 = vector.load %arg4[%c21_203, %c0_204, %c0_205] : memref<25x10x1xf32, #tpu.memory_space<vmem>>, vector<1x10x1xf32>
    %325 = vector.shape_cast %324 : vector<1x10x1xf32> to vector<10x1xf32>
    %c0_206 = arith.constant 0 : index
    %c31_207 = arith.constant 31 : index
    %326 = vector.load %arg0[%c0_206, %c31_207] : memref<1x482xf32, #tpu.memory_space<vmem>>, vector<1x450xf32>
    %327 = vector.broadcast %325 : vector<10x1xf32> to vector<10x450xf32>
    %328 = vector.broadcast %326 : vector<1x450xf32> to vector<10x450xf32>
    %329 = arith.mulf %327, %328 : vector<10x450xf32>
    %330 = arith.addf %323, %329 : vector<10x450xf32>
    %c22_208 = arith.constant 22 : index
    %c0_209 = arith.constant 0 : index
    %c0_210 = arith.constant 0 : index
    %331 = vector.load %arg4[%c22_208, %c0_209, %c0_210] : memref<25x10x1xf32, #tpu.memory_space<vmem>>, vector<1x10x1xf32>
    %332 = vector.shape_cast %331 : vector<1x10x1xf32> to vector<10x1xf32>
    %c0_211 = arith.constant 0 : index
    %c31_212 = arith.constant 31 : index
    %333 = vector.load %arg1[%c0_211, %c31_212] : memref<1x482xf32, #tpu.memory_space<vmem>>, vector<1x450xf32>
    %334 = vector.broadcast %332 : vector<10x1xf32> to vector<10x450xf32>
    %335 = vector.broadcast %333 : vector<1x450xf32> to vector<10x450xf32>
    %336 = arith.mulf %334, %335 : vector<10x450xf32>
    %337 = arith.addf %330, %336 : vector<10x450xf32>
    %c23_213 = arith.constant 23 : index
    %c0_214 = arith.constant 0 : index
    %c0_215 = arith.constant 0 : index
    %338 = vector.load %arg4[%c23_213, %c0_214, %c0_215] : memref<25x10x1xf32, #tpu.memory_space<vmem>>, vector<1x10x1xf32>
    %339 = vector.shape_cast %338 : vector<1x10x1xf32> to vector<10x1xf32>
    %c0_216 = arith.constant 0 : index
    %c32_217 = arith.constant 32 : index
    %340 = vector.load %arg0[%c0_216, %c32_217] : memref<1x482xf32, #tpu.memory_space<vmem>>, vector<1x450xf32>
    %341 = vector.broadcast %339 : vector<10x1xf32> to vector<10x450xf32>
    %342 = vector.broadcast %340 : vector<1x450xf32> to vector<10x450xf32>
    %343 = arith.mulf %341, %342 : vector<10x450xf32>
    %344 = arith.addf %337, %343 : vector<10x450xf32>
    %c24_218 = arith.constant 24 : index
    %c0_219 = arith.constant 0 : index
    %c0_220 = arith.constant 0 : index
    %345 = vector.load %arg4[%c24_218, %c0_219, %c0_220] : memref<25x10x1xf32, #tpu.memory_space<vmem>>, vector<1x10x1xf32>
    %346 = vector.shape_cast %345 : vector<1x10x1xf32> to vector<10x1xf32>
    %c0_221 = arith.constant 0 : index
    %c32_222 = arith.constant 32 : index
    %347 = vector.load %arg1[%c0_221, %c32_222] : memref<1x482xf32, #tpu.memory_space<vmem>>, vector<1x450xf32>
    %348 = vector.broadcast %346 : vector<10x1xf32> to vector<10x450xf32>
    %349 = vector.broadcast %347 : vector<1x450xf32> to vector<10x450xf32>
    %350 = arith.mulf %348, %349 : vector<10x450xf32>
    %351 = arith.addf %344, %350 : vector<10x450xf32>
    %352 = arith.maximumf %175, %351 : vector<10x450xf32>
    %cst_223 = arith.constant 0.000000e+00 : f32
    %353 = vector.broadcast %cst_223 : f32 to vector<10x450xf32>
    %c0_224 = arith.constant 0 : index
    %c0_225 = arith.constant 0 : index
    %c0_226 = arith.constant 0 : index
    %354 = vector.load %arg4[%c0_224, %c0_225, %c0_226] : memref<25x10x1xf32, #tpu.memory_space<vmem>>, vector<1x10x1xf32>
    %355 = vector.shape_cast %354 : vector<1x10x1xf32> to vector<10x1xf32>
    %c0_227 = arith.constant 0 : index
    %c0_228 = arith.constant 0 : index
    %356 = vector.load %arg2[%c0_227, %c0_228] : memref<1x482xf32, #tpu.memory_space<vmem>>, vector<1x450xf32>
    %357 = vector.broadcast %355 : vector<10x1xf32> to vector<10x450xf32>
    %358 = vector.broadcast %356 : vector<1x450xf32> to vector<10x450xf32>
    %359 = arith.mulf %357, %358 : vector<10x450xf32>
    %360 = arith.addf %353, %359 : vector<10x450xf32>
    %c1_229 = arith.constant 1 : index
    %c0_230 = arith.constant 0 : index
    %c0_231 = arith.constant 0 : index
    %361 = vector.load %arg4[%c1_229, %c0_230, %c0_231] : memref<25x10x1xf32, #tpu.memory_space<vmem>>, vector<1x10x1xf32>
    %362 = vector.shape_cast %361 : vector<1x10x1xf32> to vector<10x1xf32>
    %c0_232 = arith.constant 0 : index
    %c0_233 = arith.constant 0 : index
    %363 = vector.load %arg3[%c0_232, %c0_233] : memref<1x482xf32, #tpu.memory_space<vmem>>, vector<1x450xf32>
    %364 = vector.broadcast %362 : vector<10x1xf32> to vector<10x450xf32>
    %365 = vector.broadcast %363 : vector<1x450xf32> to vector<10x450xf32>
    %366 = arith.mulf %364, %365 : vector<10x450xf32>
    %367 = arith.addf %360, %366 : vector<10x450xf32>
    %c2_234 = arith.constant 2 : index
    %c0_235 = arith.constant 0 : index
    %c0_236 = arith.constant 0 : index
    %368 = vector.load %arg4[%c2_234, %c0_235, %c0_236] : memref<25x10x1xf32, #tpu.memory_space<vmem>>, vector<1x10x1xf32>
    %369 = vector.shape_cast %368 : vector<1x10x1xf32> to vector<10x1xf32>
    %c0_237 = arith.constant 0 : index
    %c1_238 = arith.constant 1 : index
    %370 = vector.load %arg2[%c0_237, %c1_238] : memref<1x482xf32, #tpu.memory_space<vmem>>, vector<1x450xf32>
    %371 = vector.broadcast %369 : vector<10x1xf32> to vector<10x450xf32>
    %372 = vector.broadcast %370 : vector<1x450xf32> to vector<10x450xf32>
    %373 = arith.mulf %371, %372 : vector<10x450xf32>
    %374 = arith.addf %367, %373 : vector<10x450xf32>
    %c3_239 = arith.constant 3 : index
    %c0_240 = arith.constant 0 : index
    %c0_241 = arith.constant 0 : index
    %375 = vector.load %arg4[%c3_239, %c0_240, %c0_241] : memref<25x10x1xf32, #tpu.memory_space<vmem>>, vector<1x10x1xf32>
    %376 = vector.shape_cast %375 : vector<1x10x1xf32> to vector<10x1xf32>
    %c0_242 = arith.constant 0 : index
    %c1_243 = arith.constant 1 : index
    %377 = vector.load %arg3[%c0_242, %c1_243] : memref<1x482xf32, #tpu.memory_space<vmem>>, vector<1x450xf32>
    %378 = vector.broadcast %376 : vector<10x1xf32> to vector<10x450xf32>
    %379 = vector.broadcast %377 : vector<1x450xf32> to vector<10x450xf32>
    %380 = arith.mulf %378, %379 : vector<10x450xf32>
    %381 = arith.addf %374, %380 : vector<10x450xf32>
    %c4_244 = arith.constant 4 : index
    %c0_245 = arith.constant 0 : index
    %c0_246 = arith.constant 0 : index
    %382 = vector.load %arg4[%c4_244, %c0_245, %c0_246] : memref<25x10x1xf32, #tpu.memory_space<vmem>>, vector<1x10x1xf32>
    %383 = vector.shape_cast %382 : vector<1x10x1xf32> to vector<10x1xf32>
    %c0_247 = arith.constant 0 : index
    %c2_248 = arith.constant 2 : index
    %384 = vector.load %arg2[%c0_247, %c2_248] : memref<1x482xf32, #tpu.memory_space<vmem>>, vector<1x450xf32>
    %385 = vector.broadcast %383 : vector<10x1xf32> to vector<10x450xf32>
    %386 = vector.broadcast %384 : vector<1x450xf32> to vector<10x450xf32>
    %387 = arith.mulf %385, %386 : vector<10x450xf32>
    %388 = arith.addf %381, %387 : vector<10x450xf32>
    %c5_249 = arith.constant 5 : index
    %c0_250 = arith.constant 0 : index
    %c0_251 = arith.constant 0 : index
    %389 = vector.load %arg4[%c5_249, %c0_250, %c0_251] : memref<25x10x1xf32, #tpu.memory_space<vmem>>, vector<1x10x1xf32>
    %390 = vector.shape_cast %389 : vector<1x10x1xf32> to vector<10x1xf32>
    %c0_252 = arith.constant 0 : index
    %c15_253 = arith.constant 15 : index
    %391 = vector.load %arg0[%c0_252, %c15_253] : memref<1x482xf32, #tpu.memory_space<vmem>>, vector<1x450xf32>
    %392 = vector.broadcast %390 : vector<10x1xf32> to vector<10x450xf32>
    %393 = vector.broadcast %391 : vector<1x450xf32> to vector<10x450xf32>
    %394 = arith.mulf %392, %393 : vector<10x450xf32>
    %395 = arith.addf %388, %394 : vector<10x450xf32>
    %c6_254 = arith.constant 6 : index
    %c0_255 = arith.constant 0 : index
    %c0_256 = arith.constant 0 : index
    %396 = vector.load %arg4[%c6_254, %c0_255, %c0_256] : memref<25x10x1xf32, #tpu.memory_space<vmem>>, vector<1x10x1xf32>
    %397 = vector.shape_cast %396 : vector<1x10x1xf32> to vector<10x1xf32>
    %c0_257 = arith.constant 0 : index
    %c15_258 = arith.constant 15 : index
    %398 = vector.load %arg1[%c0_257, %c15_258] : memref<1x482xf32, #tpu.memory_space<vmem>>, vector<1x450xf32>
    %399 = vector.broadcast %397 : vector<10x1xf32> to vector<10x450xf32>
    %400 = vector.broadcast %398 : vector<1x450xf32> to vector<10x450xf32>
    %401 = arith.mulf %399, %400 : vector<10x450xf32>
    %402 = arith.addf %395, %401 : vector<10x450xf32>
    %c7_259 = arith.constant 7 : index
    %c0_260 = arith.constant 0 : index
    %c0_261 = arith.constant 0 : index
    %403 = vector.load %arg4[%c7_259, %c0_260, %c0_261] : memref<25x10x1xf32, #tpu.memory_space<vmem>>, vector<1x10x1xf32>
    %404 = vector.shape_cast %403 : vector<1x10x1xf32> to vector<10x1xf32>
    %c0_262 = arith.constant 0 : index
    %c16_263 = arith.constant 16 : index
    %405 = vector.load %arg0[%c0_262, %c16_263] : memref<1x482xf32, #tpu.memory_space<vmem>>, vector<1x450xf32>
    %406 = vector.broadcast %404 : vector<10x1xf32> to vector<10x450xf32>
    %407 = vector.broadcast %405 : vector<1x450xf32> to vector<10x450xf32>
    %408 = arith.mulf %406, %407 : vector<10x450xf32>
    %409 = arith.addf %402, %408 : vector<10x450xf32>
    %c8_264 = arith.constant 8 : index
    %c0_265 = arith.constant 0 : index
    %c0_266 = arith.constant 0 : index
    %410 = vector.load %arg4[%c8_264, %c0_265, %c0_266] : memref<25x10x1xf32, #tpu.memory_space<vmem>>, vector<1x10x1xf32>
    %411 = vector.shape_cast %410 : vector<1x10x1xf32> to vector<10x1xf32>
    %c0_267 = arith.constant 0 : index
    %c16_268 = arith.constant 16 : index
    %412 = vector.load %arg1[%c0_267, %c16_268] : memref<1x482xf32, #tpu.memory_space<vmem>>, vector<1x450xf32>
    %413 = vector.broadcast %411 : vector<10x1xf32> to vector<10x450xf32>
    %414 = vector.broadcast %412 : vector<1x450xf32> to vector<10x450xf32>
    %415 = arith.mulf %413, %414 : vector<10x450xf32>
    %416 = arith.addf %409, %415 : vector<10x450xf32>
    %c9_269 = arith.constant 9 : index
    %c0_270 = arith.constant 0 : index
    %c0_271 = arith.constant 0 : index
    %417 = vector.load %arg4[%c9_269, %c0_270, %c0_271] : memref<25x10x1xf32, #tpu.memory_space<vmem>>, vector<1x10x1xf32>
    %418 = vector.shape_cast %417 : vector<1x10x1xf32> to vector<10x1xf32>
    %c0_272 = arith.constant 0 : index
    %c17_273 = arith.constant 17 : index
    %419 = vector.load %arg0[%c0_272, %c17_273] : memref<1x482xf32, #tpu.memory_space<vmem>>, vector<1x450xf32>
    %420 = vector.broadcast %418 : vector<10x1xf32> to vector<10x450xf32>
    %421 = vector.broadcast %419 : vector<1x450xf32> to vector<10x450xf32>
    %422 = arith.mulf %420, %421 : vector<10x450xf32>
    %423 = arith.addf %416, %422 : vector<10x450xf32>
    %c10_274 = arith.constant 10 : index
    %c0_275 = arith.constant 0 : index
    %c0_276 = arith.constant 0 : index
    %424 = vector.load %arg4[%c10_274, %c0_275, %c0_276] : memref<25x10x1xf32, #tpu.memory_space<vmem>>, vector<1x10x1xf32>
    %425 = vector.shape_cast %424 : vector<1x10x1xf32> to vector<10x1xf32>
    %c0_277 = arith.constant 0 : index
    %c15_278 = arith.constant 15 : index
    %426 = vector.load %arg2[%c0_277, %c15_278] : memref<1x482xf32, #tpu.memory_space<vmem>>, vector<1x450xf32>
    %427 = vector.broadcast %425 : vector<10x1xf32> to vector<10x450xf32>
    %428 = vector.broadcast %426 : vector<1x450xf32> to vector<10x450xf32>
    %429 = arith.mulf %427, %428 : vector<10x450xf32>
    %430 = arith.addf %423, %429 : vector<10x450xf32>
    %c11_279 = arith.constant 11 : index
    %c0_280 = arith.constant 0 : index
    %c0_281 = arith.constant 0 : index
    %431 = vector.load %arg4[%c11_279, %c0_280, %c0_281] : memref<25x10x1xf32, #tpu.memory_space<vmem>>, vector<1x10x1xf32>
    %432 = vector.shape_cast %431 : vector<1x10x1xf32> to vector<10x1xf32>
    %c0_282 = arith.constant 0 : index
    %c15_283 = arith.constant 15 : index
    %433 = vector.load %arg3[%c0_282, %c15_283] : memref<1x482xf32, #tpu.memory_space<vmem>>, vector<1x450xf32>
    %434 = vector.broadcast %432 : vector<10x1xf32> to vector<10x450xf32>
    %435 = vector.broadcast %433 : vector<1x450xf32> to vector<10x450xf32>
    %436 = arith.mulf %434, %435 : vector<10x450xf32>
    %437 = arith.addf %430, %436 : vector<10x450xf32>
    %c12_284 = arith.constant 12 : index
    %c0_285 = arith.constant 0 : index
    %c0_286 = arith.constant 0 : index
    %438 = vector.load %arg4[%c12_284, %c0_285, %c0_286] : memref<25x10x1xf32, #tpu.memory_space<vmem>>, vector<1x10x1xf32>
    %439 = vector.shape_cast %438 : vector<1x10x1xf32> to vector<10x1xf32>
    %c0_287 = arith.constant 0 : index
    %c16_288 = arith.constant 16 : index
    %440 = vector.load %arg2[%c0_287, %c16_288] : memref<1x482xf32, #tpu.memory_space<vmem>>, vector<1x450xf32>
    %441 = vector.broadcast %439 : vector<10x1xf32> to vector<10x450xf32>
    %442 = vector.broadcast %440 : vector<1x450xf32> to vector<10x450xf32>
    %443 = arith.mulf %441, %442 : vector<10x450xf32>
    %444 = arith.addf %437, %443 : vector<10x450xf32>
    %c13_289 = arith.constant 13 : index
    %c0_290 = arith.constant 0 : index
    %c0_291 = arith.constant 0 : index
    %445 = vector.load %arg4[%c13_289, %c0_290, %c0_291] : memref<25x10x1xf32, #tpu.memory_space<vmem>>, vector<1x10x1xf32>
    %446 = vector.shape_cast %445 : vector<1x10x1xf32> to vector<10x1xf32>
    %c0_292 = arith.constant 0 : index
    %c16_293 = arith.constant 16 : index
    %447 = vector.load %arg3[%c0_292, %c16_293] : memref<1x482xf32, #tpu.memory_space<vmem>>, vector<1x450xf32>
    %448 = vector.broadcast %446 : vector<10x1xf32> to vector<10x450xf32>
    %449 = vector.broadcast %447 : vector<1x450xf32> to vector<10x450xf32>
    %450 = arith.mulf %448, %449 : vector<10x450xf32>
    %451 = arith.addf %444, %450 : vector<10x450xf32>
    %c14_294 = arith.constant 14 : index
    %c0_295 = arith.constant 0 : index
    %c0_296 = arith.constant 0 : index
    %452 = vector.load %arg4[%c14_294, %c0_295, %c0_296] : memref<25x10x1xf32, #tpu.memory_space<vmem>>, vector<1x10x1xf32>
    %453 = vector.shape_cast %452 : vector<1x10x1xf32> to vector<10x1xf32>
    %c0_297 = arith.constant 0 : index
    %c17_298 = arith.constant 17 : index
    %454 = vector.load %arg2[%c0_297, %c17_298] : memref<1x482xf32, #tpu.memory_space<vmem>>, vector<1x450xf32>
    %455 = vector.broadcast %453 : vector<10x1xf32> to vector<10x450xf32>
    %456 = vector.broadcast %454 : vector<1x450xf32> to vector<10x450xf32>
    %457 = arith.mulf %455, %456 : vector<10x450xf32>
    %458 = arith.addf %451, %457 : vector<10x450xf32>
    %c15_299 = arith.constant 15 : index
    %c0_300 = arith.constant 0 : index
    %c0_301 = arith.constant 0 : index
    %459 = vector.load %arg4[%c15_299, %c0_300, %c0_301] : memref<25x10x1xf32, #tpu.memory_space<vmem>>, vector<1x10x1xf32>
    %460 = vector.shape_cast %459 : vector<1x10x1xf32> to vector<10x1xf32>
    %c0_302 = arith.constant 0 : index
    %c30_303 = arith.constant 30 : index
    %461 = vector.load %arg0[%c0_302, %c30_303] : memref<1x482xf32, #tpu.memory_space<vmem>>, vector<1x450xf32>
    %462 = vector.broadcast %460 : vector<10x1xf32> to vector<10x450xf32>
    %463 = vector.broadcast %461 : vector<1x450xf32> to vector<10x450xf32>
    %464 = arith.mulf %462, %463 : vector<10x450xf32>
    %465 = arith.addf %458, %464 : vector<10x450xf32>
    %c16_304 = arith.constant 16 : index
    %c0_305 = arith.constant 0 : index
    %c0_306 = arith.constant 0 : index
    %466 = vector.load %arg4[%c16_304, %c0_305, %c0_306] : memref<25x10x1xf32, #tpu.memory_space<vmem>>, vector<1x10x1xf32>
    %467 = vector.shape_cast %466 : vector<1x10x1xf32> to vector<10x1xf32>
    %c0_307 = arith.constant 0 : index
    %c30_308 = arith.constant 30 : index
    %468 = vector.load %arg1[%c0_307, %c30_308] : memref<1x482xf32, #tpu.memory_space<vmem>>, vector<1x450xf32>
    %469 = vector.broadcast %467 : vector<10x1xf32> to vector<10x450xf32>
    %470 = vector.broadcast %468 : vector<1x450xf32> to vector<10x450xf32>
    %471 = arith.mulf %469, %470 : vector<10x450xf32>
    %472 = arith.addf %465, %471 : vector<10x450xf32>
    %c17_309 = arith.constant 17 : index
    %c0_310 = arith.constant 0 : index
    %c0_311 = arith.constant 0 : index
    %473 = vector.load %arg4[%c17_309, %c0_310, %c0_311] : memref<25x10x1xf32, #tpu.memory_space<vmem>>, vector<1x10x1xf32>
    %474 = vector.shape_cast %473 : vector<1x10x1xf32> to vector<10x1xf32>
    %c0_312 = arith.constant 0 : index
    %c31_313 = arith.constant 31 : index
    %475 = vector.load %arg0[%c0_312, %c31_313] : memref<1x482xf32, #tpu.memory_space<vmem>>, vector<1x450xf32>
    %476 = vector.broadcast %474 : vector<10x1xf32> to vector<10x450xf32>
    %477 = vector.broadcast %475 : vector<1x450xf32> to vector<10x450xf32>
    %478 = arith.mulf %476, %477 : vector<10x450xf32>
    %479 = arith.addf %472, %478 : vector<10x450xf32>
    %c18_314 = arith.constant 18 : index
    %c0_315 = arith.constant 0 : index
    %c0_316 = arith.constant 0 : index
    %480 = vector.load %arg4[%c18_314, %c0_315, %c0_316] : memref<25x10x1xf32, #tpu.memory_space<vmem>>, vector<1x10x1xf32>
    %481 = vector.shape_cast %480 : vector<1x10x1xf32> to vector<10x1xf32>
    %c0_317 = arith.constant 0 : index
    %c31_318 = arith.constant 31 : index
    %482 = vector.load %arg1[%c0_317, %c31_318] : memref<1x482xf32, #tpu.memory_space<vmem>>, vector<1x450xf32>
    %483 = vector.broadcast %481 : vector<10x1xf32> to vector<10x450xf32>
    %484 = vector.broadcast %482 : vector<1x450xf32> to vector<10x450xf32>
    %485 = arith.mulf %483, %484 : vector<10x450xf32>
    %486 = arith.addf %479, %485 : vector<10x450xf32>
    %c19_319 = arith.constant 19 : index
    %c0_320 = arith.constant 0 : index
    %c0_321 = arith.constant 0 : index
    %487 = vector.load %arg4[%c19_319, %c0_320, %c0_321] : memref<25x10x1xf32, #tpu.memory_space<vmem>>, vector<1x10x1xf32>
    %488 = vector.shape_cast %487 : vector<1x10x1xf32> to vector<10x1xf32>
    %c0_322 = arith.constant 0 : index
    %c32_323 = arith.constant 32 : index
    %489 = vector.load %arg0[%c0_322, %c32_323] : memref<1x482xf32, #tpu.memory_space<vmem>>, vector<1x450xf32>
    %490 = vector.broadcast %488 : vector<10x1xf32> to vector<10x450xf32>
    %491 = vector.broadcast %489 : vector<1x450xf32> to vector<10x450xf32>
    %492 = arith.mulf %490, %491 : vector<10x450xf32>
    %493 = arith.addf %486, %492 : vector<10x450xf32>
    %c20_324 = arith.constant 20 : index
    %c0_325 = arith.constant 0 : index
    %c0_326 = arith.constant 0 : index
    %494 = vector.load %arg4[%c20_324, %c0_325, %c0_326] : memref<25x10x1xf32, #tpu.memory_space<vmem>>, vector<1x10x1xf32>
    %495 = vector.shape_cast %494 : vector<1x10x1xf32> to vector<10x1xf32>
    %c0_327 = arith.constant 0 : index
    %c30_328 = arith.constant 30 : index
    %496 = vector.load %arg2[%c0_327, %c30_328] : memref<1x482xf32, #tpu.memory_space<vmem>>, vector<1x450xf32>
    %497 = vector.broadcast %495 : vector<10x1xf32> to vector<10x450xf32>
    %498 = vector.broadcast %496 : vector<1x450xf32> to vector<10x450xf32>
    %499 = arith.mulf %497, %498 : vector<10x450xf32>
    %500 = arith.addf %493, %499 : vector<10x450xf32>
    %c21_329 = arith.constant 21 : index
    %c0_330 = arith.constant 0 : index
    %c0_331 = arith.constant 0 : index
    %501 = vector.load %arg4[%c21_329, %c0_330, %c0_331] : memref<25x10x1xf32, #tpu.memory_space<vmem>>, vector<1x10x1xf32>
    %502 = vector.shape_cast %501 : vector<1x10x1xf32> to vector<10x1xf32>
    %c0_332 = arith.constant 0 : index
    %c30_333 = arith.constant 30 : index
    %503 = vector.load %arg3[%c0_332, %c30_333] : memref<1x482xf32, #tpu.memory_space<vmem>>, vector<1x450xf32>
    %504 = vector.broadcast %502 : vector<10x1xf32> to vector<10x450xf32>
    %505 = vector.broadcast %503 : vector<1x450xf32> to vector<10x450xf32>
    %506 = arith.mulf %504, %505 : vector<10x450xf32>
    %507 = arith.addf %500, %506 : vector<10x450xf32>
    %c22_334 = arith.constant 22 : index
    %c0_335 = arith.constant 0 : index
    %c0_336 = arith.constant 0 : index
    %508 = vector.load %arg4[%c22_334, %c0_335, %c0_336] : memref<25x10x1xf32, #tpu.memory_space<vmem>>, vector<1x10x1xf32>
    %509 = vector.shape_cast %508 : vector<1x10x1xf32> to vector<10x1xf32>
    %c0_337 = arith.constant 0 : index
    %c31_338 = arith.constant 31 : index
    %510 = vector.load %arg2[%c0_337, %c31_338] : memref<1x482xf32, #tpu.memory_space<vmem>>, vector<1x450xf32>
    %511 = vector.broadcast %509 : vector<10x1xf32> to vector<10x450xf32>
    %512 = vector.broadcast %510 : vector<1x450xf32> to vector<10x450xf32>
    %513 = arith.mulf %511, %512 : vector<10x450xf32>
    %514 = arith.addf %507, %513 : vector<10x450xf32>
    %c23_339 = arith.constant 23 : index
    %c0_340 = arith.constant 0 : index
    %c0_341 = arith.constant 0 : index
    %515 = vector.load %arg4[%c23_339, %c0_340, %c0_341] : memref<25x10x1xf32, #tpu.memory_space<vmem>>, vector<1x10x1xf32>
    %516 = vector.shape_cast %515 : vector<1x10x1xf32> to vector<10x1xf32>
    %c0_342 = arith.constant 0 : index
    %c31_343 = arith.constant 31 : index
    %517 = vector.load %arg3[%c0_342, %c31_343] : memref<1x482xf32, #tpu.memory_space<vmem>>, vector<1x450xf32>
    %518 = vector.broadcast %516 : vector<10x1xf32> to vector<10x450xf32>
    %519 = vector.broadcast %517 : vector<1x450xf32> to vector<10x450xf32>
    %520 = arith.mulf %518, %519 : vector<10x450xf32>
    %521 = arith.addf %514, %520 : vector<10x450xf32>
    %c24_344 = arith.constant 24 : index
    %c0_345 = arith.constant 0 : index
    %c0_346 = arith.constant 0 : index
    %522 = vector.load %arg4[%c24_344, %c0_345, %c0_346] : memref<25x10x1xf32, #tpu.memory_space<vmem>>, vector<1x10x1xf32>
    %523 = vector.shape_cast %522 : vector<1x10x1xf32> to vector<10x1xf32>
    %c0_347 = arith.constant 0 : index
    %c32_348 = arith.constant 32 : index
    %524 = vector.load %arg2[%c0_347, %c32_348] : memref<1x482xf32, #tpu.memory_space<vmem>>, vector<1x450xf32>
    %525 = vector.broadcast %523 : vector<10x1xf32> to vector<10x450xf32>
    %526 = vector.broadcast %524 : vector<1x450xf32> to vector<10x450xf32>
    %527 = arith.mulf %525, %526 : vector<10x450xf32>
    %528 = arith.addf %521, %527 : vector<10x450xf32>
    %529 = arith.maximumf %352, %528 : vector<10x450xf32>
    %cst_349 = arith.constant 0.000000e+00 : f32
    %530 = vector.broadcast %cst_349 : f32 to vector<10x450xf32>
    %c0_350 = arith.constant 0 : index
    %c0_351 = arith.constant 0 : index
    %c0_352 = arith.constant 0 : index
    %531 = vector.load %arg4[%c0_350, %c0_351, %c0_352] : memref<25x10x1xf32, #tpu.memory_space<vmem>>, vector<1x10x1xf32>
    %532 = vector.shape_cast %531 : vector<1x10x1xf32> to vector<10x1xf32>
    %c0_353 = arith.constant 0 : index
    %c0_354 = arith.constant 0 : index
    %533 = vector.load %arg3[%c0_353, %c0_354] : memref<1x482xf32, #tpu.memory_space<vmem>>, vector<1x450xf32>
    %534 = vector.broadcast %532 : vector<10x1xf32> to vector<10x450xf32>
    %535 = vector.broadcast %533 : vector<1x450xf32> to vector<10x450xf32>
    %536 = arith.mulf %534, %535 : vector<10x450xf32>
    %537 = arith.addf %530, %536 : vector<10x450xf32>
    %c1_355 = arith.constant 1 : index
    %c0_356 = arith.constant 0 : index
    %c0_357 = arith.constant 0 : index
    %538 = vector.load %arg4[%c1_355, %c0_356, %c0_357] : memref<25x10x1xf32, #tpu.memory_space<vmem>>, vector<1x10x1xf32>
    %539 = vector.shape_cast %538 : vector<1x10x1xf32> to vector<10x1xf32>
    %c0_358 = arith.constant 0 : index
    %c1_359 = arith.constant 1 : index
    %540 = vector.load %arg2[%c0_358, %c1_359] : memref<1x482xf32, #tpu.memory_space<vmem>>, vector<1x450xf32>
    %541 = vector.broadcast %539 : vector<10x1xf32> to vector<10x450xf32>
    %542 = vector.broadcast %540 : vector<1x450xf32> to vector<10x450xf32>
    %543 = arith.mulf %541, %542 : vector<10x450xf32>
    %544 = arith.addf %537, %543 : vector<10x450xf32>
    %c2_360 = arith.constant 2 : index
    %c0_361 = arith.constant 0 : index
    %c0_362 = arith.constant 0 : index
    %545 = vector.load %arg4[%c2_360, %c0_361, %c0_362] : memref<25x10x1xf32, #tpu.memory_space<vmem>>, vector<1x10x1xf32>
    %546 = vector.shape_cast %545 : vector<1x10x1xf32> to vector<10x1xf32>
    %c0_363 = arith.constant 0 : index
    %c1_364 = arith.constant 1 : index
    %547 = vector.load %arg3[%c0_363, %c1_364] : memref<1x482xf32, #tpu.memory_space<vmem>>, vector<1x450xf32>
    %548 = vector.broadcast %546 : vector<10x1xf32> to vector<10x450xf32>
    %549 = vector.broadcast %547 : vector<1x450xf32> to vector<10x450xf32>
    %550 = arith.mulf %548, %549 : vector<10x450xf32>
    %551 = arith.addf %544, %550 : vector<10x450xf32>
    %c3_365 = arith.constant 3 : index
    %c0_366 = arith.constant 0 : index
    %c0_367 = arith.constant 0 : index
    %552 = vector.load %arg4[%c3_365, %c0_366, %c0_367] : memref<25x10x1xf32, #tpu.memory_space<vmem>>, vector<1x10x1xf32>
    %553 = vector.shape_cast %552 : vector<1x10x1xf32> to vector<10x1xf32>
    %c0_368 = arith.constant 0 : index
    %c2_369 = arith.constant 2 : index
    %554 = vector.load %arg2[%c0_368, %c2_369] : memref<1x482xf32, #tpu.memory_space<vmem>>, vector<1x450xf32>
    %555 = vector.broadcast %553 : vector<10x1xf32> to vector<10x450xf32>
    %556 = vector.broadcast %554 : vector<1x450xf32> to vector<10x450xf32>
    %557 = arith.mulf %555, %556 : vector<10x450xf32>
    %558 = arith.addf %551, %557 : vector<10x450xf32>
    %c4_370 = arith.constant 4 : index
    %c0_371 = arith.constant 0 : index
    %c0_372 = arith.constant 0 : index
    %559 = vector.load %arg4[%c4_370, %c0_371, %c0_372] : memref<25x10x1xf32, #tpu.memory_space<vmem>>, vector<1x10x1xf32>
    %560 = vector.shape_cast %559 : vector<1x10x1xf32> to vector<10x1xf32>
    %c0_373 = arith.constant 0 : index
    %c2_374 = arith.constant 2 : index
    %561 = vector.load %arg3[%c0_373, %c2_374] : memref<1x482xf32, #tpu.memory_space<vmem>>, vector<1x450xf32>
    %562 = vector.broadcast %560 : vector<10x1xf32> to vector<10x450xf32>
    %563 = vector.broadcast %561 : vector<1x450xf32> to vector<10x450xf32>
    %564 = arith.mulf %562, %563 : vector<10x450xf32>
    %565 = arith.addf %558, %564 : vector<10x450xf32>
    %c5_375 = arith.constant 5 : index
    %c0_376 = arith.constant 0 : index
    %c0_377 = arith.constant 0 : index
    %566 = vector.load %arg4[%c5_375, %c0_376, %c0_377] : memref<25x10x1xf32, #tpu.memory_space<vmem>>, vector<1x10x1xf32>
    %567 = vector.shape_cast %566 : vector<1x10x1xf32> to vector<10x1xf32>
    %c0_378 = arith.constant 0 : index
    %c15_379 = arith.constant 15 : index
    %568 = vector.load %arg1[%c0_378, %c15_379] : memref<1x482xf32, #tpu.memory_space<vmem>>, vector<1x450xf32>
    %569 = vector.broadcast %567 : vector<10x1xf32> to vector<10x450xf32>
    %570 = vector.broadcast %568 : vector<1x450xf32> to vector<10x450xf32>
    %571 = arith.mulf %569, %570 : vector<10x450xf32>
    %572 = arith.addf %565, %571 : vector<10x450xf32>
    %c6_380 = arith.constant 6 : index
    %c0_381 = arith.constant 0 : index
    %c0_382 = arith.constant 0 : index
    %573 = vector.load %arg4[%c6_380, %c0_381, %c0_382] : memref<25x10x1xf32, #tpu.memory_space<vmem>>, vector<1x10x1xf32>
    %574 = vector.shape_cast %573 : vector<1x10x1xf32> to vector<10x1xf32>
    %c0_383 = arith.constant 0 : index
    %c16_384 = arith.constant 16 : index
    %575 = vector.load %arg0[%c0_383, %c16_384] : memref<1x482xf32, #tpu.memory_space<vmem>>, vector<1x450xf32>
    %576 = vector.broadcast %574 : vector<10x1xf32> to vector<10x450xf32>
    %577 = vector.broadcast %575 : vector<1x450xf32> to vector<10x450xf32>
    %578 = arith.mulf %576, %577 : vector<10x450xf32>
    %579 = arith.addf %572, %578 : vector<10x450xf32>
    %c7_385 = arith.constant 7 : index
    %c0_386 = arith.constant 0 : index
    %c0_387 = arith.constant 0 : index
    %580 = vector.load %arg4[%c7_385, %c0_386, %c0_387] : memref<25x10x1xf32, #tpu.memory_space<vmem>>, vector<1x10x1xf32>
    %581 = vector.shape_cast %580 : vector<1x10x1xf32> to vector<10x1xf32>
    %c0_388 = arith.constant 0 : index
    %c16_389 = arith.constant 16 : index
    %582 = vector.load %arg1[%c0_388, %c16_389] : memref<1x482xf32, #tpu.memory_space<vmem>>, vector<1x450xf32>
    %583 = vector.broadcast %581 : vector<10x1xf32> to vector<10x450xf32>
    %584 = vector.broadcast %582 : vector<1x450xf32> to vector<10x450xf32>
    %585 = arith.mulf %583, %584 : vector<10x450xf32>
    %586 = arith.addf %579, %585 : vector<10x450xf32>
    %c8_390 = arith.constant 8 : index
    %c0_391 = arith.constant 0 : index
    %c0_392 = arith.constant 0 : index
    %587 = vector.load %arg4[%c8_390, %c0_391, %c0_392] : memref<25x10x1xf32, #tpu.memory_space<vmem>>, vector<1x10x1xf32>
    %588 = vector.shape_cast %587 : vector<1x10x1xf32> to vector<10x1xf32>
    %c0_393 = arith.constant 0 : index
    %c17_394 = arith.constant 17 : index
    %589 = vector.load %arg0[%c0_393, %c17_394] : memref<1x482xf32, #tpu.memory_space<vmem>>, vector<1x450xf32>
    %590 = vector.broadcast %588 : vector<10x1xf32> to vector<10x450xf32>
    %591 = vector.broadcast %589 : vector<1x450xf32> to vector<10x450xf32>
    %592 = arith.mulf %590, %591 : vector<10x450xf32>
    %593 = arith.addf %586, %592 : vector<10x450xf32>
    %c9_395 = arith.constant 9 : index
    %c0_396 = arith.constant 0 : index
    %c0_397 = arith.constant 0 : index
    %594 = vector.load %arg4[%c9_395, %c0_396, %c0_397] : memref<25x10x1xf32, #tpu.memory_space<vmem>>, vector<1x10x1xf32>
    %595 = vector.shape_cast %594 : vector<1x10x1xf32> to vector<10x1xf32>
    %c0_398 = arith.constant 0 : index
    %c17_399 = arith.constant 17 : index
    %596 = vector.load %arg1[%c0_398, %c17_399] : memref<1x482xf32, #tpu.memory_space<vmem>>, vector<1x450xf32>
    %597 = vector.broadcast %595 : vector<10x1xf32> to vector<10x450xf32>
    %598 = vector.broadcast %596 : vector<1x450xf32> to vector<10x450xf32>
    %599 = arith.mulf %597, %598 : vector<10x450xf32>
    %600 = arith.addf %593, %599 : vector<10x450xf32>
    %c10_400 = arith.constant 10 : index
    %c0_401 = arith.constant 0 : index
    %c0_402 = arith.constant 0 : index
    %601 = vector.load %arg4[%c10_400, %c0_401, %c0_402] : memref<25x10x1xf32, #tpu.memory_space<vmem>>, vector<1x10x1xf32>
    %602 = vector.shape_cast %601 : vector<1x10x1xf32> to vector<10x1xf32>
    %c0_403 = arith.constant 0 : index
    %c15_404 = arith.constant 15 : index
    %603 = vector.load %arg3[%c0_403, %c15_404] : memref<1x482xf32, #tpu.memory_space<vmem>>, vector<1x450xf32>
    %604 = vector.broadcast %602 : vector<10x1xf32> to vector<10x450xf32>
    %605 = vector.broadcast %603 : vector<1x450xf32> to vector<10x450xf32>
    %606 = arith.mulf %604, %605 : vector<10x450xf32>
    %607 = arith.addf %600, %606 : vector<10x450xf32>
    %c11_405 = arith.constant 11 : index
    %c0_406 = arith.constant 0 : index
    %c0_407 = arith.constant 0 : index
    %608 = vector.load %arg4[%c11_405, %c0_406, %c0_407] : memref<25x10x1xf32, #tpu.memory_space<vmem>>, vector<1x10x1xf32>
    %609 = vector.shape_cast %608 : vector<1x10x1xf32> to vector<10x1xf32>
    %c0_408 = arith.constant 0 : index
    %c16_409 = arith.constant 16 : index
    %610 = vector.load %arg2[%c0_408, %c16_409] : memref<1x482xf32, #tpu.memory_space<vmem>>, vector<1x450xf32>
    %611 = vector.broadcast %609 : vector<10x1xf32> to vector<10x450xf32>
    %612 = vector.broadcast %610 : vector<1x450xf32> to vector<10x450xf32>
    %613 = arith.mulf %611, %612 : vector<10x450xf32>
    %614 = arith.addf %607, %613 : vector<10x450xf32>
    %c12_410 = arith.constant 12 : index
    %c0_411 = arith.constant 0 : index
    %c0_412 = arith.constant 0 : index
    %615 = vector.load %arg4[%c12_410, %c0_411, %c0_412] : memref<25x10x1xf32, #tpu.memory_space<vmem>>, vector<1x10x1xf32>
    %616 = vector.shape_cast %615 : vector<1x10x1xf32> to vector<10x1xf32>
    %c0_413 = arith.constant 0 : index
    %c16_414 = arith.constant 16 : index
    %617 = vector.load %arg3[%c0_413, %c16_414] : memref<1x482xf32, #tpu.memory_space<vmem>>, vector<1x450xf32>
    %618 = vector.broadcast %616 : vector<10x1xf32> to vector<10x450xf32>
    %619 = vector.broadcast %617 : vector<1x450xf32> to vector<10x450xf32>
    %620 = arith.mulf %618, %619 : vector<10x450xf32>
    %621 = arith.addf %614, %620 : vector<10x450xf32>
    %c13_415 = arith.constant 13 : index
    %c0_416 = arith.constant 0 : index
    %c0_417 = arith.constant 0 : index
    %622 = vector.load %arg4[%c13_415, %c0_416, %c0_417] : memref<25x10x1xf32, #tpu.memory_space<vmem>>, vector<1x10x1xf32>
    %623 = vector.shape_cast %622 : vector<1x10x1xf32> to vector<10x1xf32>
    %c0_418 = arith.constant 0 : index
    %c17_419 = arith.constant 17 : index
    %624 = vector.load %arg2[%c0_418, %c17_419] : memref<1x482xf32, #tpu.memory_space<vmem>>, vector<1x450xf32>
    %625 = vector.broadcast %623 : vector<10x1xf32> to vector<10x450xf32>
    %626 = vector.broadcast %624 : vector<1x450xf32> to vector<10x450xf32>
    %627 = arith.mulf %625, %626 : vector<10x450xf32>
    %628 = arith.addf %621, %627 : vector<10x450xf32>
    %c14_420 = arith.constant 14 : index
    %c0_421 = arith.constant 0 : index
    %c0_422 = arith.constant 0 : index
    %629 = vector.load %arg4[%c14_420, %c0_421, %c0_422] : memref<25x10x1xf32, #tpu.memory_space<vmem>>, vector<1x10x1xf32>
    %630 = vector.shape_cast %629 : vector<1x10x1xf32> to vector<10x1xf32>
    %c0_423 = arith.constant 0 : index
    %c17_424 = arith.constant 17 : index
    %631 = vector.load %arg3[%c0_423, %c17_424] : memref<1x482xf32, #tpu.memory_space<vmem>>, vector<1x450xf32>
    %632 = vector.broadcast %630 : vector<10x1xf32> to vector<10x450xf32>
    %633 = vector.broadcast %631 : vector<1x450xf32> to vector<10x450xf32>
    %634 = arith.mulf %632, %633 : vector<10x450xf32>
    %635 = arith.addf %628, %634 : vector<10x450xf32>
    %c15_425 = arith.constant 15 : index
    %c0_426 = arith.constant 0 : index
    %c0_427 = arith.constant 0 : index
    %636 = vector.load %arg4[%c15_425, %c0_426, %c0_427] : memref<25x10x1xf32, #tpu.memory_space<vmem>>, vector<1x10x1xf32>
    %637 = vector.shape_cast %636 : vector<1x10x1xf32> to vector<10x1xf32>
    %c0_428 = arith.constant 0 : index
    %c30_429 = arith.constant 30 : index
    %638 = vector.load %arg1[%c0_428, %c30_429] : memref<1x482xf32, #tpu.memory_space<vmem>>, vector<1x450xf32>
    %639 = vector.broadcast %637 : vector<10x1xf32> to vector<10x450xf32>
    %640 = vector.broadcast %638 : vector<1x450xf32> to vector<10x450xf32>
    %641 = arith.mulf %639, %640 : vector<10x450xf32>
    %642 = arith.addf %635, %641 : vector<10x450xf32>
    %c16_430 = arith.constant 16 : index
    %c0_431 = arith.constant 0 : index
    %c0_432 = arith.constant 0 : index
    %643 = vector.load %arg4[%c16_430, %c0_431, %c0_432] : memref<25x10x1xf32, #tpu.memory_space<vmem>>, vector<1x10x1xf32>
    %644 = vector.shape_cast %643 : vector<1x10x1xf32> to vector<10x1xf32>
    %c0_433 = arith.constant 0 : index
    %c31_434 = arith.constant 31 : index
    %645 = vector.load %arg0[%c0_433, %c31_434] : memref<1x482xf32, #tpu.memory_space<vmem>>, vector<1x450xf32>
    %646 = vector.broadcast %644 : vector<10x1xf32> to vector<10x450xf32>
    %647 = vector.broadcast %645 : vector<1x450xf32> to vector<10x450xf32>
    %648 = arith.mulf %646, %647 : vector<10x450xf32>
    %649 = arith.addf %642, %648 : vector<10x450xf32>
    %c17_435 = arith.constant 17 : index
    %c0_436 = arith.constant 0 : index
    %c0_437 = arith.constant 0 : index
    %650 = vector.load %arg4[%c17_435, %c0_436, %c0_437] : memref<25x10x1xf32, #tpu.memory_space<vmem>>, vector<1x10x1xf32>
    %651 = vector.shape_cast %650 : vector<1x10x1xf32> to vector<10x1xf32>
    %c0_438 = arith.constant 0 : index
    %c31_439 = arith.constant 31 : index
    %652 = vector.load %arg1[%c0_438, %c31_439] : memref<1x482xf32, #tpu.memory_space<vmem>>, vector<1x450xf32>
    %653 = vector.broadcast %651 : vector<10x1xf32> to vector<10x450xf32>
    %654 = vector.broadcast %652 : vector<1x450xf32> to vector<10x450xf32>
    %655 = arith.mulf %653, %654 : vector<10x450xf32>
    %656 = arith.addf %649, %655 : vector<10x450xf32>
    %c18_440 = arith.constant 18 : index
    %c0_441 = arith.constant 0 : index
    %c0_442 = arith.constant 0 : index
    %657 = vector.load %arg4[%c18_440, %c0_441, %c0_442] : memref<25x10x1xf32, #tpu.memory_space<vmem>>, vector<1x10x1xf32>
    %658 = vector.shape_cast %657 : vector<1x10x1xf32> to vector<10x1xf32>
    %c0_443 = arith.constant 0 : index
    %c32_444 = arith.constant 32 : index
    %659 = vector.load %arg0[%c0_443, %c32_444] : memref<1x482xf32, #tpu.memory_space<vmem>>, vector<1x450xf32>
    %660 = vector.broadcast %658 : vector<10x1xf32> to vector<10x450xf32>
    %661 = vector.broadcast %659 : vector<1x450xf32> to vector<10x450xf32>
    %662 = arith.mulf %660, %661 : vector<10x450xf32>
    %663 = arith.addf %656, %662 : vector<10x450xf32>
    %c19_445 = arith.constant 19 : index
    %c0_446 = arith.constant 0 : index
    %c0_447 = arith.constant 0 : index
    %664 = vector.load %arg4[%c19_445, %c0_446, %c0_447] : memref<25x10x1xf32, #tpu.memory_space<vmem>>, vector<1x10x1xf32>
    %665 = vector.shape_cast %664 : vector<1x10x1xf32> to vector<10x1xf32>
    %c0_448 = arith.constant 0 : index
    %c32_449 = arith.constant 32 : index
    %666 = vector.load %arg1[%c0_448, %c32_449] : memref<1x482xf32, #tpu.memory_space<vmem>>, vector<1x450xf32>
    %667 = vector.broadcast %665 : vector<10x1xf32> to vector<10x450xf32>
    %668 = vector.broadcast %666 : vector<1x450xf32> to vector<10x450xf32>
    %669 = arith.mulf %667, %668 : vector<10x450xf32>
    %670 = arith.addf %663, %669 : vector<10x450xf32>
    %c20_450 = arith.constant 20 : index
    %c0_451 = arith.constant 0 : index
    %c0_452 = arith.constant 0 : index
    %671 = vector.load %arg4[%c20_450, %c0_451, %c0_452] : memref<25x10x1xf32, #tpu.memory_space<vmem>>, vector<1x10x1xf32>
    %672 = vector.shape_cast %671 : vector<1x10x1xf32> to vector<10x1xf32>
    %c0_453 = arith.constant 0 : index
    %c30_454 = arith.constant 30 : index
    %673 = vector.load %arg3[%c0_453, %c30_454] : memref<1x482xf32, #tpu.memory_space<vmem>>, vector<1x450xf32>
    %674 = vector.broadcast %672 : vector<10x1xf32> to vector<10x450xf32>
    %675 = vector.broadcast %673 : vector<1x450xf32> to vector<10x450xf32>
    %676 = arith.mulf %674, %675 : vector<10x450xf32>
    %677 = arith.addf %670, %676 : vector<10x450xf32>
    %c21_455 = arith.constant 21 : index
    %c0_456 = arith.constant 0 : index
    %c0_457 = arith.constant 0 : index
    %678 = vector.load %arg4[%c21_455, %c0_456, %c0_457] : memref<25x10x1xf32, #tpu.memory_space<vmem>>, vector<1x10x1xf32>
    %679 = vector.shape_cast %678 : vector<1x10x1xf32> to vector<10x1xf32>
    %c0_458 = arith.constant 0 : index
    %c31_459 = arith.constant 31 : index
    %680 = vector.load %arg2[%c0_458, %c31_459] : memref<1x482xf32, #tpu.memory_space<vmem>>, vector<1x450xf32>
    %681 = vector.broadcast %679 : vector<10x1xf32> to vector<10x450xf32>
    %682 = vector.broadcast %680 : vector<1x450xf32> to vector<10x450xf32>
    %683 = arith.mulf %681, %682 : vector<10x450xf32>
    %684 = arith.addf %677, %683 : vector<10x450xf32>
    %c22_460 = arith.constant 22 : index
    %c0_461 = arith.constant 0 : index
    %c0_462 = arith.constant 0 : index
    %685 = vector.load %arg4[%c22_460, %c0_461, %c0_462] : memref<25x10x1xf32, #tpu.memory_space<vmem>>, vector<1x10x1xf32>
    %686 = vector.shape_cast %685 : vector<1x10x1xf32> to vector<10x1xf32>
    %c0_463 = arith.constant 0 : index
    %c31_464 = arith.constant 31 : index
    %687 = vector.load %arg3[%c0_463, %c31_464] : memref<1x482xf32, #tpu.memory_space<vmem>>, vector<1x450xf32>
    %688 = vector.broadcast %686 : vector<10x1xf32> to vector<10x450xf32>
    %689 = vector.broadcast %687 : vector<1x450xf32> to vector<10x450xf32>
    %690 = arith.mulf %688, %689 : vector<10x450xf32>
    %691 = arith.addf %684, %690 : vector<10x450xf32>
    %c23_465 = arith.constant 23 : index
    %c0_466 = arith.constant 0 : index
    %c0_467 = arith.constant 0 : index
    %692 = vector.load %arg4[%c23_465, %c0_466, %c0_467] : memref<25x10x1xf32, #tpu.memory_space<vmem>>, vector<1x10x1xf32>
    %693 = vector.shape_cast %692 : vector<1x10x1xf32> to vector<10x1xf32>
    %c0_468 = arith.constant 0 : index
    %c32_469 = arith.constant 32 : index
    %694 = vector.load %arg2[%c0_468, %c32_469] : memref<1x482xf32, #tpu.memory_space<vmem>>, vector<1x450xf32>
    %695 = vector.broadcast %693 : vector<10x1xf32> to vector<10x450xf32>
    %696 = vector.broadcast %694 : vector<1x450xf32> to vector<10x450xf32>
    %697 = arith.mulf %695, %696 : vector<10x450xf32>
    %698 = arith.addf %691, %697 : vector<10x450xf32>
    %c24_470 = arith.constant 24 : index
    %c0_471 = arith.constant 0 : index
    %c0_472 = arith.constant 0 : index
    %699 = vector.load %arg4[%c24_470, %c0_471, %c0_472] : memref<25x10x1xf32, #tpu.memory_space<vmem>>, vector<1x10x1xf32>
    %700 = vector.shape_cast %699 : vector<1x10x1xf32> to vector<10x1xf32>
    %c0_473 = arith.constant 0 : index
    %c32_474 = arith.constant 32 : index
    %701 = vector.load %arg3[%c0_473, %c32_474] : memref<1x482xf32, #tpu.memory_space<vmem>>, vector<1x450xf32>
    %702 = vector.broadcast %700 : vector<10x1xf32> to vector<10x450xf32>
    %703 = vector.broadcast %701 : vector<1x450xf32> to vector<10x450xf32>
    %704 = arith.mulf %702, %703 : vector<10x450xf32>
    %705 = arith.addf %698, %704 : vector<10x450xf32>
    %706 = arith.maximumf %529, %705 : vector<10x450xf32>
    %c0_475 = arith.constant 0 : index
    %c0_476 = arith.constant 0 : index
    %707 = vector.load %arg5[%c0_475, %c0_476] : memref<10x1xf32, #tpu.memory_space<vmem>>, vector<10x1xf32>
    %708 = vector.broadcast %707 : vector<10x1xf32> to vector<10x450xf32>
    %709 = arith.addf %706, %708 : vector<10x450xf32>
    %cst_477 = arith.constant 0.000000e+00 : f32
    %710 = vector.broadcast %cst_477 : f32 to vector<10x450xf32>
    %711 = arith.maximumf %709, %710 : vector<10x450xf32>
    %712 = arith.truncf %711 : vector<10x450xf32> to vector<10x450xbf16>
    %c0_478 = arith.constant 0 : index
    %c0_479 = arith.constant 0 : index
    %713 = vector.load %arg6[%c0_478, %c0_479] : memref<10x450xbf16, #tpu.memory_space<vmem>>, vector<10x450xbf16>
    tpu.vector_store %arg6[%c0_478, %c0_479], %712 {strides = array<i32>} : memref<10x450xbf16, #tpu.memory_space<vmem>>, vector<10x450xbf16>,
    return
  }
}

module attributes {stable_mosaic.version = 11 : i64} {
  func.func @_conv_pool_relu_kernel(%arg0: memref<10x146xbf16, #tpu.memory_space<vmem>>, %arg1: memref<10x146xbf16, #tpu.memory_space<vmem>>, %arg2: memref<10x146xbf16, #tpu.memory_space<vmem>>, %arg3: memref<10x146xbf16, #tpu.memory_space<vmem>>, %arg4: memref<25x10x10xbf16, #tpu.memory_space<vmem>>, %arg5: memref<10x1xf32, #tpu.memory_space<vmem>>, %arg6: memref<10x128xbf16, #tpu.memory_space<vmem>>) attributes {dimension_semantics = [], scalar_prefetch = 0 : i64, scratch_operands = 0 : i64, tpu.core_type = #tpu.core_type<tc>} {
    %cst = arith.constant 0.000000e+00 : f32
    %0 = vector.broadcast %cst : f32 to vector<10x128xf32>
    %c0 = arith.constant 0 : index
    %c0_0 = arith.constant 0 : index
    %c0_1 = arith.constant 0 : index
    %1 = vector.load %arg4[%c0, %c0_0, %c0_1] : memref<25x10x10xbf16, #tpu.memory_space<vmem>>, vector<1x10x10xbf16>
    %2 = vector.shape_cast %1 : vector<1x10x10xbf16> to vector<10x10xbf16>
    %c0_2 = arith.constant 0 : index
    %c0_3 = arith.constant 0 : index
    %3 = vector.load %arg0[%c0_2, %c0_3] : memref<10x146xbf16, #tpu.memory_space<vmem>>, vector<10x128xbf16>
    %cst_4 = arith.constant dense<0.000000e+00> : vector<10x128xf32>
    %4 = tpu.matmul %2, %3, %cst_4 {dimension_numbers = #tpu.dot_dimension_numbers<[1], [0], [0], [1], [0, 0, 1, 1], [], []>} : vector<10x10xbf16>, vector<10x128xbf16>, vector<10x128xf32> -> vector<10x128xf32>
    %5 = arith.addf %0, %4 : vector<10x128xf32>
    %c1 = arith.constant 1 : index
    %c0_5 = arith.constant 0 : index
    %c0_6 = arith.constant 0 : index
    %6 = vector.load %arg4[%c1, %c0_5, %c0_6] : memref<25x10x10xbf16, #tpu.memory_space<vmem>>, vector<1x10x10xbf16>
    %7 = vector.shape_cast %6 : vector<1x10x10xbf16> to vector<10x10xbf16>
    %c0_7 = arith.constant 0 : index
    %c0_8 = arith.constant 0 : index
    %8 = vector.load %arg1[%c0_7, %c0_8] : memref<10x146xbf16, #tpu.memory_space<vmem>>, vector<10x128xbf16>
    %cst_9 = arith.constant dense<0.000000e+00> : vector<10x128xf32>
    %9 = tpu.matmul %7, %8, %cst_9 {dimension_numbers = #tpu.dot_dimension_numbers<[1], [0], [0], [1], [0, 0, 1, 1], [], []>} : vector<10x10xbf16>, vector<10x128xbf16>, vector<10x128xf32> -> vector<10x128xf32>
    %10 = arith.addf %5, %9 : vector<10x128xf32>
    %c2 = arith.constant 2 : index
    %c0_10 = arith.constant 0 : index
    %c0_11 = arith.constant 0 : index
    %11 = vector.load %arg4[%c2, %c0_10, %c0_11] : memref<25x10x10xbf16, #tpu.memory_space<vmem>>, vector<1x10x10xbf16>
    %12 = vector.shape_cast %11 : vector<1x10x10xbf16> to vector<10x10xbf16>
    %c0_12 = arith.constant 0 : index
    %c1_13 = arith.constant 1 : index
    %13 = vector.load %arg0[%c0_12, %c1_13] : memref<10x146xbf16, #tpu.memory_space<vmem>>, vector<10x128xbf16>
    %cst_14 = arith.constant dense<0.000000e+00> : vector<10x128xf32>
    %14 = tpu.matmul %12, %13, %cst_14 {dimension_numbers = #tpu.dot_dimension_numbers<[1], [0], [0], [1], [0, 0, 1, 1], [], []>} : vector<10x10xbf16>, vector<10x128xbf16>, vector<10x128xf32> -> vector<10x128xf32>
    %15 = arith.addf %10, %14 : vector<10x128xf32>
    %c3 = arith.constant 3 : index
    %c0_15 = arith.constant 0 : index
    %c0_16 = arith.constant 0 : index
    %16 = vector.load %arg4[%c3, %c0_15, %c0_16] : memref<25x10x10xbf16, #tpu.memory_space<vmem>>, vector<1x10x10xbf16>
    %17 = vector.shape_cast %16 : vector<1x10x10xbf16> to vector<10x10xbf16>
    %c0_17 = arith.constant 0 : index
    %c1_18 = arith.constant 1 : index
    %18 = vector.load %arg1[%c0_17, %c1_18] : memref<10x146xbf16, #tpu.memory_space<vmem>>, vector<10x128xbf16>
    %cst_19 = arith.constant dense<0.000000e+00> : vector<10x128xf32>
    %19 = tpu.matmul %17, %18, %cst_19 {dimension_numbers = #tpu.dot_dimension_numbers<[1], [0], [0], [1], [0, 0, 1, 1], [], []>} : vector<10x10xbf16>, vector<10x128xbf16>, vector<10x128xf32> -> vector<10x128xf32>
    %20 = arith.addf %15, %19 : vector<10x128xf32>
    %c4 = arith.constant 4 : index
    %c0_20 = arith.constant 0 : index
    %c0_21 = arith.constant 0 : index
    %21 = vector.load %arg4[%c4, %c0_20, %c0_21] : memref<25x10x10xbf16, #tpu.memory_space<vmem>>, vector<1x10x10xbf16>
    %22 = vector.shape_cast %21 : vector<1x10x10xbf16> to vector<10x10xbf16>
    %c0_22 = arith.constant 0 : index
    %c2_23 = arith.constant 2 : index
    %23 = vector.load %arg0[%c0_22, %c2_23] : memref<10x146xbf16, #tpu.memory_space<vmem>>, vector<10x128xbf16>
    %cst_24 = arith.constant dense<0.000000e+00> : vector<10x128xf32>
    %24 = tpu.matmul %22, %23, %cst_24 {dimension_numbers = #tpu.dot_dimension_numbers<[1], [0], [0], [1], [0, 0, 1, 1], [], []>} : vector<10x10xbf16>, vector<10x128xbf16>, vector<10x128xf32> -> vector<10x128xf32>
    %25 = arith.addf %20, %24 : vector<10x128xf32>
    %c5 = arith.constant 5 : index
    %c0_25 = arith.constant 0 : index
    %c0_26 = arith.constant 0 : index
    %26 = vector.load %arg4[%c5, %c0_25, %c0_26] : memref<25x10x10xbf16, #tpu.memory_space<vmem>>, vector<1x10x10xbf16>
    %27 = vector.shape_cast %26 : vector<1x10x10xbf16> to vector<10x10xbf16>
    %c0_27 = arith.constant 0 : index
    %c0_28 = arith.constant 0 : index
    %28 = vector.load %arg2[%c0_27, %c0_28] : memref<10x146xbf16, #tpu.memory_space<vmem>>, vector<10x128xbf16>
    %cst_29 = arith.constant dense<0.000000e+00> : vector<10x128xf32>
    %29 = tpu.matmul %27, %28, %cst_29 {dimension_numbers = #tpu.dot_dimension_numbers<[1], [0], [0], [1], [0, 0, 1, 1], [], []>} : vector<10x10xbf16>, vector<10x128xbf16>, vector<10x128xf32> -> vector<10x128xf32>
    %30 = arith.addf %25, %29 : vector<10x128xf32>
    %c6 = arith.constant 6 : index
    %c0_30 = arith.constant 0 : index
    %c0_31 = arith.constant 0 : index
    %31 = vector.load %arg4[%c6, %c0_30, %c0_31] : memref<25x10x10xbf16, #tpu.memory_space<vmem>>, vector<1x10x10xbf16>
    %32 = vector.shape_cast %31 : vector<1x10x10xbf16> to vector<10x10xbf16>
    %c0_32 = arith.constant 0 : index
    %c0_33 = arith.constant 0 : index
    %33 = vector.load %arg3[%c0_32, %c0_33] : memref<10x146xbf16, #tpu.memory_space<vmem>>, vector<10x128xbf16>
    %cst_34 = arith.constant dense<0.000000e+00> : vector<10x128xf32>
    %34 = tpu.matmul %32, %33, %cst_34 {dimension_numbers = #tpu.dot_dimension_numbers<[1], [0], [0], [1], [0, 0, 1, 1], [], []>} : vector<10x10xbf16>, vector<10x128xbf16>, vector<10x128xf32> -> vector<10x128xf32>
    %35 = arith.addf %30, %34 : vector<10x128xf32>
    %c7 = arith.constant 7 : index
    %c0_35 = arith.constant 0 : index
    %c0_36 = arith.constant 0 : index
    %36 = vector.load %arg4[%c7, %c0_35, %c0_36] : memref<25x10x10xbf16, #tpu.memory_space<vmem>>, vector<1x10x10xbf16>
    %37 = vector.shape_cast %36 : vector<1x10x10xbf16> to vector<10x10xbf16>
    %c0_37 = arith.constant 0 : index
    %c1_38 = arith.constant 1 : index
    %38 = vector.load %arg2[%c0_37, %c1_38] : memref<10x146xbf16, #tpu.memory_space<vmem>>, vector<10x128xbf16>
    %cst_39 = arith.constant dense<0.000000e+00> : vector<10x128xf32>
    %39 = tpu.matmul %37, %38, %cst_39 {dimension_numbers = #tpu.dot_dimension_numbers<[1], [0], [0], [1], [0, 0, 1, 1], [], []>} : vector<10x10xbf16>, vector<10x128xbf16>, vector<10x128xf32> -> vector<10x128xf32>
    %40 = arith.addf %35, %39 : vector<10x128xf32>
    %c8 = arith.constant 8 : index
    %c0_40 = arith.constant 0 : index
    %c0_41 = arith.constant 0 : index
    %41 = vector.load %arg4[%c8, %c0_40, %c0_41] : memref<25x10x10xbf16, #tpu.memory_space<vmem>>, vector<1x10x10xbf16>
    %42 = vector.shape_cast %41 : vector<1x10x10xbf16> to vector<10x10xbf16>
    %c0_42 = arith.constant 0 : index
    %c1_43 = arith.constant 1 : index
    %43 = vector.load %arg3[%c0_42, %c1_43] : memref<10x146xbf16, #tpu.memory_space<vmem>>, vector<10x128xbf16>
    %cst_44 = arith.constant dense<0.000000e+00> : vector<10x128xf32>
    %44 = tpu.matmul %42, %43, %cst_44 {dimension_numbers = #tpu.dot_dimension_numbers<[1], [0], [0], [1], [0, 0, 1, 1], [], []>} : vector<10x10xbf16>, vector<10x128xbf16>, vector<10x128xf32> -> vector<10x128xf32>
    %45 = arith.addf %40, %44 : vector<10x128xf32>
    %c9 = arith.constant 9 : index
    %c0_45 = arith.constant 0 : index
    %c0_46 = arith.constant 0 : index
    %46 = vector.load %arg4[%c9, %c0_45, %c0_46] : memref<25x10x10xbf16, #tpu.memory_space<vmem>>, vector<1x10x10xbf16>
    %47 = vector.shape_cast %46 : vector<1x10x10xbf16> to vector<10x10xbf16>
    %c0_47 = arith.constant 0 : index
    %c2_48 = arith.constant 2 : index
    %48 = vector.load %arg2[%c0_47, %c2_48] : memref<10x146xbf16, #tpu.memory_space<vmem>>, vector<10x128xbf16>
    %cst_49 = arith.constant dense<0.000000e+00> : vector<10x128xf32>
    %49 = tpu.matmul %47, %48, %cst_49 {dimension_numbers = #tpu.dot_dimension_numbers<[1], [0], [0], [1], [0, 0, 1, 1], [], []>} : vector<10x10xbf16>, vector<10x128xbf16>, vector<10x128xf32> -> vector<10x128xf32>
    %50 = arith.addf %45, %49 : vector<10x128xf32>
    %c10 = arith.constant 10 : index
    %c0_50 = arith.constant 0 : index
    %c0_51 = arith.constant 0 : index
    %51 = vector.load %arg4[%c10, %c0_50, %c0_51] : memref<25x10x10xbf16, #tpu.memory_space<vmem>>, vector<1x10x10xbf16>
    %52 = vector.shape_cast %51 : vector<1x10x10xbf16> to vector<10x10xbf16>
    %c0_52 = arith.constant 0 : index
    %c8_53 = arith.constant 8 : index
    %53 = vector.load %arg0[%c0_52, %c8_53] : memref<10x146xbf16, #tpu.memory_space<vmem>>, vector<10x128xbf16>
    %cst_54 = arith.constant dense<0.000000e+00> : vector<10x128xf32>
    %54 = tpu.matmul %52, %53, %cst_54 {dimension_numbers = #tpu.dot_dimension_numbers<[1], [0], [0], [1], [0, 0, 1, 1], [], []>} : vector<10x10xbf16>, vector<10x128xbf16>, vector<10x128xf32> -> vector<10x128xf32>
    %55 = arith.addf %50, %54 : vector<10x128xf32>
    %c11 = arith.constant 11 : index
    %c0_55 = arith.constant 0 : index
    %c0_56 = arith.constant 0 : index
    %56 = vector.load %arg4[%c11, %c0_55, %c0_56] : memref<25x10x10xbf16, #tpu.memory_space<vmem>>, vector<1x10x10xbf16>
    %57 = vector.shape_cast %56 : vector<1x10x10xbf16> to vector<10x10xbf16>
    %c0_57 = arith.constant 0 : index
    %c8_58 = arith.constant 8 : index
    %58 = vector.load %arg1[%c0_57, %c8_58] : memref<10x146xbf16, #tpu.memory_space<vmem>>, vector<10x128xbf16>
    %cst_59 = arith.constant dense<0.000000e+00> : vector<10x128xf32>
    %59 = tpu.matmul %57, %58, %cst_59 {dimension_numbers = #tpu.dot_dimension_numbers<[1], [0], [0], [1], [0, 0, 1, 1], [], []>} : vector<10x10xbf16>, vector<10x128xbf16>, vector<10x128xf32> -> vector<10x128xf32>
    %60 = arith.addf %55, %59 : vector<10x128xf32>
    %c12 = arith.constant 12 : index
    %c0_60 = arith.constant 0 : index
    %c0_61 = arith.constant 0 : index
    %61 = vector.load %arg4[%c12, %c0_60, %c0_61] : memref<25x10x10xbf16, #tpu.memory_space<vmem>>, vector<1x10x10xbf16>
    %62 = vector.shape_cast %61 : vector<1x10x10xbf16> to vector<10x10xbf16>
    %c0_62 = arith.constant 0 : index
    %c9_63 = arith.constant 9 : index
    %63 = vector.load %arg0[%c0_62, %c9_63] : memref<10x146xbf16, #tpu.memory_space<vmem>>, vector<10x128xbf16>
    %cst_64 = arith.constant dense<0.000000e+00> : vector<10x128xf32>
    %64 = tpu.matmul %62, %63, %cst_64 {dimension_numbers = #tpu.dot_dimension_numbers<[1], [0], [0], [1], [0, 0, 1, 1], [], []>} : vector<10x10xbf16>, vector<10x128xbf16>, vector<10x128xf32> -> vector<10x128xf32>
    %65 = arith.addf %60, %64 : vector<10x128xf32>
    %c13 = arith.constant 13 : index
    %c0_65 = arith.constant 0 : index
    %c0_66 = arith.constant 0 : index
    %66 = vector.load %arg4[%c13, %c0_65, %c0_66] : memref<25x10x10xbf16, #tpu.memory_space<vmem>>, vector<1x10x10xbf16>
    %67 = vector.shape_cast %66 : vector<1x10x10xbf16> to vector<10x10xbf16>
    %c0_67 = arith.constant 0 : index
    %c9_68 = arith.constant 9 : index
    %68 = vector.load %arg1[%c0_67, %c9_68] : memref<10x146xbf16, #tpu.memory_space<vmem>>, vector<10x128xbf16>
    %cst_69 = arith.constant dense<0.000000e+00> : vector<10x128xf32>
    %69 = tpu.matmul %67, %68, %cst_69 {dimension_numbers = #tpu.dot_dimension_numbers<[1], [0], [0], [1], [0, 0, 1, 1], [], []>} : vector<10x10xbf16>, vector<10x128xbf16>, vector<10x128xf32> -> vector<10x128xf32>
    %70 = arith.addf %65, %69 : vector<10x128xf32>
    %c14 = arith.constant 14 : index
    %c0_70 = arith.constant 0 : index
    %c0_71 = arith.constant 0 : index
    %71 = vector.load %arg4[%c14, %c0_70, %c0_71] : memref<25x10x10xbf16, #tpu.memory_space<vmem>>, vector<1x10x10xbf16>
    %72 = vector.shape_cast %71 : vector<1x10x10xbf16> to vector<10x10xbf16>
    %c0_72 = arith.constant 0 : index
    %c10_73 = arith.constant 10 : index
    %73 = vector.load %arg0[%c0_72, %c10_73] : memref<10x146xbf16, #tpu.memory_space<vmem>>, vector<10x128xbf16>
    %cst_74 = arith.constant dense<0.000000e+00> : vector<10x128xf32>
    %74 = tpu.matmul %72, %73, %cst_74 {dimension_numbers = #tpu.dot_dimension_numbers<[1], [0], [0], [1], [0, 0, 1, 1], [], []>} : vector<10x10xbf16>, vector<10x128xbf16>, vector<10x128xf32> -> vector<10x128xf32>
    %75 = arith.addf %70, %74 : vector<10x128xf32>
    %c15 = arith.constant 15 : index
    %c0_75 = arith.constant 0 : index
    %c0_76 = arith.constant 0 : index
    %76 = vector.load %arg4[%c15, %c0_75, %c0_76] : memref<25x10x10xbf16, #tpu.memory_space<vmem>>, vector<1x10x10xbf16>
    %77 = vector.shape_cast %76 : vector<1x10x10xbf16> to vector<10x10xbf16>
    %c0_77 = arith.constant 0 : index
    %c8_78 = arith.constant 8 : index
    %78 = vector.load %arg2[%c0_77, %c8_78] : memref<10x146xbf16, #tpu.memory_space<vmem>>, vector<10x128xbf16>
    %cst_79 = arith.constant dense<0.000000e+00> : vector<10x128xf32>
    %79 = tpu.matmul %77, %78, %cst_79 {dimension_numbers = #tpu.dot_dimension_numbers<[1], [0], [0], [1], [0, 0, 1, 1], [], []>} : vector<10x10xbf16>, vector<10x128xbf16>, vector<10x128xf32> -> vector<10x128xf32>
    %80 = arith.addf %75, %79 : vector<10x128xf32>
    %c16 = arith.constant 16 : index
    %c0_80 = arith.constant 0 : index
    %c0_81 = arith.constant 0 : index
    %81 = vector.load %arg4[%c16, %c0_80, %c0_81] : memref<25x10x10xbf16, #tpu.memory_space<vmem>>, vector<1x10x10xbf16>
    %82 = vector.shape_cast %81 : vector<1x10x10xbf16> to vector<10x10xbf16>
    %c0_82 = arith.constant 0 : index
    %c8_83 = arith.constant 8 : index
    %83 = vector.load %arg3[%c0_82, %c8_83] : memref<10x146xbf16, #tpu.memory_space<vmem>>, vector<10x128xbf16>
    %cst_84 = arith.constant dense<0.000000e+00> : vector<10x128xf32>
    %84 = tpu.matmul %82, %83, %cst_84 {dimension_numbers = #tpu.dot_dimension_numbers<[1], [0], [0], [1], [0, 0, 1, 1], [], []>} : vector<10x10xbf16>, vector<10x128xbf16>, vector<10x128xf32> -> vector<10x128xf32>
    %85 = arith.addf %80, %84 : vector<10x128xf32>
    %c17 = arith.constant 17 : index
    %c0_85 = arith.constant 0 : index
    %c0_86 = arith.constant 0 : index
    %86 = vector.load %arg4[%c17, %c0_85, %c0_86] : memref<25x10x10xbf16, #tpu.memory_space<vmem>>, vector<1x10x10xbf16>
    %87 = vector.shape_cast %86 : vector<1x10x10xbf16> to vector<10x10xbf16>
    %c0_87 = arith.constant 0 : index
    %c9_88 = arith.constant 9 : index
    %88 = vector.load %arg2[%c0_87, %c9_88] : memref<10x146xbf16, #tpu.memory_space<vmem>>, vector<10x128xbf16>
    %cst_89 = arith.constant dense<0.000000e+00> : vector<10x128xf32>
    %89 = tpu.matmul %87, %88, %cst_89 {dimension_numbers = #tpu.dot_dimension_numbers<[1], [0], [0], [1], [0, 0, 1, 1], [], []>} : vector<10x10xbf16>, vector<10x128xbf16>, vector<10x128xf32> -> vector<10x128xf32>
    %90 = arith.addf %85, %89 : vector<10x128xf32>
    %c18 = arith.constant 18 : index
    %c0_90 = arith.constant 0 : index
    %c0_91 = arith.constant 0 : index
    %91 = vector.load %arg4[%c18, %c0_90, %c0_91] : memref<25x10x10xbf16, #tpu.memory_space<vmem>>, vector<1x10x10xbf16>
    %92 = vector.shape_cast %91 : vector<1x10x10xbf16> to vector<10x10xbf16>
    %c0_92 = arith.constant 0 : index
    %c9_93 = arith.constant 9 : index
    %93 = vector.load %arg3[%c0_92, %c9_93] : memref<10x146xbf16, #tpu.memory_space<vmem>>, vector<10x128xbf16>
    %cst_94 = arith.constant dense<0.000000e+00> : vector<10x128xf32>
    %94 = tpu.matmul %92, %93, %cst_94 {dimension_numbers = #tpu.dot_dimension_numbers<[1], [0], [0], [1], [0, 0, 1, 1], [], []>} : vector<10x10xbf16>, vector<10x128xbf16>, vector<10x128xf32> -> vector<10x128xf32>
    %95 = arith.addf %90, %94 : vector<10x128xf32>
    %c19 = arith.constant 19 : index
    %c0_95 = arith.constant 0 : index
    %c0_96 = arith.constant 0 : index
    %96 = vector.load %arg4[%c19, %c0_95, %c0_96] : memref<25x10x10xbf16, #tpu.memory_space<vmem>>, vector<1x10x10xbf16>
    %97 = vector.shape_cast %96 : vector<1x10x10xbf16> to vector<10x10xbf16>
    %c0_97 = arith.constant 0 : index
    %c10_98 = arith.constant 10 : index
    %98 = vector.load %arg2[%c0_97, %c10_98] : memref<10x146xbf16, #tpu.memory_space<vmem>>, vector<10x128xbf16>
    %cst_99 = arith.constant dense<0.000000e+00> : vector<10x128xf32>
    %99 = tpu.matmul %97, %98, %cst_99 {dimension_numbers = #tpu.dot_dimension_numbers<[1], [0], [0], [1], [0, 0, 1, 1], [], []>} : vector<10x10xbf16>, vector<10x128xbf16>, vector<10x128xf32> -> vector<10x128xf32>
    %100 = arith.addf %95, %99 : vector<10x128xf32>
    %c20 = arith.constant 20 : index
    %c0_100 = arith.constant 0 : index
    %c0_101 = arith.constant 0 : index
    %101 = vector.load %arg4[%c20, %c0_100, %c0_101] : memref<25x10x10xbf16, #tpu.memory_space<vmem>>, vector<1x10x10xbf16>
    %102 = vector.shape_cast %101 : vector<1x10x10xbf16> to vector<10x10xbf16>
    %c0_102 = arith.constant 0 : index
    %c16_103 = arith.constant 16 : index
    %103 = vector.load %arg0[%c0_102, %c16_103] : memref<10x146xbf16, #tpu.memory_space<vmem>>, vector<10x128xbf16>
    %cst_104 = arith.constant dense<0.000000e+00> : vector<10x128xf32>
    %104 = tpu.matmul %102, %103, %cst_104 {dimension_numbers = #tpu.dot_dimension_numbers<[1], [0], [0], [1], [0, 0, 1, 1], [], []>} : vector<10x10xbf16>, vector<10x128xbf16>, vector<10x128xf32> -> vector<10x128xf32>
    %105 = arith.addf %100, %104 : vector<10x128xf32>
    %c21 = arith.constant 21 : index
    %c0_105 = arith.constant 0 : index
    %c0_106 = arith.constant 0 : index
    %106 = vector.load %arg4[%c21, %c0_105, %c0_106] : memref<25x10x10xbf16, #tpu.memory_space<vmem>>, vector<1x10x10xbf16>
    %107 = vector.shape_cast %106 : vector<1x10x10xbf16> to vector<10x10xbf16>
    %c0_107 = arith.constant 0 : index
    %c16_108 = arith.constant 16 : index
    %108 = vector.load %arg1[%c0_107, %c16_108] : memref<10x146xbf16, #tpu.memory_space<vmem>>, vector<10x128xbf16>
    %cst_109 = arith.constant dense<0.000000e+00> : vector<10x128xf32>
    %109 = tpu.matmul %107, %108, %cst_109 {dimension_numbers = #tpu.dot_dimension_numbers<[1], [0], [0], [1], [0, 0, 1, 1], [], []>} : vector<10x10xbf16>, vector<10x128xbf16>, vector<10x128xf32> -> vector<10x128xf32>
    %110 = arith.addf %105, %109 : vector<10x128xf32>
    %c22 = arith.constant 22 : index
    %c0_110 = arith.constant 0 : index
    %c0_111 = arith.constant 0 : index
    %111 = vector.load %arg4[%c22, %c0_110, %c0_111] : memref<25x10x10xbf16, #tpu.memory_space<vmem>>, vector<1x10x10xbf16>
    %112 = vector.shape_cast %111 : vector<1x10x10xbf16> to vector<10x10xbf16>
    %c0_112 = arith.constant 0 : index
    %c17_113 = arith.constant 17 : index
    %113 = vector.load %arg0[%c0_112, %c17_113] : memref<10x146xbf16, #tpu.memory_space<vmem>>, vector<10x128xbf16>
    %cst_114 = arith.constant dense<0.000000e+00> : vector<10x128xf32>
    %114 = tpu.matmul %112, %113, %cst_114 {dimension_numbers = #tpu.dot_dimension_numbers<[1], [0], [0], [1], [0, 0, 1, 1], [], []>} : vector<10x10xbf16>, vector<10x128xbf16>, vector<10x128xf32> -> vector<10x128xf32>
    %115 = arith.addf %110, %114 : vector<10x128xf32>
    %c23 = arith.constant 23 : index
    %c0_115 = arith.constant 0 : index
    %c0_116 = arith.constant 0 : index
    %116 = vector.load %arg4[%c23, %c0_115, %c0_116] : memref<25x10x10xbf16, #tpu.memory_space<vmem>>, vector<1x10x10xbf16>
    %117 = vector.shape_cast %116 : vector<1x10x10xbf16> to vector<10x10xbf16>
    %c0_117 = arith.constant 0 : index
    %c17_118 = arith.constant 17 : index
    %118 = vector.load %arg1[%c0_117, %c17_118] : memref<10x146xbf16, #tpu.memory_space<vmem>>, vector<10x128xbf16>
    %cst_119 = arith.constant dense<0.000000e+00> : vector<10x128xf32>
    %119 = tpu.matmul %117, %118, %cst_119 {dimension_numbers = #tpu.dot_dimension_numbers<[1], [0], [0], [1], [0, 0, 1, 1], [], []>} : vector<10x10xbf16>, vector<10x128xbf16>, vector<10x128xf32> -> vector<10x128xf32>
    %120 = arith.addf %115, %119 : vector<10x128xf32>
    %c24 = arith.constant 24 : index
    %c0_120 = arith.constant 0 : index
    %c0_121 = arith.constant 0 : index
    %121 = vector.load %arg4[%c24, %c0_120, %c0_121] : memref<25x10x10xbf16, #tpu.memory_space<vmem>>, vector<1x10x10xbf16>
    %122 = vector.shape_cast %121 : vector<1x10x10xbf16> to vector<10x10xbf16>
    %c0_122 = arith.constant 0 : index
    %c18_123 = arith.constant 18 : index
    %123 = vector.load %arg0[%c0_122, %c18_123] : memref<10x146xbf16, #tpu.memory_space<vmem>>, vector<10x128xbf16>
    %cst_124 = arith.constant dense<0.000000e+00> : vector<10x128xf32>
    %124 = tpu.matmul %122, %123, %cst_124 {dimension_numbers = #tpu.dot_dimension_numbers<[1], [0], [0], [1], [0, 0, 1, 1], [], []>} : vector<10x10xbf16>, vector<10x128xbf16>, vector<10x128xf32> -> vector<10x128xf32>
    %125 = arith.addf %120, %124 : vector<10x128xf32>
    %cst_125 = arith.constant 0.000000e+00 : f32
    %126 = vector.broadcast %cst_125 : f32 to vector<10x128xf32>
    %c0_126 = arith.constant 0 : index
    %c0_127 = arith.constant 0 : index
    %c0_128 = arith.constant 0 : index
    %127 = vector.load %arg4[%c0_126, %c0_127, %c0_128] : memref<25x10x10xbf16, #tpu.memory_space<vmem>>, vector<1x10x10xbf16>
    %128 = vector.shape_cast %127 : vector<1x10x10xbf16> to vector<10x10xbf16>
    %c0_129 = arith.constant 0 : index
    %c0_130 = arith.constant 0 : index
    %129 = vector.load %arg1[%c0_129, %c0_130] : memref<10x146xbf16, #tpu.memory_space<vmem>>, vector<10x128xbf16>
    %cst_131 = arith.constant dense<0.000000e+00> : vector<10x128xf32>
    %130 = tpu.matmul %128, %129, %cst_131 {dimension_numbers = #tpu.dot_dimension_numbers<[1], [0], [0], [1], [0, 0, 1, 1], [], []>} : vector<10x10xbf16>, vector<10x128xbf16>, vector<10x128xf32> -> vector<10x128xf32>
    %131 = arith.addf %126, %130 : vector<10x128xf32>
    %c1_132 = arith.constant 1 : index
    %c0_133 = arith.constant 0 : index
    %c0_134 = arith.constant 0 : index
    %132 = vector.load %arg4[%c1_132, %c0_133, %c0_134] : memref<25x10x10xbf16, #tpu.memory_space<vmem>>, vector<1x10x10xbf16>
    %133 = vector.shape_cast %132 : vector<1x10x10xbf16> to vector<10x10xbf16>
    %c0_135 = arith.constant 0 : index
    %c1_136 = arith.constant 1 : index
    %134 = vector.load %arg0[%c0_135, %c1_136] : memref<10x146xbf16, #tpu.memory_space<vmem>>, vector<10x128xbf16>
    %cst_137 = arith.constant dense<0.000000e+00> : vector<10x128xf32>
    %135 = tpu.matmul %133, %134, %cst_137 {dimension_numbers = #tpu.dot_dimension_numbers<[1], [0], [0], [1], [0, 0, 1, 1], [], []>} : vector<10x10xbf16>, vector<10x128xbf16>, vector<10x128xf32> -> vector<10x128xf32>
    %136 = arith.addf %131, %135 : vector<10x128xf32>
    %c2_138 = arith.constant 2 : index
    %c0_139 = arith.constant 0 : index
    %c0_140 = arith.constant 0 : index
    %137 = vector.load %arg4[%c2_138, %c0_139, %c0_140] : memref<25x10x10xbf16, #tpu.memory_space<vmem>>, vector<1x10x10xbf16>
    %138 = vector.shape_cast %137 : vector<1x10x10xbf16> to vector<10x10xbf16>
    %c0_141 = arith.constant 0 : index
    %c1_142 = arith.constant 1 : index
    %139 = vector.load %arg1[%c0_141, %c1_142] : memref<10x146xbf16, #tpu.memory_space<vmem>>, vector<10x128xbf16>
    %cst_143 = arith.constant dense<0.000000e+00> : vector<10x128xf32>
    %140 = tpu.matmul %138, %139, %cst_143 {dimension_numbers = #tpu.dot_dimension_numbers<[1], [0], [0], [1], [0, 0, 1, 1], [], []>} : vector<10x10xbf16>, vector<10x128xbf16>, vector<10x128xf32> -> vector<10x128xf32>
    %141 = arith.addf %136, %140 : vector<10x128xf32>
    %c3_144 = arith.constant 3 : index
    %c0_145 = arith.constant 0 : index
    %c0_146 = arith.constant 0 : index
    %142 = vector.load %arg4[%c3_144, %c0_145, %c0_146] : memref<25x10x10xbf16, #tpu.memory_space<vmem>>, vector<1x10x10xbf16>
    %143 = vector.shape_cast %142 : vector<1x10x10xbf16> to vector<10x10xbf16>
    %c0_147 = arith.constant 0 : index
    %c2_148 = arith.constant 2 : index
    %144 = vector.load %arg0[%c0_147, %c2_148] : memref<10x146xbf16, #tpu.memory_space<vmem>>, vector<10x128xbf16>
    %cst_149 = arith.constant dense<0.000000e+00> : vector<10x128xf32>
    %145 = tpu.matmul %143, %144, %cst_149 {dimension_numbers = #tpu.dot_dimension_numbers<[1], [0], [0], [1], [0, 0, 1, 1], [], []>} : vector<10x10xbf16>, vector<10x128xbf16>, vector<10x128xf32> -> vector<10x128xf32>
    %146 = arith.addf %141, %145 : vector<10x128xf32>
    %c4_150 = arith.constant 4 : index
    %c0_151 = arith.constant 0 : index
    %c0_152 = arith.constant 0 : index
    %147 = vector.load %arg4[%c4_150, %c0_151, %c0_152] : memref<25x10x10xbf16, #tpu.memory_space<vmem>>, vector<1x10x10xbf16>
    %148 = vector.shape_cast %147 : vector<1x10x10xbf16> to vector<10x10xbf16>
    %c0_153 = arith.constant 0 : index
    %c2_154 = arith.constant 2 : index
    %149 = vector.load %arg1[%c0_153, %c2_154] : memref<10x146xbf16, #tpu.memory_space<vmem>>, vector<10x128xbf16>
    %cst_155 = arith.constant dense<0.000000e+00> : vector<10x128xf32>
    %150 = tpu.matmul %148, %149, %cst_155 {dimension_numbers = #tpu.dot_dimension_numbers<[1], [0], [0], [1], [0, 0, 1, 1], [], []>} : vector<10x10xbf16>, vector<10x128xbf16>, vector<10x128xf32> -> vector<10x128xf32>
    %151 = arith.addf %146, %150 : vector<10x128xf32>
    %c5_156 = arith.constant 5 : index
    %c0_157 = arith.constant 0 : index
    %c0_158 = arith.constant 0 : index
    %152 = vector.load %arg4[%c5_156, %c0_157, %c0_158] : memref<25x10x10xbf16, #tpu.memory_space<vmem>>, vector<1x10x10xbf16>
    %153 = vector.shape_cast %152 : vector<1x10x10xbf16> to vector<10x10xbf16>
    %c0_159 = arith.constant 0 : index
    %c0_160 = arith.constant 0 : index
    %154 = vector.load %arg3[%c0_159, %c0_160] : memref<10x146xbf16, #tpu.memory_space<vmem>>, vector<10x128xbf16>
    %cst_161 = arith.constant dense<0.000000e+00> : vector<10x128xf32>
    %155 = tpu.matmul %153, %154, %cst_161 {dimension_numbers = #tpu.dot_dimension_numbers<[1], [0], [0], [1], [0, 0, 1, 1], [], []>} : vector<10x10xbf16>, vector<10x128xbf16>, vector<10x128xf32> -> vector<10x128xf32>
    %156 = arith.addf %151, %155 : vector<10x128xf32>
    %c6_162 = arith.constant 6 : index
    %c0_163 = arith.constant 0 : index
    %c0_164 = arith.constant 0 : index
    %157 = vector.load %arg4[%c6_162, %c0_163, %c0_164] : memref<25x10x10xbf16, #tpu.memory_space<vmem>>, vector<1x10x10xbf16>
    %158 = vector.shape_cast %157 : vector<1x10x10xbf16> to vector<10x10xbf16>
    %c0_165 = arith.constant 0 : index
    %c1_166 = arith.constant 1 : index
    %159 = vector.load %arg2[%c0_165, %c1_166] : memref<10x146xbf16, #tpu.memory_space<vmem>>, vector<10x128xbf16>
    %cst_167 = arith.constant dense<0.000000e+00> : vector<10x128xf32>
    %160 = tpu.matmul %158, %159, %cst_167 {dimension_numbers = #tpu.dot_dimension_numbers<[1], [0], [0], [1], [0, 0, 1, 1], [], []>} : vector<10x10xbf16>, vector<10x128xbf16>, vector<10x128xf32> -> vector<10x128xf32>
    %161 = arith.addf %156, %160 : vector<10x128xf32>
    %c7_168 = arith.constant 7 : index
    %c0_169 = arith.constant 0 : index
    %c0_170 = arith.constant 0 : index
    %162 = vector.load %arg4[%c7_168, %c0_169, %c0_170] : memref<25x10x10xbf16, #tpu.memory_space<vmem>>, vector<1x10x10xbf16>
    %163 = vector.shape_cast %162 : vector<1x10x10xbf16> to vector<10x10xbf16>
    %c0_171 = arith.constant 0 : index
    %c1_172 = arith.constant 1 : index
    %164 = vector.load %arg3[%c0_171, %c1_172] : memref<10x146xbf16, #tpu.memory_space<vmem>>, vector<10x128xbf16>
    %cst_173 = arith.constant dense<0.000000e+00> : vector<10x128xf32>
    %165 = tpu.matmul %163, %164, %cst_173 {dimension_numbers = #tpu.dot_dimension_numbers<[1], [0], [0], [1], [0, 0, 1, 1], [], []>} : vector<10x10xbf16>, vector<10x128xbf16>, vector<10x128xf32> -> vector<10x128xf32>
    %166 = arith.addf %161, %165 : vector<10x128xf32>
    %c8_174 = arith.constant 8 : index
    %c0_175 = arith.constant 0 : index
    %c0_176 = arith.constant 0 : index
    %167 = vector.load %arg4[%c8_174, %c0_175, %c0_176] : memref<25x10x10xbf16, #tpu.memory_space<vmem>>, vector<1x10x10xbf16>
    %168 = vector.shape_cast %167 : vector<1x10x10xbf16> to vector<10x10xbf16>
    %c0_177 = arith.constant 0 : index
    %c2_178 = arith.constant 2 : index
    %169 = vector.load %arg2[%c0_177, %c2_178] : memref<10x146xbf16, #tpu.memory_space<vmem>>, vector<10x128xbf16>
    %cst_179 = arith.constant dense<0.000000e+00> : vector<10x128xf32>
    %170 = tpu.matmul %168, %169, %cst_179 {dimension_numbers = #tpu.dot_dimension_numbers<[1], [0], [0], [1], [0, 0, 1, 1], [], []>} : vector<10x10xbf16>, vector<10x128xbf16>, vector<10x128xf32> -> vector<10x128xf32>
    %171 = arith.addf %166, %170 : vector<10x128xf32>
    %c9_180 = arith.constant 9 : index
    %c0_181 = arith.constant 0 : index
    %c0_182 = arith.constant 0 : index
    %172 = vector.load %arg4[%c9_180, %c0_181, %c0_182] : memref<25x10x10xbf16, #tpu.memory_space<vmem>>, vector<1x10x10xbf16>
    %173 = vector.shape_cast %172 : vector<1x10x10xbf16> to vector<10x10xbf16>
    %c0_183 = arith.constant 0 : index
    %c2_184 = arith.constant 2 : index
    %174 = vector.load %arg3[%c0_183, %c2_184] : memref<10x146xbf16, #tpu.memory_space<vmem>>, vector<10x128xbf16>
    %cst_185 = arith.constant dense<0.000000e+00> : vector<10x128xf32>
    %175 = tpu.matmul %173, %174, %cst_185 {dimension_numbers = #tpu.dot_dimension_numbers<[1], [0], [0], [1], [0, 0, 1, 1], [], []>} : vector<10x10xbf16>, vector<10x128xbf16>, vector<10x128xf32> -> vector<10x128xf32>
    %176 = arith.addf %171, %175 : vector<10x128xf32>
    %c10_186 = arith.constant 10 : index
    %c0_187 = arith.constant 0 : index
    %c0_188 = arith.constant 0 : index
    %177 = vector.load %arg4[%c10_186, %c0_187, %c0_188] : memref<25x10x10xbf16, #tpu.memory_space<vmem>>, vector<1x10x10xbf16>
    %178 = vector.shape_cast %177 : vector<1x10x10xbf16> to vector<10x10xbf16>
    %c0_189 = arith.constant 0 : index
    %c8_190 = arith.constant 8 : index
    %179 = vector.load %arg1[%c0_189, %c8_190] : memref<10x146xbf16, #tpu.memory_space<vmem>>, vector<10x128xbf16>
    %cst_191 = arith.constant dense<0.000000e+00> : vector<10x128xf32>
    %180 = tpu.matmul %178, %179, %cst_191 {dimension_numbers = #tpu.dot_dimension_numbers<[1], [0], [0], [1], [0, 0, 1, 1], [], []>} : vector<10x10xbf16>, vector<10x128xbf16>, vector<10x128xf32> -> vector<10x128xf32>
    %181 = arith.addf %176, %180 : vector<10x128xf32>
    %c11_192 = arith.constant 11 : index
    %c0_193 = arith.constant 0 : index
    %c0_194 = arith.constant 0 : index
    %182 = vector.load %arg4[%c11_192, %c0_193, %c0_194] : memref<25x10x10xbf16, #tpu.memory_space<vmem>>, vector<1x10x10xbf16>
    %183 = vector.shape_cast %182 : vector<1x10x10xbf16> to vector<10x10xbf16>
    %c0_195 = arith.constant 0 : index
    %c9_196 = arith.constant 9 : index
    %184 = vector.load %arg0[%c0_195, %c9_196] : memref<10x146xbf16, #tpu.memory_space<vmem>>, vector<10x128xbf16>
    %cst_197 = arith.constant dense<0.000000e+00> : vector<10x128xf32>
    %185 = tpu.matmul %183, %184, %cst_197 {dimension_numbers = #tpu.dot_dimension_numbers<[1], [0], [0], [1], [0, 0, 1, 1], [], []>} : vector<10x10xbf16>, vector<10x128xbf16>, vector<10x128xf32> -> vector<10x128xf32>
    %186 = arith.addf %181, %185 : vector<10x128xf32>
    %c12_198 = arith.constant 12 : index
    %c0_199 = arith.constant 0 : index
    %c0_200 = arith.constant 0 : index
    %187 = vector.load %arg4[%c12_198, %c0_199, %c0_200] : memref<25x10x10xbf16, #tpu.memory_space<vmem>>, vector<1x10x10xbf16>
    %188 = vector.shape_cast %187 : vector<1x10x10xbf16> to vector<10x10xbf16>
    %c0_201 = arith.constant 0 : index
    %c9_202 = arith.constant 9 : index
    %189 = vector.load %arg1[%c0_201, %c9_202] : memref<10x146xbf16, #tpu.memory_space<vmem>>, vector<10x128xbf16>
    %cst_203 = arith.constant dense<0.000000e+00> : vector<10x128xf32>
    %190 = tpu.matmul %188, %189, %cst_203 {dimension_numbers = #tpu.dot_dimension_numbers<[1], [0], [0], [1], [0, 0, 1, 1], [], []>} : vector<10x10xbf16>, vector<10x128xbf16>, vector<10x128xf32> -> vector<10x128xf32>
    %191 = arith.addf %186, %190 : vector<10x128xf32>
    %c13_204 = arith.constant 13 : index
    %c0_205 = arith.constant 0 : index
    %c0_206 = arith.constant 0 : index
    %192 = vector.load %arg4[%c13_204, %c0_205, %c0_206] : memref<25x10x10xbf16, #tpu.memory_space<vmem>>, vector<1x10x10xbf16>
    %193 = vector.shape_cast %192 : vector<1x10x10xbf16> to vector<10x10xbf16>
    %c0_207 = arith.constant 0 : index
    %c10_208 = arith.constant 10 : index
    %194 = vector.load %arg0[%c0_207, %c10_208] : memref<10x146xbf16, #tpu.memory_space<vmem>>, vector<10x128xbf16>
    %cst_209 = arith.constant dense<0.000000e+00> : vector<10x128xf32>
    %195 = tpu.matmul %193, %194, %cst_209 {dimension_numbers = #tpu.dot_dimension_numbers<[1], [0], [0], [1], [0, 0, 1, 1], [], []>} : vector<10x10xbf16>, vector<10x128xbf16>, vector<10x128xf32> -> vector<10x128xf32>
    %196 = arith.addf %191, %195 : vector<10x128xf32>
    %c14_210 = arith.constant 14 : index
    %c0_211 = arith.constant 0 : index
    %c0_212 = arith.constant 0 : index
    %197 = vector.load %arg4[%c14_210, %c0_211, %c0_212] : memref<25x10x10xbf16, #tpu.memory_space<vmem>>, vector<1x10x10xbf16>
    %198 = vector.shape_cast %197 : vector<1x10x10xbf16> to vector<10x10xbf16>
    %c0_213 = arith.constant 0 : index
    %c10_214 = arith.constant 10 : index
    %199 = vector.load %arg1[%c0_213, %c10_214] : memref<10x146xbf16, #tpu.memory_space<vmem>>, vector<10x128xbf16>
    %cst_215 = arith.constant dense<0.000000e+00> : vector<10x128xf32>
    %200 = tpu.matmul %198, %199, %cst_215 {dimension_numbers = #tpu.dot_dimension_numbers<[1], [0], [0], [1], [0, 0, 1, 1], [], []>} : vector<10x10xbf16>, vector<10x128xbf16>, vector<10x128xf32> -> vector<10x128xf32>
    %201 = arith.addf %196, %200 : vector<10x128xf32>
    %c15_216 = arith.constant 15 : index
    %c0_217 = arith.constant 0 : index
    %c0_218 = arith.constant 0 : index
    %202 = vector.load %arg4[%c15_216, %c0_217, %c0_218] : memref<25x10x10xbf16, #tpu.memory_space<vmem>>, vector<1x10x10xbf16>
    %203 = vector.shape_cast %202 : vector<1x10x10xbf16> to vector<10x10xbf16>
    %c0_219 = arith.constant 0 : index
    %c8_220 = arith.constant 8 : index
    %204 = vector.load %arg3[%c0_219, %c8_220] : memref<10x146xbf16, #tpu.memory_space<vmem>>, vector<10x128xbf16>
    %cst_221 = arith.constant dense<0.000000e+00> : vector<10x128xf32>
    %205 = tpu.matmul %203, %204, %cst_221 {dimension_numbers = #tpu.dot_dimension_numbers<[1], [0], [0], [1], [0, 0, 1, 1], [], []>} : vector<10x10xbf16>, vector<10x128xbf16>, vector<10x128xf32> -> vector<10x128xf32>
    %206 = arith.addf %201, %205 : vector<10x128xf32>
    %c16_222 = arith.constant 16 : index
    %c0_223 = arith.constant 0 : index
    %c0_224 = arith.constant 0 : index
    %207 = vector.load %arg4[%c16_222, %c0_223, %c0_224] : memref<25x10x10xbf16, #tpu.memory_space<vmem>>, vector<1x10x10xbf16>
    %208 = vector.shape_cast %207 : vector<1x10x10xbf16> to vector<10x10xbf16>
    %c0_225 = arith.constant 0 : index
    %c9_226 = arith.constant 9 : index
    %209 = vector.load %arg2[%c0_225, %c9_226] : memref<10x146xbf16, #tpu.memory_space<vmem>>, vector<10x128xbf16>
    %cst_227 = arith.constant dense<0.000000e+00> : vector<10x128xf32>
    %210 = tpu.matmul %208, %209, %cst_227 {dimension_numbers = #tpu.dot_dimension_numbers<[1], [0], [0], [1], [0, 0, 1, 1], [], []>} : vector<10x10xbf16>, vector<10x128xbf16>, vector<10x128xf32> -> vector<10x128xf32>
    %211 = arith.addf %206, %210 : vector<10x128xf32>
    %c17_228 = arith.constant 17 : index
    %c0_229 = arith.constant 0 : index
    %c0_230 = arith.constant 0 : index
    %212 = vector.load %arg4[%c17_228, %c0_229, %c0_230] : memref<25x10x10xbf16, #tpu.memory_space<vmem>>, vector<1x10x10xbf16>
    %213 = vector.shape_cast %212 : vector<1x10x10xbf16> to vector<10x10xbf16>
    %c0_231 = arith.constant 0 : index
    %c9_232 = arith.constant 9 : index
    %214 = vector.load %arg3[%c0_231, %c9_232] : memref<10x146xbf16, #tpu.memory_space<vmem>>, vector<10x128xbf16>
    %cst_233 = arith.constant dense<0.000000e+00> : vector<10x128xf32>
    %215 = tpu.matmul %213, %214, %cst_233 {dimension_numbers = #tpu.dot_dimension_numbers<[1], [0], [0], [1], [0, 0, 1, 1], [], []>} : vector<10x10xbf16>, vector<10x128xbf16>, vector<10x128xf32> -> vector<10x128xf32>
    %216 = arith.addf %211, %215 : vector<10x128xf32>
    %c18_234 = arith.constant 18 : index
    %c0_235 = arith.constant 0 : index
    %c0_236 = arith.constant 0 : index
    %217 = vector.load %arg4[%c18_234, %c0_235, %c0_236] : memref<25x10x10xbf16, #tpu.memory_space<vmem>>, vector<1x10x10xbf16>
    %218 = vector.shape_cast %217 : vector<1x10x10xbf16> to vector<10x10xbf16>
    %c0_237 = arith.constant 0 : index
    %c10_238 = arith.constant 10 : index
    %219 = vector.load %arg2[%c0_237, %c10_238] : memref<10x146xbf16, #tpu.memory_space<vmem>>, vector<10x128xbf16>
    %cst_239 = arith.constant dense<0.000000e+00> : vector<10x128xf32>
    %220 = tpu.matmul %218, %219, %cst_239 {dimension_numbers = #tpu.dot_dimension_numbers<[1], [0], [0], [1], [0, 0, 1, 1], [], []>} : vector<10x10xbf16>, vector<10x128xbf16>, vector<10x128xf32> -> vector<10x128xf32>
    %221 = arith.addf %216, %220 : vector<10x128xf32>
    %c19_240 = arith.constant 19 : index
    %c0_241 = arith.constant 0 : index
    %c0_242 = arith.constant 0 : index
    %222 = vector.load %arg4[%c19_240, %c0_241, %c0_242] : memref<25x10x10xbf16, #tpu.memory_space<vmem>>, vector<1x10x10xbf16>
    %223 = vector.shape_cast %222 : vector<1x10x10xbf16> to vector<10x10xbf16>
    %c0_243 = arith.constant 0 : index
    %c10_244 = arith.constant 10 : index
    %224 = vector.load %arg3[%c0_243, %c10_244] : memref<10x146xbf16, #tpu.memory_space<vmem>>, vector<10x128xbf16>
    %cst_245 = arith.constant dense<0.000000e+00> : vector<10x128xf32>
    %225 = tpu.matmul %223, %224, %cst_245 {dimension_numbers = #tpu.dot_dimension_numbers<[1], [0], [0], [1], [0, 0, 1, 1], [], []>} : vector<10x10xbf16>, vector<10x128xbf16>, vector<10x128xf32> -> vector<10x128xf32>
    %226 = arith.addf %221, %225 : vector<10x128xf32>
    %c20_246 = arith.constant 20 : index
    %c0_247 = arith.constant 0 : index
    %c0_248 = arith.constant 0 : index
    %227 = vector.load %arg4[%c20_246, %c0_247, %c0_248] : memref<25x10x10xbf16, #tpu.memory_space<vmem>>, vector<1x10x10xbf16>
    %228 = vector.shape_cast %227 : vector<1x10x10xbf16> to vector<10x10xbf16>
    %c0_249 = arith.constant 0 : index
    %c16_250 = arith.constant 16 : index
    %229 = vector.load %arg1[%c0_249, %c16_250] : memref<10x146xbf16, #tpu.memory_space<vmem>>, vector<10x128xbf16>
    %cst_251 = arith.constant dense<0.000000e+00> : vector<10x128xf32>
    %230 = tpu.matmul %228, %229, %cst_251 {dimension_numbers = #tpu.dot_dimension_numbers<[1], [0], [0], [1], [0, 0, 1, 1], [], []>} : vector<10x10xbf16>, vector<10x128xbf16>, vector<10x128xf32> -> vector<10x128xf32>
    %231 = arith.addf %226, %230 : vector<10x128xf32>
    %c21_252 = arith.constant 21 : index
    %c0_253 = arith.constant 0 : index
    %c0_254 = arith.constant 0 : index
    %232 = vector.load %arg4[%c21_252, %c0_253, %c0_254] : memref<25x10x10xbf16, #tpu.memory_space<vmem>>, vector<1x10x10xbf16>
    %233 = vector.shape_cast %232 : vector<1x10x10xbf16> to vector<10x10xbf16>
    %c0_255 = arith.constant 0 : index
    %c17_256 = arith.constant 17 : index
    %234 = vector.load %arg0[%c0_255, %c17_256] : memref<10x146xbf16, #tpu.memory_space<vmem>>, vector<10x128xbf16>
    %cst_257 = arith.constant dense<0.000000e+00> : vector<10x128xf32>
    %235 = tpu.matmul %233, %234, %cst_257 {dimension_numbers = #tpu.dot_dimension_numbers<[1], [0], [0], [1], [0, 0, 1, 1], [], []>} : vector<10x10xbf16>, vector<10x128xbf16>, vector<10x128xf32> -> vector<10x128xf32>
    %236 = arith.addf %231, %235 : vector<10x128xf32>
    %c22_258 = arith.constant 22 : index
    %c0_259 = arith.constant 0 : index
    %c0_260 = arith.constant 0 : index
    %237 = vector.load %arg4[%c22_258, %c0_259, %c0_260] : memref<25x10x10xbf16, #tpu.memory_space<vmem>>, vector<1x10x10xbf16>
    %238 = vector.shape_cast %237 : vector<1x10x10xbf16> to vector<10x10xbf16>
    %c0_261 = arith.constant 0 : index
    %c17_262 = arith.constant 17 : index
    %239 = vector.load %arg1[%c0_261, %c17_262] : memref<10x146xbf16, #tpu.memory_space<vmem>>, vector<10x128xbf16>
    %cst_263 = arith.constant dense<0.000000e+00> : vector<10x128xf32>
    %240 = tpu.matmul %238, %239, %cst_263 {dimension_numbers = #tpu.dot_dimension_numbers<[1], [0], [0], [1], [0, 0, 1, 1], [], []>} : vector<10x10xbf16>, vector<10x128xbf16>, vector<10x128xf32> -> vector<10x128xf32>
    %241 = arith.addf %236, %240 : vector<10x128xf32>
    %c23_264 = arith.constant 23 : index
    %c0_265 = arith.constant 0 : index
    %c0_266 = arith.constant 0 : index
    %242 = vector.load %arg4[%c23_264, %c0_265, %c0_266] : memref<25x10x10xbf16, #tpu.memory_space<vmem>>, vector<1x10x10xbf16>
    %243 = vector.shape_cast %242 : vector<1x10x10xbf16> to vector<10x10xbf16>
    %c0_267 = arith.constant 0 : index
    %c18_268 = arith.constant 18 : index
    %244 = vector.load %arg0[%c0_267, %c18_268] : memref<10x146xbf16, #tpu.memory_space<vmem>>, vector<10x128xbf16>
    %cst_269 = arith.constant dense<0.000000e+00> : vector<10x128xf32>
    %245 = tpu.matmul %243, %244, %cst_269 {dimension_numbers = #tpu.dot_dimension_numbers<[1], [0], [0], [1], [0, 0, 1, 1], [], []>} : vector<10x10xbf16>, vector<10x128xbf16>, vector<10x128xf32> -> vector<10x128xf32>
    %246 = arith.addf %241, %245 : vector<10x128xf32>
    %c24_270 = arith.constant 24 : index
    %c0_271 = arith.constant 0 : index
    %c0_272 = arith.constant 0 : index
    %247 = vector.load %arg4[%c24_270, %c0_271, %c0_272] : memref<25x10x10xbf16, #tpu.memory_space<vmem>>, vector<1x10x10xbf16>
    %248 = vector.shape_cast %247 : vector<1x10x10xbf16> to vector<10x10xbf16>
    %c0_273 = arith.constant 0 : index
    %c18_274 = arith.constant 18 : index
    %249 = vector.load %arg1[%c0_273, %c18_274] : memref<10x146xbf16, #tpu.memory_space<vmem>>, vector<10x128xbf16>
    %cst_275 = arith.constant dense<0.000000e+00> : vector<10x128xf32>
    %250 = tpu.matmul %248, %249, %cst_275 {dimension_numbers = #tpu.dot_dimension_numbers<[1], [0], [0], [1], [0, 0, 1, 1], [], []>} : vector<10x10xbf16>, vector<10x128xbf16>, vector<10x128xf32> -> vector<10x128xf32>
    %251 = arith.addf %246, %250 : vector<10x128xf32>
    %252 = arith.maximumf %125, %251 : vector<10x128xf32>
    %cst_276 = arith.constant 0.000000e+00 : f32
    %253 = vector.broadcast %cst_276 : f32 to vector<10x128xf32>
    %c0_277 = arith.constant 0 : index
    %c0_278 = arith.constant 0 : index
    %c0_279 = arith.constant 0 : index
    %254 = vector.load %arg4[%c0_277, %c0_278, %c0_279] : memref<25x10x10xbf16, #tpu.memory_space<vmem>>, vector<1x10x10xbf16>
    %255 = vector.shape_cast %254 : vector<1x10x10xbf16> to vector<10x10xbf16>
    %c0_280 = arith.constant 0 : index
    %c0_281 = arith.constant 0 : index
    %256 = vector.load %arg2[%c0_280, %c0_281] : memref<10x146xbf16, #tpu.memory_space<vmem>>, vector<10x128xbf16>
    %cst_282 = arith.constant dense<0.000000e+00> : vector<10x128xf32>
    %257 = tpu.matmul %255, %256, %cst_282 {dimension_numbers = #tpu.dot_dimension_numbers<[1], [0], [0], [1], [0, 0, 1, 1], [], []>} : vector<10x10xbf16>, vector<10x128xbf16>, vector<10x128xf32> -> vector<10x128xf32>
    %258 = arith.addf %253, %257 : vector<10x128xf32>
    %c1_283 = arith.constant 1 : index
    %c0_284 = arith.constant 0 : index
    %c0_285 = arith.constant 0 : index
    %259 = vector.load %arg4[%c1_283, %c0_284, %c0_285] : memref<25x10x10xbf16, #tpu.memory_space<vmem>>, vector<1x10x10xbf16>
    %260 = vector.shape_cast %259 : vector<1x10x10xbf16> to vector<10x10xbf16>
    %c0_286 = arith.constant 0 : index
    %c0_287 = arith.constant 0 : index
    %261 = vector.load %arg3[%c0_286, %c0_287] : memref<10x146xbf16, #tpu.memory_space<vmem>>, vector<10x128xbf16>
    %cst_288 = arith.constant dense<0.000000e+00> : vector<10x128xf32>
    %262 = tpu.matmul %260, %261, %cst_288 {dimension_numbers = #tpu.dot_dimension_numbers<[1], [0], [0], [1], [0, 0, 1, 1], [], []>} : vector<10x10xbf16>, vector<10x128xbf16>, vector<10x128xf32> -> vector<10x128xf32>
    %263 = arith.addf %258, %262 : vector<10x128xf32>
    %c2_289 = arith.constant 2 : index
    %c0_290 = arith.constant 0 : index
    %c0_291 = arith.constant 0 : index
    %264 = vector.load %arg4[%c2_289, %c0_290, %c0_291] : memref<25x10x10xbf16, #tpu.memory_space<vmem>>, vector<1x10x10xbf16>
    %265 = vector.shape_cast %264 : vector<1x10x10xbf16> to vector<10x10xbf16>
    %c0_292 = arith.constant 0 : index
    %c1_293 = arith.constant 1 : index
    %266 = vector.load %arg2[%c0_292, %c1_293] : memref<10x146xbf16, #tpu.memory_space<vmem>>, vector<10x128xbf16>
    %cst_294 = arith.constant dense<0.000000e+00> : vector<10x128xf32>
    %267 = tpu.matmul %265, %266, %cst_294 {dimension_numbers = #tpu.dot_dimension_numbers<[1], [0], [0], [1], [0, 0, 1, 1], [], []>} : vector<10x10xbf16>, vector<10x128xbf16>, vector<10x128xf32> -> vector<10x128xf32>
    %268 = arith.addf %263, %267 : vector<10x128xf32>
    %c3_295 = arith.constant 3 : index
    %c0_296 = arith.constant 0 : index
    %c0_297 = arith.constant 0 : index
    %269 = vector.load %arg4[%c3_295, %c0_296, %c0_297] : memref<25x10x10xbf16, #tpu.memory_space<vmem>>, vector<1x10x10xbf16>
    %270 = vector.shape_cast %269 : vector<1x10x10xbf16> to vector<10x10xbf16>
    %c0_298 = arith.constant 0 : index
    %c1_299 = arith.constant 1 : index
    %271 = vector.load %arg3[%c0_298, %c1_299] : memref<10x146xbf16, #tpu.memory_space<vmem>>, vector<10x128xbf16>
    %cst_300 = arith.constant dense<0.000000e+00> : vector<10x128xf32>
    %272 = tpu.matmul %270, %271, %cst_300 {dimension_numbers = #tpu.dot_dimension_numbers<[1], [0], [0], [1], [0, 0, 1, 1], [], []>} : vector<10x10xbf16>, vector<10x128xbf16>, vector<10x128xf32> -> vector<10x128xf32>
    %273 = arith.addf %268, %272 : vector<10x128xf32>
    %c4_301 = arith.constant 4 : index
    %c0_302 = arith.constant 0 : index
    %c0_303 = arith.constant 0 : index
    %274 = vector.load %arg4[%c4_301, %c0_302, %c0_303] : memref<25x10x10xbf16, #tpu.memory_space<vmem>>, vector<1x10x10xbf16>
    %275 = vector.shape_cast %274 : vector<1x10x10xbf16> to vector<10x10xbf16>
    %c0_304 = arith.constant 0 : index
    %c2_305 = arith.constant 2 : index
    %276 = vector.load %arg2[%c0_304, %c2_305] : memref<10x146xbf16, #tpu.memory_space<vmem>>, vector<10x128xbf16>
    %cst_306 = arith.constant dense<0.000000e+00> : vector<10x128xf32>
    %277 = tpu.matmul %275, %276, %cst_306 {dimension_numbers = #tpu.dot_dimension_numbers<[1], [0], [0], [1], [0, 0, 1, 1], [], []>} : vector<10x10xbf16>, vector<10x128xbf16>, vector<10x128xf32> -> vector<10x128xf32>
    %278 = arith.addf %273, %277 : vector<10x128xf32>
    %c5_307 = arith.constant 5 : index
    %c0_308 = arith.constant 0 : index
    %c0_309 = arith.constant 0 : index
    %279 = vector.load %arg4[%c5_307, %c0_308, %c0_309] : memref<25x10x10xbf16, #tpu.memory_space<vmem>>, vector<1x10x10xbf16>
    %280 = vector.shape_cast %279 : vector<1x10x10xbf16> to vector<10x10xbf16>
    %c0_310 = arith.constant 0 : index
    %c8_311 = arith.constant 8 : index
    %281 = vector.load %arg0[%c0_310, %c8_311] : memref<10x146xbf16, #tpu.memory_space<vmem>>, vector<10x128xbf16>
    %cst_312 = arith.constant dense<0.000000e+00> : vector<10x128xf32>
    %282 = tpu.matmul %280, %281, %cst_312 {dimension_numbers = #tpu.dot_dimension_numbers<[1], [0], [0], [1], [0, 0, 1, 1], [], []>} : vector<10x10xbf16>, vector<10x128xbf16>, vector<10x128xf32> -> vector<10x128xf32>
    %283 = arith.addf %278, %282 : vector<10x128xf32>
    %c6_313 = arith.constant 6 : index
    %c0_314 = arith.constant 0 : index
    %c0_315 = arith.constant 0 : index
    %284 = vector.load %arg4[%c6_313, %c0_314, %c0_315] : memref<25x10x10xbf16, #tpu.memory_space<vmem>>, vector<1x10x10xbf16>
    %285 = vector.shape_cast %284 : vector<1x10x10xbf16> to vector<10x10xbf16>
    %c0_316 = arith.constant 0 : index
    %c8_317 = arith.constant 8 : index
    %286 = vector.load %arg1[%c0_316, %c8_317] : memref<10x146xbf16, #tpu.memory_space<vmem>>, vector<10x128xbf16>
    %cst_318 = arith.constant dense<0.000000e+00> : vector<10x128xf32>
    %287 = tpu.matmul %285, %286, %cst_318 {dimension_numbers = #tpu.dot_dimension_numbers<[1], [0], [0], [1], [0, 0, 1, 1], [], []>} : vector<10x10xbf16>, vector<10x128xbf16>, vector<10x128xf32> -> vector<10x128xf32>
    %288 = arith.addf %283, %287 : vector<10x128xf32>
    %c7_319 = arith.constant 7 : index
    %c0_320 = arith.constant 0 : index
    %c0_321 = arith.constant 0 : index
    %289 = vector.load %arg4[%c7_319, %c0_320, %c0_321] : memref<25x10x10xbf16, #tpu.memory_space<vmem>>, vector<1x10x10xbf16>
    %290 = vector.shape_cast %289 : vector<1x10x10xbf16> to vector<10x10xbf16>
    %c0_322 = arith.constant 0 : index
    %c9_323 = arith.constant 9 : index
    %291 = vector.load %arg0[%c0_322, %c9_323] : memref<10x146xbf16, #tpu.memory_space<vmem>>, vector<10x128xbf16>
    %cst_324 = arith.constant dense<0.000000e+00> : vector<10x128xf32>
    %292 = tpu.matmul %290, %291, %cst_324 {dimension_numbers = #tpu.dot_dimension_numbers<[1], [0], [0], [1], [0, 0, 1, 1], [], []>} : vector<10x10xbf16>, vector<10x128xbf16>, vector<10x128xf32> -> vector<10x128xf32>
    %293 = arith.addf %288, %292 : vector<10x128xf32>
    %c8_325 = arith.constant 8 : index
    %c0_326 = arith.constant 0 : index
    %c0_327 = arith.constant 0 : index
    %294 = vector.load %arg4[%c8_325, %c0_326, %c0_327] : memref<25x10x10xbf16, #tpu.memory_space<vmem>>, vector<1x10x10xbf16>
    %295 = vector.shape_cast %294 : vector<1x10x10xbf16> to vector<10x10xbf16>
    %c0_328 = arith.constant 0 : index
    %c9_329 = arith.constant 9 : index
    %296 = vector.load %arg1[%c0_328, %c9_329] : memref<10x146xbf16, #tpu.memory_space<vmem>>, vector<10x128xbf16>
    %cst_330 = arith.constant dense<0.000000e+00> : vector<10x128xf32>
    %297 = tpu.matmul %295, %296, %cst_330 {dimension_numbers = #tpu.dot_dimension_numbers<[1], [0], [0], [1], [0, 0, 1, 1], [], []>} : vector<10x10xbf16>, vector<10x128xbf16>, vector<10x128xf32> -> vector<10x128xf32>
    %298 = arith.addf %293, %297 : vector<10x128xf32>
    %c9_331 = arith.constant 9 : index
    %c0_332 = arith.constant 0 : index
    %c0_333 = arith.constant 0 : index
    %299 = vector.load %arg4[%c9_331, %c0_332, %c0_333] : memref<25x10x10xbf16, #tpu.memory_space<vmem>>, vector<1x10x10xbf16>
    %300 = vector.shape_cast %299 : vector<1x10x10xbf16> to vector<10x10xbf16>
    %c0_334 = arith.constant 0 : index
    %c10_335 = arith.constant 10 : index
    %301 = vector.load %arg0[%c0_334, %c10_335] : memref<10x146xbf16, #tpu.memory_space<vmem>>, vector<10x128xbf16>
    %cst_336 = arith.constant dense<0.000000e+00> : vector<10x128xf32>
    %302 = tpu.matmul %300, %301, %cst_336 {dimension_numbers = #tpu.dot_dimension_numbers<[1], [0], [0], [1], [0, 0, 1, 1], [], []>} : vector<10x10xbf16>, vector<10x128xbf16>, vector<10x128xf32> -> vector<10x128xf32>
    %303 = arith.addf %298, %302 : vector<10x128xf32>
    %c10_337 = arith.constant 10 : index
    %c0_338 = arith.constant 0 : index
    %c0_339 = arith.constant 0 : index
    %304 = vector.load %arg4[%c10_337, %c0_338, %c0_339] : memref<25x10x10xbf16, #tpu.memory_space<vmem>>, vector<1x10x10xbf16>
    %305 = vector.shape_cast %304 : vector<1x10x10xbf16> to vector<10x10xbf16>
    %c0_340 = arith.constant 0 : index
    %c8_341 = arith.constant 8 : index
    %306 = vector.load %arg2[%c0_340, %c8_341] : memref<10x146xbf16, #tpu.memory_space<vmem>>, vector<10x128xbf16>
    %cst_342 = arith.constant dense<0.000000e+00> : vector<10x128xf32>
    %307 = tpu.matmul %305, %306, %cst_342 {dimension_numbers = #tpu.dot_dimension_numbers<[1], [0], [0], [1], [0, 0, 1, 1], [], []>} : vector<10x10xbf16>, vector<10x128xbf16>, vector<10x128xf32> -> vector<10x128xf32>
    %308 = arith.addf %303, %307 : vector<10x128xf32>
    %c11_343 = arith.constant 11 : index
    %c0_344 = arith.constant 0 : index
    %c0_345 = arith.constant 0 : index
    %309 = vector.load %arg4[%c11_343, %c0_344, %c0_345] : memref<25x10x10xbf16, #tpu.memory_space<vmem>>, vector<1x10x10xbf16>
    %310 = vector.shape_cast %309 : vector<1x10x10xbf16> to vector<10x10xbf16>
    %c0_346 = arith.constant 0 : index
    %c8_347 = arith.constant 8 : index
    %311 = vector.load %arg3[%c0_346, %c8_347] : memref<10x146xbf16, #tpu.memory_space<vmem>>, vector<10x128xbf16>
    %cst_348 = arith.constant dense<0.000000e+00> : vector<10x128xf32>
    %312 = tpu.matmul %310, %311, %cst_348 {dimension_numbers = #tpu.dot_dimension_numbers<[1], [0], [0], [1], [0, 0, 1, 1], [], []>} : vector<10x10xbf16>, vector<10x128xbf16>, vector<10x128xf32> -> vector<10x128xf32>
    %313 = arith.addf %308, %312 : vector<10x128xf32>
    %c12_349 = arith.constant 12 : index
    %c0_350 = arith.constant 0 : index
    %c0_351 = arith.constant 0 : index
    %314 = vector.load %arg4[%c12_349, %c0_350, %c0_351] : memref<25x10x10xbf16, #tpu.memory_space<vmem>>, vector<1x10x10xbf16>
    %315 = vector.shape_cast %314 : vector<1x10x10xbf16> to vector<10x10xbf16>
    %c0_352 = arith.constant 0 : index
    %c9_353 = arith.constant 9 : index
    %316 = vector.load %arg2[%c0_352, %c9_353] : memref<10x146xbf16, #tpu.memory_space<vmem>>, vector<10x128xbf16>
    %cst_354 = arith.constant dense<0.000000e+00> : vector<10x128xf32>
    %317 = tpu.matmul %315, %316, %cst_354 {dimension_numbers = #tpu.dot_dimension_numbers<[1], [0], [0], [1], [0, 0, 1, 1], [], []>} : vector<10x10xbf16>, vector<10x128xbf16>, vector<10x128xf32> -> vector<10x128xf32>
    %318 = arith.addf %313, %317 : vector<10x128xf32>
    %c13_355 = arith.constant 13 : index
    %c0_356 = arith.constant 0 : index
    %c0_357 = arith.constant 0 : index
    %319 = vector.load %arg4[%c13_355, %c0_356, %c0_357] : memref<25x10x10xbf16, #tpu.memory_space<vmem>>, vector<1x10x10xbf16>
    %320 = vector.shape_cast %319 : vector<1x10x10xbf16> to vector<10x10xbf16>
    %c0_358 = arith.constant 0 : index
    %c9_359 = arith.constant 9 : index
    %321 = vector.load %arg3[%c0_358, %c9_359] : memref<10x146xbf16, #tpu.memory_space<vmem>>, vector<10x128xbf16>
    %cst_360 = arith.constant dense<0.000000e+00> : vector<10x128xf32>
    %322 = tpu.matmul %320, %321, %cst_360 {dimension_numbers = #tpu.dot_dimension_numbers<[1], [0], [0], [1], [0, 0, 1, 1], [], []>} : vector<10x10xbf16>, vector<10x128xbf16>, vector<10x128xf32> -> vector<10x128xf32>
    %323 = arith.addf %318, %322 : vector<10x128xf32>
    %c14_361 = arith.constant 14 : index
    %c0_362 = arith.constant 0 : index
    %c0_363 = arith.constant 0 : index
    %324 = vector.load %arg4[%c14_361, %c0_362, %c0_363] : memref<25x10x10xbf16, #tpu.memory_space<vmem>>, vector<1x10x10xbf16>
    %325 = vector.shape_cast %324 : vector<1x10x10xbf16> to vector<10x10xbf16>
    %c0_364 = arith.constant 0 : index
    %c10_365 = arith.constant 10 : index
    %326 = vector.load %arg2[%c0_364, %c10_365] : memref<10x146xbf16, #tpu.memory_space<vmem>>, vector<10x128xbf16>
    %cst_366 = arith.constant dense<0.000000e+00> : vector<10x128xf32>
    %327 = tpu.matmul %325, %326, %cst_366 {dimension_numbers = #tpu.dot_dimension_numbers<[1], [0], [0], [1], [0, 0, 1, 1], [], []>} : vector<10x10xbf16>, vector<10x128xbf16>, vector<10x128xf32> -> vector<10x128xf32>
    %328 = arith.addf %323, %327 : vector<10x128xf32>
    %c15_367 = arith.constant 15 : index
    %c0_368 = arith.constant 0 : index
    %c0_369 = arith.constant 0 : index
    %329 = vector.load %arg4[%c15_367, %c0_368, %c0_369] : memref<25x10x10xbf16, #tpu.memory_space<vmem>>, vector<1x10x10xbf16>
    %330 = vector.shape_cast %329 : vector<1x10x10xbf16> to vector<10x10xbf16>
    %c0_370 = arith.constant 0 : index
    %c16_371 = arith.constant 16 : index
    %331 = vector.load %arg0[%c0_370, %c16_371] : memref<10x146xbf16, #tpu.memory_space<vmem>>, vector<10x128xbf16>
    %cst_372 = arith.constant dense<0.000000e+00> : vector<10x128xf32>
    %332 = tpu.matmul %330, %331, %cst_372 {dimension_numbers = #tpu.dot_dimension_numbers<[1], [0], [0], [1], [0, 0, 1, 1], [], []>} : vector<10x10xbf16>, vector<10x128xbf16>, vector<10x128xf32> -> vector<10x128xf32>
    %333 = arith.addf %328, %332 : vector<10x128xf32>
    %c16_373 = arith.constant 16 : index
    %c0_374 = arith.constant 0 : index
    %c0_375 = arith.constant 0 : index
    %334 = vector.load %arg4[%c16_373, %c0_374, %c0_375] : memref<25x10x10xbf16, #tpu.memory_space<vmem>>, vector<1x10x10xbf16>
    %335 = vector.shape_cast %334 : vector<1x10x10xbf16> to vector<10x10xbf16>
    %c0_376 = arith.constant 0 : index
    %c16_377 = arith.constant 16 : index
    %336 = vector.load %arg1[%c0_376, %c16_377] : memref<10x146xbf16, #tpu.memory_space<vmem>>, vector<10x128xbf16>
    %cst_378 = arith.constant dense<0.000000e+00> : vector<10x128xf32>
    %337 = tpu.matmul %335, %336, %cst_378 {dimension_numbers = #tpu.dot_dimension_numbers<[1], [0], [0], [1], [0, 0, 1, 1], [], []>} : vector<10x10xbf16>, vector<10x128xbf16>, vector<10x128xf32> -> vector<10x128xf32>
    %338 = arith.addf %333, %337 : vector<10x128xf32>
    %c17_379 = arith.constant 17 : index
    %c0_380 = arith.constant 0 : index
    %c0_381 = arith.constant 0 : index
    %339 = vector.load %arg4[%c17_379, %c0_380, %c0_381] : memref<25x10x10xbf16, #tpu.memory_space<vmem>>, vector<1x10x10xbf16>
    %340 = vector.shape_cast %339 : vector<1x10x10xbf16> to vector<10x10xbf16>
    %c0_382 = arith.constant 0 : index
    %c17_383 = arith.constant 17 : index
    %341 = vector.load %arg0[%c0_382, %c17_383] : memref<10x146xbf16, #tpu.memory_space<vmem>>, vector<10x128xbf16>
    %cst_384 = arith.constant dense<0.000000e+00> : vector<10x128xf32>
    %342 = tpu.matmul %340, %341, %cst_384 {dimension_numbers = #tpu.dot_dimension_numbers<[1], [0], [0], [1], [0, 0, 1, 1], [], []>} : vector<10x10xbf16>, vector<10x128xbf16>, vector<10x128xf32> -> vector<10x128xf32>
    %343 = arith.addf %338, %342 : vector<10x128xf32>
    %c18_385 = arith.constant 18 : index
    %c0_386 = arith.constant 0 : index
    %c0_387 = arith.constant 0 : index
    %344 = vector.load %arg4[%c18_385, %c0_386, %c0_387] : memref<25x10x10xbf16, #tpu.memory_space<vmem>>, vector<1x10x10xbf16>
    %345 = vector.shape_cast %344 : vector<1x10x10xbf16> to vector<10x10xbf16>
    %c0_388 = arith.constant 0 : index
    %c17_389 = arith.constant 17 : index
    %346 = vector.load %arg1[%c0_388, %c17_389] : memref<10x146xbf16, #tpu.memory_space<vmem>>, vector<10x128xbf16>
    %cst_390 = arith.constant dense<0.000000e+00> : vector<10x128xf32>
    %347 = tpu.matmul %345, %346, %cst_390 {dimension_numbers = #tpu.dot_dimension_numbers<[1], [0], [0], [1], [0, 0, 1, 1], [], []>} : vector<10x10xbf16>, vector<10x128xbf16>, vector<10x128xf32> -> vector<10x128xf32>
    %348 = arith.addf %343, %347 : vector<10x128xf32>
    %c19_391 = arith.constant 19 : index
    %c0_392 = arith.constant 0 : index
    %c0_393 = arith.constant 0 : index
    %349 = vector.load %arg4[%c19_391, %c0_392, %c0_393] : memref<25x10x10xbf16, #tpu.memory_space<vmem>>, vector<1x10x10xbf16>
    %350 = vector.shape_cast %349 : vector<1x10x10xbf16> to vector<10x10xbf16>
    %c0_394 = arith.constant 0 : index
    %c18_395 = arith.constant 18 : index
    %351 = vector.load %arg0[%c0_394, %c18_395] : memref<10x146xbf16, #tpu.memory_space<vmem>>, vector<10x128xbf16>
    %cst_396 = arith.constant dense<0.000000e+00> : vector<10x128xf32>
    %352 = tpu.matmul %350, %351, %cst_396 {dimension_numbers = #tpu.dot_dimension_numbers<[1], [0], [0], [1], [0, 0, 1, 1], [], []>} : vector<10x10xbf16>, vector<10x128xbf16>, vector<10x128xf32> -> vector<10x128xf32>
    %353 = arith.addf %348, %352 : vector<10x128xf32>
    %c20_397 = arith.constant 20 : index
    %c0_398 = arith.constant 0 : index
    %c0_399 = arith.constant 0 : index
    %354 = vector.load %arg4[%c20_397, %c0_398, %c0_399] : memref<25x10x10xbf16, #tpu.memory_space<vmem>>, vector<1x10x10xbf16>
    %355 = vector.shape_cast %354 : vector<1x10x10xbf16> to vector<10x10xbf16>
    %c0_400 = arith.constant 0 : index
    %c16_401 = arith.constant 16 : index
    %356 = vector.load %arg2[%c0_400, %c16_401] : memref<10x146xbf16, #tpu.memory_space<vmem>>, vector<10x128xbf16>
    %cst_402 = arith.constant dense<0.000000e+00> : vector<10x128xf32>
    %357 = tpu.matmul %355, %356, %cst_402 {dimension_numbers = #tpu.dot_dimension_numbers<[1], [0], [0], [1], [0, 0, 1, 1], [], []>} : vector<10x10xbf16>, vector<10x128xbf16>, vector<10x128xf32> -> vector<10x128xf32>
    %358 = arith.addf %353, %357 : vector<10x128xf32>
    %c21_403 = arith.constant 21 : index
    %c0_404 = arith.constant 0 : index
    %c0_405 = arith.constant 0 : index
    %359 = vector.load %arg4[%c21_403, %c0_404, %c0_405] : memref<25x10x10xbf16, #tpu.memory_space<vmem>>, vector<1x10x10xbf16>
    %360 = vector.shape_cast %359 : vector<1x10x10xbf16> to vector<10x10xbf16>
    %c0_406 = arith.constant 0 : index
    %c16_407 = arith.constant 16 : index
    %361 = vector.load %arg3[%c0_406, %c16_407] : memref<10x146xbf16, #tpu.memory_space<vmem>>, vector<10x128xbf16>
    %cst_408 = arith.constant dense<0.000000e+00> : vector<10x128xf32>
    %362 = tpu.matmul %360, %361, %cst_408 {dimension_numbers = #tpu.dot_dimension_numbers<[1], [0], [0], [1], [0, 0, 1, 1], [], []>} : vector<10x10xbf16>, vector<10x128xbf16>, vector<10x128xf32> -> vector<10x128xf32>
    %363 = arith.addf %358, %362 : vector<10x128xf32>
    %c22_409 = arith.constant 22 : index
    %c0_410 = arith.constant 0 : index
    %c0_411 = arith.constant 0 : index
    %364 = vector.load %arg4[%c22_409, %c0_410, %c0_411] : memref<25x10x10xbf16, #tpu.memory_space<vmem>>, vector<1x10x10xbf16>
    %365 = vector.shape_cast %364 : vector<1x10x10xbf16> to vector<10x10xbf16>
    %c0_412 = arith.constant 0 : index
    %c17_413 = arith.constant 17 : index
    %366 = vector.load %arg2[%c0_412, %c17_413] : memref<10x146xbf16, #tpu.memory_space<vmem>>, vector<10x128xbf16>
    %cst_414 = arith.constant dense<0.000000e+00> : vector<10x128xf32>
    %367 = tpu.matmul %365, %366, %cst_414 {dimension_numbers = #tpu.dot_dimension_numbers<[1], [0], [0], [1], [0, 0, 1, 1], [], []>} : vector<10x10xbf16>, vector<10x128xbf16>, vector<10x128xf32> -> vector<10x128xf32>
    %368 = arith.addf %363, %367 : vector<10x128xf32>
    %c23_415 = arith.constant 23 : index
    %c0_416 = arith.constant 0 : index
    %c0_417 = arith.constant 0 : index
    %369 = vector.load %arg4[%c23_415, %c0_416, %c0_417] : memref<25x10x10xbf16, #tpu.memory_space<vmem>>, vector<1x10x10xbf16>
    %370 = vector.shape_cast %369 : vector<1x10x10xbf16> to vector<10x10xbf16>
    %c0_418 = arith.constant 0 : index
    %c17_419 = arith.constant 17 : index
    %371 = vector.load %arg3[%c0_418, %c17_419] : memref<10x146xbf16, #tpu.memory_space<vmem>>, vector<10x128xbf16>
    %cst_420 = arith.constant dense<0.000000e+00> : vector<10x128xf32>
    %372 = tpu.matmul %370, %371, %cst_420 {dimension_numbers = #tpu.dot_dimension_numbers<[1], [0], [0], [1], [0, 0, 1, 1], [], []>} : vector<10x10xbf16>, vector<10x128xbf16>, vector<10x128xf32> -> vector<10x128xf32>
    %373 = arith.addf %368, %372 : vector<10x128xf32>
    %c24_421 = arith.constant 24 : index
    %c0_422 = arith.constant 0 : index
    %c0_423 = arith.constant 0 : index
    %374 = vector.load %arg4[%c24_421, %c0_422, %c0_423] : memref<25x10x10xbf16, #tpu.memory_space<vmem>>, vector<1x10x10xbf16>
    %375 = vector.shape_cast %374 : vector<1x10x10xbf16> to vector<10x10xbf16>
    %c0_424 = arith.constant 0 : index
    %c18_425 = arith.constant 18 : index
    %376 = vector.load %arg2[%c0_424, %c18_425] : memref<10x146xbf16, #tpu.memory_space<vmem>>, vector<10x128xbf16>
    %cst_426 = arith.constant dense<0.000000e+00> : vector<10x128xf32>
    %377 = tpu.matmul %375, %376, %cst_426 {dimension_numbers = #tpu.dot_dimension_numbers<[1], [0], [0], [1], [0, 0, 1, 1], [], []>} : vector<10x10xbf16>, vector<10x128xbf16>, vector<10x128xf32> -> vector<10x128xf32>
    %378 = arith.addf %373, %377 : vector<10x128xf32>
    %379 = arith.maximumf %252, %378 : vector<10x128xf32>
    %cst_427 = arith.constant 0.000000e+00 : f32
    %380 = vector.broadcast %cst_427 : f32 to vector<10x128xf32>
    %c0_428 = arith.constant 0 : index
    %c0_429 = arith.constant 0 : index
    %c0_430 = arith.constant 0 : index
    %381 = vector.load %arg4[%c0_428, %c0_429, %c0_430] : memref<25x10x10xbf16, #tpu.memory_space<vmem>>, vector<1x10x10xbf16>
    %382 = vector.shape_cast %381 : vector<1x10x10xbf16> to vector<10x10xbf16>
    %c0_431 = arith.constant 0 : index
    %c0_432 = arith.constant 0 : index
    %383 = vector.load %arg3[%c0_431, %c0_432] : memref<10x146xbf16, #tpu.memory_space<vmem>>, vector<10x128xbf16>
    %cst_433 = arith.constant dense<0.000000e+00> : vector<10x128xf32>
    %384 = tpu.matmul %382, %383, %cst_433 {dimension_numbers = #tpu.dot_dimension_numbers<[1], [0], [0], [1], [0, 0, 1, 1], [], []>} : vector<10x10xbf16>, vector<10x128xbf16>, vector<10x128xf32> -> vector<10x128xf32>
    %385 = arith.addf %380, %384 : vector<10x128xf32>
    %c1_434 = arith.constant 1 : index
    %c0_435 = arith.constant 0 : index
    %c0_436 = arith.constant 0 : index
    %386 = vector.load %arg4[%c1_434, %c0_435, %c0_436] : memref<25x10x10xbf16, #tpu.memory_space<vmem>>, vector<1x10x10xbf16>
    %387 = vector.shape_cast %386 : vector<1x10x10xbf16> to vector<10x10xbf16>
    %c0_437 = arith.constant 0 : index
    %c1_438 = arith.constant 1 : index
    %388 = vector.load %arg2[%c0_437, %c1_438] : memref<10x146xbf16, #tpu.memory_space<vmem>>, vector<10x128xbf16>
    %cst_439 = arith.constant dense<0.000000e+00> : vector<10x128xf32>
    %389 = tpu.matmul %387, %388, %cst_439 {dimension_numbers = #tpu.dot_dimension_numbers<[1], [0], [0], [1], [0, 0, 1, 1], [], []>} : vector<10x10xbf16>, vector<10x128xbf16>, vector<10x128xf32> -> vector<10x128xf32>
    %390 = arith.addf %385, %389 : vector<10x128xf32>
    %c2_440 = arith.constant 2 : index
    %c0_441 = arith.constant 0 : index
    %c0_442 = arith.constant 0 : index
    %391 = vector.load %arg4[%c2_440, %c0_441, %c0_442] : memref<25x10x10xbf16, #tpu.memory_space<vmem>>, vector<1x10x10xbf16>
    %392 = vector.shape_cast %391 : vector<1x10x10xbf16> to vector<10x10xbf16>
    %c0_443 = arith.constant 0 : index
    %c1_444 = arith.constant 1 : index
    %393 = vector.load %arg3[%c0_443, %c1_444] : memref<10x146xbf16, #tpu.memory_space<vmem>>, vector<10x128xbf16>
    %cst_445 = arith.constant dense<0.000000e+00> : vector<10x128xf32>
    %394 = tpu.matmul %392, %393, %cst_445 {dimension_numbers = #tpu.dot_dimension_numbers<[1], [0], [0], [1], [0, 0, 1, 1], [], []>} : vector<10x10xbf16>, vector<10x128xbf16>, vector<10x128xf32> -> vector<10x128xf32>
    %395 = arith.addf %390, %394 : vector<10x128xf32>
    %c3_446 = arith.constant 3 : index
    %c0_447 = arith.constant 0 : index
    %c0_448 = arith.constant 0 : index
    %396 = vector.load %arg4[%c3_446, %c0_447, %c0_448] : memref<25x10x10xbf16, #tpu.memory_space<vmem>>, vector<1x10x10xbf16>
    %397 = vector.shape_cast %396 : vector<1x10x10xbf16> to vector<10x10xbf16>
    %c0_449 = arith.constant 0 : index
    %c2_450 = arith.constant 2 : index
    %398 = vector.load %arg2[%c0_449, %c2_450] : memref<10x146xbf16, #tpu.memory_space<vmem>>, vector<10x128xbf16>
    %cst_451 = arith.constant dense<0.000000e+00> : vector<10x128xf32>
    %399 = tpu.matmul %397, %398, %cst_451 {dimension_numbers = #tpu.dot_dimension_numbers<[1], [0], [0], [1], [0, 0, 1, 1], [], []>} : vector<10x10xbf16>, vector<10x128xbf16>, vector<10x128xf32> -> vector<10x128xf32>
    %400 = arith.addf %395, %399 : vector<10x128xf32>
    %c4_452 = arith.constant 4 : index
    %c0_453 = arith.constant 0 : index
    %c0_454 = arith.constant 0 : index
    %401 = vector.load %arg4[%c4_452, %c0_453, %c0_454] : memref<25x10x10xbf16, #tpu.memory_space<vmem>>, vector<1x10x10xbf16>
    %402 = vector.shape_cast %401 : vector<1x10x10xbf16> to vector<10x10xbf16>
    %c0_455 = arith.constant 0 : index
    %c2_456 = arith.constant 2 : index
    %403 = vector.load %arg3[%c0_455, %c2_456] : memref<10x146xbf16, #tpu.memory_space<vmem>>, vector<10x128xbf16>
    %cst_457 = arith.constant dense<0.000000e+00> : vector<10x128xf32>
    %404 = tpu.matmul %402, %403, %cst_457 {dimension_numbers = #tpu.dot_dimension_numbers<[1], [0], [0], [1], [0, 0, 1, 1], [], []>} : vector<10x10xbf16>, vector<10x128xbf16>, vector<10x128xf32> -> vector<10x128xf32>
    %405 = arith.addf %400, %404 : vector<10x128xf32>
    %c5_458 = arith.constant 5 : index
    %c0_459 = arith.constant 0 : index
    %c0_460 = arith.constant 0 : index
    %406 = vector.load %arg4[%c5_458, %c0_459, %c0_460] : memref<25x10x10xbf16, #tpu.memory_space<vmem>>, vector<1x10x10xbf16>
    %407 = vector.shape_cast %406 : vector<1x10x10xbf16> to vector<10x10xbf16>
    %c0_461 = arith.constant 0 : index
    %c8_462 = arith.constant 8 : index
    %408 = vector.load %arg1[%c0_461, %c8_462] : memref<10x146xbf16, #tpu.memory_space<vmem>>, vector<10x128xbf16>
    %cst_463 = arith.constant dense<0.000000e+00> : vector<10x128xf32>
    %409 = tpu.matmul %407, %408, %cst_463 {dimension_numbers = #tpu.dot_dimension_numbers<[1], [0], [0], [1], [0, 0, 1, 1], [], []>} : vector<10x10xbf16>, vector<10x128xbf16>, vector<10x128xf32> -> vector<10x128xf32>
    %410 = arith.addf %405, %409 : vector<10x128xf32>
    %c6_464 = arith.constant 6 : index
    %c0_465 = arith.constant 0 : index
    %c0_466 = arith.constant 0 : index
    %411 = vector.load %arg4[%c6_464, %c0_465, %c0_466] : memref<25x10x10xbf16, #tpu.memory_space<vmem>>, vector<1x10x10xbf16>
    %412 = vector.shape_cast %411 : vector<1x10x10xbf16> to vector<10x10xbf16>
    %c0_467 = arith.constant 0 : index
    %c9_468 = arith.constant 9 : index
    %413 = vector.load %arg0[%c0_467, %c9_468] : memref<10x146xbf16, #tpu.memory_space<vmem>>, vector<10x128xbf16>
    %cst_469 = arith.constant dense<0.000000e+00> : vector<10x128xf32>
    %414 = tpu.matmul %412, %413, %cst_469 {dimension_numbers = #tpu.dot_dimension_numbers<[1], [0], [0], [1], [0, 0, 1, 1], [], []>} : vector<10x10xbf16>, vector<10x128xbf16>, vector<10x128xf32> -> vector<10x128xf32>
    %415 = arith.addf %410, %414 : vector<10x128xf32>
    %c7_470 = arith.constant 7 : index
    %c0_471 = arith.constant 0 : index
    %c0_472 = arith.constant 0 : index
    %416 = vector.load %arg4[%c7_470, %c0_471, %c0_472] : memref<25x10x10xbf16, #tpu.memory_space<vmem>>, vector<1x10x10xbf16>
    %417 = vector.shape_cast %416 : vector<1x10x10xbf16> to vector<10x10xbf16>
    %c0_473 = arith.constant 0 : index
    %c9_474 = arith.constant 9 : index
    %418 = vector.load %arg1[%c0_473, %c9_474] : memref<10x146xbf16, #tpu.memory_space<vmem>>, vector<10x128xbf16>
    %cst_475 = arith.constant dense<0.000000e+00> : vector<10x128xf32>
    %419 = tpu.matmul %417, %418, %cst_475 {dimension_numbers = #tpu.dot_dimension_numbers<[1], [0], [0], [1], [0, 0, 1, 1], [], []>} : vector<10x10xbf16>, vector<10x128xbf16>, vector<10x128xf32> -> vector<10x128xf32>
    %420 = arith.addf %415, %419 : vector<10x128xf32>
    %c8_476 = arith.constant 8 : index
    %c0_477 = arith.constant 0 : index
    %c0_478 = arith.constant 0 : index
    %421 = vector.load %arg4[%c8_476, %c0_477, %c0_478] : memref<25x10x10xbf16, #tpu.memory_space<vmem>>, vector<1x10x10xbf16>
    %422 = vector.shape_cast %421 : vector<1x10x10xbf16> to vector<10x10xbf16>
    %c0_479 = arith.constant 0 : index
    %c10_480 = arith.constant 10 : index
    %423 = vector.load %arg0[%c0_479, %c10_480] : memref<10x146xbf16, #tpu.memory_space<vmem>>, vector<10x128xbf16>
    %cst_481 = arith.constant dense<0.000000e+00> : vector<10x128xf32>
    %424 = tpu.matmul %422, %423, %cst_481 {dimension_numbers = #tpu.dot_dimension_numbers<[1], [0], [0], [1], [0, 0, 1, 1], [], []>} : vector<10x10xbf16>, vector<10x128xbf16>, vector<10x128xf32> -> vector<10x128xf32>
    %425 = arith.addf %420, %424 : vector<10x128xf32>
    %c9_482 = arith.constant 9 : index
    %c0_483 = arith.constant 0 : index
    %c0_484 = arith.constant 0 : index
    %426 = vector.load %arg4[%c9_482, %c0_483, %c0_484] : memref<25x10x10xbf16, #tpu.memory_space<vmem>>, vector<1x10x10xbf16>
    %427 = vector.shape_cast %426 : vector<1x10x10xbf16> to vector<10x10xbf16>
    %c0_485 = arith.constant 0 : index
    %c10_486 = arith.constant 10 : index
    %428 = vector.load %arg1[%c0_485, %c10_486] : memref<10x146xbf16, #tpu.memory_space<vmem>>, vector<10x128xbf16>
    %cst_487 = arith.constant dense<0.000000e+00> : vector<10x128xf32>
    %429 = tpu.matmul %427, %428, %cst_487 {dimension_numbers = #tpu.dot_dimension_numbers<[1], [0], [0], [1], [0, 0, 1, 1], [], []>} : vector<10x10xbf16>, vector<10x128xbf16>, vector<10x128xf32> -> vector<10x128xf32>
    %430 = arith.addf %425, %429 : vector<10x128xf32>
    %c10_488 = arith.constant 10 : index
    %c0_489 = arith.constant 0 : index
    %c0_490 = arith.constant 0 : index
    %431 = vector.load %arg4[%c10_488, %c0_489, %c0_490] : memref<25x10x10xbf16, #tpu.memory_space<vmem>>, vector<1x10x10xbf16>
    %432 = vector.shape_cast %431 : vector<1x10x10xbf16> to vector<10x10xbf16>
    %c0_491 = arith.constant 0 : index
    %c8_492 = arith.constant 8 : index
    %433 = vector.load %arg3[%c0_491, %c8_492] : memref<10x146xbf16, #tpu.memory_space<vmem>>, vector<10x128xbf16>
    %cst_493 = arith.constant dense<0.000000e+00> : vector<10x128xf32>
    %434 = tpu.matmul %432, %433, %cst_493 {dimension_numbers = #tpu.dot_dimension_numbers<[1], [0], [0], [1], [0, 0, 1, 1], [], []>} : vector<10x10xbf16>, vector<10x128xbf16>, vector<10x128xf32> -> vector<10x128xf32>
    %435 = arith.addf %430, %434 : vector<10x128xf32>
    %c11_494 = arith.constant 11 : index
    %c0_495 = arith.constant 0 : index
    %c0_496 = arith.constant 0 : index
    %436 = vector.load %arg4[%c11_494, %c0_495, %c0_496] : memref<25x10x10xbf16, #tpu.memory_space<vmem>>, vector<1x10x10xbf16>
    %437 = vector.shape_cast %436 : vector<1x10x10xbf16> to vector<10x10xbf16>
    %c0_497 = arith.constant 0 : index
    %c9_498 = arith.constant 9 : index
    %438 = vector.load %arg2[%c0_497, %c9_498] : memref<10x146xbf16, #tpu.memory_space<vmem>>, vector<10x128xbf16>
    %cst_499 = arith.constant dense<0.000000e+00> : vector<10x128xf32>
    %439 = tpu.matmul %437, %438, %cst_499 {dimension_numbers = #tpu.dot_dimension_numbers<[1], [0], [0], [1], [0, 0, 1, 1], [], []>} : vector<10x10xbf16>, vector<10x128xbf16>, vector<10x128xf32> -> vector<10x128xf32>
    %440 = arith.addf %435, %439 : vector<10x128xf32>
    %c12_500 = arith.constant 12 : index
    %c0_501 = arith.constant 0 : index
    %c0_502 = arith.constant 0 : index
    %441 = vector.load %arg4[%c12_500, %c0_501, %c0_502] : memref<25x10x10xbf16, #tpu.memory_space<vmem>>, vector<1x10x10xbf16>
    %442 = vector.shape_cast %441 : vector<1x10x10xbf16> to vector<10x10xbf16>
    %c0_503 = arith.constant 0 : index
    %c9_504 = arith.constant 9 : index
    %443 = vector.load %arg3[%c0_503, %c9_504] : memref<10x146xbf16, #tpu.memory_space<vmem>>, vector<10x128xbf16>
    %cst_505 = arith.constant dense<0.000000e+00> : vector<10x128xf32>
    %444 = tpu.matmul %442, %443, %cst_505 {dimension_numbers = #tpu.dot_dimension_numbers<[1], [0], [0], [1], [0, 0, 1, 1], [], []>} : vector<10x10xbf16>, vector<10x128xbf16>, vector<10x128xf32> -> vector<10x128xf32>
    %445 = arith.addf %440, %444 : vector<10x128xf32>
    %c13_506 = arith.constant 13 : index
    %c0_507 = arith.constant 0 : index
    %c0_508 = arith.constant 0 : index
    %446 = vector.load %arg4[%c13_506, %c0_507, %c0_508] : memref<25x10x10xbf16, #tpu.memory_space<vmem>>, vector<1x10x10xbf16>
    %447 = vector.shape_cast %446 : vector<1x10x10xbf16> to vector<10x10xbf16>
    %c0_509 = arith.constant 0 : index
    %c10_510 = arith.constant 10 : index
    %448 = vector.load %arg2[%c0_509, %c10_510] : memref<10x146xbf16, #tpu.memory_space<vmem>>, vector<10x128xbf16>
    %cst_511 = arith.constant dense<0.000000e+00> : vector<10x128xf32>
    %449 = tpu.matmul %447, %448, %cst_511 {dimension_numbers = #tpu.dot_dimension_numbers<[1], [0], [0], [1], [0, 0, 1, 1], [], []>} : vector<10x10xbf16>, vector<10x128xbf16>, vector<10x128xf32> -> vector<10x128xf32>
    %450 = arith.addf %445, %449 : vector<10x128xf32>
    %c14_512 = arith.constant 14 : index
    %c0_513 = arith.constant 0 : index
    %c0_514 = arith.constant 0 : index
    %451 = vector.load %arg4[%c14_512, %c0_513, %c0_514] : memref<25x10x10xbf16, #tpu.memory_space<vmem>>, vector<1x10x10xbf16>
    %452 = vector.shape_cast %451 : vector<1x10x10xbf16> to vector<10x10xbf16>
    %c0_515 = arith.constant 0 : index
    %c10_516 = arith.constant 10 : index
    %453 = vector.load %arg3[%c0_515, %c10_516] : memref<10x146xbf16, #tpu.memory_space<vmem>>, vector<10x128xbf16>
    %cst_517 = arith.constant dense<0.000000e+00> : vector<10x128xf32>
    %454 = tpu.matmul %452, %453, %cst_517 {dimension_numbers = #tpu.dot_dimension_numbers<[1], [0], [0], [1], [0, 0, 1, 1], [], []>} : vector<10x10xbf16>, vector<10x128xbf16>, vector<10x128xf32> -> vector<10x128xf32>
    %455 = arith.addf %450, %454 : vector<10x128xf32>
    %c15_518 = arith.constant 15 : index
    %c0_519 = arith.constant 0 : index
    %c0_520 = arith.constant 0 : index
    %456 = vector.load %arg4[%c15_518, %c0_519, %c0_520] : memref<25x10x10xbf16, #tpu.memory_space<vmem>>, vector<1x10x10xbf16>
    %457 = vector.shape_cast %456 : vector<1x10x10xbf16> to vector<10x10xbf16>
    %c0_521 = arith.constant 0 : index
    %c16_522 = arith.constant 16 : index
    %458 = vector.load %arg1[%c0_521, %c16_522] : memref<10x146xbf16, #tpu.memory_space<vmem>>, vector<10x128xbf16>
    %cst_523 = arith.constant dense<0.000000e+00> : vector<10x128xf32>
    %459 = tpu.matmul %457, %458, %cst_523 {dimension_numbers = #tpu.dot_dimension_numbers<[1], [0], [0], [1], [0, 0, 1, 1], [], []>} : vector<10x10xbf16>, vector<10x128xbf16>, vector<10x128xf32> -> vector<10x128xf32>
    %460 = arith.addf %455, %459 : vector<10x128xf32>
    %c16_524 = arith.constant 16 : index
    %c0_525 = arith.constant 0 : index
    %c0_526 = arith.constant 0 : index
    %461 = vector.load %arg4[%c16_524, %c0_525, %c0_526] : memref<25x10x10xbf16, #tpu.memory_space<vmem>>, vector<1x10x10xbf16>
    %462 = vector.shape_cast %461 : vector<1x10x10xbf16> to vector<10x10xbf16>
    %c0_527 = arith.constant 0 : index
    %c17_528 = arith.constant 17 : index
    %463 = vector.load %arg0[%c0_527, %c17_528] : memref<10x146xbf16, #tpu.memory_space<vmem>>, vector<10x128xbf16>
    %cst_529 = arith.constant dense<0.000000e+00> : vector<10x128xf32>
    %464 = tpu.matmul %462, %463, %cst_529 {dimension_numbers = #tpu.dot_dimension_numbers<[1], [0], [0], [1], [0, 0, 1, 1], [], []>} : vector<10x10xbf16>, vector<10x128xbf16>, vector<10x128xf32> -> vector<10x128xf32>
    %465 = arith.addf %460, %464 : vector<10x128xf32>
    %c17_530 = arith.constant 17 : index
    %c0_531 = arith.constant 0 : index
    %c0_532 = arith.constant 0 : index
    %466 = vector.load %arg4[%c17_530, %c0_531, %c0_532] : memref<25x10x10xbf16, #tpu.memory_space<vmem>>, vector<1x10x10xbf16>
    %467 = vector.shape_cast %466 : vector<1x10x10xbf16> to vector<10x10xbf16>
    %c0_533 = arith.constant 0 : index
    %c17_534 = arith.constant 17 : index
    %468 = vector.load %arg1[%c0_533, %c17_534] : memref<10x146xbf16, #tpu.memory_space<vmem>>, vector<10x128xbf16>
    %cst_535 = arith.constant dense<0.000000e+00> : vector<10x128xf32>
    %469 = tpu.matmul %467, %468, %cst_535 {dimension_numbers = #tpu.dot_dimension_numbers<[1], [0], [0], [1], [0, 0, 1, 1], [], []>} : vector<10x10xbf16>, vector<10x128xbf16>, vector<10x128xf32> -> vector<10x128xf32>
    %470 = arith.addf %465, %469 : vector<10x128xf32>
    %c18_536 = arith.constant 18 : index
    %c0_537 = arith.constant 0 : index
    %c0_538 = arith.constant 0 : index
    %471 = vector.load %arg4[%c18_536, %c0_537, %c0_538] : memref<25x10x10xbf16, #tpu.memory_space<vmem>>, vector<1x10x10xbf16>
    %472 = vector.shape_cast %471 : vector<1x10x10xbf16> to vector<10x10xbf16>
    %c0_539 = arith.constant 0 : index
    %c18_540 = arith.constant 18 : index
    %473 = vector.load %arg0[%c0_539, %c18_540] : memref<10x146xbf16, #tpu.memory_space<vmem>>, vector<10x128xbf16>
    %cst_541 = arith.constant dense<0.000000e+00> : vector<10x128xf32>
    %474 = tpu.matmul %472, %473, %cst_541 {dimension_numbers = #tpu.dot_dimension_numbers<[1], [0], [0], [1], [0, 0, 1, 1], [], []>} : vector<10x10xbf16>, vector<10x128xbf16>, vector<10x128xf32> -> vector<10x128xf32>
    %475 = arith.addf %470, %474 : vector<10x128xf32>
    %c19_542 = arith.constant 19 : index
    %c0_543 = arith.constant 0 : index
    %c0_544 = arith.constant 0 : index
    %476 = vector.load %arg4[%c19_542, %c0_543, %c0_544] : memref<25x10x10xbf16, #tpu.memory_space<vmem>>, vector<1x10x10xbf16>
    %477 = vector.shape_cast %476 : vector<1x10x10xbf16> to vector<10x10xbf16>
    %c0_545 = arith.constant 0 : index
    %c18_546 = arith.constant 18 : index
    %478 = vector.load %arg1[%c0_545, %c18_546] : memref<10x146xbf16, #tpu.memory_space<vmem>>, vector<10x128xbf16>
    %cst_547 = arith.constant dense<0.000000e+00> : vector<10x128xf32>
    %479 = tpu.matmul %477, %478, %cst_547 {dimension_numbers = #tpu.dot_dimension_numbers<[1], [0], [0], [1], [0, 0, 1, 1], [], []>} : vector<10x10xbf16>, vector<10x128xbf16>, vector<10x128xf32> -> vector<10x128xf32>
    %480 = arith.addf %475, %479 : vector<10x128xf32>
    %c20_548 = arith.constant 20 : index
    %c0_549 = arith.constant 0 : index
    %c0_550 = arith.constant 0 : index
    %481 = vector.load %arg4[%c20_548, %c0_549, %c0_550] : memref<25x10x10xbf16, #tpu.memory_space<vmem>>, vector<1x10x10xbf16>
    %482 = vector.shape_cast %481 : vector<1x10x10xbf16> to vector<10x10xbf16>
    %c0_551 = arith.constant 0 : index
    %c16_552 = arith.constant 16 : index
    %483 = vector.load %arg3[%c0_551, %c16_552] : memref<10x146xbf16, #tpu.memory_space<vmem>>, vector<10x128xbf16>
    %cst_553 = arith.constant dense<0.000000e+00> : vector<10x128xf32>
    %484 = tpu.matmul %482, %483, %cst_553 {dimension_numbers = #tpu.dot_dimension_numbers<[1], [0], [0], [1], [0, 0, 1, 1], [], []>} : vector<10x10xbf16>, vector<10x128xbf16>, vector<10x128xf32> -> vector<10x128xf32>
    %485 = arith.addf %480, %484 : vector<10x128xf32>
    %c21_554 = arith.constant 21 : index
    %c0_555 = arith.constant 0 : index
    %c0_556 = arith.constant 0 : index
    %486 = vector.load %arg4[%c21_554, %c0_555, %c0_556] : memref<25x10x10xbf16, #tpu.memory_space<vmem>>, vector<1x10x10xbf16>
    %487 = vector.shape_cast %486 : vector<1x10x10xbf16> to vector<10x10xbf16>
    %c0_557 = arith.constant 0 : index
    %c17_558 = arith.constant 17 : index
    %488 = vector.load %arg2[%c0_557, %c17_558] : memref<10x146xbf16, #tpu.memory_space<vmem>>, vector<10x128xbf16>
    %cst_559 = arith.constant dense<0.000000e+00> : vector<10x128xf32>
    %489 = tpu.matmul %487, %488, %cst_559 {dimension_numbers = #tpu.dot_dimension_numbers<[1], [0], [0], [1], [0, 0, 1, 1], [], []>} : vector<10x10xbf16>, vector<10x128xbf16>, vector<10x128xf32> -> vector<10x128xf32>
    %490 = arith.addf %485, %489 : vector<10x128xf32>
    %c22_560 = arith.constant 22 : index
    %c0_561 = arith.constant 0 : index
    %c0_562 = arith.constant 0 : index
    %491 = vector.load %arg4[%c22_560, %c0_561, %c0_562] : memref<25x10x10xbf16, #tpu.memory_space<vmem>>, vector<1x10x10xbf16>
    %492 = vector.shape_cast %491 : vector<1x10x10xbf16> to vector<10x10xbf16>
    %c0_563 = arith.constant 0 : index
    %c17_564 = arith.constant 17 : index
    %493 = vector.load %arg3[%c0_563, %c17_564] : memref<10x146xbf16, #tpu.memory_space<vmem>>, vector<10x128xbf16>
    %cst_565 = arith.constant dense<0.000000e+00> : vector<10x128xf32>
    %494 = tpu.matmul %492, %493, %cst_565 {dimension_numbers = #tpu.dot_dimension_numbers<[1], [0], [0], [1], [0, 0, 1, 1], [], []>} : vector<10x10xbf16>, vector<10x128xbf16>, vector<10x128xf32> -> vector<10x128xf32>
    %495 = arith.addf %490, %494 : vector<10x128xf32>
    %c23_566 = arith.constant 23 : index
    %c0_567 = arith.constant 0 : index
    %c0_568 = arith.constant 0 : index
    %496 = vector.load %arg4[%c23_566, %c0_567, %c0_568] : memref<25x10x10xbf16, #tpu.memory_space<vmem>>, vector<1x10x10xbf16>
    %497 = vector.shape_cast %496 : vector<1x10x10xbf16> to vector<10x10xbf16>
    %c0_569 = arith.constant 0 : index
    %c18_570 = arith.constant 18 : index
    %498 = vector.load %arg2[%c0_569, %c18_570] : memref<10x146xbf16, #tpu.memory_space<vmem>>, vector<10x128xbf16>
    %cst_571 = arith.constant dense<0.000000e+00> : vector<10x128xf32>
    %499 = tpu.matmul %497, %498, %cst_571 {dimension_numbers = #tpu.dot_dimension_numbers<[1], [0], [0], [1], [0, 0, 1, 1], [], []>} : vector<10x10xbf16>, vector<10x128xbf16>, vector<10x128xf32> -> vector<10x128xf32>
    %500 = arith.addf %495, %499 : vector<10x128xf32>
    %c24_572 = arith.constant 24 : index
    %c0_573 = arith.constant 0 : index
    %c0_574 = arith.constant 0 : index
    %501 = vector.load %arg4[%c24_572, %c0_573, %c0_574] : memref<25x10x10xbf16, #tpu.memory_space<vmem>>, vector<1x10x10xbf16>
    %502 = vector.shape_cast %501 : vector<1x10x10xbf16> to vector<10x10xbf16>
    %c0_575 = arith.constant 0 : index
    %c18_576 = arith.constant 18 : index
    %503 = vector.load %arg3[%c0_575, %c18_576] : memref<10x146xbf16, #tpu.memory_space<vmem>>, vector<10x128xbf16>
    %cst_577 = arith.constant dense<0.000000e+00> : vector<10x128xf32>
    %504 = tpu.matmul %502, %503, %cst_577 {dimension_numbers = #tpu.dot_dimension_numbers<[1], [0], [0], [1], [0, 0, 1, 1], [], []>} : vector<10x10xbf16>, vector<10x128xbf16>, vector<10x128xf32> -> vector<10x128xf32>
    %505 = arith.addf %500, %504 : vector<10x128xf32>
    %506 = arith.maximumf %379, %505 : vector<10x128xf32>
    %c0_578 = arith.constant 0 : index
    %c0_579 = arith.constant 0 : index
    %507 = vector.load %arg5[%c0_578, %c0_579] : memref<10x1xf32, #tpu.memory_space<vmem>>, vector<10x1xf32>
    %508 = vector.broadcast %507 : vector<10x1xf32> to vector<10x128xf32>
    %509 = arith.addf %506, %508 : vector<10x128xf32>
    %cst_580 = arith.constant 0.000000e+00 : f32
    %510 = vector.broadcast %cst_580 : f32 to vector<10x128xf32>
    %511 = arith.maximumf %509, %510 : vector<10x128xf32>
    %512 = arith.truncf %511 : vector<10x128xf32> to vector<10x128xbf16>
    %c0_581 = arith.constant 0 : index
    %c0_582 = arith.constant 0 : index
    %513 = vector.load %arg6[%c0_581, %c0_582] : memref<10x128xbf16, #tpu.memory_space<vmem>>, vector<10x128xbf16>
    tpu.vector_store %arg6[%c0_581, %c0_582], %512 {strides = array<i32>} : memref<10x128xbf16, #tpu.memory_space<vmem>>, vector<10x128xbf16>,
    return
  }
}

module attributes {stable_mosaic.version = 11 : i64} {
  func.func @_fc_logsoftmax_kernel(%arg0: memref<2x160xbf16, #tpu.memory_space<vmem>>, %arg1: memref<160x128xbf16, #tpu.memory_space<vmem>>, %arg2: memref<1x128xf32, #tpu.memory_space<vmem>>, %arg3: memref<2x128xf32, #tpu.memory_space<vmem>>) attributes {dimension_semantics = [], scalar_prefetch = 0 : i64, scratch_operands = 0 : i64, tpu.core_type = #tpu.core_type<tc>} {
    %c0 = arith.constant 0 : index
    %c0_0 = arith.constant 0 : index
    %0 = vector.load %arg0[%c0, %c0_0] : memref<2x160xbf16, #tpu.memory_space<vmem>>, vector<2x160xbf16>
    %c0_1 = arith.constant 0 : index
    %c0_2 = arith.constant 0 : index
    %1 = vector.load %arg1[%c0_1, %c0_2] : memref<160x128xbf16, #tpu.memory_space<vmem>>, vector<160x128xbf16>
    %cst = arith.constant dense<0.000000e+00> : vector<2x128xf32>
    %2 = tpu.matmul %0, %1, %cst {dimension_numbers = #tpu.dot_dimension_numbers<[1], [0], [0], [1], [0, 0, 1, 1], [], []>} : vector<2x160xbf16>, vector<160x128xbf16>, vector<2x128xf32> -> vector<2x128xf32>
    %c0_3 = arith.constant 0 : index
    %c0_4 = arith.constant 0 : index
    %3 = vector.load %arg2[%c0_3, %c0_4] : memref<1x128xf32, #tpu.memory_space<vmem>>, vector<1x128xf32>
    %4 = vector.broadcast %3 : vector<1x128xf32> to vector<2x128xf32>
    %5 = arith.addf %2, %4 : vector<2x128xf32>
    %cst_5 = arith.constant dense<0xFF800000> : vector<2xf32>
    %6 = vector.multi_reduction <maximumf>, %5, %cst_5 [1] : vector<2x128xf32> to vector<2xf32>
    %7 = vector.shape_cast %6 : vector<2xf32> to vector<2x1xf32>
    %8 = vector.broadcast %7 : vector<2x1xf32> to vector<2x128xf32>
    %9 = arith.subf %5, %8 : vector<2x128xf32>
    %10 = math.exp %9 : vector<2x128xf32>
    %cst_6 = arith.constant dense<0.000000e+00> : vector<2xf32>
    %11 = vector.multi_reduction <add>, %10, %cst_6 [1] : vector<2x128xf32> to vector<2xf32>
    %12 = vector.shape_cast %11 : vector<2xf32> to vector<2x1xf32>
    %13 = math.log %12 : vector<2x1xf32>
    %14 = vector.broadcast %13 : vector<2x1xf32> to vector<2x128xf32>
    %15 = arith.subf %9, %14 : vector<2x128xf32>
    %c0_7 = arith.constant 0 : index
    %c0_8 = arith.constant 0 : index
    %16 = vector.load %arg3[%c0_7, %c0_8] : memref<2x128xf32, #tpu.memory_space<vmem>>, vector<2x128xf32>
    tpu.vector_store %arg3[%c0_7, %c0_8], %15 {strides = array<i32>} : memref<2x128xf32, #tpu.memory_space<vmem>>, vector<2x128xf32>,
    return
  }
}

</mosaic_0001>

<llo_original>
// kernel: squeeze.8
$region0: #{squeeze.8}
  %s0 = inlined_call_operand.vmem [shape: f32[1,2,15,1,15,1], index: 0, kind: input, shape index: {}]
  %s1 = inlined_call_operand.vmem [shape: f32[1,450], index: 1, kind: output, shape index: {}]
  $region1: #{squeeze.8} parent=0
    #allocation0 [shape = 'u8[16384]{0}', space=vmem, size = 0x4000, scoped, tag = 'scoped mem for output reshape']
    %v2 = vld [vmem:[%s0] sm:$0x1]
    %vm3 = vcmask 121856
    %4 = vst.msk [vmem:[#allocation0] sm:$0x1] %vm3, %v2
    %s5 = scalar_lea.vmem %s0, 18
    %v6 = vld [vmem:[%s5] sm:$0x1]
    %s7 = scalar_lea.vmem %s0, 18
    %v8 = vld [vmem:[%s7] sm:$0x1]
    %vm9 = vcmask 7168
    %v10 = vsel %vm9, %v8, %v6
    %11 = vrot.lane.b32.xlu0 %v10, 127
    %v12 = vpop.permute.xlu0 %11
    %vm13 = vcmask 113664
    %s14 = scalar_lea.vmem [#allocation0], 16
    %15 = vst.msk [vmem:[%s14] sm:$0x1] %vm13, %v12
    %vm16 = vcmask 1048568
    %s17 = scalar_lea.vmem [#allocation0], 8
    %18 = vst.msk [vmem:[%s17] sm:$0x1] %vm16, %v12
    %s19 = scalar_lea.vmem %s0, 8
    %v20 = vld [vmem:[%s19] sm:$0x1]
    %s21 = scalar_lea.vmem %s0, 8
    %v22 = vld [vmem:[%s21] sm:$0x1]
    %vm23 = vcmask 64512
    %v24 = vsel %vm23, %v22, %v20
    %25 = vrot.lane.b32.xlu0 %v24, 120
    %v26 = vpop.permute.xlu0 %25
    %vm27 = vcmask 56320
    %s28 = scalar_lea.vmem [#allocation0], 8
    %29 = vst.msk [vmem:[%s28] sm:$0x1] %vm27, %v26
    %vm30 = vcmask 1048512
    %31 = vst.msk [vmem:[#allocation0] sm:$0x1] %vm30, %v26
    %s32 = scalar_lea.vmem %s0, 26
    %v33 = vld [vmem:[%s32] sm:$0x1]
    %s34 = scalar_lea.vmem %s0, 26
    %v35 = vld [vmem:[%s34] sm:$0x1]
    %vm36 = vcmask 72704
    %v37 = vsel %vm36, %v35, %v33
    %38 = vrot.lane.b32.xlu0 %v37, 119
    %v39 = vpop.permute.xlu0 %38
    %vm40 = vcmask 48128
    %s41 = scalar_lea.vmem [#allocation0], 24
    %42 = vst.msk [vmem:[%s41] sm:$0x1] %vm40, %v39
    %vm43 = vcmask 1048504
    %s44 = scalar_lea.vmem [#allocation0], 16
    %45 = vst.msk [vmem:[%s44] sm:$0x1] %vm43, %v39
    %s46 = scalar_lea.vmem %s0, 17
    %v47 = vld [vmem:[%s46] sm:$0x1]
    %48 = vrot.lane.b32.xlu0 %v47, 112
    %v49 = vpop.permute.xlu0 %48
    %vm50 = vcmask 1040256
    %s51 = scalar_lea.vmem [#allocation0], 8
    %52 = vst.msk [vmem:[%s51] sm:$0x1] %vm50, %v49
    %s53 = scalar_lea.vmem %s0, 7
    %v54 = vld [vmem:[%s53] sm:$0x1]
    %55 = vrot.lane.b32.xlu0 %v54, 105
    %v56 = vpop.permute.xlu0 %55
    %vm57 = vcmask 982856
    %58 = vst.msk [vmem:[#allocation0] sm:$0x1] %vm57, %v56
    %s59 = scalar_lea.vmem %s0, 25
    %v60 = vld [vmem:[%s59] sm:$0x1]
    %61 = vrot.lane.b32.xlu0 %v60, 104
    %v62 = vpop.permute.xlu0 %61
    %vm63 = vcmask 974656
    %s64 = scalar_lea.vmem [#allocation0], 16
    %65 = vst.msk [vmem:[%s64] sm:$0x1] %vm63, %v62
    %s66 = scalar_lea.vmem %s0, 16
    %v67 = vld [vmem:[%s66] sm:$0x1]
    %68 = vrot.lane.b32.xlu0 %v67, 97
    %v69 = vpop.permute.xlu0 %68
    %vm70 = vcmask 917256
    %s71 = scalar_lea.vmem [#allocation0], 8
    %72 = vst.msk [vmem:[%s71] sm:$0x1] %vm70, %v69
    %s73 = scalar_lea.vmem %s0, 6
    %v74 = vld [vmem:[%s73] sm:$0x1]
    %75 = vrot.lane.b32.xlu0 %v74, 90
    %v76 = vpop.permute.xlu0 %75
    %vm77 = vcmask 859856
    %78 = vst.msk [vmem:[#allocation0] sm:$0x1] %vm77, %v76
    %s79 = scalar_lea.vmem %s0, 24
    %v80 = vld [vmem:[%s79] sm:$0x1]
    %81 = vrot.lane.b32.xlu0 %v80, 89
    %v82 = vpop.permute.xlu0 %81
    %vm83 = vcmask 851656
    %s84 = scalar_lea.vmem [#allocation0], 16
    %85 = vst.msk [vmem:[%s84] sm:$0x1] %vm83, %v82
    %s86 = scalar_lea.vmem %s0, 14
    %v87 = vld [vmem:[%s86] sm:$0x1]
    %88 = vrot.lane.b32.xlu0 %v87, 82
    %v89 = vpop.permute.xlu0 %88
    %vm90 = vcmask 794256
    %s91 = scalar_lea.vmem [#allocation0], 8
    %92 = vst.msk [vmem:[%s91] sm:$0x1] %vm90, %v89
    %s93 = scalar_lea.vmem %s0, 5
    %v94 = vld [vmem:[%s93] sm:$0x1]
    %95 = vrot.lane.b32.xlu0 %v94, 75
    %v96 = vpop.permute.xlu0 %95
    %vm97 = vcmask 736856
    %98 = vst.msk [vmem:[#allocation0] sm:$0x1] %vm97, %v96
    %s99 = scalar_lea.vmem %s0, 23
    %v100 = vld [vmem:[%s99] sm:$0x1]
    %101 = vrot.lane.b32.xlu0 %v100, 74
    %v102 = vpop.permute.xlu0 %101
    %vm103 = vcmask 728656
    %s104 = scalar_lea.vmem [#allocation0], 16
    %105 = vst.msk [vmem:[%s104] sm:$0x1] %vm103, %v102
    %s106 = scalar_lea.vmem %s0, 13
    %v107 = vld [vmem:[%s106] sm:$0x1]
    %108 = vrot.lane.b32.xlu0 %v107, 67
    %v109 = vpop.permute.xlu0 %108
    %vm110 = vcmask 671256
    %s111 = scalar_lea.vmem [#allocation0], 8
    %112 = vst.msk [vmem:[%s111] sm:$0x1] %vm110, %v109
    %s113 = scalar_lea.vmem %s0, 4
    %v114 = vld [vmem:[%s113] sm:$0x1]
    %115 = vrot.lane.b32.xlu0 %v114, 60
    %v116 = vpop.permute.xlu0 %115
    %vm117 = vcmask 613856
    %118 = vst.msk [vmem:[#allocation0] sm:$0x1] %vm117, %v116
    %s119 = scalar_lea.vmem %s0, 22
    %v120 = vld [vmem:[%s119] sm:$0x1]
    %121 = vrot.lane.b32.xlu0 %v120, 59
    %v122 = vpop.permute.xlu0 %121
    %vm123 = vcmask 605656
    %s124 = scalar_lea.vmem [#allocation0], 16
    %125 = vst.msk [vmem:[%s124] sm:$0x1] %vm123, %v122
    %s126 = scalar_lea.vmem %s0, 12
    %v127 = vld [vmem:[%s126] sm:$0x1]
    %128 = vrot.lane.b32.xlu0 %v127, 52
    %v129 = vpop.permute.xlu0 %128
    %vm130 = vcmask 548256
    %s131 = scalar_lea.vmem [#allocation0], 8
    %132 = vst.msk [vmem:[%s131] sm:$0x1] %vm130, %v129
    %s133 = scalar_lea.vmem %s0, 30
    %v134 = vld [vmem:[%s133] sm:$0x1]
    %135 = vrot.lane.b32.xlu0 %v134, 51
    %v136 = vpop.permute.xlu0 %135
    %vm137 = vcmask 540056
    %s138 = scalar_lea.vmem [#allocation0], 24
    %139 = vst.msk [vmem:[%s138] sm:$0x1] %vm137, %v136
    %s140 = scalar_lea.vmem %s0, 3
    %v141 = vld [vmem:[%s140] sm:$0x1]
    %142 = vrot.lane.b32.xlu0 %v141, 45
    %v143 = vpop.permute.xlu0 %142
    %vm144 = vcmask 490856
    %145 = vst.msk [vmem:[#allocation0] sm:$0x1] %vm144, %v143
    %s146 = scalar_lea.vmem %s0, 21
    %v147 = vld [vmem:[%s146] sm:$0x1]
    %148 = vrot.lane.b32.xlu0 %v147, 44
    %v149 = vpop.permute.xlu0 %148
    %vm150 = vcmask 482656
    %s151 = scalar_lea.vmem [#allocation0], 16
    %152 = vst.msk [vmem:[%s151] sm:$0x1] %vm150, %v149
    %s153 = scalar_lea.vmem %s0, 11
    %v154 = vld [vmem:[%s153] sm:$0x1]
    %155 = vrot.lane.b32.xlu0 %v154, 37
    %v156 = vpop.permute.xlu0 %155
    %vm157 = vcmask 425256
    %s158 = scalar_lea.vmem [#allocation0], 8
    %159 = vst.msk [vmem:[%s158] sm:$0x1] %vm157, %v156
    %s160 = scalar_lea.vmem %s0, 29
    %v161 = vld [vmem:[%s160] sm:$0x1]
    %162 = vrot.lane.b32.xlu0 %v161, 36
    %v163 = vpop.permute.xlu0 %162
    %vm164 = vcmask 417056
    %s165 = scalar_lea.vmem [#allocation0], 24
    %166 = vst.msk [vmem:[%s165] sm:$0x1] %vm164, %v163
    %s167 = scalar_lea.vmem %s0, 2
    %v168 = vld [vmem:[%s167] sm:$0x1]
    %169 = vrot.lane.b32.xlu0 %v168, 30
    %v170 = vpop.permute.xlu0 %169
    %vm171 = vcmask 367856
    %172 = vst.msk [vmem:[#allocation0] sm:$0x1] %vm171, %v170
    %s173 = scalar_lea.vmem %s0, 20
    %v174 = vld [vmem:[%s173] sm:$0x1]
    %175 = vrot.lane.b32.xlu0 %v174, 29
    %v176 = vpop.permute.xlu0 %175
    %vm177 = vcmask 359656
    %s178 = scalar_lea.vmem [#allocation0], 16
    %179 = vst.msk [vmem:[%s178] sm:$0x1] %vm177, %v176
    %s180 = scalar_lea.vmem %s0, 10
    %v181 = vld [vmem:[%s180] sm:$0x1]
    %182 = vrot.lane.b32.xlu0 %v181, 22
    %v183 = vpop.permute.xlu0 %182
    %vm184 = vcmask 302256
    %s185 = scalar_lea.vmem [#allocation0], 8
    %186 = vst.msk [vmem:[%s185] sm:$0x1] %vm184, %v183
    %s187 = scalar_lea.vmem %s0, 28
    %v188 = vld [vmem:[%s187] sm:$0x1]
    %189 = vrot.lane.b32.xlu0 %v188, 21
    %v190 = vpop.permute.xlu0 %189
    %vm191 = vcmask 294056
    %s192 = scalar_lea.vmem [#allocation0], 24
    %193 = vst.msk [vmem:[%s192] sm:$0x1] %vm191, %v190
    %s194 = scalar_lea.vmem %s0, 1
    %v195 = vld [vmem:[%s194] sm:$0x1]
    %196 = vrot.lane.b32.xlu0 %v195, 15
    %v197 = vpop.permute.xlu0 %196
    %vm198 = vcmask 244856
    %199 = vst.msk [vmem:[#allocation0] sm:$0x1] %vm198, %v197
    %s200 = scalar_lea.vmem %s0, 19
    %v201 = vld [vmem:[%s200] sm:$0x1]
    %202 = vrot.lane.b32.xlu0 %v201, 14
    %v203 = vpop.permute.xlu0 %202
    %vm204 = vcmask 236656
    %s205 = scalar_lea.vmem [#allocation0], 16
    %206 = vst.msk [vmem:[%s205] sm:$0x1] %vm204, %v203
    %s207 = scalar_lea.vmem %s0, 9
    %v208 = vld [vmem:[%s207] sm:$0x1]
    %209 = vrot.lane.b32.xlu0 %v208, 7
    %v210 = vpop.permute.xlu0 %209
    %vm211 = vcmask 179256
    %s212 = scalar_lea.vmem [#allocation0], 8
    %213 = vst.msk [vmem:[%s212] sm:$0x1] %vm211, %v210
    %s214 = scalar_lea.vmem %s0, 27
    %v215 = vld [vmem:[%s214] sm:$0x1]
    %216 = vrot.lane.b32.xlu0 %v215, 6
    %v217 = vpop.permute.xlu0 %216
    %vm218 = vcmask 171056
    %s219 = scalar_lea.vmem [#allocation0], 24
    %220 = vst.msk [vmem:[%s219] sm:$0x1] %vm218, %v217
    %s222 = ssub.s32 2, 1
    %v223 = vld [vmem:[#allocation0] sm:%s222]
    %s225 = ssub.s32 2, 1
    %226 = vst [vmem:[%s1] sm:%s225] %v223
    %s227 = scalar_lea.vmem [#allocation0], 8
    %v228 = vld [vmem:[%s227] sm:%s222]
    %s230 = ssub.s32 2, 1
    %s231 = scalar_lea.vmem %s1, 1
    %232 = vst [vmem:[%s231] sm:%s230] %v228
    %s233 = scalar_lea.vmem [#allocation0], 16
    %v234 = vld [vmem:[%s233] sm:%s222]
    %s236 = ssub.s32 2, 1
    %s237 = scalar_lea.vmem %s1, 2
    %238 = vst [vmem:[%s237] sm:%s236] %v234
    %s239 = scalar_lea.vmem [#allocation0], 24
    %v240 = vld [vmem:[%s239] sm:%s222]
    %s242 = ssub.s32 2, 1
    %s243 = scalar_lea.vmem %s1, 3
    %244 = vst [vmem:[%s243] sm:%s242] %v240

// kernel: net_forward.5
$region0: #{net_forward.5}
  #allocation0 [shape = 'u32[]', space=smem, size = 0x4, offset = 0x4, fixed_abs, tag = 'smem constant byte address 0x4 - core index']
  #allocation1 [shape = 'u32[72,128]{1,0:T(1,128)}', space=vmem, size = 0x9000, scoped, tag = 'internal scratch']
  %s0 = inlined_call_operand.vmem [shape: bf16[2,160], index: 0, kind: input, shape index: {}]
  %s1 = inlined_call_operand.vmem [shape: bf16[160,128], index: 1, kind: input, shape index: {}]
  %s2 = inlined_call_operand.vmem [shape: f32[1,128], index: 2, kind: input, shape index: {}]
  %s3 = inlined_call_operand.hbm [shape: f32[2,128], index: 3, kind: output, shape index: {}]
  %s4 = sld [smem:[#allocation0]]
  $region22: #{net_forward.5} parent=0
    _
  %s6 = ssub.s32 1, %s4
  %s7 = scalar_select 0, %s6, %s4
  $region1: #{net_forward.5} parent=0
    #allocation2 [shape = 'u8[1024]{0}', space=vmem, size = 0x400, scoped, tag = 'output window, operand 0, single buffered']
    #allocation3 [shape = 's32[1]{0}', space=sflag, size = 0x4, scoped, tag = 'scoped memory for net_forward.5']
    %8 = vsyncpa [#allocation3], 0
    // Predicated region
    $region2: #{net_forward.5} parent=1 // pred_check
      _
    $region3: #{net_forward.5} parent=1 // pred_check_branch
      %10 = sbr.rel (0) target = $region5
    $region4: #{net_forward.5} parent=1 // pred_region
      _
    $region5: #{net_forward.5} parent=1 // pred_fallthru
      _
    // Predicated region
    $region6: #{net_forward.5} parent=1 // pred_check
      _
    $region7: #{net_forward.5} parent=1 // pred_check_branch
      %12 = sbr.rel (0) target = $region9
    $region8: #{net_forward.5} parent=1 // pred_region
      _
    $region9: #{net_forward.5} parent=1 // pred_fallthru
      _
    // Predicated region
    $region10: #{net_forward.5} parent=1 // pred_check
      _
    $region11: #{net_forward.5} parent=1 // pred_check_branch
      %14 = sbr.rel (0) target = $region13
    $region12: #{net_forward.5} parent=1 // pred_region
      _
    $region13: #{net_forward.5} parent=1 // pred_fallthru
      _
    %v16 = vld [vmem:[%s0] sm:$0x3]
    %v17 = vld [vmem:[%s1] sm:$0xf]
    %v18 = vld [vmem:[%s1 + $0x4] sm:$0xf]
    %v19 = vld [vmem:[%s1 + $0x8] sm:$0xf]
    %v20 = vld [vmem:[%s1 + $0xc] sm:$0xf]
    %v21 = vld [vmem:[%s1 + $0x10] sm:$0xf]
    %v22 = vld [vmem:[%s1 + $0x14] sm:$0xf]
    %v23 = vld [vmem:[%s1 + $0x18] sm:$0xf]
    %v24 = vld [vmem:[%s1 + $0x1c] sm:$0xf]
    %v25 = vld [vmem:[%s1 + $0x20] sm:$0xf]
    %v26 = vld [vmem:[%s1 + $0x24] sm:$0xf]
    %v27 = vld [vmem:[%s1 + $0x28] sm:$0xf]
    %v28 = vld [vmem:[%s1 + $0x2c] sm:$0xf]
    %v29 = vld [vmem:[%s1 + $0x30] sm:$0xf]
    %v30 = vld [vmem:[%s1 + $0x34] sm:$0xf]
    %v31 = vld [vmem:[%s1 + $0x38] sm:$0xf]
    %v32 = vld [vmem:[%s1 + $0x3c] sm:$0xf]
    %v33 = vld [vmem:[%s1 + $0x40] sm:$0xf]
    %v34 = vld [vmem:[%s1 + $0x44] sm:$0xf]
    %v35 = vld [vmem:[%s1 + $0x48] sm:$0xf]
    %v36 = vld [vmem:[%s1 + $0x4c] sm:$0xf]
    %v37 = vld [vmem:[%s2] sm:$0x1]
    %v39 = vperm.slane %v37, 0
    %42 = vst [vmem:[#allocation1] ss:$9 sm:$0xff] %v16
    %v43 = vld [vmem:[#allocation1] sm:$0xff]
    %v44 = vld [vmem:[#allocation1 + $0x9] sm:$0xff]
    %v66 = vunpack.c.l.b16 %v17
    %v67 = vunpack.c.l.b16 %v18
    %v68 = vunpack.c.l.b16 %v19
    %v69 = vunpack.c.l.b16 %v20
    %v70 = vunpack.c.l.b16 %v21
    %v71 = vunpack.c.l.b16 %v22
    %v72 = vunpack.c.l.b16 %v23
    %v73 = vunpack.c.l.b16 %v24
    %v74 = vunpack.c.l.b16 %v25
    %v75 = vunpack.c.l.b16 %v26
    %v76 = vunpack.c.l.b16 %v27
    %v77 = vunpack.c.l.b16 %v28
    %v78 = vunpack.c.l.b16 %v29
    %v79 = vunpack.c.l.b16 %v30
    %v80 = vunpack.c.l.b16 %v31
    %v81 = vunpack.c.l.b16 %v32
    %v82 = vunpack.c.l.b16 %v33
    %v83 = vunpack.c.l.b16 %v34
    %v84 = vunpack.c.l.b16 %v35
    %v85 = vunpack.c.l.b16 %v36
    %v86 = vpack.c.b16 %v67, %v66
    %v87 = vpack.c.b16 %v69, %v68
    %v88 = vpack.c.b16 %v71, %v70
    %v89 = vpack.c.b16 %v73, %v72
    %v90 = vpack.c.b16 %v75, %v74
    %v91 = vpack.c.b16 %v77, %v76
    %v92 = vpack.c.b16 %v79, %v78
    %v93 = vpack.c.b16 %v81, %v80
    %v94 = vpack.c.b16 %v83, %v82
    %v95 = vpack.c.b16 %v85, %v84
    %vm106 = vcmask 261120
    %v107 = vsel %vm106, %v44, 0
    %109 = vmatpush.bf16.msra.mxu0 %v93
    %110 = vmatpush.bf16.msra.mxu0 %v92
    %111 = vmatpush.bf16.msra.mxu0 %v91
    %112 = vmatpush.bf16.msra.mxu0 %v90
    %113 = vmatpush.bf16.msra.mxu0 %v89
    %114 = vmatpush.bf16.msra.mxu0 %v88
    %115 = vmatpush.bf16.msra.mxu0 %v87
    %116 = vmatpush.bf16.msra.mxu0 %v86
    %117 = vmatmul.bf16.gmra.mxu0 %v43
    %v118 = vpop.f32.mrf.mxu0
    %v119 = vadd.f32 %v39, %v118
    %v120 = vpop.f32.mrf.mxu0
    %121 = vdwg.mxu0
    %122 = vmatpush.bf16.msra.mxu0 0
    %123 = vmatpush.bf16.msra.mxu0 0
    %124 = vmatpush.bf16.msra.mxu0 0
    %125 = vmatpush.bf16.msra.mxu0 0
    %126 = vmatpush.bf16.msra.mxu0 0
    %127 = vmatpush.bf16.msra.mxu0 0
    %128 = vmatpush.bf16.msra.mxu0 %v95
    %129 = vmatpush.bf16.msra.mxu0 %v94
    %130 = vmatmul.bf16.gmra.mxu0 %v107
    %v131 = vpop.f32.mrf.mxu0
    %v132 = vadd.f32 %v119, %v131
    %v133 = vpop.f32.mrf.mxu0
    %134 = vdwg.mxu0
    %vm135 = vcmask 1041408
    %v136 = vsel %vm135, %v132, -inf
    %137 = vmax.xlane.f32.xlu0 %v136
    %v138 = vpop.xlane.xlu0 %137
    %v139 = vsub.f32 %v132, %v138
    %v140 = vmul.f32 %v139, 1.442695
    %v141 = vpow.pop %v140
    %v142 = vsel %vm135, %v141, 0.0
    %143 = vadd.xlane.f32.xlu0 %v142
    %v144 = vpop.xlane.xlu0 %143
    %v145 = vlog2.pop %v144
    %v146 = vmul.f32 %v145, 0.6931472
    %v147 = vsub.f32 %v139, %v146
    %148 = vst [vmem:[#allocation2] sm:$0x3] %v147
    // Predicated region
    $region14: #{net_forward.5} parent=1 // pred_check
      _
    $region15: #{net_forward.5} parent=1 // pred_check_branch
      %150 = sbr.rel (0) target = $region17
    $region16: #{net_forward.5} parent=1 // pred_region
      %152 = vsyncadd [#allocation3], 0
      %s154 = sshll.u32 [#allocation2], 4
      %s155 = int_to_ptr.vmem [resolvable:$true] %s154
      %s156 = sshll.u32 %s3, 4
      %s157 = int_to_ptr.hbm [resolvable:$true] %s156
      %159 = dma.vmem_to_hbm [thread:$0]  %s155, 32, %s157, [#allocation3]
    $region17: #{net_forward.5} parent=1 // pred_fallthru
      _
    // Predicated region
    $region18: #{net_forward.5} parent=1 // pred_check
      _
    $region19: #{net_forward.5} parent=1 // pred_check_branch
      %161 = sbr.rel (0) target = $region21
    $region20: #{net_forward.5} parent=1 // pred_region
      %163 = dma.done [#allocation3], 32
    $region21: #{net_forward.5} parent=1 // pred_fallthru
      _
    %164 = vsyncpa [#allocation3], 1

// kernel: net_forward.3
$region0: #{net_forward.3}
  #allocation0 [shape = 'u32[]', space=smem, size = 0x4, offset = 0x4, fixed_abs, tag = 'smem constant byte address 0x4 - core index']
  #allocation1 [shape = 'u32[72,128]{1,0:T(1,128)}', space=vmem, size = 0x9000, scoped, tag = 'internal scratch']
  %s0 = inlined_call_operand.vmem [shape: f32[1,482], index: 0, kind: input, shape index: {}]
  %s1 = inlined_call_operand.vmem [shape: f32[1,482], index: 1, kind: input, shape index: {}]
  %s2 = inlined_call_operand.vmem [shape: f32[1,482], index: 2, kind: input, shape index: {}]
  %s3 = inlined_call_operand.vmem [shape: f32[1,482], index: 3, kind: input, shape index: {}]
  %s4 = inlined_call_operand.vmem [shape: f32[25,10,1], index: 4, kind: input, shape index: {}]
  %s5 = inlined_call_operand.vmem [shape: f32[10,1], index: 5, kind: input, shape index: {}]
  %s6 = inlined_call_operand.vmem [shape: bf16[10,450], index: 6, kind: output, shape index: {}]
  %s7 = sld [smem:[#allocation0]]
  $region34: #{net_forward.3} parent=0
    _
  %s9 = ssub.s32 1, %s7
  %s10 = scalar_select 0, %s9, %s7
  // Predicated region
  $region2: #{net_forward.3} parent=0 // pred_check
    _
  $region3: #{net_forward.3} parent=0 // pred_check_branch
    %12 = sbr.rel (0) target = $region5
  $region4: #{net_forward.3} parent=0 // pred_region
    _
  $region5: #{net_forward.3} parent=0 // pred_fallthru
    _
  // Predicated region
  $region6: #{net_forward.3} parent=0 // pred_check
    _
  $region7: #{net_forward.3} parent=0 // pred_check_branch
    %14 = sbr.rel (0) target = $region9
  $region8: #{net_forward.3} parent=0 // pred_region
    _
  $region9: #{net_forward.3} parent=0 // pred_fallthru
    _
  // Predicated region
  $region10: #{net_forward.3} parent=0 // pred_check
    _
  $region11: #{net_forward.3} parent=0 // pred_check_branch
    %16 = sbr.rel (0) target = $region13
  $region12: #{net_forward.3} parent=0 // pred_region
    _
  $region13: #{net_forward.3} parent=0 // pred_fallthru
    _
  // Predicated region
  $region14: #{net_forward.3} parent=0 // pred_check
    _
  $region15: #{net_forward.3} parent=0 // pred_check_branch
    %18 = sbr.rel (0) target = $region17
  $region16: #{net_forward.3} parent=0 // pred_region
    _
  $region17: #{net_forward.3} parent=0 // pred_fallthru
    _
  // Predicated region
  $region18: #{net_forward.3} parent=0 // pred_check
    _
  $region19: #{net_forward.3} parent=0 // pred_check_branch
    %20 = sbr.rel (0) target = $region21
  $region20: #{net_forward.3} parent=0 // pred_region
    _
  $region21: #{net_forward.3} parent=0 // pred_fallthru
    _
  // Predicated region
  $region22: #{net_forward.3} parent=0 // pred_check
    _
  $region23: #{net_forward.3} parent=0 // pred_check_branch
    %22 = sbr.rel (0) target = $region25
  $region24: #{net_forward.3} parent=0 // pred_region
    _
  $region25: #{net_forward.3} parent=0 // pred_fallthru
    _
  %v23 = vld [vmem:[%s4] sm:$0xff]
  %v24 = vld [vmem:[%s4 + $0x8] sm:$0x3]
  %v25 = vld [vmem:[%s0] sm:$0xf]
  %27 = vset.pattern.permute.xlu0 0
  %28 = vperm.xlu0 %27, %v23
  %v29 = vpop.permute.xlu0 %28
  %32 = vset.pattern.permute.xlu0 0
  %33 = vperm.xlu0 %32, %v24
  %v34 = vpop.permute.xlu0 %33
  %v37 = vperm.slane %v25, 0
  %v38 = vperm.slane %v25, 1
  %v39 = vperm.slane %v25, 2
  %v40 = vperm.slane %v25, 3
  %v45 = vmul.f32 %v29, %v37
  %v46 = vmul.f32 %v29, %v38
  %v47 = vmul.f32 %v29, %v39
  %v48 = vmul.f32 %v29, %v40
  %v49 = vmul.f32 %v34, %v37
  %v50 = vmul.f32 %v34, %v38
  %v51 = vmul.f32 %v34, %v39
  %v52 = vmul.f32 %v34, %v40
  %v53 = vadd.f32 %v45, 0.0
  %v54 = vadd.f32 %v46, 0.0
  %v55 = vadd.f32 %v47, 0.0
  %v56 = vadd.f32 %v48, 0.0
  %v57 = vadd.f32 %v49, 0.0
  %v58 = vadd.f32 %v50, 0.0
  %v59 = vadd.f32 %v51, 0.0
  %v60 = vadd.f32 %v52, 0.0
  %s61 = scalar_lea.vmem %s4, 16
  %v62 = vld [vmem:[%s61] sm:$0xff]
  %v63 = vld [vmem:[%s61 + $0x8] sm:$0x3]
  %v64 = vld [vmem:[%s1] sm:$0xf]
  %66 = vset.pattern.permute.xlu0 0
  %67 = vperm.xlu0 %66, %v62
  %v68 = vpop.permute.xlu0 %67
  %71 = vset.pattern.permute.xlu0 0
  %72 = vperm.xlu0 %71, %v63
  %v73 = vpop.permute.xlu0 %72
  %v76 = vperm.slane %v64, 0
  %v77 = vperm.slane %v64, 1
  %v78 = vperm.slane %v64, 2
  %v79 = vperm.slane %v64, 3
  %v84 = vmul.f32 %v68, %v76
  %v85 = vmul.f32 %v68, %v77
  %v86 = vmul.f32 %v68, %v78
  %v87 = vmul.f32 %v68, %v79
  %v88 = vmul.f32 %v73, %v76
  %v89 = vmul.f32 %v73, %v77
  %v90 = vmul.f32 %v73, %v78
  %v91 = vmul.f32 %v73, %v79
  %v92 = vadd.f32 %v53, %v84
  %v93 = vadd.f32 %v54, %v85
  %v94 = vadd.f32 %v55, %v86
  %v95 = vadd.f32 %v56, %v87
  %v96 = vadd.f32 %v57, %v88
  %v97 = vadd.f32 %v58, %v89
  %v98 = vadd.f32 %v59, %v90
  %v99 = vadd.f32 %v60, %v91
  %s100 = scalar_lea.vmem %s4, 32
  %v101 = vld [vmem:[%s100] sm:$0xff]
  %v102 = vld [vmem:[%s100 + $0x8] sm:$0x3]
  %104 = vset.pattern.permute.xlu0 0
  %105 = vperm.xlu0 %104, %v101
  %v106 = vpop.permute.xlu0 %105
  %109 = vset.pattern.permute.xlu0 0
  %110 = vperm.xlu0 %109, %v102
  %v111 = vpop.permute.xlu0 %110
  %v113 = vmul.f32 %v106, %v37
  %v114 = vmul.f32 %v106, %v38
  %v115 = vmul.f32 %v106, %v39
  %v116 = vmul.f32 %v106, %v40
  %v117 = vmul.f32 %v111, %v37
  %v118 = vmul.f32 %v111, %v38
  %v119 = vmul.f32 %v111, %v39
  %v120 = vmul.f32 %v111, %v40
  %129 = vrot.lane.b32.xlu0 %v113, 127
  %v130 = vpop.permute.xlu0 %129
  %131 = vrot.lane.b32.xlu0 %v114, 127
  %v132 = vpop.permute.xlu0 %131
  %133 = vrot.lane.b32.xlu0 %v115, 127
  %v134 = vpop.permute.xlu0 %133
  %135 = vrot.lane.b32.xlu0 %v116, 127
  %v136 = vpop.permute.xlu0 %135
  %137 = vrot.lane.b32.xlu0 %v117, 127
  %v138 = vpop.permute.xlu0 %137
  %139 = vrot.lane.b32.xlu0 %v118, 127
  %v140 = vpop.permute.xlu0 %139
  %141 = vrot.lane.b32.xlu0 %v119, 127
  %v142 = vpop.permute.xlu0 %141
  %143 = vrot.lane.b32.xlu0 %v120, 127
  %v144 = vpop.permute.xlu0 %143
  %vm145 = vcmask 1039360
  %v146 = vsel %vm145, %v130, %v132
  %v147 = vsel %vm145, %v132, %v134
  %v148 = vsel %vm145, %v134, %v136
  %v149 = vsel %vm145, %v138, %v140
  %v150 = vsel %vm145, %v140, %v142
  %v151 = vsel %vm145, %v142, %v144
  %v160 = vadd.f32 %v92, %v146
  %v161 = vadd.f32 %v93, %v147
  %v162 = vadd.f32 %v94, %v148
  %v163 = vadd.f32 %v95, %v136
  %v164 = vadd.f32 %v96, %v149
  %v165 = vadd.f32 %v97, %v150
  %v166 = vadd.f32 %v98, %v151
  %v167 = vadd.f32 %v99, %v144
  %s168 = scalar_lea.vmem %s4, 48
  %v169 = vld [vmem:[%s168] sm:$0xff]
  %v170 = vld [vmem:[%s168 + $0x8] sm:$0x3]
  %172 = vset.pattern.permute.xlu0 0
  %173 = vperm.xlu0 %172, %v169
  %v174 = vpop.permute.xlu0 %173
  %177 = vset.pattern.permute.xlu0 0
  %178 = vperm.xlu0 %177, %v170
  %v179 = vpop.permute.xlu0 %178
  %v181 = vmul.f32 %v174, %v76
  %v182 = vmul.f32 %v174, %v77
  %v183 = vmul.f32 %v174, %v78
  %v184 = vmul.f32 %v174, %v79
  %v185 = vmul.f32 %v179, %v76
  %v186 = vmul.f32 %v179, %v77
  %v187 = vmul.f32 %v179, %v78
  %v188 = vmul.f32 %v179, %v79
  %197 = vrot.lane.b32.xlu0 %v181, 127
  %v198 = vpop.permute.xlu0 %197
  %199 = vrot.lane.b32.xlu0 %v182, 127
  %v200 = vpop.permute.xlu0 %199
  %201 = vrot.lane.b32.xlu0 %v183, 127
  %v202 = vpop.permute.xlu0 %201
  %203 = vrot.lane.b32.xlu0 %v184, 127
  %v204 = vpop.permute.xlu0 %203
  %205 = vrot.lane.b32.xlu0 %v185, 127
  %v206 = vpop.permute.xlu0 %205
  %207 = vrot.lane.b32.xlu0 %v186, 127
  %v208 = vpop.permute.xlu0 %207
  %209 = vrot.lane.b32.xlu0 %v187, 127
  %v210 = vpop.permute.xlu0 %209
  %211 = vrot.lane.b32.xlu0 %v188, 127
  %v212 = vpop.permute.xlu0 %211
  %v213 = vsel %vm145, %v198, %v200
  %v214 = vsel %vm145, %v200, %v202
  %v215 = vsel %vm145, %v202, %v204
  %v216 = vsel %vm145, %v206, %v208
  %v217 = vsel %vm145, %v208, %v210
  %v218 = vsel %vm145, %v210, %v212
  %v227 = vadd.f32 %v160, %v213
  %v228 = vadd.f32 %v161, %v214
  %v229 = vadd.f32 %v162, %v215
  %v230 = vadd.f32 %v163, %v204
  %v231 = vadd.f32 %v164, %v216
  %v232 = vadd.f32 %v165, %v217
  %v233 = vadd.f32 %v166, %v218
  %v234 = vadd.f32 %v167, %v212
  %s235 = scalar_lea.vmem %s4, 64
  %v236 = vld [vmem:[%s235] sm:$0xff]
  %v237 = vld [vmem:[%s235 + $0x8] sm:$0x3]
  %239 = vset.pattern.permute.xlu0 0
  %240 = vperm.xlu0 %239, %v236
  %v241 = vpop.permute.xlu0 %240
  %244 = vset.pattern.permute.xlu0 0
  %245 = vperm.xlu0 %244, %v237
  %v246 = vpop.permute.xlu0 %245
  %v248 = vmul.f32 %v241, %v37
  %v249 = vmul.f32 %v241, %v38
  %v250 = vmul.f32 %v241, %v39
  %v251 = vmul.f32 %v241, %v40
  %v252 = vmul.f32 %v246, %v37
  %v253 = vmul.f32 %v246, %v38
  %v254 = vmul.f32 %v246, %v39
  %v255 = vmul.f32 %v246, %v40
  %264 = vrot.lane.b32.xlu0 %v248, 126
  %v265 = vpop.permute.xlu0 %264
  %266 = vrot.lane.b32.xlu0 %v249, 126
  %v267 = vpop.permute.xlu0 %266
  %268 = vrot.lane.b32.xlu0 %v250, 126
  %v269 = vpop.permute.xlu0 %268
  %270 = vrot.lane.b32.xlu0 %v251, 126
  %v271 = vpop.permute.xlu0 %270
  %272 = vrot.lane.b32.xlu0 %v252, 126
  %v273 = vpop.permute.xlu0 %272
  %274 = vrot.lane.b32.xlu0 %v253, 126
  %v275 = vpop.permute.xlu0 %274
  %276 = vrot.lane.b32.xlu0 %v254, 126
  %v277 = vpop.permute.xlu0 %276
  %278 = vrot.lane.b32.xlu0 %v255, 126
  %v279 = vpop.permute.xlu0 %278
  %vm280 = vcmask 1031168
  %v281 = vsel %vm280, %v265, %v267
  %v282 = vsel %vm280, %v267, %v269
  %v283 = vsel %vm280, %v269, %v271
  %v284 = vsel %vm280, %v273, %v275
  %v285 = vsel %vm280, %v275, %v277
  %v286 = vsel %vm280, %v277, %v279
  %v295 = vadd.f32 %v227, %v281
  %v296 = vadd.f32 %v228, %v282
  %v297 = vadd.f32 %v229, %v283
  %v298 = vadd.f32 %v230, %v271
  %v299 = vadd.f32 %v231, %v284
  %v300 = vadd.f32 %v232, %v285
  %v301 = vadd.f32 %v233, %v286
  %v302 = vadd.f32 %v234, %v279
  %s303 = scalar_lea.vmem %s4, 80
  %v304 = vld [vmem:[%s303] sm:$0xff]
  %v305 = vld [vmem:[%s303 + $0x8] sm:$0x3]
  %v306 = vld [vmem:[%s2] sm:$0xf]
  %308 = vset.pattern.permute.xlu0 0
  %309 = vperm.xlu0 %308, %v304
  %v310 = vpop.permute.xlu0 %309
  %313 = vset.pattern.permute.xlu0 0
  %314 = vperm.xlu0 %313, %v305
  %v315 = vpop.permute.xlu0 %314
  %v318 = vperm.slane %v306, 0
  %v319 = vperm.slane %v306, 1
  %v320 = vperm.slane %v306, 2
  %v321 = vperm.slane %v306, 3
  %v326 = vmul.f32 %v310, %v318
  %v327 = vmul.f32 %v310, %v319
  %v328 = vmul.f32 %v310, %v320
  %v329 = vmul.f32 %v310, %v321
  %v330 = vmul.f32 %v315, %v318
  %v331 = vmul.f32 %v315, %v319
  %v332 = vmul.f32 %v315, %v320
  %v333 = vmul.f32 %v315, %v321
  %v334 = vadd.f32 %v295, %v326
  %v335 = vadd.f32 %v296, %v327
  %v336 = vadd.f32 %v297, %v328
  %v337 = vadd.f32 %v298, %v329
  %v338 = vadd.f32 %v299, %v330
  %v339 = vadd.f32 %v300, %v331
  %v340 = vadd.f32 %v301, %v332
  %v341 = vadd.f32 %v302, %v333
  %s342 = scalar_lea.vmem %s4, 96
  %v343 = vld [vmem:[%s342] sm:$0xff]
  %v344 = vld [vmem:[%s342 + $0x8] sm:$0x3]
  %v345 = vld [vmem:[%s3] sm:$0xf]
  %347 = vset.pattern.permute.xlu0 0
  %348 = vperm.xlu0 %347, %v343
  %v349 = vpop.permute.xlu0 %348
  %352 = vset.pattern.permute.xlu0 0
  %353 = vperm.xlu0 %352, %v344
  %v354 = vpop.permute.xlu0 %353
  %v357 = vperm.slane %v345, 0
  %v358 = vperm.slane %v345, 1
  %v359 = vperm.slane %v345, 2
  %v360 = vperm.slane %v345, 3
  %v365 = vmul.f32 %v349, %v357
  %v366 = vmul.f32 %v349, %v358
  %v367 = vmul.f32 %v349, %v359
  %v368 = vmul.f32 %v349, %v360
  %v369 = vmul.f32 %v354, %v357
  %v370 = vmul.f32 %v354, %v358
  %v371 = vmul.f32 %v354, %v359
  %v372 = vmul.f32 %v354, %v360
  %v373 = vadd.f32 %v334, %v365
  %v374 = vadd.f32 %v335, %v366
  %v375 = vadd.f32 %v336, %v367
  %v376 = vadd.f32 %v337, %v368
  %v377 = vadd.f32 %v338, %v369
  %v378 = vadd.f32 %v339, %v370
  %v379 = vadd.f32 %v340, %v371
  %v380 = vadd.f32 %v341, %v372
  %s381 = scalar_lea.vmem %s4, 112
  %v382 = vld [vmem:[%s381] sm:$0xff]
  %v383 = vld [vmem:[%s381 + $0x8] sm:$0x3]
  %385 = vset.pattern.permute.xlu0 0
  %386 = vperm.xlu0 %385, %v382
  %v387 = vpop.permute.xlu0 %386
  %390 = vset.pattern.permute.xlu0 0
  %391 = vperm.xlu0 %390, %v383
  %v392 = vpop.permute.xlu0 %391
  %v394 = vmul.f32 %v387, %v318
  %v395 = vmul.f32 %v387, %v319
  %v396 = vmul.f32 %v387, %v320
  %v397 = vmul.f32 %v387, %v321
  %v398 = vmul.f32 %v392, %v318
  %v399 = vmul.f32 %v392, %v319
  %v400 = vmul.f32 %v392, %v320
  %v401 = vmul.f32 %v392, %v321
  %410 = vrot.lane.b32.xlu0 %v394, 127
  %v411 = vpop.permute.xlu0 %410
  %412 = vrot.lane.b32.xlu0 %v395, 127
  %v413 = vpop.permute.xlu0 %412
  %414 = vrot.lane.b32.xlu0 %v396, 127
  %v415 = vpop.permute.xlu0 %414
  %416 = vrot.lane.b32.xlu0 %v397, 127
  %v417 = vpop.permute.xlu0 %416
  %418 = vrot.lane.b32.xlu0 %v398, 127
  %v419 = vpop.permute.xlu0 %418
  %420 = vrot.lane.b32.xlu0 %v399, 127
  %v421 = vpop.permute.xlu0 %420
  %422 = vrot.lane.b32.xlu0 %v400, 127
  %v423 = vpop.permute.xlu0 %422
  %424 = vrot.lane.b32.xlu0 %v401, 127
  %v425 = vpop.permute.xlu0 %424
  %v426 = vsel %vm145, %v411, %v413
  %v427 = vsel %vm145, %v413, %v415
  %v428 = vsel %vm145, %v415, %v417
  %v429 = vsel %vm145, %v419, %v421
  %v430 = vsel %vm145, %v421, %v423
  %v431 = vsel %vm145, %v423, %v425
  %v440 = vadd.f32 %v373, %v426
  %v441 = vadd.f32 %v374, %v427
  %v442 = vadd.f32 %v375, %v428
  %v443 = vadd.f32 %v376, %v417
  %v444 = vadd.f32 %v377, %v429
  %v445 = vadd.f32 %v378, %v430
  %v446 = vadd.f32 %v379, %v431
  %v447 = vadd.f32 %v380, %v425
  %s448 = scalar_lea.vmem %s4, 128
  %v449 = vld [vmem:[%s448] sm:$0xff]
  %v450 = vld [vmem:[%s448 + $0x8] sm:$0x3]
  %452 = vset.pattern.permute.xlu0 0
  %453 = vperm.xlu0 %452, %v449
  %v454 = vpop.permute.xlu0 %453
  %457 = vset.pattern.permute.xlu0 0
  %458 = vperm.xlu0 %457, %v450
  %v459 = vpop.permute.xlu0 %458
  %v461 = vmul.f32 %v454, %v357
  %v462 = vmul.f32 %v454, %v358
  %v463 = vmul.f32 %v454, %v359
  %v464 = vmul.f32 %v454, %v360
  %v465 = vmul.f32 %v459, %v357
  %v466 = vmul.f32 %v459, %v358
  %v467 = vmul.f32 %v459, %v359
  %v468 = vmul.f32 %v459, %v360
  %477 = vrot.lane.b32.xlu0 %v461, 127
  %v478 = vpop.permute.xlu0 %477
  %479 = vrot.lane.b32.xlu0 %v462, 127
  %v480 = vpop.permute.xlu0 %479
  %481 = vrot.lane.b32.xlu0 %v463, 127
  %v482 = vpop.permute.xlu0 %481
  %483 = vrot.lane.b32.xlu0 %v464, 127
  %v484 = vpop.permute.xlu0 %483
  %485 = vrot.lane.b32.xlu0 %v465, 127
  %v486 = vpop.permute.xlu0 %485
  %487 = vrot.lane.b32.xlu0 %v466, 127
  %v488 = vpop.permute.xlu0 %487
  %489 = vrot.lane.b32.xlu0 %v467, 127
  %v490 = vpop.permute.xlu0 %489
  %491 = vrot.lane.b32.xlu0 %v468, 127
  %v492 = vpop.permute.xlu0 %491
  %v493 = vsel %vm145, %v478, %v480
  %v494 = vsel %vm145, %v480, %v482
  %v495 = vsel %vm145, %v482, %v484
  %v496 = vsel %vm145, %v486, %v488
  %v497 = vsel %vm145, %v488, %v490
  %v498 = vsel %vm145, %v490, %v492
  %v507 = vadd.f32 %v440, %v493
  %v508 = vadd.f32 %v441, %v494
  %v509 = vadd.f32 %v442, %v495
  %v510 = vadd.f32 %v443, %v484
  %v511 = vadd.f32 %v444, %v496
  %v512 = vadd.f32 %v445, %v497
  %v513 = vadd.f32 %v446, %v498
  %v514 = vadd.f32 %v447, %v492
  %s515 = scalar_lea.vmem %s4, 144
  %v516 = vld [vmem:[%s515] sm:$0xff]
  %v517 = vld [vmem:[%s515 + $0x8] sm:$0x3]
  %519 = vset.pattern.permute.xlu0 0
  %520 = vperm.xlu0 %519, %v516
  %v521 = vpop.permute.xlu0 %520
  %524 = vset.pattern.permute.xlu0 0
  %525 = vperm.xlu0 %524, %v517
  %v526 = vpop.permute.xlu0 %525
  %v528 = vmul.f32 %v521, %v318
  %v529 = vmul.f32 %v521, %v319
  %v530 = vmul.f32 %v521, %v320
  %v531 = vmul.f32 %v521, %v321
  %v532 = vmul.f32 %v526, %v318
  %v533 = vmul.f32 %v526, %v319
  %v534 = vmul.f32 %v526, %v320
  %v535 = vmul.f32 %v526, %v321
  %544 = vrot.lane.b32.xlu0 %v528, 126
  %v545 = vpop.permute.xlu0 %544
  %546 = vrot.lane.b32.xlu0 %v529, 126
  %v547 = vpop.permute.xlu0 %546
  %548 = vrot.lane.b32.xlu0 %v530, 126
  %v549 = vpop.permute.xlu0 %548
  %550 = vrot.lane.b32.xlu0 %v531, 126
  %v551 = vpop.permute.xlu0 %550
  %552 = vrot.lane.b32.xlu0 %v532, 126
  %v553 = vpop.permute.xlu0 %552
  %554 = vrot.lane.b32.xlu0 %v533, 126
  %v555 = vpop.permute.xlu0 %554
  %556 = vrot.lane.b32.xlu0 %v534, 126
  %v557 = vpop.permute.xlu0 %556
  %558 = vrot.lane.b32.xlu0 %v535, 126
  %v559 = vpop.permute.xlu0 %558
  %v560 = vsel %vm280, %v545, %v547
  %v561 = vsel %vm280, %v547, %v549
  %v562 = vsel %vm280, %v549, %v551
  %v563 = vsel %vm280, %v553, %v555
  %v564 = vsel %vm280, %v555, %v557
  %v565 = vsel %vm280, %v557, %v559
  %v574 = vadd.f32 %v507, %v560
  %v575 = vadd.f32 %v508, %v561
  %v576 = vadd.f32 %v509, %v562
  %v577 = vadd.f32 %v510, %v551
  %v578 = vadd.f32 %v511, %v563
  %v579 = vadd.f32 %v512, %v564
  %v580 = vadd.f32 %v513, %v565
  %v581 = vadd.f32 %v514, %v559
  %s582 = scalar_lea.vmem %s4, 160
  %v583 = vld [vmem:[%s582] sm:$0xff]
  %v584 = vld [vmem:[%s582 + $0x8] sm:$0x3]
  %586 = vset.pattern.permute.xlu0 0
  %587 = vperm.xlu0 %586, %v583
  %v588 = vpop.permute.xlu0 %587
  %591 = vset.pattern.permute.xlu0 0
  %592 = vperm.xlu0 %591, %v584
  %v593 = vpop.permute.xlu0 %592
  %v595 = vmul.f32 %v588, %v37
  %v596 = vmul.f32 %v588, %v38
  %v597 = vmul.f32 %v588, %v39
  %v598 = vmul.f32 %v588, %v40
  %v599 = vmul.f32 %v593, %v37
  %v600 = vmul.f32 %v593, %v38
  %v601 = vmul.f32 %v593, %v39
  %v602 = vmul.f32 %v593, %v40
  %611 = vrot.lane.b32.xlu0 %v595, 113
  %v612 = vpop.permute.xlu0 %611
  %613 = vrot.lane.b32.xlu0 %v596, 113
  %v614 = vpop.permute.xlu0 %613
  %615 = vrot.lane.b32.xlu0 %v597, 113
  %v616 = vpop.permute.xlu0 %615
  %617 = vrot.lane.b32.xlu0 %v598, 113
  %v618 = vpop.permute.xlu0 %617
  %619 = vrot.lane.b32.xlu0 %v599, 113
  %v620 = vpop.permute.xlu0 %619
  %621 = vrot.lane.b32.xlu0 %v600, 113
  %v622 = vpop.permute.xlu0 %621
  %623 = vrot.lane.b32.xlu0 %v601, 113
  %v624 = vpop.permute.xlu0 %623
  %625 = vrot.lane.b32.xlu0 %v602, 113
  %v626 = vpop.permute.xlu0 %625
  %vm627 = vcmask 924672
  %v628 = vsel %vm627, %v612, %v614
  %v629 = vsel %vm627, %v614, %v616
  %v630 = vsel %vm627, %v616, %v618
  %v631 = vsel %vm627, %v620, %v622
  %v632 = vsel %vm627, %v622, %v624
  %v633 = vsel %vm627, %v624, %v626
  %v642 = vadd.f32 %v574, %v628
  %v643 = vadd.f32 %v575, %v629
  %v644 = vadd.f32 %v576, %v630
  %v645 = vadd.f32 %v577, %v618
  %v646 = vadd.f32 %v578, %v631
  %v647 = vadd.f32 %v579, %v632
  %v648 = vadd.f32 %v580, %v633
  %v649 = vadd.f32 %v581, %v626
  %s650 = scalar_lea.vmem %s4, 176
  %v651 = vld [vmem:[%s650] sm:$0xff]
  %v652 = vld [vmem:[%s650 + $0x8] sm:$0x3]
  %654 = vset.pattern.permute.xlu0 0
  %655 = vperm.xlu0 %654, %v651
  %v656 = vpop.permute.xlu0 %655
  %659 = vset.pattern.permute.xlu0 0
  %660 = vperm.xlu0 %659, %v652
  %v661 = vpop.permute.xlu0 %660
  %v663 = vmul.f32 %v656, %v76
  %v664 = vmul.f32 %v656, %v77
  %v665 = vmul.f32 %v656, %v78
  %v666 = vmul.f32 %v656, %v79
  %v667 = vmul.f32 %v661, %v76
  %v668 = vmul.f32 %v661, %v77
  %v669 = vmul.f32 %v661, %v78
  %v670 = vmul.f32 %v661, %v79
  %679 = vrot.lane.b32.xlu0 %v663, 113
  %v680 = vpop.permute.xlu0 %679
  %681 = vrot.lane.b32.xlu0 %v664, 113
  %v682 = vpop.permute.xlu0 %681
  %683 = vrot.lane.b32.xlu0 %v665, 113
  %v684 = vpop.permute.xlu0 %683
  %685 = vrot.lane.b32.xlu0 %v666, 113
  %v686 = vpop.permute.xlu0 %685
  %687 = vrot.lane.b32.xlu0 %v667, 113
  %v688 = vpop.permute.xlu0 %687
  %689 = vrot.lane.b32.xlu0 %v668, 113
  %v690 = vpop.permute.xlu0 %689
  %691 = vrot.lane.b32.xlu0 %v669, 113
  %v692 = vpop.permute.xlu0 %691
  %693 = vrot.lane.b32.xlu0 %v670, 113
  %v694 = vpop.permute.xlu0 %693
  %v695 = vsel %vm627, %v680, %v682
  %v696 = vsel %vm627, %v682, %v684
  %v697 = vsel %vm627, %v684, %v686
  %v698 = vsel %vm627, %v688, %v690
  %v699 = vsel %vm627, %v690, %v692
  %v700 = vsel %vm627, %v692, %v694
  %v709 = vadd.f32 %v642, %v695
  %v710 = vadd.f32 %v643, %v696
  %v711 = vadd.f32 %v644, %v697
  %v712 = vadd.f32 %v645, %v686
  %v713 = vadd.f32 %v646, %v698
  %v714 = vadd.f32 %v647, %v699
  %v715 = vadd.f32 %v648, %v700
  %v716 = vadd.f32 %v649, %v694
  %s717 = scalar_lea.vmem %s4, 192
  %v718 = vld [vmem:[%s717] sm:$0xff]
  %v719 = vld [vmem:[%s717 + $0x8] sm:$0x3]
  %721 = vset.pattern.permute.xlu0 0
  %722 = vperm.xlu0 %721, %v718
  %v723 = vpop.permute.xlu0 %722
  %726 = vset.pattern.permute.xlu0 0
  %727 = vperm.xlu0 %726, %v719
  %v728 = vpop.permute.xlu0 %727
  %v730 = vmul.f32 %v723, %v37
  %v731 = vmul.f32 %v723, %v38
  %v732 = vmul.f32 %v723, %v39
  %v733 = vmul.f32 %v723, %v40
  %v734 = vmul.f32 %v728, %v37
  %v735 = vmul.f32 %v728, %v38
  %v736 = vmul.f32 %v728, %v39
  %v737 = vmul.f32 %v728, %v40
  %746 = vrot.lane.b32.xlu0 %v730, 112
  %v747 = vpop.permute.xlu0 %746
  %748 = vrot.lane.b32.xlu0 %v731, 112
  %v749 = vpop.permute.xlu0 %748
  %750 = vrot.lane.b32.xlu0 %v732, 112
  %v751 = vpop.permute.xlu0 %750
  %752 = vrot.lane.b32.xlu0 %v733, 112
  %v753 = vpop.permute.xlu0 %752
  %754 = vrot.lane.b32.xlu0 %v734, 112
  %v755 = vpop.permute.xlu0 %754
  %756 = vrot.lane.b32.xlu0 %v735, 112
  %v757 = vpop.permute.xlu0 %756
  %758 = vrot.lane.b32.xlu0 %v736, 112
  %v759 = vpop.permute.xlu0 %758
  %760 = vrot.lane.b32.xlu0 %v737, 112
  %v761 = vpop.permute.xlu0 %760
  %vm762 = vcmask 916480
  %v763 = vsel %vm762, %v747, %v749
  %v764 = vsel %vm762, %v749, %v751
  %v765 = vsel %vm762, %v751, %v753
  %v766 = vsel %vm762, %v755, %v757
  %v767 = vsel %vm762, %v757, %v759
  %v768 = vsel %vm762, %v759, %v761
  %v777 = vadd.f32 %v709, %v763
  %v778 = vadd.f32 %v710, %v764
  %v779 = vadd.f32 %v711, %v765
  %v780 = vadd.f32 %v712, %v753
  %v781 = vadd.f32 %v713, %v766
  %v782 = vadd.f32 %v714, %v767
  %v783 = vadd.f32 %v715, %v768
  %v784 = vadd.f32 %v716, %v761
  %s785 = scalar_lea.vmem %s4, 208
  %v786 = vld [vmem:[%s785] sm:$0xff]
  %v787 = vld [vmem:[%s785 + $0x8] sm:$0x3]
  %789 = vset.pattern.permute.xlu0 0
  %790 = vperm.xlu0 %789, %v786
  %v791 = vpop.permute.xlu0 %790
  %794 = vset.pattern.permute.xlu0 0
  %795 = vperm.xlu0 %794, %v787
  %v796 = vpop.permute.xlu0 %795
  %v798 = vmul.f32 %v791, %v76
  %v799 = vmul.f32 %v791, %v77
  %v800 = vmul.f32 %v791, %v78
  %v801 = vmul.f32 %v791, %v79
  %v802 = vmul.f32 %v796, %v76
  %v803 = vmul.f32 %v796, %v77
  %v804 = vmul.f32 %v796, %v78
  %v805 = vmul.f32 %v796, %v79
  %814 = vrot.lane.b32.xlu0 %v798, 112
  %v815 = vpop.permute.xlu0 %814
  %816 = vrot.lane.b32.xlu0 %v799, 112
  %v817 = vpop.permute.xlu0 %816
  %818 = vrot.lane.b32.xlu0 %v800, 112
  %v819 = vpop.permute.xlu0 %818
  %820 = vrot.lane.b32.xlu0 %v801, 112
  %v821 = vpop.permute.xlu0 %820
  %822 = vrot.lane.b32.xlu0 %v802, 112
  %v823 = vpop.permute.xlu0 %822
  %824 = vrot.lane.b32.xlu0 %v803, 112
  %v825 = vpop.permute.xlu0 %824
  %826 = vrot.lane.b32.xlu0 %v804, 112
  %v827 = vpop.permute.xlu0 %826
  %828 = vrot.lane.b32.xlu0 %v805, 112
  %v829 = vpop.permute.xlu0 %828
  %v830 = vsel %vm762, %v815, %v817
  %v831 = vsel %vm762, %v817, %v819
  %v832 = vsel %vm762, %v819, %v821
  %v833 = vsel %vm762, %v823, %v825
  %v834 = vsel %vm762, %v825, %v827
  %v835 = vsel %vm762, %v827, %v829
  %v844 = vadd.f32 %v777, %v830
  %v845 = vadd.f32 %v778, %v831
  %v846 = vadd.f32 %v779, %v832
  %v847 = vadd.f32 %v780, %v821
  %v848 = vadd.f32 %v781, %v833
  %v849 = vadd.f32 %v782, %v834
  %v850 = vadd.f32 %v783, %v835
  %v851 = vadd.f32 %v784, %v829
  %s852 = scalar_lea.vmem %s4, 224
  %v853 = vld [vmem:[%s852] sm:$0xff]
  %v854 = vld [vmem:[%s852 + $0x8] sm:$0x3]
  %856 = vset.pattern.permute.xlu0 0
  %857 = vperm.xlu0 %856, %v853
  %v858 = vpop.permute.xlu0 %857
  %861 = vset.pattern.permute.xlu0 0
  %862 = vperm.xlu0 %861, %v854
  %v863 = vpop.permute.xlu0 %862
  %v865 = vmul.f32 %v858, %v37
  %v866 = vmul.f32 %v858, %v38
  %v867 = vmul.f32 %v858, %v39
  %v868 = vmul.f32 %v858, %v40
  %v869 = vmul.f32 %v863, %v37
  %v870 = vmul.f32 %v863, %v38
  %v871 = vmul.f32 %v863, %v39
  %v872 = vmul.f32 %v863, %v40
  %881 = vrot.lane.b32.xlu0 %v865, 111
  %v882 = vpop.permute.xlu0 %881
  %883 = vrot.lane.b32.xlu0 %v866, 111
  %v884 = vpop.permute.xlu0 %883
  %885 = vrot.lane.b32.xlu0 %v867, 111
  %v886 = vpop.permute.xlu0 %885
  %887 = vrot.lane.b32.xlu0 %v868, 111
  %v888 = vpop.permute.xlu0 %887
  %889 = vrot.lane.b32.xlu0 %v869, 111
  %v890 = vpop.permute.xlu0 %889
  %891 = vrot.lane.b32.xlu0 %v870, 111
  %v892 = vpop.permute.xlu0 %891
  %893 = vrot.lane.b32.xlu0 %v871, 111
  %v894 = vpop.permute.xlu0 %893
  %895 = vrot.lane.b32.xlu0 %v872, 111
  %v896 = vpop.permute.xlu0 %895
  %vm897 = vcmask 908288
  %v898 = vsel %vm897, %v882, %v884
  %v899 = vsel %vm897, %v884, %v886
  %v900 = vsel %vm897, %v886, %v888
  %v901 = vsel %vm897, %v890, %v892
  %v902 = vsel %vm897, %v892, %v894
  %v903 = vsel %vm897, %v894, %v896
  %v912 = vadd.f32 %v844, %v898
  %v913 = vadd.f32 %v845, %v899
  %v914 = vadd.f32 %v846, %v900
  %v915 = vadd.f32 %v847, %v888
  %v916 = vadd.f32 %v848, %v901
  %v917 = vadd.f32 %v849, %v902
  %v918 = vadd.f32 %v850, %v903
  %v919 = vadd.f32 %v851, %v896
  %s920 = scalar_lea.vmem %s4, 240
  %v921 = vld [vmem:[%s920] sm:$0xff]
  %v922 = vld [vmem:[%s920 + $0x8] sm:$0x3]
  %924 = vset.pattern.permute.xlu0 0
  %925 = vperm.xlu0 %924, %v921
  %v926 = vpop.permute.xlu0 %925
  %929 = vset.pattern.permute.xlu0 0
  %930 = vperm.xlu0 %929, %v922
  %v931 = vpop.permute.xlu0 %930
  %v933 = vmul.f32 %v926, %v318
  %v934 = vmul.f32 %v926, %v319
  %v935 = vmul.f32 %v926, %v320
  %v936 = vmul.f32 %v926, %v321
  %v937 = vmul.f32 %v931, %v318
  %v938 = vmul.f32 %v931, %v319
  %v939 = vmul.f32 %v931, %v320
  %v940 = vmul.f32 %v931, %v321
  %949 = vrot.lane.b32.xlu0 %v933, 113
  %v950 = vpop.permute.xlu0 %949
  %951 = vrot.lane.b32.xlu0 %v934, 113
  %v952 = vpop.permute.xlu0 %951
  %953 = vrot.lane.b32.xlu0 %v935, 113
  %v954 = vpop.permute.xlu0 %953
  %955 = vrot.lane.b32.xlu0 %v936, 113
  %v956 = vpop.permute.xlu0 %955
  %957 = vrot.lane.b32.xlu0 %v937, 113
  %v958 = vpop.permute.xlu0 %957
  %959 = vrot.lane.b32.xlu0 %v938, 113
  %v960 = vpop.permute.xlu0 %959
  %961 = vrot.lane.b32.xlu0 %v939, 113
  %v962 = vpop.permute.xlu0 %961
  %963 = vrot.lane.b32.xlu0 %v940, 113
  %v964 = vpop.permute.xlu0 %963
  %v965 = vsel %vm627, %v950, %v952
  %v966 = vsel %vm627, %v952, %v954
  %v967 = vsel %vm627, %v954, %v956
  %v968 = vsel %vm627, %v958, %v960
  %v969 = vsel %vm627, %v960, %v962
  %v970 = vsel %vm627, %v962, %v964
  %v979 = vadd.f32 %v912, %v965
  %v980 = vadd.f32 %v913, %v966
  %v981 = vadd.f32 %v914, %v967
  %v982 = vadd.f32 %v915, %v956
  %v983 = vadd.f32 %v916, %v968
  %v984 = vadd.f32 %v917, %v969
  %v985 = vadd.f32 %v918, %v970
  %v986 = vadd.f32 %v919, %v964
  %s987 = scalar_lea.vmem %s4, 256
  %v988 = vld [vmem:[%s987] sm:$0xff]
  %v989 = vld [vmem:[%s987 + $0x8] sm:$0x3]
  %991 = vset.pattern.permute.xlu0 0
  %992 = vperm.xlu0 %991, %v988
  %v993 = vpop.permute.xlu0 %992
  %996 = vset.pattern.permute.xlu0 0
  %997 = vperm.xlu0 %996, %v989
  %v998 = vpop.permute.xlu0 %997
  %v1000 = vmul.f32 %v993, %v357
  %v1001 = vmul.f32 %v993, %v358
  %v1002 = vmul.f32 %v993, %v359
  %v1003 = vmul.f32 %v993, %v360
  %v1004 = vmul.f32 %v998, %v357
  %v1005 = vmul.f32 %v998, %v358
  %v1006 = vmul.f32 %v998, %v359
  %v1007 = vmul.f32 %v998, %v360
  %1016 = vrot.lane.b32.xlu0 %v1000, 113
  %v1017 = vpop.permute.xlu0 %1016
  %1018 = vrot.lane.b32.xlu0 %v1001, 113
  %v1019 = vpop.permute.xlu0 %1018
  %1020 = vrot.lane.b32.xlu0 %v1002, 113
  %v1021 = vpop.permute.xlu0 %1020
  %1022 = vrot.lane.b32.xlu0 %v1003, 113
  %v1023 = vpop.permute.xlu0 %1022
  %1024 = vrot.lane.b32.xlu0 %v1004, 113
  %v1025 = vpop.permute.xlu0 %1024
  %1026 = vrot.lane.b32.xlu0 %v1005, 113
  %v1027 = vpop.permute.xlu0 %1026
  %1028 = vrot.lane.b32.xlu0 %v1006, 113
  %v1029 = vpop.permute.xlu0 %1028
  %1030 = vrot.lane.b32.xlu0 %v1007, 113
  %v1031 = vpop.permute.xlu0 %1030
  %v1032 = vsel %vm627, %v1017, %v1019
  %v1033 = vsel %vm627, %v1019, %v1021
  %v1034 = vsel %vm627, %v1021, %v1023
  %v1035 = vsel %vm627, %v1025, %v1027
  %v1036 = vsel %vm627, %v1027, %v1029
  %v1037 = vsel %vm627, %v1029, %v1031
  %v1046 = vadd.f32 %v979, %v1032
  %v1047 = vadd.f32 %v980, %v1033
  %v1048 = vadd.f32 %v981, %v1034
  %v1049 = vadd.f32 %v982, %v1023
  %v1050 = vadd.f32 %v983, %v1035
  %v1051 = vadd.f32 %v984, %v1036
  %v1052 = vadd.f32 %v985, %v1037
  %v1053 = vadd.f32 %v986, %v1031
  %s1054 = scalar_lea.vmem %s4, 272
  %v1055 = vld [vmem:[%s1054] sm:$0xff]
  %v1056 = vld [vmem:[%s1054 + $0x8] sm:$0x3]
  %1058 = vset.pattern.permute.xlu0 0
  %1059 = vperm.xlu0 %1058, %v1055
  %v1060 = vpop.permute.xlu0 %1059
  %1063 = vset.pattern.permute.xlu0 0
  %1064 = vperm.xlu0 %1063, %v1056
  %v1065 = vpop.permute.xlu0 %1064
  %v1067 = vmul.f32 %v1060, %v318
  %v1068 = vmul.f32 %v1060, %v319
  %v1069 = vmul.f32 %v1060, %v320
  %v1070 = vmul.f32 %v1060, %v321
  %v1071 = vmul.f32 %v1065, %v318
  %v1072 = vmul.f32 %v1065, %v319
  %v1073 = vmul.f32 %v1065, %v320
  %v1074 = vmul.f32 %v1065, %v321
  %1083 = vrot.lane.b32.xlu0 %v1067, 112
  %v1084 = vpop.permute.xlu0 %1083
  %1085 = vrot.lane.b32.xlu0 %v1068, 112
  %v1086 = vpop.permute.xlu0 %1085
  %1087 = vrot.lane.b32.xlu0 %v1069, 112
  %v1088 = vpop.permute.xlu0 %1087
  %1089 = vrot.lane.b32.xlu0 %v1070, 112
  %v1090 = vpop.permute.xlu0 %1089
  %1091 = vrot.lane.b32.xlu0 %v1071, 112
  %v1092 = vpop.permute.xlu0 %1091
  %1093 = vrot.lane.b32.xlu0 %v1072, 112
  %v1094 = vpop.permute.xlu0 %1093
  %1095 = vrot.lane.b32.xlu0 %v1073, 112
  %v1096 = vpop.permute.xlu0 %1095
  %1097 = vrot.lane.b32.xlu0 %v1074, 112
  %v1098 = vpop.permute.xlu0 %1097
  %v1099 = vsel %vm762, %v1084, %v1086
  %v1100 = vsel %vm762, %v1086, %v1088
  %v1101 = vsel %vm762, %v1088, %v1090
  %v1102 = vsel %vm762, %v1092, %v1094
  %v1103 = vsel %vm762, %v1094, %v1096
  %v1104 = vsel %vm762, %v1096, %v1098
  %v1113 = vadd.f32 %v1046, %v1099
  %v1114 = vadd.f32 %v1047, %v1100
  %v1115 = vadd.f32 %v1048, %v1101
  %v1116 = vadd.f32 %v1049, %v1090
  %v1117 = vadd.f32 %v1050, %v1102
  %v1118 = vadd.f32 %v1051, %v1103
  %v1119 = vadd.f32 %v1052, %v1104
  %v1120 = vadd.f32 %v1053, %v1098
  %s1121 = scalar_lea.vmem %s4, 288
  %v1122 = vld [vmem:[%s1121] sm:$0xff]
  %v1123 = vld [vmem:[%s1121 + $0x8] sm:$0x3]
  %1125 = vset.pattern.permute.xlu0 0
  %1126 = vperm.xlu0 %1125, %v1122
  %v1127 = vpop.permute.xlu0 %1126
  %1130 = vset.pattern.permute.xlu0 0
  %1131 = vperm.xlu0 %1130, %v1123
  %v1132 = vpop.permute.xlu0 %1131
  %v1134 = vmul.f32 %v1127, %v357
  %v1135 = vmul.f32 %v1127, %v358
  %v1136 = vmul.f32 %v1127, %v359
  %v1137 = vmul.f32 %v1127, %v360
  %v1138 = vmul.f32 %v1132, %v357
  %v1139 = vmul.f32 %v1132, %v358
  %v1140 = vmul.f32 %v1132, %v359
  %v1141 = vmul.f32 %v1132, %v360
  %1150 = vrot.lane.b32.xlu0 %v1134, 112
  %v1151 = vpop.permute.xlu0 %1150
  %1152 = vrot.lane.b32.xlu0 %v1135, 112
  %v1153 = vpop.permute.xlu0 %1152
  %1154 = vrot.lane.b32.xlu0 %v1136, 112
  %v1155 = vpop.permute.xlu0 %1154
  %1156 = vrot.lane.b32.xlu0 %v1137, 112
  %v1157 = vpop.permute.xlu0 %1156
  %1158 = vrot.lane.b32.xlu0 %v1138, 112
  %v1159 = vpop.permute.xlu0 %1158
  %1160 = vrot.lane.b32.xlu0 %v1139, 112
  %v1161 = vpop.permute.xlu0 %1160
  %1162 = vrot.lane.b32.xlu0 %v1140, 112
  %v1163 = vpop.permute.xlu0 %1162
  %1164 = vrot.lane.b32.xlu0 %v1141, 112
  %v1165 = vpop.permute.xlu0 %1164
  %v1166 = vsel %vm762, %v1151, %v1153
  %v1167 = vsel %vm762, %v1153, %v1155
  %v1168 = vsel %vm762, %v1155, %v1157
  %v1169 = vsel %vm762, %v1159, %v1161
  %v1170 = vsel %vm762, %v1161, %v1163
  %v1171 = vsel %vm762, %v1163, %v1165
  %v1180 = vadd.f32 %v1113, %v1166
  %v1181 = vadd.f32 %v1114, %v1167
  %v1182 = vadd.f32 %v1115, %v1168
  %v1183 = vadd.f32 %v1116, %v1157
  %v1184 = vadd.f32 %v1117, %v1169
  %v1185 = vadd.f32 %v1118, %v1170
  %v1186 = vadd.f32 %v1119, %v1171
  %v1187 = vadd.f32 %v1120, %v1165
  %s1188 = scalar_lea.vmem %s4, 304
  %v1189 = vld [vmem:[%s1188] sm:$0xff]
  %v1190 = vld [vmem:[%s1188 + $0x8] sm:$0x3]
  %1192 = vset.pattern.permute.xlu0 0
  %1193 = vperm.xlu0 %1192, %v1189
  %v1194 = vpop.permute.xlu0 %1193
  %1197 = vset.pattern.permute.xlu0 0
  %1198 = vperm.xlu0 %1197, %v1190
  %v1199 = vpop.permute.xlu0 %1198
  %v1201 = vmul.f32 %v1194, %v318
  %v1202 = vmul.f32 %v1194, %v319
  %v1203 = vmul.f32 %v1194, %v320
  %v1204 = vmul.f32 %v1194, %v321
  %v1205 = vmul.f32 %v1199, %v318
  %v1206 = vmul.f32 %v1199, %v319
  %v1207 = vmul.f32 %v1199, %v320
  %v1208 = vmul.f32 %v1199, %v321
  %1217 = vrot.lane.b32.xlu0 %v1201, 111
  %v1218 = vpop.permute.xlu0 %1217
  %1219 = vrot.lane.b32.xlu0 %v1202, 111
  %v1220 = vpop.permute.xlu0 %1219
  %1221 = vrot.lane.b32.xlu0 %v1203, 111
  %v1222 = vpop.permute.xlu0 %1221
  %1223 = vrot.lane.b32.xlu0 %v1204, 111
  %v1224 = vpop.permute.xlu0 %1223
  %1225 = vrot.lane.b32.xlu0 %v1205, 111
  %v1226 = vpop.permute.xlu0 %1225
  %1227 = vrot.lane.b32.xlu0 %v1206, 111
  %v1228 = vpop.permute.xlu0 %1227
  %1229 = vrot.lane.b32.xlu0 %v1207, 111
  %v1230 = vpop.permute.xlu0 %1229
  %1231 = vrot.lane.b32.xlu0 %v1208, 111
  %v1232 = vpop.permute.xlu0 %1231
  %v1233 = vsel %vm897, %v1218, %v1220
  %v1234 = vsel %vm897, %v1220, %v1222
  %v1235 = vsel %vm897, %v1222, %v1224
  %v1236 = vsel %vm897, %v1226, %v1228
  %v1237 = vsel %vm897, %v1228, %v1230
  %v1238 = vsel %vm897, %v1230, %v1232
  %v1247 = vadd.f32 %v1180, %v1233
  %v1248 = vadd.f32 %v1181, %v1234
  %v1249 = vadd.f32 %v1182, %v1235
  %v1250 = vadd.f32 %v1183, %v1224
  %v1251 = vadd.f32 %v1184, %v1236
  %v1252 = vadd.f32 %v1185, %v1237
  %v1253 = vadd.f32 %v1186, %v1238
  %v1254 = vadd.f32 %v1187, %v1232
  %s1255 = scalar_lea.vmem %s4, 320
  %v1256 = vld [vmem:[%s1255] sm:$0xff]
  %v1257 = vld [vmem:[%s1255 + $0x8] sm:$0x3]
  %1259 = vset.pattern.permute.xlu0 0
  %1260 = vperm.xlu0 %1259, %v1256
  %v1261 = vpop.permute.xlu0 %1260
  %1264 = vset.pattern.permute.xlu0 0
  %1265 = vperm.xlu0 %1264, %v1257
  %v1266 = vpop.permute.xlu0 %1265
  %v1268 = vmul.f32 %v1261, %v37
  %v1269 = vmul.f32 %v1261, %v38
  %v1270 = vmul.f32 %v1261, %v39
  %v1271 = vmul.f32 %v1261, %v40
  %v1272 = vmul.f32 %v1266, %v37
  %v1273 = vmul.f32 %v1266, %v38
  %v1274 = vmul.f32 %v1266, %v39
  %v1275 = vmul.f32 %v1266, %v40
  %1284 = vrot.lane.b32.xlu0 %v1268, 98
  %v1285 = vpop.permute.xlu0 %1284
  %1286 = vrot.lane.b32.xlu0 %v1269, 98
  %v1287 = vpop.permute.xlu0 %1286
  %1288 = vrot.lane.b32.xlu0 %v1270, 98
  %v1289 = vpop.permute.xlu0 %1288
  %1290 = vrot.lane.b32.xlu0 %v1271, 98
  %v1291 = vpop.permute.xlu0 %1290
  %1292 = vrot.lane.b32.xlu0 %v1272, 98
  %v1293 = vpop.permute.xlu0 %1292
  %1294 = vrot.lane.b32.xlu0 %v1273, 98
  %v1295 = vpop.permute.xlu0 %1294
  %1296 = vrot.lane.b32.xlu0 %v1274, 98
  %v1297 = vpop.permute.xlu0 %1296
  %1298 = vrot.lane.b32.xlu0 %v1275, 98
  %v1299 = vpop.permute.xlu0 %1298
  %vm1300 = vcmask 801792
  %v1301 = vsel %vm1300, %v1285, %v1287
  %v1302 = vsel %vm1300, %v1287, %v1289
  %v1303 = vsel %vm1300, %v1289, %v1291
  %v1304 = vsel %vm1300, %v1293, %v1295
  %v1305 = vsel %vm1300, %v1295, %v1297
  %v1306 = vsel %vm1300, %v1297, %v1299
  %v1315 = vadd.f32 %v1247, %v1301
  %v1316 = vadd.f32 %v1248, %v1302
  %v1317 = vadd.f32 %v1249, %v1303
  %v1318 = vadd.f32 %v1250, %v1291
  %v1319 = vadd.f32 %v1251, %v1304
  %v1320 = vadd.f32 %v1252, %v1305
  %v1321 = vadd.f32 %v1253, %v1306
  %v1322 = vadd.f32 %v1254, %v1299
  %s1323 = scalar_lea.vmem %s4, 336
  %v1324 = vld [vmem:[%s1323] sm:$0xff]
  %v1325 = vld [vmem:[%s1323 + $0x8] sm:$0x3]
  %1327 = vset.pattern.permute.xlu0 0
  %1328 = vperm.xlu0 %1327, %v1324
  %v1329 = vpop.permute.xlu0 %1328
  %1332 = vset.pattern.permute.xlu0 0
  %1333 = vperm.xlu0 %1332, %v1325
  %v1334 = vpop.permute.xlu0 %1333
  %v1336 = vmul.f32 %v1329, %v76
  %v1337 = vmul.f32 %v1329, %v77
  %v1338 = vmul.f32 %v1329, %v78
  %v1339 = vmul.f32 %v1329, %v79
  %v1340 = vmul.f32 %v1334, %v76
  %v1341 = vmul.f32 %v1334, %v77
  %v1342 = vmul.f32 %v1334, %v78
  %v1343 = vmul.f32 %v1334, %v79
  %1352 = vrot.lane.b32.xlu0 %v1336, 98
  %v1353 = vpop.permute.xlu0 %1352
  %1354 = vrot.lane.b32.xlu0 %v1337, 98
  %v1355 = vpop.permute.xlu0 %1354
  %1356 = vrot.lane.b32.xlu0 %v1338, 98
  %v1357 = vpop.permute.xlu0 %1356
  %1358 = vrot.lane.b32.xlu0 %v1339, 98
  %v1359 = vpop.permute.xlu0 %1358
  %1360 = vrot.lane.b32.xlu0 %v1340, 98
  %v1361 = vpop.permute.xlu0 %1360
  %1362 = vrot.lane.b32.xlu0 %v1341, 98
  %v1363 = vpop.permute.xlu0 %1362
  %1364 = vrot.lane.b32.xlu0 %v1342, 98
  %v1365 = vpop.permute.xlu0 %1364
  %1366 = vrot.lane.b32.xlu0 %v1343, 98
  %v1367 = vpop.permute.xlu0 %1366
  %v1368 = vsel %vm1300, %v1353, %v1355
  %v1369 = vsel %vm1300, %v1355, %v1357
  %v1370 = vsel %vm1300, %v1357, %v1359
  %v1371 = vsel %vm1300, %v1361, %v1363
  %v1372 = vsel %vm1300, %v1363, %v1365
  %v1373 = vsel %vm1300, %v1365, %v1367
  %v1382 = vadd.f32 %v1315, %v1368
  %v1383 = vadd.f32 %v1316, %v1369
  %v1384 = vadd.f32 %v1317, %v1370
  %v1385 = vadd.f32 %v1318, %v1359
  %v1386 = vadd.f32 %v1319, %v1371
  %v1387 = vadd.f32 %v1320, %v1372
  %v1388 = vadd.f32 %v1321, %v1373
  %v1389 = vadd.f32 %v1322, %v1367
  %s1390 = scalar_lea.vmem %s4, 352
  %v1391 = vld [vmem:[%s1390] sm:$0xff]
  %v1392 = vld [vmem:[%s1390 + $0x8] sm:$0x3]
  %1394 = vset.pattern.permute.xlu0 0
  %1395 = vperm.xlu0 %1394, %v1391
  %v1396 = vpop.permute.xlu0 %1395
  %1399 = vset.pattern.permute.xlu0 0
  %1400 = vperm.xlu0 %1399, %v1392
  %v1401 = vpop.permute.xlu0 %1400
  %v1403 = vmul.f32 %v1396, %v37
  %v1404 = vmul.f32 %v1396, %v38
  %v1405 = vmul.f32 %v1396, %v39
  %v1406 = vmul.f32 %v1396, %v40
  %v1407 = vmul.f32 %v1401, %v37
  %v1408 = vmul.f32 %v1401, %v38
  %v1409 = vmul.f32 %v1401, %v39
  %v1410 = vmul.f32 %v1401, %v40
  %1419 = vrot.lane.b32.xlu0 %v1403, 97
  %v1420 = vpop.permute.xlu0 %1419
  %1421 = vrot.lane.b32.xlu0 %v1404, 97
  %v1422 = vpop.permute.xlu0 %1421
  %1423 = vrot.lane.b32.xlu0 %v1405, 97
  %v1424 = vpop.permute.xlu0 %1423
  %1425 = vrot.lane.b32.xlu0 %v1406, 97
  %v1426 = vpop.permute.xlu0 %1425
  %1427 = vrot.lane.b32.xlu0 %v1407, 97
  %v1428 = vpop.permute.xlu0 %1427
  %1429 = vrot.lane.b32.xlu0 %v1408, 97
  %v1430 = vpop.permute.xlu0 %1429
  %1431 = vrot.lane.b32.xlu0 %v1409, 97
  %v1432 = vpop.permute.xlu0 %1431
  %1433 = vrot.lane.b32.xlu0 %v1410, 97
  %v1434 = vpop.permute.xlu0 %1433
  %vm1435 = vcmask 793600
  %v1436 = vsel %vm1435, %v1420, %v1422
  %v1437 = vsel %vm1435, %v1422, %v1424
  %v1438 = vsel %vm1435, %v1424, %v1426
  %v1439 = vsel %vm1435, %v1428, %v1430
  %v1440 = vsel %vm1435, %v1430, %v1432
  %v1441 = vsel %vm1435, %v1432, %v1434
  %v1450 = vadd.f32 %v1382, %v1436
  %v1451 = vadd.f32 %v1383, %v1437
  %v1452 = vadd.f32 %v1384, %v1438
  %v1453 = vadd.f32 %v1385, %v1426
  %v1454 = vadd.f32 %v1386, %v1439
  %v1455 = vadd.f32 %v1387, %v1440
  %v1456 = vadd.f32 %v1388, %v1441
  %v1457 = vadd.f32 %v1389, %v1434
  %s1458 = scalar_lea.vmem %s4, 368
  %v1459 = vld [vmem:[%s1458] sm:$0xff]
  %v1460 = vld [vmem:[%s1458 + $0x8] sm:$0x3]
  %1462 = vset.pattern.permute.xlu0 0
  %1463 = vperm.xlu0 %1462, %v1459
  %v1464 = vpop.permute.xlu0 %1463
  %1467 = vset.pattern.permute.xlu0 0
  %1468 = vperm.xlu0 %1467, %v1460
  %v1469 = vpop.permute.xlu0 %1468
  %v1471 = vmul.f32 %v1464, %v76
  %v1472 = vmul.f32 %v1464, %v77
  %v1473 = vmul.f32 %v1464, %v78
  %v1474 = vmul.f32 %v1464, %v79
  %v1475 = vmul.f32 %v1469, %v76
  %v1476 = vmul.f32 %v1469, %v77
  %v1477 = vmul.f32 %v1469, %v78
  %v1478 = vmul.f32 %v1469, %v79
  %1487 = vrot.lane.b32.xlu0 %v1471, 97
  %v1488 = vpop.permute.xlu0 %1487
  %1489 = vrot.lane.b32.xlu0 %v1472, 97
  %v1490 = vpop.permute.xlu0 %1489
  %1491 = vrot.lane.b32.xlu0 %v1473, 97
  %v1492 = vpop.permute.xlu0 %1491
  %1493 = vrot.lane.b32.xlu0 %v1474, 97
  %v1494 = vpop.permute.xlu0 %1493
  %1495 = vrot.lane.b32.xlu0 %v1475, 97
  %v1496 = vpop.permute.xlu0 %1495
  %1497 = vrot.lane.b32.xlu0 %v1476, 97
  %v1498 = vpop.permute.xlu0 %1497
  %1499 = vrot.lane.b32.xlu0 %v1477, 97
  %v1500 = vpop.permute.xlu0 %1499
  %1501 = vrot.lane.b32.xlu0 %v1478, 97
  %v1502 = vpop.permute.xlu0 %1501
  %v1503 = vsel %vm1435, %v1488, %v1490
  %v1504 = vsel %vm1435, %v1490, %v1492
  %v1505 = vsel %vm1435, %v1492, %v1494
  %v1506 = vsel %vm1435, %v1496, %v1498
  %v1507 = vsel %vm1435, %v1498, %v1500
  %v1508 = vsel %vm1435, %v1500, %v1502
  %v1517 = vadd.f32 %v1450, %v1503
  %v1518 = vadd.f32 %v1451, %v1504
  %v1519 = vadd.f32 %v1452, %v1505
  %v1520 = vadd.f32 %v1453, %v1494
  %v1521 = vadd.f32 %v1454, %v1506
  %v1522 = vadd.f32 %v1455, %v1507
  %v1523 = vadd.f32 %v1456, %v1508
  %v1524 = vadd.f32 %v1457, %v1502
  %s1525 = scalar_lea.vmem %s4, 384
  %v1526 = vld [vmem:[%s1525] sm:$0xff]
  %v1527 = vld [vmem:[%s1525 + $0x8] sm:$0x3]
  %1529 = vset.pattern.permute.xlu0 0
  %1530 = vperm.xlu0 %1529, %v1526
  %v1531 = vpop.permute.xlu0 %1530
  %1534 = vset.pattern.permute.xlu0 0
  %1535 = vperm.xlu0 %1534, %v1527
  %v1536 = vpop.permute.xlu0 %1535
  %v1538 = vmul.f32 %v1531, %v37
  %v1539 = vmul.f32 %v1531, %v38
  %v1540 = vmul.f32 %v1531, %v39
  %v1541 = vmul.f32 %v1531, %v40
  %v1542 = vmul.f32 %v1536, %v37
  %v1543 = vmul.f32 %v1536, %v38
  %v1544 = vmul.f32 %v1536, %v39
  %v1545 = vmul.f32 %v1536, %v40
  %1554 = vrot.lane.b32.xlu0 %v1538, 96
  %v1555 = vpop.permute.xlu0 %1554
  %1556 = vrot.lane.b32.xlu0 %v1539, 96
  %v1557 = vpop.permute.xlu0 %1556
  %1558 = vrot.lane.b32.xlu0 %v1540, 96
  %v1559 = vpop.permute.xlu0 %1558
  %1560 = vrot.lane.b32.xlu0 %v1541, 96
  %v1561 = vpop.permute.xlu0 %1560
  %1562 = vrot.lane.b32.xlu0 %v1542, 96
  %v1563 = vpop.permute.xlu0 %1562
  %1564 = vrot.lane.b32.xlu0 %v1543, 96
  %v1565 = vpop.permute.xlu0 %1564
  %1566 = vrot.lane.b32.xlu0 %v1544, 96
  %v1567 = vpop.permute.xlu0 %1566
  %1568 = vrot.lane.b32.xlu0 %v1545, 96
  %v1569 = vpop.permute.xlu0 %1568
  %vm1570 = vcmask 785408
  %v1571 = vsel %vm1570, %v1555, %v1557
  %v1572 = vsel %vm1570, %v1557, %v1559
  %v1573 = vsel %vm1570, %v1559, %v1561
  %v1574 = vsel %vm1570, %v1563, %v1565
  %v1575 = vsel %vm1570, %v1565, %v1567
  %v1576 = vsel %vm1570, %v1567, %v1569
  %v1585 = vadd.f32 %v1517, %v1571
  %v1586 = vadd.f32 %v1518, %v1572
  %v1587 = vadd.f32 %v1519, %v1573
  %v1588 = vadd.f32 %v1520, %v1561
  %v1589 = vadd.f32 %v1521, %v1574
  %v1590 = vadd.f32 %v1522, %v1575
  %v1591 = vadd.f32 %v1523, %v1576
  %v1592 = vadd.f32 %v1524, %v1569
  %v1593 = vmul.f32 %v29, %v76
  %v1594 = vmul.f32 %v29, %v77
  %v1595 = vmul.f32 %v29, %v78
  %v1596 = vmul.f32 %v29, %v79
  %v1597 = vmul.f32 %v34, %v76
  %v1598 = vmul.f32 %v34, %v77
  %v1599 = vmul.f32 %v34, %v78
  %v1600 = vmul.f32 %v34, %v79
  %v1601 = vadd.f32 %v1593, 0.0
  %v1602 = vadd.f32 %v1594, 0.0
  %v1603 = vadd.f32 %v1595, 0.0
  %v1604 = vadd.f32 %v1596, 0.0
  %v1605 = vadd.f32 %v1597, 0.0
  %v1606 = vadd.f32 %v1598, 0.0
  %v1607 = vadd.f32 %v1599, 0.0
  %v1608 = vadd.f32 %v1600, 0.0
  %v1609 = vmul.f32 %v68, %v37
  %v1610 = vmul.f32 %v68, %v38
  %v1611 = vmul.f32 %v68, %v39
  %v1612 = vmul.f32 %v68, %v40
  %v1613 = vmul.f32 %v73, %v37
  %v1614 = vmul.f32 %v73, %v38
  %v1615 = vmul.f32 %v73, %v39
  %v1616 = vmul.f32 %v73, %v40
  %1625 = vrot.lane.b32.xlu0 %v1609, 127
  %v1626 = vpop.permute.xlu0 %1625
  %1627 = vrot.lane.b32.xlu0 %v1610, 127
  %v1628 = vpop.permute.xlu0 %1627
  %1629 = vrot.lane.b32.xlu0 %v1611, 127
  %v1630 = vpop.permute.xlu0 %1629
  %1631 = vrot.lane.b32.xlu0 %v1612, 127
  %v1632 = vpop.permute.xlu0 %1631
  %1633 = vrot.lane.b32.xlu0 %v1613, 127
  %v1634 = vpop.permute.xlu0 %1633
  %1635 = vrot.lane.b32.xlu0 %v1614, 127
  %v1636 = vpop.permute.xlu0 %1635
  %1637 = vrot.lane.b32.xlu0 %v1615, 127
  %v1638 = vpop.permute.xlu0 %1637
  %1639 = vrot.lane.b32.xlu0 %v1616, 127
  %v1640 = vpop.permute.xlu0 %1639
  %v1641 = vsel %vm145, %v1626, %v1628
  %v1642 = vsel %vm145, %v1628, %v1630
  %v1643 = vsel %vm145, %v1630, %v1632
  %v1644 = vsel %vm145, %v1634, %v1636
  %v1645 = vsel %vm145, %v1636, %v1638
  %v1646 = vsel %vm145, %v1638, %v1640
  %v1655 = vadd.f32 %v1601, %v1641
  %v1656 = vadd.f32 %v1602, %v1642
  %v1657 = vadd.f32 %v1603, %v1643
  %v1658 = vadd.f32 %v1604, %v1632
  %v1659 = vadd.f32 %v1605, %v1644
  %v1660 = vadd.f32 %v1606, %v1645
  %v1661 = vadd.f32 %v1607, %v1646
  %v1662 = vadd.f32 %v1608, %v1640
  %v1663 = vmul.f32 %v106, %v76
  %v1664 = vmul.f32 %v106, %v77
  %v1665 = vmul.f32 %v106, %v78
  %v1666 = vmul.f32 %v106, %v79
  %v1667 = vmul.f32 %v111, %v76
  %v1668 = vmul.f32 %v111, %v77
  %v1669 = vmul.f32 %v111, %v78
  %v1670 = vmul.f32 %v111, %v79
  %1679 = vrot.lane.b32.xlu0 %v1663, 127
  %v1680 = vpop.permute.xlu0 %1679
  %1681 = vrot.lane.b32.xlu0 %v1664, 127
  %v1682 = vpop.permute.xlu0 %1681
  %1683 = vrot.lane.b32.xlu0 %v1665, 127
  %v1684 = vpop.permute.xlu0 %1683
  %1685 = vrot.lane.b32.xlu0 %v1666, 127
  %v1686 = vpop.permute.xlu0 %1685
  %1687 = vrot.lane.b32.xlu0 %v1667, 127
  %v1688 = vpop.permute.xlu0 %1687
  %1689 = vrot.lane.b32.xlu0 %v1668, 127
  %v1690 = vpop.permute.xlu0 %1689
  %1691 = vrot.lane.b32.xlu0 %v1669, 127
  %v1692 = vpop.permute.xlu0 %1691
  %1693 = vrot.lane.b32.xlu0 %v1670, 127
  %v1694 = vpop.permute.xlu0 %1693
  %v1695 = vsel %vm145, %v1680, %v1682
  %v1696 = vsel %vm145, %v1682, %v1684
  %v1697 = vsel %vm145, %v1684, %v1686
  %v1698 = vsel %vm145, %v1688, %v1690
  %v1699 = vsel %vm145, %v1690, %v1692
  %v1700 = vsel %vm145, %v1692, %v1694
  %v1709 = vadd.f32 %v1655, %v1695
  %v1710 = vadd.f32 %v1656, %v1696
  %v1711 = vadd.f32 %v1657, %v1697
  %v1712 = vadd.f32 %v1658, %v1686
  %v1713 = vadd.f32 %v1659, %v1698
  %v1714 = vadd.f32 %v1660, %v1699
  %v1715 = vadd.f32 %v1661, %v1700
  %v1716 = vadd.f32 %v1662, %v1694
  %v1717 = vmul.f32 %v174, %v37
  %v1718 = vmul.f32 %v174, %v38
  %v1719 = vmul.f32 %v174, %v39
  %v1720 = vmul.f32 %v174, %v40
  %v1721 = vmul.f32 %v179, %v37
  %v1722 = vmul.f32 %v179, %v38
  %v1723 = vmul.f32 %v179, %v39
  %v1724 = vmul.f32 %v179, %v40
  %1733 = vrot.lane.b32.xlu0 %v1717, 126
  %v1734 = vpop.permute.xlu0 %1733
  %1735 = vrot.lane.b32.xlu0 %v1718, 126
  %v1736 = vpop.permute.xlu0 %1735
  %1737 = vrot.lane.b32.xlu0 %v1719, 126
  %v1738 = vpop.permute.xlu0 %1737
  %1739 = vrot.lane.b32.xlu0 %v1720, 126
  %v1740 = vpop.permute.xlu0 %1739
  %1741 = vrot.lane.b32.xlu0 %v1721, 126
  %v1742 = vpop.permute.xlu0 %1741
  %1743 = vrot.lane.b32.xlu0 %v1722, 126
  %v1744 = vpop.permute.xlu0 %1743
  %1745 = vrot.lane.b32.xlu0 %v1723, 126
  %v1746 = vpop.permute.xlu0 %1745
  %1747 = vrot.lane.b32.xlu0 %v1724, 126
  %v1748 = vpop.permute.xlu0 %1747
  %v1749 = vsel %vm280, %v1734, %v1736
  %v1750 = vsel %vm280, %v1736, %v1738
  %v1751 = vsel %vm280, %v1738, %v1740
  %v1752 = vsel %vm280, %v1742, %v1744
  %v1753 = vsel %vm280, %v1744, %v1746
  %v1754 = vsel %vm280, %v1746, %v1748
  %v1763 = vadd.f32 %v1709, %v1749
  %v1764 = vadd.f32 %v1710, %v1750
  %v1765 = vadd.f32 %v1711, %v1751
  %v1766 = vadd.f32 %v1712, %v1740
  %v1767 = vadd.f32 %v1713, %v1752
  %v1768 = vadd.f32 %v1714, %v1753
  %v1769 = vadd.f32 %v1715, %v1754
  %v1770 = vadd.f32 %v1716, %v1748
  %v1771 = vmul.f32 %v241, %v76
  %v1772 = vmul.f32 %v241, %v77
  %v1773 = vmul.f32 %v241, %v78
  %v1774 = vmul.f32 %v241, %v79
  %v1775 = vmul.f32 %v246, %v76
  %v1776 = vmul.f32 %v246, %v77
  %v1777 = vmul.f32 %v246, %v78
  %v1778 = vmul.f32 %v246, %v79
  %1787 = vrot.lane.b32.xlu0 %v1771, 126
  %v1788 = vpop.permute.xlu0 %1787
  %1789 = vrot.lane.b32.xlu0 %v1772, 126
  %v1790 = vpop.permute.xlu0 %1789
  %1791 = vrot.lane.b32.xlu0 %v1773, 126
  %v1792 = vpop.permute.xlu0 %1791
  %1793 = vrot.lane.b32.xlu0 %v1774, 126
  %v1794 = vpop.permute.xlu0 %1793
  %1795 = vrot.lane.b32.xlu0 %v1775, 126
  %v1796 = vpop.permute.xlu0 %1795
  %1797 = vrot.lane.b32.xlu0 %v1776, 126
  %v1798 = vpop.permute.xlu0 %1797
  %1799 = vrot.lane.b32.xlu0 %v1777, 126
  %v1800 = vpop.permute.xlu0 %1799
  %1801 = vrot.lane.b32.xlu0 %v1778, 126
  %v1802 = vpop.permute.xlu0 %1801
  %v1803 = vsel %vm280, %v1788, %v1790
  %v1804 = vsel %vm280, %v1790, %v1792
  %v1805 = vsel %vm280, %v1792, %v1794
  %v1806 = vsel %vm280, %v1796, %v1798
  %v1807 = vsel %vm280, %v1798, %v1800
  %v1808 = vsel %vm280, %v1800, %v1802
  %v1817 = vadd.f32 %v1763, %v1803
  %v1818 = vadd.f32 %v1764, %v1804
  %v1819 = vadd.f32 %v1765, %v1805
  %v1820 = vadd.f32 %v1766, %v1794
  %v1821 = vadd.f32 %v1767, %v1806
  %v1822 = vadd.f32 %v1768, %v1807
  %v1823 = vadd.f32 %v1769, %v1808
  %v1824 = vadd.f32 %v1770, %v1802
  %v1825 = vmul.f32 %v310, %v357
  %v1826 = vmul.f32 %v310, %v358
  %v1827 = vmul.f32 %v310, %v359
  %v1828 = vmul.f32 %v310, %v360
  %v1829 = vmul.f32 %v315, %v357
  %v1830 = vmul.f32 %v315, %v358
  %v1831 = vmul.f32 %v315, %v359
  %v1832 = vmul.f32 %v315, %v360
  %v1833 = vadd.f32 %v1817, %v1825
  %v1834 = vadd.f32 %v1818, %v1826
  %v1835 = vadd.f32 %v1819, %v1827
  %v1836 = vadd.f32 %v1820, %v1828
  %v1837 = vadd.f32 %v1821, %v1829
  %v1838 = vadd.f32 %v1822, %v1830
  %v1839 = vadd.f32 %v1823, %v1831
  %v1840 = vadd.f32 %v1824, %v1832
  %v1841 = vmul.f32 %v349, %v318
  %v1842 = vmul.f32 %v349, %v319
  %v1843 = vmul.f32 %v349, %v320
  %v1844 = vmul.f32 %v349, %v321
  %v1845 = vmul.f32 %v354, %v318
  %v1846 = vmul.f32 %v354, %v319
  %v1847 = vmul.f32 %v354, %v320
  %v1848 = vmul.f32 %v354, %v321
  %1857 = vrot.lane.b32.xlu0 %v1841, 127
  %v1858 = vpop.permute.xlu0 %1857
  %1859 = vrot.lane.b32.xlu0 %v1842, 127
  %v1860 = vpop.permute.xlu0 %1859
  %1861 = vrot.lane.b32.xlu0 %v1843, 127
  %v1862 = vpop.permute.xlu0 %1861
  %1863 = vrot.lane.b32.xlu0 %v1844, 127
  %v1864 = vpop.permute.xlu0 %1863
  %1865 = vrot.lane.b32.xlu0 %v1845, 127
  %v1866 = vpop.permute.xlu0 %1865
  %1867 = vrot.lane.b32.xlu0 %v1846, 127
  %v1868 = vpop.permute.xlu0 %1867
  %1869 = vrot.lane.b32.xlu0 %v1847, 127
  %v1870 = vpop.permute.xlu0 %1869
  %1871 = vrot.lane.b32.xlu0 %v1848, 127
  %v1872 = vpop.permute.xlu0 %1871
  %v1873 = vsel %vm145, %v1858, %v1860
  %v1874 = vsel %vm145, %v1860, %v1862
  %v1875 = vsel %vm145, %v1862, %v1864
  %v1876 = vsel %vm145, %v1866, %v1868
  %v1877 = vsel %vm145, %v1868, %v1870
  %v1878 = vsel %vm145, %v1870, %v1872
  %v1887 = vadd.f32 %v1833, %v1873
  %v1888 = vadd.f32 %v1834, %v1874
  %v1889 = vadd.f32 %v1835, %v1875
  %v1890 = vadd.f32 %v1836, %v1864
  %v1891 = vadd.f32 %v1837, %v1876
  %v1892 = vadd.f32 %v1838, %v1877
  %v1893 = vadd.f32 %v1839, %v1878
  %v1894 = vadd.f32 %v1840, %v1872
  %v1895 = vmul.f32 %v387, %v357
  %v1896 = vmul.f32 %v387, %v358
  %v1897 = vmul.f32 %v387, %v359
  %v1898 = vmul.f32 %v387, %v360
  %v1899 = vmul.f32 %v392, %v357
  %v1900 = vmul.f32 %v392, %v358
  %v1901 = vmul.f32 %v392, %v359
  %v1902 = vmul.f32 %v392, %v360
  %1911 = vrot.lane.b32.xlu0 %v1895, 127
  %v1912 = vpop.permute.xlu0 %1911
  %1913 = vrot.lane.b32.xlu0 %v1896, 127
  %v1914 = vpop.permute.xlu0 %1913
  %1915 = vrot.lane.b32.xlu0 %v1897, 127
  %v1916 = vpop.permute.xlu0 %1915
  %1917 = vrot.lane.b32.xlu0 %v1898, 127
  %v1918 = vpop.permute.xlu0 %1917
  %1919 = vrot.lane.b32.xlu0 %v1899, 127
  %v1920 = vpop.permute.xlu0 %1919
  %1921 = vrot.lane.b32.xlu0 %v1900, 127
  %v1922 = vpop.permute.xlu0 %1921
  %1923 = vrot.lane.b32.xlu0 %v1901, 127
  %v1924 = vpop.permute.xlu0 %1923
  %1925 = vrot.lane.b32.xlu0 %v1902, 127
  %v1926 = vpop.permute.xlu0 %1925
  %v1927 = vsel %vm145, %v1912, %v1914
  %v1928 = vsel %vm145, %v1914, %v1916
  %v1929 = vsel %vm145, %v1916, %v1918
  %v1930 = vsel %vm145, %v1920, %v1922
  %v1931 = vsel %vm145, %v1922, %v1924
  %v1932 = vsel %vm145, %v1924, %v1926
  %v1941 = vadd.f32 %v1887, %v1927
  %v1942 = vadd.f32 %v1888, %v1928
  %v1943 = vadd.f32 %v1889, %v1929
  %v1944 = vadd.f32 %v1890, %v1918
  %v1945 = vadd.f32 %v1891, %v1930
  %v1946 = vadd.f32 %v1892, %v1931
  %v1947 = vadd.f32 %v1893, %v1932
  %v1948 = vadd.f32 %v1894, %v1926
  %v1949 = vmul.f32 %v454, %v318
  %v1950 = vmul.f32 %v454, %v319
  %v1951 = vmul.f32 %v454, %v320
  %v1952 = vmul.f32 %v454, %v321
  %v1953 = vmul.f32 %v459, %v318
  %v1954 = vmul.f32 %v459, %v319
  %v1955 = vmul.f32 %v459, %v320
  %v1956 = vmul.f32 %v459, %v321
  %1965 = vrot.lane.b32.xlu0 %v1949, 126
  %v1966 = vpop.permute.xlu0 %1965
  %1967 = vrot.lane.b32.xlu0 %v1950, 126
  %v1968 = vpop.permute.xlu0 %1967
  %1969 = vrot.lane.b32.xlu0 %v1951, 126
  %v1970 = vpop.permute.xlu0 %1969
  %1971 = vrot.lane.b32.xlu0 %v1952, 126
  %v1972 = vpop.permute.xlu0 %1971
  %1973 = vrot.lane.b32.xlu0 %v1953, 126
  %v1974 = vpop.permute.xlu0 %1973
  %1975 = vrot.lane.b32.xlu0 %v1954, 126
  %v1976 = vpop.permute.xlu0 %1975
  %1977 = vrot.lane.b32.xlu0 %v1955, 126
  %v1978 = vpop.permute.xlu0 %1977
  %1979 = vrot.lane.b32.xlu0 %v1956, 126
  %v1980 = vpop.permute.xlu0 %1979
  %v1981 = vsel %vm280, %v1966, %v1968
  %v1982 = vsel %vm280, %v1968, %v1970
  %v1983 = vsel %vm280, %v1970, %v1972
  %v1984 = vsel %vm280, %v1974, %v1976
  %v1985 = vsel %vm280, %v1976, %v1978
  %v1986 = vsel %vm280, %v1978, %v1980
  %v1995 = vadd.f32 %v1941, %v1981
  %v1996 = vadd.f32 %v1942, %v1982
  %v1997 = vadd.f32 %v1943, %v1983
  %v1998 = vadd.f32 %v1944, %v1972
  %v1999 = vadd.f32 %v1945, %v1984
  %v2000 = vadd.f32 %v1946, %v1985
  %v2001 = vadd.f32 %v1947, %v1986
  %v2002 = vadd.f32 %v1948, %v1980
  %v2003 = vmul.f32 %v521, %v357
  %v2004 = vmul.f32 %v521, %v358
  %v2005 = vmul.f32 %v521, %v359
  %v2006 = vmul.f32 %v521, %v360
  %v2007 = vmul.f32 %v526, %v357
  %v2008 = vmul.f32 %v526, %v358
  %v2009 = vmul.f32 %v526, %v359
  %v2010 = vmul.f32 %v526, %v360
  %2019 = vrot.lane.b32.xlu0 %v2003, 126
  %v2020 = vpop.permute.xlu0 %2019
  %2021 = vrot.lane.b32.xlu0 %v2004, 126
  %v2022 = vpop.permute.xlu0 %2021
  %2023 = vrot.lane.b32.xlu0 %v2005, 126
  %v2024 = vpop.permute.xlu0 %2023
  %2025 = vrot.lane.b32.xlu0 %v2006, 126
  %v2026 = vpop.permute.xlu0 %2025
  %2027 = vrot.lane.b32.xlu0 %v2007, 126
  %v2028 = vpop.permute.xlu0 %2027
  %2029 = vrot.lane.b32.xlu0 %v2008, 126
  %v2030 = vpop.permute.xlu0 %2029
  %2031 = vrot.lane.b32.xlu0 %v2009, 126
  %v2032 = vpop.permute.xlu0 %2031
  %2033 = vrot.lane.b32.xlu0 %v2010, 126
  %v2034 = vpop.permute.xlu0 %2033
  %v2035 = vsel %vm280, %v2020, %v2022
  %v2036 = vsel %vm280, %v2022, %v2024
  %v2037 = vsel %vm280, %v2024, %v2026
  %v2038 = vsel %vm280, %v2028, %v2030
  %v2039 = vsel %vm280, %v2030, %v2032
  %v2040 = vsel %vm280, %v2032, %v2034
  %v2049 = vadd.f32 %v1995, %v2035
  %v2050 = vadd.f32 %v1996, %v2036
  %v2051 = vadd.f32 %v1997, %v2037
  %v2052 = vadd.f32 %v1998, %v2026
  %v2053 = vadd.f32 %v1999, %v2038
  %v2054 = vadd.f32 %v2000, %v2039
  %v2055 = vadd.f32 %v2001, %v2040
  %v2056 = vadd.f32 %v2002, %v2034
  %v2057 = vmul.f32 %v588, %v76
  %v2058 = vmul.f32 %v588, %v77
  %v2059 = vmul.f32 %v588, %v78
  %v2060 = vmul.f32 %v588, %v79
  %v2061 = vmul.f32 %v593, %v76
  %v2062 = vmul.f32 %v593, %v77
  %v2063 = vmul.f32 %v593, %v78
  %v2064 = vmul.f32 %v593, %v79
  %2073 = vrot.lane.b32.xlu0 %v2057, 113
  %v2074 = vpop.permute.xlu0 %2073
  %2075 = vrot.lane.b32.xlu0 %v2058, 113
  %v2076 = vpop.permute.xlu0 %2075
  %2077 = vrot.lane.b32.xlu0 %v2059, 113
  %v2078 = vpop.permute.xlu0 %2077
  %2079 = vrot.lane.b32.xlu0 %v2060, 113
  %v2080 = vpop.permute.xlu0 %2079
  %2081 = vrot.lane.b32.xlu0 %v2061, 113
  %v2082 = vpop.permute.xlu0 %2081
  %2083 = vrot.lane.b32.xlu0 %v2062, 113
  %v2084 = vpop.permute.xlu0 %2083
  %2085 = vrot.lane.b32.xlu0 %v2063, 113
  %v2086 = vpop.permute.xlu0 %2085
  %2087 = vrot.lane.b32.xlu0 %v2064, 113
  %v2088 = vpop.permute.xlu0 %2087
  %v2089 = vsel %vm627, %v2074, %v2076
  %v2090 = vsel %vm627, %v2076, %v2078
  %v2091 = vsel %vm627, %v2078, %v2080
  %v2092 = vsel %vm627, %v2082, %v2084
  %v2093 = vsel %vm627, %v2084, %v2086
  %v2094 = vsel %vm627, %v2086, %v2088
  %v2103 = vadd.f32 %v2049, %v2089
  %v2104 = vadd.f32 %v2050, %v2090
  %v2105 = vadd.f32 %v2051, %v2091
  %v2106 = vadd.f32 %v2052, %v2080
  %v2107 = vadd.f32 %v2053, %v2092
  %v2108 = vadd.f32 %v2054, %v2093
  %v2109 = vadd.f32 %v2055, %v2094
  %v2110 = vadd.f32 %v2056, %v2088
  %v2111 = vmul.f32 %v656, %v37
  %v2112 = vmul.f32 %v656, %v38
  %v2113 = vmul.f32 %v656, %v39
  %v2114 = vmul.f32 %v656, %v40
  %v2115 = vmul.f32 %v661, %v37
  %v2116 = vmul.f32 %v661, %v38
  %v2117 = vmul.f32 %v661, %v39
  %v2118 = vmul.f32 %v661, %v40
  %2127 = vrot.lane.b32.xlu0 %v2111, 112
  %v2128 = vpop.permute.xlu0 %2127
  %2129 = vrot.lane.b32.xlu0 %v2112, 112
  %v2130 = vpop.permute.xlu0 %2129
  %2131 = vrot.lane.b32.xlu0 %v2113, 112
  %v2132 = vpop.permute.xlu0 %2131
  %2133 = vrot.lane.b32.xlu0 %v2114, 112
  %v2134 = vpop.permute.xlu0 %2133
  %2135 = vrot.lane.b32.xlu0 %v2115, 112
  %v2136 = vpop.permute.xlu0 %2135
  %2137 = vrot.lane.b32.xlu0 %v2116, 112
  %v2138 = vpop.permute.xlu0 %2137
  %2139 = vrot.lane.b32.xlu0 %v2117, 112
  %v2140 = vpop.permute.xlu0 %2139
  %2141 = vrot.lane.b32.xlu0 %v2118, 112
  %v2142 = vpop.permute.xlu0 %2141
  %v2143 = vsel %vm762, %v2128, %v2130
  %v2144 = vsel %vm762, %v2130, %v2132
  %v2145 = vsel %vm762, %v2132, %v2134
  %v2146 = vsel %vm762, %v2136, %v2138
  %v2147 = vsel %vm762, %v2138, %v2140
  %v2148 = vsel %vm762, %v2140, %v2142
  %v2157 = vadd.f32 %v2103, %v2143
  %v2158 = vadd.f32 %v2104, %v2144
  %v2159 = vadd.f32 %v2105, %v2145
  %v2160 = vadd.f32 %v2106, %v2134
  %v2161 = vadd.f32 %v2107, %v2146
  %v2162 = vadd.f32 %v2108, %v2147
  %v2163 = vadd.f32 %v2109, %v2148
  %v2164 = vadd.f32 %v2110, %v2142
  %v2165 = vmul.f32 %v723, %v76
  %v2166 = vmul.f32 %v723, %v77
  %v2167 = vmul.f32 %v723, %v78
  %v2168 = vmul.f32 %v723, %v79
  %v2169 = vmul.f32 %v728, %v76
  %v2170 = vmul.f32 %v728, %v77
  %v2171 = vmul.f32 %v728, %v78
  %v2172 = vmul.f32 %v728, %v79
  %2181 = vrot.lane.b32.xlu0 %v2165, 112
  %v2182 = vpop.permute.xlu0 %2181
  %2183 = vrot.lane.b32.xlu0 %v2166, 112
  %v2184 = vpop.permute.xlu0 %2183
  %2185 = vrot.lane.b32.xlu0 %v2167, 112
  %v2186 = vpop.permute.xlu0 %2185
  %2187 = vrot.lane.b32.xlu0 %v2168, 112
  %v2188 = vpop.permute.xlu0 %2187
  %2189 = vrot.lane.b32.xlu0 %v2169, 112
  %v2190 = vpop.permute.xlu0 %2189
  %2191 = vrot.lane.b32.xlu0 %v2170, 112
  %v2192 = vpop.permute.xlu0 %2191
  %2193 = vrot.lane.b32.xlu0 %v2171, 112
  %v2194 = vpop.permute.xlu0 %2193
  %2195 = vrot.lane.b32.xlu0 %v2172, 112
  %v2196 = vpop.permute.xlu0 %2195
  %v2197 = vsel %vm762, %v2182, %v2184
  %v2198 = vsel %vm762, %v2184, %v2186
  %v2199 = vsel %vm762, %v2186, %v2188
  %v2200 = vsel %vm762, %v2190, %v2192
  %v2201 = vsel %vm762, %v2192, %v2194
  %v2202 = vsel %vm762, %v2194, %v2196
  %v2211 = vadd.f32 %v2157, %v2197
  %v2212 = vadd.f32 %v2158, %v2198
  %v2213 = vadd.f32 %v2159, %v2199
  %v2214 = vadd.f32 %v2160, %v2188
  %v2215 = vadd.f32 %v2161, %v2200
  %v2216 = vadd.f32 %v2162, %v2201
  %v2217 = vadd.f32 %v2163, %v2202
  %v2218 = vadd.f32 %v2164, %v2196
  %v2219 = vmul.f32 %v791, %v37
  %v2220 = vmul.f32 %v791, %v38
  %v2221 = vmul.f32 %v791, %v39
  %v2222 = vmul.f32 %v791, %v40
  %v2223 = vmul.f32 %v796, %v37
  %v2224 = vmul.f32 %v796, %v38
  %v2225 = vmul.f32 %v796, %v39
  %v2226 = vmul.f32 %v796, %v40
  %2235 = vrot.lane.b32.xlu0 %v2219, 111
  %v2236 = vpop.permute.xlu0 %2235
  %2237 = vrot.lane.b32.xlu0 %v2220, 111
  %v2238 = vpop.permute.xlu0 %2237
  %2239 = vrot.lane.b32.xlu0 %v2221, 111
  %v2240 = vpop.permute.xlu0 %2239
  %2241 = vrot.lane.b32.xlu0 %v2222, 111
  %v2242 = vpop.permute.xlu0 %2241
  %2243 = vrot.lane.b32.xlu0 %v2223, 111
  %v2244 = vpop.permute.xlu0 %2243
  %2245 = vrot.lane.b32.xlu0 %v2224, 111
  %v2246 = vpop.permute.xlu0 %2245
  %2247 = vrot.lane.b32.xlu0 %v2225, 111
  %v2248 = vpop.permute.xlu0 %2247
  %2249 = vrot.lane.b32.xlu0 %v2226, 111
  %v2250 = vpop.permute.xlu0 %2249
  %v2251 = vsel %vm897, %v2236, %v2238
  %v2252 = vsel %vm897, %v2238, %v2240
  %v2253 = vsel %vm897, %v2240, %v2242
  %v2254 = vsel %vm897, %v2244, %v2246
  %v2255 = vsel %vm897, %v2246, %v2248
  %v2256 = vsel %vm897, %v2248, %v2250
  %v2265 = vadd.f32 %v2211, %v2251
  %v2266 = vadd.f32 %v2212, %v2252
  %v2267 = vadd.f32 %v2213, %v2253
  %v2268 = vadd.f32 %v2214, %v2242
  %v2269 = vadd.f32 %v2215, %v2254
  %v2270 = vadd.f32 %v2216, %v2255
  %v2271 = vadd.f32 %v2217, %v2256
  %v2272 = vadd.f32 %v2218, %v2250
  %v2273 = vmul.f32 %v858, %v76
  %v2274 = vmul.f32 %v858, %v77
  %v2275 = vmul.f32 %v858, %v78
  %v2276 = vmul.f32 %v858, %v79
  %v2277 = vmul.f32 %v863, %v76
  %v2278 = vmul.f32 %v863, %v77
  %v2279 = vmul.f32 %v863, %v78
  %v2280 = vmul.f32 %v863, %v79
  %2289 = vrot.lane.b32.xlu0 %v2273, 111
  %v2290 = vpop.permute.xlu0 %2289
  %2291 = vrot.lane.b32.xlu0 %v2274, 111
  %v2292 = vpop.permute.xlu0 %2291
  %2293 = vrot.lane.b32.xlu0 %v2275, 111
  %v2294 = vpop.permute.xlu0 %2293
  %2295 = vrot.lane.b32.xlu0 %v2276, 111
  %v2296 = vpop.permute.xlu0 %2295
  %2297 = vrot.lane.b32.xlu0 %v2277, 111
  %v2298 = vpop.permute.xlu0 %2297
  %2299 = vrot.lane.b32.xlu0 %v2278, 111
  %v2300 = vpop.permute.xlu0 %2299
  %2301 = vrot.lane.b32.xlu0 %v2279, 111
  %v2302 = vpop.permute.xlu0 %2301
  %2303 = vrot.lane.b32.xlu0 %v2280, 111
  %v2304 = vpop.permute.xlu0 %2303
  %v2305 = vsel %vm897, %v2290, %v2292
  %v2306 = vsel %vm897, %v2292, %v2294
  %v2307 = vsel %vm897, %v2294, %v2296
  %v2308 = vsel %vm897, %v2298, %v2300
  %v2309 = vsel %vm897, %v2300, %v2302
  %v2310 = vsel %vm897, %v2302, %v2304
  %v2319 = vadd.f32 %v2265, %v2305
  %v2320 = vadd.f32 %v2266, %v2306
  %v2321 = vadd.f32 %v2267, %v2307
  %v2322 = vadd.f32 %v2268, %v2296
  %v2323 = vadd.f32 %v2269, %v2308
  %v2324 = vadd.f32 %v2270, %v2309
  %v2325 = vadd.f32 %v2271, %v2310
  %v2326 = vadd.f32 %v2272, %v2304
  %v2327 = vmul.f32 %v926, %v357
  %v2328 = vmul.f32 %v926, %v358
  %v2329 = vmul.f32 %v926, %v359
  %v2330 = vmul.f32 %v926, %v360
  %v2331 = vmul.f32 %v931, %v357
  %v2332 = vmul.f32 %v931, %v358
  %v2333 = vmul.f32 %v931, %v359
  %v2334 = vmul.f32 %v931, %v360
  %2343 = vrot.lane.b32.xlu0 %v2327, 113
  %v2344 = vpop.permute.xlu0 %2343
  %2345 = vrot.lane.b32.xlu0 %v2328, 113
  %v2346 = vpop.permute.xlu0 %2345
  %2347 = vrot.lane.b32.xlu0 %v2329, 113
  %v2348 = vpop.permute.xlu0 %2347
  %2349 = vrot.lane.b32.xlu0 %v2330, 113
  %v2350 = vpop.permute.xlu0 %2349
  %2351 = vrot.lane.b32.xlu0 %v2331, 113
  %v2352 = vpop.permute.xlu0 %2351
  %2353 = vrot.lane.b32.xlu0 %v2332, 113
  %v2354 = vpop.permute.xlu0 %2353
  %2355 = vrot.lane.b32.xlu0 %v2333, 113
  %v2356 = vpop.permute.xlu0 %2355
  %2357 = vrot.lane.b32.xlu0 %v2334, 113
  %v2358 = vpop.permute.xlu0 %2357
  %v2359 = vsel %vm627, %v2344, %v2346
  %v2360 = vsel %vm627, %v2346, %v2348
  %v2361 = vsel %vm627, %v2348, %v2350
  %v2362 = vsel %vm627, %v2352, %v2354
  %v2363 = vsel %vm627, %v2354, %v2356
  %v2364 = vsel %vm627, %v2356, %v2358
  %v2373 = vadd.f32 %v2319, %v2359
  %v2374 = vadd.f32 %v2320, %v2360
  %v2375 = vadd.f32 %v2321, %v2361
  %v2376 = vadd.f32 %v2322, %v2350
  %v2377 = vadd.f32 %v2323, %v2362
  %v2378 = vadd.f32 %v2324, %v2363
  %v2379 = vadd.f32 %v2325, %v2364
  %v2380 = vadd.f32 %v2326, %v2358
  %v2381 = vmul.f32 %v993, %v318
  %v2382 = vmul.f32 %v993, %v319
  %v2383 = vmul.f32 %v993, %v320
  %v2384 = vmul.f32 %v993, %v321
  %v2385 = vmul.f32 %v998, %v318
  %v2386 = vmul.f32 %v998, %v319
  %v2387 = vmul.f32 %v998, %v320
  %v2388 = vmul.f32 %v998, %v321
  %2397 = vrot.lane.b32.xlu0 %v2381, 112
  %v2398 = vpop.permute.xlu0 %2397
  %2399 = vrot.lane.b32.xlu0 %v2382, 112
  %v2400 = vpop.permute.xlu0 %2399
  %2401 = vrot.lane.b32.xlu0 %v2383, 112
  %v2402 = vpop.permute.xlu0 %2401
  %2403 = vrot.lane.b32.xlu0 %v2384, 112
  %v2404 = vpop.permute.xlu0 %2403
  %2405 = vrot.lane.b32.xlu0 %v2385, 112
  %v2406 = vpop.permute.xlu0 %2405
  %2407 = vrot.lane.b32.xlu0 %v2386, 112
  %v2408 = vpop.permute.xlu0 %2407
  %2409 = vrot.lane.b32.xlu0 %v2387, 112
  %v2410 = vpop.permute.xlu0 %2409
  %2411 = vrot.lane.b32.xlu0 %v2388, 112
  %v2412 = vpop.permute.xlu0 %2411
  %v2413 = vsel %vm762, %v2398, %v2400
  %v2414 = vsel %vm762, %v2400, %v2402
  %v2415 = vsel %vm762, %v2402, %v2404
  %v2416 = vsel %vm762, %v2406, %v2408
  %v2417 = vsel %vm762, %v2408, %v2410
  %v2418 = vsel %vm762, %v2410, %v2412
  %v2427 = vadd.f32 %v2373, %v2413
  %v2428 = vadd.f32 %v2374, %v2414
  %v2429 = vadd.f32 %v2375, %v2415
  %v2430 = vadd.f32 %v2376, %v2404
  %v2431 = vadd.f32 %v2377, %v2416
  %v2432 = vadd.f32 %v2378, %v2417
  %v2433 = vadd.f32 %v2379, %v2418
  %v2434 = vadd.f32 %v2380, %v2412
  %v2435 = vmul.f32 %v1060, %v357
  %v2436 = vmul.f32 %v1060, %v358
  %v2437 = vmul.f32 %v1060, %v359
  %v2438 = vmul.f32 %v1060, %v360
  %v2439 = vmul.f32 %v1065, %v357
  %v2440 = vmul.f32 %v1065, %v358
  %v2441 = vmul.f32 %v1065, %v359
  %v2442 = vmul.f32 %v1065, %v360
  %2451 = vrot.lane.b32.xlu0 %v2435, 112
  %v2452 = vpop.permute.xlu0 %2451
  %2453 = vrot.lane.b32.xlu0 %v2436, 112
  %v2454 = vpop.permute.xlu0 %2453
  %2455 = vrot.lane.b32.xlu0 %v2437, 112
  %v2456 = vpop.permute.xlu0 %2455
  %2457 = vrot.lane.b32.xlu0 %v2438, 112
  %v2458 = vpop.permute.xlu0 %2457
  %2459 = vrot.lane.b32.xlu0 %v2439, 112
  %v2460 = vpop.permute.xlu0 %2459
  %2461 = vrot.lane.b32.xlu0 %v2440, 112
  %v2462 = vpop.permute.xlu0 %2461
  %2463 = vrot.lane.b32.xlu0 %v2441, 112
  %v2464 = vpop.permute.xlu0 %2463
  %2465 = vrot.lane.b32.xlu0 %v2442, 112
  %v2466 = vpop.permute.xlu0 %2465
  %v2467 = vsel %vm762, %v2452, %v2454
  %v2468 = vsel %vm762, %v2454, %v2456
  %v2469 = vsel %vm762, %v2456, %v2458
  %v2470 = vsel %vm762, %v2460, %v2462
  %v2471 = vsel %vm762, %v2462, %v2464
  %v2472 = vsel %vm762, %v2464, %v2466
  %v2481 = vadd.f32 %v2427, %v2467
  %v2482 = vadd.f32 %v2428, %v2468
  %v2483 = vadd.f32 %v2429, %v2469
  %v2484 = vadd.f32 %v2430, %v2458
  %v2485 = vadd.f32 %v2431, %v2470
  %v2486 = vadd.f32 %v2432, %v2471
  %v2487 = vadd.f32 %v2433, %v2472
  %v2488 = vadd.f32 %v2434, %v2466
  %v2489 = vmul.f32 %v1127, %v318
  %v2490 = vmul.f32 %v1127, %v319
  %v2491 = vmul.f32 %v1127, %v320
  %v2492 = vmul.f32 %v1127, %v321
  %v2493 = vmul.f32 %v1132, %v318
  %v2494 = vmul.f32 %v1132, %v319
  %v2495 = vmul.f32 %v1132, %v320
  %v2496 = vmul.f32 %v1132, %v321
  %2505 = vrot.lane.b32.xlu0 %v2489, 111
  %v2506 = vpop.permute.xlu0 %2505
  %2507 = vrot.lane.b32.xlu0 %v2490, 111
  %v2508 = vpop.permute.xlu0 %2507
  %2509 = vrot.lane.b32.xlu0 %v2491, 111
  %v2510 = vpop.permute.xlu0 %2509
  %2511 = vrot.lane.b32.xlu0 %v2492, 111
  %v2512 = vpop.permute.xlu0 %2511
  %2513 = vrot.lane.b32.xlu0 %v2493, 111
  %v2514 = vpop.permute.xlu0 %2513
  %2515 = vrot.lane.b32.xlu0 %v2494, 111
  %v2516 = vpop.permute.xlu0 %2515
  %2517 = vrot.lane.b32.xlu0 %v2495, 111
  %v2518 = vpop.permute.xlu0 %2517
  %2519 = vrot.lane.b32.xlu0 %v2496, 111
  %v2520 = vpop.permute.xlu0 %2519
  %v2521 = vsel %vm897, %v2506, %v2508
  %v2522 = vsel %vm897, %v2508, %v2510
  %v2523 = vsel %vm897, %v2510, %v2512
  %v2524 = vsel %vm897, %v2514, %v2516
  %v2525 = vsel %vm897, %v2516, %v2518
  %v2526 = vsel %vm897, %v2518, %v2520
  %v2535 = vadd.f32 %v2481, %v2521
  %v2536 = vadd.f32 %v2482, %v2522
  %v2537 = vadd.f32 %v2483, %v2523
  %v2538 = vadd.f32 %v2484, %v2512
  %v2539 = vadd.f32 %v2485, %v2524
  %v2540 = vadd.f32 %v2486, %v2525
  %v2541 = vadd.f32 %v2487, %v2526
  %v2542 = vadd.f32 %v2488, %v2520
  %v2543 = vmul.f32 %v1194, %v357
  %v2544 = vmul.f32 %v1194, %v358
  %v2545 = vmul.f32 %v1194, %v359
  %v2546 = vmul.f32 %v1194, %v360
  %v2547 = vmul.f32 %v1199, %v357
  %v2548 = vmul.f32 %v1199, %v358
  %v2549 = vmul.f32 %v1199, %v359
  %v2550 = vmul.f32 %v1199, %v360
  %2559 = vrot.lane.b32.xlu0 %v2543, 111
  %v2560 = vpop.permute.xlu0 %2559
  %2561 = vrot.lane.b32.xlu0 %v2544, 111
  %v2562 = vpop.permute.xlu0 %2561
  %2563 = vrot.lane.b32.xlu0 %v2545, 111
  %v2564 = vpop.permute.xlu0 %2563
  %2565 = vrot.lane.b32.xlu0 %v2546, 111
  %v2566 = vpop.permute.xlu0 %2565
  %2567 = vrot.lane.b32.xlu0 %v2547, 111
  %v2568 = vpop.permute.xlu0 %2567
  %2569 = vrot.lane.b32.xlu0 %v2548, 111
  %v2570 = vpop.permute.xlu0 %2569
  %2571 = vrot.lane.b32.xlu0 %v2549, 111
  %v2572 = vpop.permute.xlu0 %2571
  %2573 = vrot.lane.b32.xlu0 %v2550, 111
  %v2574 = vpop.permute.xlu0 %2573
  %v2575 = vsel %vm897, %v2560, %v2562
  %v2576 = vsel %vm897, %v2562, %v2564
  %v2577 = vsel %vm897, %v2564, %v2566
  %v2578 = vsel %vm897, %v2568, %v2570
  %v2579 = vsel %vm897, %v2570, %v2572
  %v2580 = vsel %vm897, %v2572, %v2574
  %v2589 = vadd.f32 %v2535, %v2575
  %v2590 = vadd.f32 %v2536, %v2576
  %v2591 = vadd.f32 %v2537, %v2577
  %v2592 = vadd.f32 %v2538, %v2566
  %v2593 = vadd.f32 %v2539, %v2578
  %v2594 = vadd.f32 %v2540, %v2579
  %v2595 = vadd.f32 %v2541, %v2580
  %v2596 = vadd.f32 %v2542, %v2574
  %v2597 = vmul.f32 %v1261, %v76
  %v2598 = vmul.f32 %v1261, %v77
  %v2599 = vmul.f32 %v1261, %v78
  %v2600 = vmul.f32 %v1261, %v79
  %v2601 = vmul.f32 %v1266, %v76
  %v2602 = vmul.f32 %v1266, %v77
  %v2603 = vmul.f32 %v1266, %v78
  %v2604 = vmul.f32 %v1266, %v79
  %2613 = vrot.lane.b32.xlu0 %v2597, 98
  %v2614 = vpop.permute.xlu0 %2613
  %2615 = vrot.lane.b32.xlu0 %v2598, 98
  %v2616 = vpop.permute.xlu0 %2615
  %2617 = vrot.lane.b32.xlu0 %v2599, 98
  %v2618 = vpop.permute.xlu0 %2617
  %2619 = vrot.lane.b32.xlu0 %v2600, 98
  %v2620 = vpop.permute.xlu0 %2619
  %2621 = vrot.lane.b32.xlu0 %v2601, 98
  %v2622 = vpop.permute.xlu0 %2621
  %2623 = vrot.lane.b32.xlu0 %v2602, 98
  %v2624 = vpop.permute.xlu0 %2623
  %2625 = vrot.lane.b32.xlu0 %v2603, 98
  %v2626 = vpop.permute.xlu0 %2625
  %2627 = vrot.lane.b32.xlu0 %v2604, 98
  %v2628 = vpop.permute.xlu0 %2627
  %v2629 = vsel %vm1300, %v2614, %v2616
  %v2630 = vsel %vm1300, %v2616, %v2618
  %v2631 = vsel %vm1300, %v2618, %v2620
  %v2632 = vsel %vm1300, %v2622, %v2624
  %v2633 = vsel %vm1300, %v2624, %v2626
  %v2634 = vsel %vm1300, %v2626, %v2628
  %v2643 = vadd.f32 %v2589, %v2629
  %v2644 = vadd.f32 %v2590, %v2630
  %v2645 = vadd.f32 %v2591, %v2631
  %v2646 = vadd.f32 %v2592, %v2620
  %v2647 = vadd.f32 %v2593, %v2632
  %v2648 = vadd.f32 %v2594, %v2633
  %v2649 = vadd.f32 %v2595, %v2634
  %v2650 = vadd.f32 %v2596, %v2628
  %v2651 = vmul.f32 %v1329, %v37
  %v2652 = vmul.f32 %v1329, %v38
  %v2653 = vmul.f32 %v1329, %v39
  %v2654 = vmul.f32 %v1329, %v40
  %v2655 = vmul.f32 %v1334, %v37
  %v2656 = vmul.f32 %v1334, %v38
  %v2657 = vmul.f32 %v1334, %v39
  %v2658 = vmul.f32 %v1334, %v40
  %2667 = vrot.lane.b32.xlu0 %v2651, 97
  %v2668 = vpop.permute.xlu0 %2667
  %2669 = vrot.lane.b32.xlu0 %v2652, 97
  %v2670 = vpop.permute.xlu0 %2669
  %2671 = vrot.lane.b32.xlu0 %v2653, 97
  %v2672 = vpop.permute.xlu0 %2671
  %2673 = vrot.lane.b32.xlu0 %v2654, 97
  %v2674 = vpop.permute.xlu0 %2673
  %2675 = vrot.lane.b32.xlu0 %v2655, 97
  %v2676 = vpop.permute.xlu0 %2675
  %2677 = vrot.lane.b32.xlu0 %v2656, 97
  %v2678 = vpop.permute.xlu0 %2677
  %2679 = vrot.lane.b32.xlu0 %v2657, 97
  %v2680 = vpop.permute.xlu0 %2679
  %2681 = vrot.lane.b32.xlu0 %v2658, 97
  %v2682 = vpop.permute.xlu0 %2681
  %v2683 = vsel %vm1435, %v2668, %v2670
  %v2684 = vsel %vm1435, %v2670, %v2672
  %v2685 = vsel %vm1435, %v2672, %v2674
  %v2686 = vsel %vm1435, %v2676, %v2678
  %v2687 = vsel %vm1435, %v2678, %v2680
  %v2688 = vsel %vm1435, %v2680, %v2682
  %v2697 = vadd.f32 %v2643, %v2683
  %v2698 = vadd.f32 %v2644, %v2684
  %v2699 = vadd.f32 %v2645, %v2685
  %v2700 = vadd.f32 %v2646, %v2674
  %v2701 = vadd.f32 %v2647, %v2686
  %v2702 = vadd.f32 %v2648, %v2687
  %v2703 = vadd.f32 %v2649, %v2688
  %v2704 = vadd.f32 %v2650, %v2682
  %v2705 = vmul.f32 %v1396, %v76
  %v2706 = vmul.f32 %v1396, %v77
  %v2707 = vmul.f32 %v1396, %v78
  %v2708 = vmul.f32 %v1396, %v79
  %v2709 = vmul.f32 %v1401, %v76
  %v2710 = vmul.f32 %v1401, %v77
  %v2711 = vmul.f32 %v1401, %v78
  %v2712 = vmul.f32 %v1401, %v79
  %2721 = vrot.lane.b32.xlu0 %v2705, 97
  %v2722 = vpop.permute.xlu0 %2721
  %2723 = vrot.lane.b32.xlu0 %v2706, 97
  %v2724 = vpop.permute.xlu0 %2723
  %2725 = vrot.lane.b32.xlu0 %v2707, 97
  %v2726 = vpop.permute.xlu0 %2725
  %2727 = vrot.lane.b32.xlu0 %v2708, 97
  %v2728 = vpop.permute.xlu0 %2727
  %2729 = vrot.lane.b32.xlu0 %v2709, 97
  %v2730 = vpop.permute.xlu0 %2729
  %2731 = vrot.lane.b32.xlu0 %v2710, 97
  %v2732 = vpop.permute.xlu0 %2731
  %2733 = vrot.lane.b32.xlu0 %v2711, 97
  %v2734 = vpop.permute.xlu0 %2733
  %2735 = vrot.lane.b32.xlu0 %v2712, 97
  %v2736 = vpop.permute.xlu0 %2735
  %v2737 = vsel %vm1435, %v2722, %v2724
  %v2738 = vsel %vm1435, %v2724, %v2726
  %v2739 = vsel %vm1435, %v2726, %v2728
  %v2740 = vsel %vm1435, %v2730, %v2732
  %v2741 = vsel %vm1435, %v2732, %v2734
  %v2742 = vsel %vm1435, %v2734, %v2736
  %v2751 = vadd.f32 %v2697, %v2737
  %v2752 = vadd.f32 %v2698, %v2738
  %v2753 = vadd.f32 %v2699, %v2739
  %v2754 = vadd.f32 %v2700, %v2728
  %v2755 = vadd.f32 %v2701, %v2740
  %v2756 = vadd.f32 %v2702, %v2741
  %v2757 = vadd.f32 %v2703, %v2742
  %v2758 = vadd.f32 %v2704, %v2736
  %v2759 = vmul.f32 %v1464, %v37
  %v2760 = vmul.f32 %v1464, %v38
  %v2761 = vmul.f32 %v1464, %v39
  %v2762 = vmul.f32 %v1464, %v40
  %v2763 = vmul.f32 %v1469, %v37
  %v2764 = vmul.f32 %v1469, %v38
  %v2765 = vmul.f32 %v1469, %v39
  %v2766 = vmul.f32 %v1469, %v40
  %2775 = vrot.lane.b32.xlu0 %v2759, 96
  %v2776 = vpop.permute.xlu0 %2775
  %2777 = vrot.lane.b32.xlu0 %v2760, 96
  %v2778 = vpop.permute.xlu0 %2777
  %2779 = vrot.lane.b32.xlu0 %v2761, 96
  %v2780 = vpop.permute.xlu0 %2779
  %2781 = vrot.lane.b32.xlu0 %v2762, 96
  %v2782 = vpop.permute.xlu0 %2781
  %2783 = vrot.lane.b32.xlu0 %v2763, 96
  %v2784 = vpop.permute.xlu0 %2783
  %2785 = vrot.lane.b32.xlu0 %v2764, 96
  %v2786 = vpop.permute.xlu0 %2785
  %2787 = vrot.lane.b32.xlu0 %v2765, 96
  %v2788 = vpop.permute.xlu0 %2787
  %2789 = vrot.lane.b32.xlu0 %v2766, 96
  %v2790 = vpop.permute.xlu0 %2789
  %v2791 = vsel %vm1570, %v2776, %v2778
  %v2792 = vsel %vm1570, %v2778, %v2780
  %v2793 = vsel %vm1570, %v2780, %v2782
  %v2794 = vsel %vm1570, %v2784, %v2786
  %v2795 = vsel %vm1570, %v2786, %v2788
  %v2796 = vsel %vm1570, %v2788, %v2790
  %v2805 = vadd.f32 %v2751, %v2791
  %v2806 = vadd.f32 %v2752, %v2792
  %v2807 = vadd.f32 %v2753, %v2793
  %v2808 = vadd.f32 %v2754, %v2782
  %v2809 = vadd.f32 %v2755, %v2794
  %v2810 = vadd.f32 %v2756, %v2795
  %v2811 = vadd.f32 %v2757, %v2796
  %v2812 = vadd.f32 %v2758, %v2790
  %v2813 = vmul.f32 %v1531, %v76
  %v2814 = vmul.f32 %v1531, %v77
  %v2815 = vmul.f32 %v1531, %v78
  %v2816 = vmul.f32 %v1531, %v79
  %v2817 = vmul.f32 %v1536, %v76
  %v2818 = vmul.f32 %v1536, %v77
  %v2819 = vmul.f32 %v1536, %v78
  %v2820 = vmul.f32 %v1536, %v79
  %2829 = vrot.lane.b32.xlu0 %v2813, 96
  %v2830 = vpop.permute.xlu0 %2829
  %2831 = vrot.lane.b32.xlu0 %v2814, 96
  %v2832 = vpop.permute.xlu0 %2831
  %2833 = vrot.lane.b32.xlu0 %v2815, 96
  %v2834 = vpop.permute.xlu0 %2833
  %2835 = vrot.lane.b32.xlu0 %v2816, 96
  %v2836 = vpop.permute.xlu0 %2835
  %2837 = vrot.lane.b32.xlu0 %v2817, 96
  %v2838 = vpop.permute.xlu0 %2837
  %2839 = vrot.lane.b32.xlu0 %v2818, 96
  %v2840 = vpop.permute.xlu0 %2839
  %2841 = vrot.lane.b32.xlu0 %v2819, 96
  %v2842 = vpop.permute.xlu0 %2841
  %2843 = vrot.lane.b32.xlu0 %v2820, 96
  %v2844 = vpop.permute.xlu0 %2843
  %v2845 = vsel %vm1570, %v2830, %v2832
  %v2846 = vsel %vm1570, %v2832, %v2834
  %v2847 = vsel %vm1570, %v2834, %v2836
  %v2848 = vsel %vm1570, %v2838, %v2840
  %v2849 = vsel %vm1570, %v2840, %v2842
  %v2850 = vsel %vm1570, %v2842, %v2844
  %v2859 = vadd.f32 %v2805, %v2845
  %v2860 = vadd.f32 %v2806, %v2846
  %v2861 = vadd.f32 %v2807, %v2847
  %v2862 = vadd.f32 %v2808, %v2836
  %v2863 = vadd.f32 %v2809, %v2848
  %v2864 = vadd.f32 %v2810, %v2849
  %v2865 = vadd.f32 %v2811, %v2850
  %v2866 = vadd.f32 %v2812, %v2844
  %v2867 = vmax.f32 %v1585, %v2859
  %v2868 = vmax.f32 %v1586, %v2860
  %v2869 = vmax.f32 %v1587, %v2861
  %v2870 = vmax.f32 %v1588, %v2862
  %v2871 = vmax.f32 %v1589, %v2863
  %v2872 = vmax.f32 %v1590, %v2864
  %v2873 = vmax.f32 %v1591, %v2865
  %v2874 = vmax.f32 %v1592, %v2866
  %v2875 = vmul.f32 %v29, %v318
  %v2876 = vmul.f32 %v29, %v319
  %v2877 = vmul.f32 %v29, %v320
  %v2878 = vmul.f32 %v29, %v321
  %v2879 = vmul.f32 %v34, %v318
  %v2880 = vmul.f32 %v34, %v319
  %v2881 = vmul.f32 %v34, %v320
  %v2882 = vmul.f32 %v34, %v321
  %v2883 = vadd.f32 %v2875, 0.0
  %v2884 = vadd.f32 %v2876, 0.0
  %v2885 = vadd.f32 %v2877, 0.0
  %v2886 = vadd.f32 %v2878, 0.0
  %v2887 = vadd.f32 %v2879, 0.0
  %v2888 = vadd.f32 %v2880, 0.0
  %v2889 = vadd.f32 %v2881, 0.0
  %v2890 = vadd.f32 %v2882, 0.0
  %v2891 = vmul.f32 %v68, %v357
  %v2892 = vmul.f32 %v68, %v358
  %v2893 = vmul.f32 %v68, %v359
  %v2894 = vmul.f32 %v68, %v360
  %v2895 = vmul.f32 %v73, %v357
  %v2896 = vmul.f32 %v73, %v358
  %v2897 = vmul.f32 %v73, %v359
  %v2898 = vmul.f32 %v73, %v360
  %v2899 = vadd.f32 %v2883, %v2891
  %v2900 = vadd.f32 %v2884, %v2892
  %v2901 = vadd.f32 %v2885, %v2893
  %v2902 = vadd.f32 %v2886, %v2894
  %v2903 = vadd.f32 %v2887, %v2895
  %v2904 = vadd.f32 %v2888, %v2896
  %v2905 = vadd.f32 %v2889, %v2897
  %v2906 = vadd.f32 %v2890, %v2898
  %v2907 = vmul.f32 %v106, %v318
  %v2908 = vmul.f32 %v106, %v319
  %v2909 = vmul.f32 %v106, %v320
  %v2910 = vmul.f32 %v106, %v321
  %v2911 = vmul.f32 %v111, %v318
  %v2912 = vmul.f32 %v111, %v319
  %v2913 = vmul.f32 %v111, %v320
  %v2914 = vmul.f32 %v111, %v321
  %2923 = vrot.lane.b32.xlu0 %v2907, 127
  %v2924 = vpop.permute.xlu0 %2923
  %2925 = vrot.lane.b32.xlu0 %v2908, 127
  %v2926 = vpop.permute.xlu0 %2925
  %2927 = vrot.lane.b32.xlu0 %v2909, 127
  %v2928 = vpop.permute.xlu0 %2927
  %2929 = vrot.lane.b32.xlu0 %v2910, 127
  %v2930 = vpop.permute.xlu0 %2929
  %2931 = vrot.lane.b32.xlu0 %v2911, 127
  %v2932 = vpop.permute.xlu0 %2931
  %2933 = vrot.lane.b32.xlu0 %v2912, 127
  %v2934 = vpop.permute.xlu0 %2933
  %2935 = vrot.lane.b32.xlu0 %v2913, 127
  %v2936 = vpop.permute.xlu0 %2935
  %2937 = vrot.lane.b32.xlu0 %v2914, 127
  %v2938 = vpop.permute.xlu0 %2937
  %v2939 = vsel %vm145, %v2924, %v2926
  %v2940 = vsel %vm145, %v2926, %v2928
  %v2941 = vsel %vm145, %v2928, %v2930
  %v2942 = vsel %vm145, %v2932, %v2934
  %v2943 = vsel %vm145, %v2934, %v2936
  %v2944 = vsel %vm145, %v2936, %v2938
  %v2953 = vadd.f32 %v2899, %v2939
  %v2954 = vadd.f32 %v2900, %v2940
  %v2955 = vadd.f32 %v2901, %v2941
  %v2956 = vadd.f32 %v2902, %v2930
  %v2957 = vadd.f32 %v2903, %v2942
  %v2958 = vadd.f32 %v2904, %v2943
  %v2959 = vadd.f32 %v2905, %v2944
  %v2960 = vadd.f32 %v2906, %v2938
  %v2961 = vmul.f32 %v174, %v357
  %v2962 = vmul.f32 %v174, %v358
  %v2963 = vmul.f32 %v174, %v359
  %v2964 = vmul.f32 %v174, %v360
  %v2965 = vmul.f32 %v179, %v357
  %v2966 = vmul.f32 %v179, %v358
  %v2967 = vmul.f32 %v179, %v359
  %v2968 = vmul.f32 %v179, %v360
  %2977 = vrot.lane.b32.xlu0 %v2961, 127
  %v2978 = vpop.permute.xlu0 %2977
  %2979 = vrot.lane.b32.xlu0 %v2962, 127
  %v2980 = vpop.permute.xlu0 %2979
  %2981 = vrot.lane.b32.xlu0 %v2963, 127
  %v2982 = vpop.permute.xlu0 %2981
  %2983 = vrot.lane.b32.xlu0 %v2964, 127
  %v2984 = vpop.permute.xlu0 %2983
  %2985 = vrot.lane.b32.xlu0 %v2965, 127
  %v2986 = vpop.permute.xlu0 %2985
  %2987 = vrot.lane.b32.xlu0 %v2966, 127
  %v2988 = vpop.permute.xlu0 %2987
  %2989 = vrot.lane.b32.xlu0 %v2967, 127
  %v2990 = vpop.permute.xlu0 %2989
  %2991 = vrot.lane.b32.xlu0 %v2968, 127
  %v2992 = vpop.permute.xlu0 %2991
  %v2993 = vsel %vm145, %v2978, %v2980
  %v2994 = vsel %vm145, %v2980, %v2982
  %v2995 = vsel %vm145, %v2982, %v2984
  %v2996 = vsel %vm145, %v2986, %v2988
  %v2997 = vsel %vm145, %v2988, %v2990
  %v2998 = vsel %vm145, %v2990, %v2992
  %v3007 = vadd.f32 %v2953, %v2993
  %v3008 = vadd.f32 %v2954, %v2994
  %v3009 = vadd.f32 %v2955, %v2995
  %v3010 = vadd.f32 %v2956, %v2984
  %v3011 = vadd.f32 %v2957, %v2996
  %v3012 = vadd.f32 %v2958, %v2997
  %v3013 = vadd.f32 %v2959, %v2998
  %v3014 = vadd.f32 %v2960, %v2992
  %v3015 = vmul.f32 %v241, %v318
  %v3016 = vmul.f32 %v241, %v319
  %v3017 = vmul.f32 %v241, %v320
  %v3018 = vmul.f32 %v241, %v321
  %v3019 = vmul.f32 %v246, %v318
  %v3020 = vmul.f32 %v246, %v319
  %v3021 = vmul.f32 %v246, %v320
  %v3022 = vmul.f32 %v246, %v321
  %3031 = vrot.lane.b32.xlu0 %v3015, 126
  %v3032 = vpop.permute.xlu0 %3031
  %3033 = vrot.lane.b32.xlu0 %v3016, 126
  %v3034 = vpop.permute.xlu0 %3033
  %3035 = vrot.lane.b32.xlu0 %v3017, 126
  %v3036 = vpop.permute.xlu0 %3035
  %3037 = vrot.lane.b32.xlu0 %v3018, 126
  %v3038 = vpop.permute.xlu0 %3037
  %3039 = vrot.lane.b32.xlu0 %v3019, 126
  %v3040 = vpop.permute.xlu0 %3039
  %3041 = vrot.lane.b32.xlu0 %v3020, 126
  %v3042 = vpop.permute.xlu0 %3041
  %3043 = vrot.lane.b32.xlu0 %v3021, 126
  %v3044 = vpop.permute.xlu0 %3043
  %3045 = vrot.lane.b32.xlu0 %v3022, 126
  %v3046 = vpop.permute.xlu0 %3045
  %v3047 = vsel %vm280, %v3032, %v3034
  %v3048 = vsel %vm280, %v3034, %v3036
  %v3049 = vsel %vm280, %v3036, %v3038
  %v3050 = vsel %vm280, %v3040, %v3042
  %v3051 = vsel %vm280, %v3042, %v3044
  %v3052 = vsel %vm280, %v3044, %v3046
  %v3061 = vadd.f32 %v3007, %v3047
  %v3062 = vadd.f32 %v3008, %v3048
  %v3063 = vadd.f32 %v3009, %v3049
  %v3064 = vadd.f32 %v3010, %v3038
  %v3065 = vadd.f32 %v3011, %v3050
  %v3066 = vadd.f32 %v3012, %v3051
  %v3067 = vadd.f32 %v3013, %v3052
  %v3068 = vadd.f32 %v3014, %v3046
  %v3069 = vmul.f32 %v310, %v37
  %v3070 = vmul.f32 %v310, %v38
  %v3071 = vmul.f32 %v310, %v39
  %v3072 = vmul.f32 %v310, %v40
  %v3073 = vmul.f32 %v315, %v37
  %v3074 = vmul.f32 %v315, %v38
  %v3075 = vmul.f32 %v315, %v39
  %v3076 = vmul.f32 %v315, %v40
  %3085 = vrot.lane.b32.xlu0 %v3069, 113
  %v3086 = vpop.permute.xlu0 %3085
  %3087 = vrot.lane.b32.xlu0 %v3070, 113
  %v3088 = vpop.permute.xlu0 %3087
  %3089 = vrot.lane.b32.xlu0 %v3071, 113
  %v3090 = vpop.permute.xlu0 %3089
  %3091 = vrot.lane.b32.xlu0 %v3072, 113
  %v3092 = vpop.permute.xlu0 %3091
  %3093 = vrot.lane.b32.xlu0 %v3073, 113
  %v3094 = vpop.permute.xlu0 %3093
  %3095 = vrot.lane.b32.xlu0 %v3074, 113
  %v3096 = vpop.permute.xlu0 %3095
  %3097 = vrot.lane.b32.xlu0 %v3075, 113
  %v3098 = vpop.permute.xlu0 %3097
  %3099 = vrot.lane.b32.xlu0 %v3076, 113
  %v3100 = vpop.permute.xlu0 %3099
  %v3101 = vsel %vm627, %v3086, %v3088
  %v3102 = vsel %vm627, %v3088, %v3090
  %v3103 = vsel %vm627, %v3090, %v3092
  %v3104 = vsel %vm627, %v3094, %v3096
  %v3105 = vsel %vm627, %v3096, %v3098
  %v3106 = vsel %vm627, %v3098, %v3100
  %v3115 = vadd.f32 %v3061, %v3101
  %v3116 = vadd.f32 %v3062, %v3102
  %v3117 = vadd.f32 %v3063, %v3103
  %v3118 = vadd.f32 %v3064, %v3092
  %v3119 = vadd.f32 %v3065, %v3104
  %v3120 = vadd.f32 %v3066, %v3105
  %v3121 = vadd.f32 %v3067, %v3106
  %v3122 = vadd.f32 %v3068, %v3100
  %v3123 = vmul.f32 %v349, %v76
  %v3124 = vmul.f32 %v349, %v77
  %v3125 = vmul.f32 %v349, %v78
  %v3126 = vmul.f32 %v349, %v79
  %v3127 = vmul.f32 %v354, %v76
  %v3128 = vmul.f32 %v354, %v77
  %v3129 = vmul.f32 %v354, %v78
  %v3130 = vmul.f32 %v354, %v79
  %3139 = vrot.lane.b32.xlu0 %v3123, 113
  %v3140 = vpop.permute.xlu0 %3139
  %3141 = vrot.lane.b32.xlu0 %v3124, 113
  %v3142 = vpop.permute.xlu0 %3141
  %3143 = vrot.lane.b32.xlu0 %v3125, 113
  %v3144 = vpop.permute.xlu0 %3143
  %3145 = vrot.lane.b32.xlu0 %v3126, 113
  %v3146 = vpop.permute.xlu0 %3145
  %3147 = vrot.lane.b32.xlu0 %v3127, 113
  %v3148 = vpop.permute.xlu0 %3147
  %3149 = vrot.lane.b32.xlu0 %v3128, 113
  %v3150 = vpop.permute.xlu0 %3149
  %3151 = vrot.lane.b32.xlu0 %v3129, 113
  %v3152 = vpop.permute.xlu0 %3151
  %3153 = vrot.lane.b32.xlu0 %v3130, 113
  %v3154 = vpop.permute.xlu0 %3153
  %v3155 = vsel %vm627, %v3140, %v3142
  %v3156 = vsel %vm627, %v3142, %v3144
  %v3157 = vsel %vm627, %v3144, %v3146
  %v3158 = vsel %vm627, %v3148, %v3150
  %v3159 = vsel %vm627, %v3150, %v3152
  %v3160 = vsel %vm627, %v3152, %v3154
  %v3169 = vadd.f32 %v3115, %v3155
  %v3170 = vadd.f32 %v3116, %v3156
  %v3171 = vadd.f32 %v3117, %v3157
  %v3172 = vadd.f32 %v3118, %v3146
  %v3173 = vadd.f32 %v3119, %v3158
  %v3174 = vadd.f32 %v3120, %v3159
  %v3175 = vadd.f32 %v3121, %v3160
  %v3176 = vadd.f32 %v3122, %v3154
  %v3177 = vmul.f32 %v387, %v37
  %v3178 = vmul.f32 %v387, %v38
  %v3179 = vmul.f32 %v387, %v39
  %v3180 = vmul.f32 %v387, %v40
  %v3181 = vmul.f32 %v392, %v37
  %v3182 = vmul.f32 %v392, %v38
  %v3183 = vmul.f32 %v392, %v39
  %v3184 = vmul.f32 %v392, %v40
  %3193 = vrot.lane.b32.xlu0 %v3177, 112
  %v3194 = vpop.permute.xlu0 %3193
  %3195 = vrot.lane.b32.xlu0 %v3178, 112
  %v3196 = vpop.permute.xlu0 %3195
  %3197 = vrot.lane.b32.xlu0 %v3179, 112
  %v3198 = vpop.permute.xlu0 %3197
  %3199 = vrot.lane.b32.xlu0 %v3180, 112
  %v3200 = vpop.permute.xlu0 %3199
  %3201 = vrot.lane.b32.xlu0 %v3181, 112
  %v3202 = vpop.permute.xlu0 %3201
  %3203 = vrot.lane.b32.xlu0 %v3182, 112
  %v3204 = vpop.permute.xlu0 %3203
  %3205 = vrot.lane.b32.xlu0 %v3183, 112
  %v3206 = vpop.permute.xlu0 %3205
  %3207 = vrot.lane.b32.xlu0 %v3184, 112
  %v3208 = vpop.permute.xlu0 %3207
  %v3209 = vsel %vm762, %v3194, %v3196
  %v3210 = vsel %vm762, %v3196, %v3198
  %v3211 = vsel %vm762, %v3198, %v3200
  %v3212 = vsel %vm762, %v3202, %v3204
  %v3213 = vsel %vm762, %v3204, %v3206
  %v3214 = vsel %vm762, %v3206, %v3208
  %v3223 = vadd.f32 %v3169, %v3209
  %v3224 = vadd.f32 %v3170, %v3210
  %v3225 = vadd.f32 %v3171, %v3211
  %v3226 = vadd.f32 %v3172, %v3200
  %v3227 = vadd.f32 %v3173, %v3212
  %v3228 = vadd.f32 %v3174, %v3213
  %v3229 = vadd.f32 %v3175, %v3214
  %v3230 = vadd.f32 %v3176, %v3208
  %v3231 = vmul.f32 %v454, %v76
  %v3232 = vmul.f32 %v454, %v77
  %v3233 = vmul.f32 %v454, %v78
  %v3234 = vmul.f32 %v454, %v79
  %v3235 = vmul.f32 %v459, %v76
  %v3236 = vmul.f32 %v459, %v77
  %v3237 = vmul.f32 %v459, %v78
  %v3238 = vmul.f32 %v459, %v79
  %3247 = vrot.lane.b32.xlu0 %v3231, 112
  %v3248 = vpop.permute.xlu0 %3247
  %3249 = vrot.lane.b32.xlu0 %v3232, 112
  %v3250 = vpop.permute.xlu0 %3249
  %3251 = vrot.lane.b32.xlu0 %v3233, 112
  %v3252 = vpop.permute.xlu0 %3251
  %3253 = vrot.lane.b32.xlu0 %v3234, 112
  %v3254 = vpop.permute.xlu0 %3253
  %3255 = vrot.lane.b32.xlu0 %v3235, 112
  %v3256 = vpop.permute.xlu0 %3255
  %3257 = vrot.lane.b32.xlu0 %v3236, 112
  %v3258 = vpop.permute.xlu0 %3257
  %3259 = vrot.lane.b32.xlu0 %v3237, 112
  %v3260 = vpop.permute.xlu0 %3259
  %3261 = vrot.lane.b32.xlu0 %v3238, 112
  %v3262 = vpop.permute.xlu0 %3261
  %v3263 = vsel %vm762, %v3248, %v3250
  %v3264 = vsel %vm762, %v3250, %v3252
  %v3265 = vsel %vm762, %v3252, %v3254
  %v3266 = vsel %vm762, %v3256, %v3258
  %v3267 = vsel %vm762, %v3258, %v3260
  %v3268 = vsel %vm762, %v3260, %v3262
  %v3277 = vadd.f32 %v3223, %v3263
  %v3278 = vadd.f32 %v3224, %v3264
  %v3279 = vadd.f32 %v3225, %v3265
  %v3280 = vadd.f32 %v3226, %v3254
  %v3281 = vadd.f32 %v3227, %v3266
  %v3282 = vadd.f32 %v3228, %v3267
  %v3283 = vadd.f32 %v3229, %v3268
  %v3284 = vadd.f32 %v3230, %v3262
  %v3285 = vmul.f32 %v521, %v37
  %v3286 = vmul.f32 %v521, %v38
  %v3287 = vmul.f32 %v521, %v39
  %v3288 = vmul.f32 %v521, %v40
  %v3289 = vmul.f32 %v526, %v37
  %v3290 = vmul.f32 %v526, %v38
  %v3291 = vmul.f32 %v526, %v39
  %v3292 = vmul.f32 %v526, %v40
  %3301 = vrot.lane.b32.xlu0 %v3285, 111
  %v3302 = vpop.permute.xlu0 %3301
  %3303 = vrot.lane.b32.xlu0 %v3286, 111
  %v3304 = vpop.permute.xlu0 %3303
  %3305 = vrot.lane.b32.xlu0 %v3287, 111
  %v3306 = vpop.permute.xlu0 %3305
  %3307 = vrot.lane.b32.xlu0 %v3288, 111
  %v3308 = vpop.permute.xlu0 %3307
  %3309 = vrot.lane.b32.xlu0 %v3289, 111
  %v3310 = vpop.permute.xlu0 %3309
  %3311 = vrot.lane.b32.xlu0 %v3290, 111
  %v3312 = vpop.permute.xlu0 %3311
  %3313 = vrot.lane.b32.xlu0 %v3291, 111
  %v3314 = vpop.permute.xlu0 %3313
  %3315 = vrot.lane.b32.xlu0 %v3292, 111
  %v3316 = vpop.permute.xlu0 %3315
  %v3317 = vsel %vm897, %v3302, %v3304
  %v3318 = vsel %vm897, %v3304, %v3306
  %v3319 = vsel %vm897, %v3306, %v3308
  %v3320 = vsel %vm897, %v3310, %v3312
  %v3321 = vsel %vm897, %v3312, %v3314
  %v3322 = vsel %vm897, %v3314, %v3316
  %v3331 = vadd.f32 %v3277, %v3317
  %v3332 = vadd.f32 %v3278, %v3318
  %v3333 = vadd.f32 %v3279, %v3319
  %v3334 = vadd.f32 %v3280, %v3308
  %v3335 = vadd.f32 %v3281, %v3320
  %v3336 = vadd.f32 %v3282, %v3321
  %v3337 = vadd.f32 %v3283, %v3322
  %v3338 = vadd.f32 %v3284, %v3316
  %v3339 = vmul.f32 %v588, %v318
  %v3340 = vmul.f32 %v588, %v319
  %v3341 = vmul.f32 %v588, %v320
  %v3342 = vmul.f32 %v588, %v321
  %v3343 = vmul.f32 %v593, %v318
  %v3344 = vmul.f32 %v593, %v319
  %v3345 = vmul.f32 %v593, %v320
  %v3346 = vmul.f32 %v593, %v321
  %3355 = vrot.lane.b32.xlu0 %v3339, 113
  %v3356 = vpop.permute.xlu0 %3355
  %3357 = vrot.lane.b32.xlu0 %v3340, 113
  %v3358 = vpop.permute.xlu0 %3357
  %3359 = vrot.lane.b32.xlu0 %v3341, 113
  %v3360 = vpop.permute.xlu0 %3359
  %3361 = vrot.lane.b32.xlu0 %v3342, 113
  %v3362 = vpop.permute.xlu0 %3361
  %3363 = vrot.lane.b32.xlu0 %v3343, 113
  %v3364 = vpop.permute.xlu0 %3363
  %3365 = vrot.lane.b32.xlu0 %v3344, 113
  %v3366 = vpop.permute.xlu0 %3365
  %3367 = vrot.lane.b32.xlu0 %v3345, 113
  %v3368 = vpop.permute.xlu0 %3367
  %3369 = vrot.lane.b32.xlu0 %v3346, 113
  %v3370 = vpop.permute.xlu0 %3369
  %v3371 = vsel %vm627, %v3356, %v3358
  %v3372 = vsel %vm627, %v3358, %v3360
  %v3373 = vsel %vm627, %v3360, %v3362
  %v3374 = vsel %vm627, %v3364, %v3366
  %v3375 = vsel %vm627, %v3366, %v3368
  %v3376 = vsel %vm627, %v3368, %v3370
  %v3385 = vadd.f32 %v3331, %v3371
  %v3386 = vadd.f32 %v3332, %v3372
  %v3387 = vadd.f32 %v3333, %v3373
  %v3388 = vadd.f32 %v3334, %v3362
  %v3389 = vadd.f32 %v3335, %v3374
  %v3390 = vadd.f32 %v3336, %v3375
  %v3391 = vadd.f32 %v3337, %v3376
  %v3392 = vadd.f32 %v3338, %v3370
  %v3393 = vmul.f32 %v656, %v357
  %v3394 = vmul.f32 %v656, %v358
  %v3395 = vmul.f32 %v656, %v359
  %v3396 = vmul.f32 %v656, %v360
  %v3397 = vmul.f32 %v661, %v357
  %v3398 = vmul.f32 %v661, %v358
  %v3399 = vmul.f32 %v661, %v359
  %v3400 = vmul.f32 %v661, %v360
  %3409 = vrot.lane.b32.xlu0 %v3393, 113
  %v3410 = vpop.permute.xlu0 %3409
  %3411 = vrot.lane.b32.xlu0 %v3394, 113
  %v3412 = vpop.permute.xlu0 %3411
  %3413 = vrot.lane.b32.xlu0 %v3395, 113
  %v3414 = vpop.permute.xlu0 %3413
  %3415 = vrot.lane.b32.xlu0 %v3396, 113
  %v3416 = vpop.permute.xlu0 %3415
  %3417 = vrot.lane.b32.xlu0 %v3397, 113
  %v3418 = vpop.permute.xlu0 %3417
  %3419 = vrot.lane.b32.xlu0 %v3398, 113
  %v3420 = vpop.permute.xlu0 %3419
  %3421 = vrot.lane.b32.xlu0 %v3399, 113
  %v3422 = vpop.permute.xlu0 %3421
  %3423 = vrot.lane.b32.xlu0 %v3400, 113
  %v3424 = vpop.permute.xlu0 %3423
  %v3425 = vsel %vm627, %v3410, %v3412
  %v3426 = vsel %vm627, %v3412, %v3414
  %v3427 = vsel %vm627, %v3414, %v3416
  %v3428 = vsel %vm627, %v3418, %v3420
  %v3429 = vsel %vm627, %v3420, %v3422
  %v3430 = vsel %vm627, %v3422, %v3424
  %v3439 = vadd.f32 %v3385, %v3425
  %v3440 = vadd.f32 %v3386, %v3426
  %v3441 = vadd.f32 %v3387, %v3427
  %v3442 = vadd.f32 %v3388, %v3416
  %v3443 = vadd.f32 %v3389, %v3428
  %v3444 = vadd.f32 %v3390, %v3429
  %v3445 = vadd.f32 %v3391, %v3430
  %v3446 = vadd.f32 %v3392, %v3424
  %v3447 = vmul.f32 %v723, %v318
  %v3448 = vmul.f32 %v723, %v319
  %v3449 = vmul.f32 %v723, %v320
  %v3450 = vmul.f32 %v723, %v321
  %v3451 = vmul.f32 %v728, %v318
  %v3452 = vmul.f32 %v728, %v319
  %v3453 = vmul.f32 %v728, %v320
  %v3454 = vmul.f32 %v728, %v321
  %3463 = vrot.lane.b32.xlu0 %v3447, 112
  %v3464 = vpop.permute.xlu0 %3463
  %3465 = vrot.lane.b32.xlu0 %v3448, 112
  %v3466 = vpop.permute.xlu0 %3465
  %3467 = vrot.lane.b32.xlu0 %v3449, 112
  %v3468 = vpop.permute.xlu0 %3467
  %3469 = vrot.lane.b32.xlu0 %v3450, 112
  %v3470 = vpop.permute.xlu0 %3469
  %3471 = vrot.lane.b32.xlu0 %v3451, 112
  %v3472 = vpop.permute.xlu0 %3471
  %3473 = vrot.lane.b32.xlu0 %v3452, 112
  %v3474 = vpop.permute.xlu0 %3473
  %3475 = vrot.lane.b32.xlu0 %v3453, 112
  %v3476 = vpop.permute.xlu0 %3475
  %3477 = vrot.lane.b32.xlu0 %v3454, 112
  %v3478 = vpop.permute.xlu0 %3477
  %v3479 = vsel %vm762, %v3464, %v3466
  %v3480 = vsel %vm762, %v3466, %v3468
  %v3481 = vsel %vm762, %v3468, %v3470
  %v3482 = vsel %vm762, %v3472, %v3474
  %v3483 = vsel %vm762, %v3474, %v3476
  %v3484 = vsel %vm762, %v3476, %v3478
  %v3493 = vadd.f32 %v3439, %v3479
  %v3494 = vadd.f32 %v3440, %v3480
  %v3495 = vadd.f32 %v3441, %v3481
  %v3496 = vadd.f32 %v3442, %v3470
  %v3497 = vadd.f32 %v3443, %v3482
  %v3498 = vadd.f32 %v3444, %v3483
  %v3499 = vadd.f32 %v3445, %v3484
  %v3500 = vadd.f32 %v3446, %v3478
  %v3501 = vmul.f32 %v791, %v357
  %v3502 = vmul.f32 %v791, %v358
  %v3503 = vmul.f32 %v791, %v359
  %v3504 = vmul.f32 %v791, %v360
  %v3505 = vmul.f32 %v796, %v357
  %v3506 = vmul.f32 %v796, %v358
  %v3507 = vmul.f32 %v796, %v359
  %v3508 = vmul.f32 %v796, %v360
  %3517 = vrot.lane.b32.xlu0 %v3501, 112
  %v3518 = vpop.permute.xlu0 %3517
  %3519 = vrot.lane.b32.xlu0 %v3502, 112
  %v3520 = vpop.permute.xlu0 %3519
  %3521 = vrot.lane.b32.xlu0 %v3503, 112
  %v3522 = vpop.permute.xlu0 %3521
  %3523 = vrot.lane.b32.xlu0 %v3504, 112
  %v3524 = vpop.permute.xlu0 %3523
  %3525 = vrot.lane.b32.xlu0 %v3505, 112
  %v3526 = vpop.permute.xlu0 %3525
  %3527 = vrot.lane.b32.xlu0 %v3506, 112
  %v3528 = vpop.permute.xlu0 %3527
  %3529 = vrot.lane.b32.xlu0 %v3507, 112
  %v3530 = vpop.permute.xlu0 %3529
  %3531 = vrot.lane.b32.xlu0 %v3508, 112
  %v3532 = vpop.permute.xlu0 %3531
  %v3533 = vsel %vm762, %v3518, %v3520
  %v3534 = vsel %vm762, %v3520, %v3522
  %v3535 = vsel %vm762, %v3522, %v3524
  %v3536 = vsel %vm762, %v3526, %v3528
  %v3537 = vsel %vm762, %v3528, %v3530
  %v3538 = vsel %vm762, %v3530, %v3532
  %v3547 = vadd.f32 %v3493, %v3533
  %v3548 = vadd.f32 %v3494, %v3534
  %v3549 = vadd.f32 %v3495, %v3535
  %v3550 = vadd.f32 %v3496, %v3524
  %v3551 = vadd.f32 %v3497, %v3536
  %v3552 = vadd.f32 %v3498, %v3537
  %v3553 = vadd.f32 %v3499, %v3538
  %v3554 = vadd.f32 %v3500, %v3532
  %v3555 = vmul.f32 %v858, %v318
  %v3556 = vmul.f32 %v858, %v319
  %v3557 = vmul.f32 %v858, %v320
  %v3558 = vmul.f32 %v858, %v321
  %v3559 = vmul.f32 %v863, %v318
  %v3560 = vmul.f32 %v863, %v319
  %v3561 = vmul.f32 %v863, %v320
  %v3562 = vmul.f32 %v863, %v321
  %3571 = vrot.lane.b32.xlu0 %v3555, 111
  %v3572 = vpop.permute.xlu0 %3571
  %3573 = vrot.lane.b32.xlu0 %v3556, 111
  %v3574 = vpop.permute.xlu0 %3573
  %3575 = vrot.lane.b32.xlu0 %v3557, 111
  %v3576 = vpop.permute.xlu0 %3575
  %3577 = vrot.lane.b32.xlu0 %v3558, 111
  %v3578 = vpop.permute.xlu0 %3577
  %3579 = vrot.lane.b32.xlu0 %v3559, 111
  %v3580 = vpop.permute.xlu0 %3579
  %3581 = vrot.lane.b32.xlu0 %v3560, 111
  %v3582 = vpop.permute.xlu0 %3581
  %3583 = vrot.lane.b32.xlu0 %v3561, 111
  %v3584 = vpop.permute.xlu0 %3583
  %3585 = vrot.lane.b32.xlu0 %v3562, 111
  %v3586 = vpop.permute.xlu0 %3585
  %v3587 = vsel %vm897, %v3572, %v3574
  %v3588 = vsel %vm897, %v3574, %v3576
  %v3589 = vsel %vm897, %v3576, %v3578
  %v3590 = vsel %vm897, %v3580, %v3582
  %v3591 = vsel %vm897, %v3582, %v3584
  %v3592 = vsel %vm897, %v3584, %v3586
  %v3601 = vadd.f32 %v3547, %v3587
  %v3602 = vadd.f32 %v3548, %v3588
  %v3603 = vadd.f32 %v3549, %v3589
  %v3604 = vadd.f32 %v3550, %v3578
  %v3605 = vadd.f32 %v3551, %v3590
  %v3606 = vadd.f32 %v3552, %v3591
  %v3607 = vadd.f32 %v3553, %v3592
  %v3608 = vadd.f32 %v3554, %v3586
  %v3609 = vmul.f32 %v926, %v37
  %v3610 = vmul.f32 %v926, %v38
  %v3611 = vmul.f32 %v926, %v39
  %v3612 = vmul.f32 %v926, %v40
  %v3613 = vmul.f32 %v931, %v37
  %v3614 = vmul.f32 %v931, %v38
  %v3615 = vmul.f32 %v931, %v39
  %v3616 = vmul.f32 %v931, %v40
  %3625 = vrot.lane.b32.xlu0 %v3609, 98
  %v3626 = vpop.permute.xlu0 %3625
  %3627 = vrot.lane.b32.xlu0 %v3610, 98
  %v3628 = vpop.permute.xlu0 %3627
  %3629 = vrot.lane.b32.xlu0 %v3611, 98
  %v3630 = vpop.permute.xlu0 %3629
  %3631 = vrot.lane.b32.xlu0 %v3612, 98
  %v3632 = vpop.permute.xlu0 %3631
  %3633 = vrot.lane.b32.xlu0 %v3613, 98
  %v3634 = vpop.permute.xlu0 %3633
  %3635 = vrot.lane.b32.xlu0 %v3614, 98
  %v3636 = vpop.permute.xlu0 %3635
  %3637 = vrot.lane.b32.xlu0 %v3615, 98
  %v3638 = vpop.permute.xlu0 %3637
  %3639 = vrot.lane.b32.xlu0 %v3616, 98
  %v3640 = vpop.permute.xlu0 %3639
  %v3641 = vsel %vm1300, %v3626, %v3628
  %v3642 = vsel %vm1300, %v3628, %v3630
  %v3643 = vsel %vm1300, %v3630, %v3632
  %v3644 = vsel %vm1300, %v3634, %v3636
  %v3645 = vsel %vm1300, %v3636, %v3638
  %v3646 = vsel %vm1300, %v3638, %v3640
  %v3655 = vadd.f32 %v3601, %v3641
  %v3656 = vadd.f32 %v3602, %v3642
  %v3657 = vadd.f32 %v3603, %v3643
  %v3658 = vadd.f32 %v3604, %v3632
  %v3659 = vadd.f32 %v3605, %v3644
  %v3660 = vadd.f32 %v3606, %v3645
  %v3661 = vadd.f32 %v3607, %v3646
  %v3662 = vadd.f32 %v3608, %v3640
  %v3663 = vmul.f32 %v993, %v76
  %v3664 = vmul.f32 %v993, %v77
  %v3665 = vmul.f32 %v993, %v78
  %v3666 = vmul.f32 %v993, %v79
  %v3667 = vmul.f32 %v998, %v76
  %v3668 = vmul.f32 %v998, %v77
  %v3669 = vmul.f32 %v998, %v78
  %v3670 = vmul.f32 %v998, %v79
  %3679 = vrot.lane.b32.xlu0 %v3663, 98
  %v3680 = vpop.permute.xlu0 %3679
  %3681 = vrot.lane.b32.xlu0 %v3664, 98
  %v3682 = vpop.permute.xlu0 %3681
  %3683 = vrot.lane.b32.xlu0 %v3665, 98
  %v3684 = vpop.permute.xlu0 %3683
  %3685 = vrot.lane.b32.xlu0 %v3666, 98
  %v3686 = vpop.permute.xlu0 %3685
  %3687 = vrot.lane.b32.xlu0 %v3667, 98
  %v3688 = vpop.permute.xlu0 %3687
  %3689 = vrot.lane.b32.xlu0 %v3668, 98
  %v3690 = vpop.permute.xlu0 %3689
  %3691 = vrot.lane.b32.xlu0 %v3669, 98
  %v3692 = vpop.permute.xlu0 %3691
  %3693 = vrot.lane.b32.xlu0 %v3670, 98
  %v3694 = vpop.permute.xlu0 %3693
  %v3695 = vsel %vm1300, %v3680, %v3682
  %v3696 = vsel %vm1300, %v3682, %v3684
  %v3697 = vsel %vm1300, %v3684, %v3686
  %v3698 = vsel %vm1300, %v3688, %v3690
  %v3699 = vsel %vm1300, %v3690, %v3692
  %v3700 = vsel %vm1300, %v3692, %v3694
  %v3709 = vadd.f32 %v3655, %v3695
  %v3710 = vadd.f32 %v3656, %v3696
  %v3711 = vadd.f32 %v3657, %v3697
  %v3712 = vadd.f32 %v3658, %v3686
  %v3713 = vadd.f32 %v3659, %v3698
  %v3714 = vadd.f32 %v3660, %v3699
  %v3715 = vadd.f32 %v3661, %v3700
  %v3716 = vadd.f32 %v3662, %v3694
  %v3717 = vmul.f32 %v1060, %v37
  %v3718 = vmul.f32 %v1060, %v38
  %v3719 = vmul.f32 %v1060, %v39
  %v3720 = vmul.f32 %v1060, %v40
  %v3721 = vmul.f32 %v1065, %v37
  %v3722 = vmul.f32 %v1065, %v38
  %v3723 = vmul.f32 %v1065, %v39
  %v3724 = vmul.f32 %v1065, %v40
  %3733 = vrot.lane.b32.xlu0 %v3717, 97
  %v3734 = vpop.permute.xlu0 %3733
  %3735 = vrot.lane.b32.xlu0 %v3718, 97
  %v3736 = vpop.permute.xlu0 %3735
  %3737 = vrot.lane.b32.xlu0 %v3719, 97
  %v3738 = vpop.permute.xlu0 %3737
  %3739 = vrot.lane.b32.xlu0 %v3720, 97
  %v3740 = vpop.permute.xlu0 %3739
  %3741 = vrot.lane.b32.xlu0 %v3721, 97
  %v3742 = vpop.permute.xlu0 %3741
  %3743 = vrot.lane.b32.xlu0 %v3722, 97
  %v3744 = vpop.permute.xlu0 %3743
  %3745 = vrot.lane.b32.xlu0 %v3723, 97
  %v3746 = vpop.permute.xlu0 %3745
  %3747 = vrot.lane.b32.xlu0 %v3724, 97
  %v3748 = vpop.permute.xlu0 %3747
  %v3749 = vsel %vm1435, %v3734, %v3736
  %v3750 = vsel %vm1435, %v3736, %v3738
  %v3751 = vsel %vm1435, %v3738, %v3740
  %v3752 = vsel %vm1435, %v3742, %v3744
  %v3753 = vsel %vm1435, %v3744, %v3746
  %v3754 = vsel %vm1435, %v3746, %v3748
  %v3763 = vadd.f32 %v3709, %v3749
  %v3764 = vadd.f32 %v3710, %v3750
  %v3765 = vadd.f32 %v3711, %v3751
  %v3766 = vadd.f32 %v3712, %v3740
  %v3767 = vadd.f32 %v3713, %v3752
  %v3768 = vadd.f32 %v3714, %v3753
  %v3769 = vadd.f32 %v3715, %v3754
  %v3770 = vadd.f32 %v3716, %v3748
  %v3771 = vmul.f32 %v1127, %v76
  %v3772 = vmul.f32 %v1127, %v77
  %v3773 = vmul.f32 %v1127, %v78
  %v3774 = vmul.f32 %v1127, %v79
  %v3775 = vmul.f32 %v1132, %v76
  %v3776 = vmul.f32 %v1132, %v77
  %v3777 = vmul.f32 %v1132, %v78
  %v3778 = vmul.f32 %v1132, %v79
  %3787 = vrot.lane.b32.xlu0 %v3771, 97
  %v3788 = vpop.permute.xlu0 %3787
  %3789 = vrot.lane.b32.xlu0 %v3772, 97
  %v3790 = vpop.permute.xlu0 %3789
  %3791 = vrot.lane.b32.xlu0 %v3773, 97
  %v3792 = vpop.permute.xlu0 %3791
  %3793 = vrot.lane.b32.xlu0 %v3774, 97
  %v3794 = vpop.permute.xlu0 %3793
  %3795 = vrot.lane.b32.xlu0 %v3775, 97
  %v3796 = vpop.permute.xlu0 %3795
  %3797 = vrot.lane.b32.xlu0 %v3776, 97
  %v3798 = vpop.permute.xlu0 %3797
  %3799 = vrot.lane.b32.xlu0 %v3777, 97
  %v3800 = vpop.permute.xlu0 %3799
  %3801 = vrot.lane.b32.xlu0 %v3778, 97
  %v3802 = vpop.permute.xlu0 %3801
  %v3803 = vsel %vm1435, %v3788, %v3790
  %v3804 = vsel %vm1435, %v3790, %v3792
  %v3805 = vsel %vm1435, %v3792, %v3794
  %v3806 = vsel %vm1435, %v3796, %v3798
  %v3807 = vsel %vm1435, %v3798, %v3800
  %v3808 = vsel %vm1435, %v3800, %v3802
  %v3817 = vadd.f32 %v3763, %v3803
  %v3818 = vadd.f32 %v3764, %v3804
  %v3819 = vadd.f32 %v3765, %v3805
  %v3820 = vadd.f32 %v3766, %v3794
  %v3821 = vadd.f32 %v3767, %v3806
  %v3822 = vadd.f32 %v3768, %v3807
  %v3823 = vadd.f32 %v3769, %v3808
  %v3824 = vadd.f32 %v3770, %v3802
  %v3825 = vmul.f32 %v1194, %v37
  %v3826 = vmul.f32 %v1194, %v38
  %v3827 = vmul.f32 %v1194, %v39
  %v3828 = vmul.f32 %v1194, %v40
  %v3829 = vmul.f32 %v1199, %v37
  %v3830 = vmul.f32 %v1199, %v38
  %v3831 = vmul.f32 %v1199, %v39
  %v3832 = vmul.f32 %v1199, %v40
  %3841 = vrot.lane.b32.xlu0 %v3825, 96
  %v3842 = vpop.permute.xlu0 %3841
  %3843 = vrot.lane.b32.xlu0 %v3826, 96
  %v3844 = vpop.permute.xlu0 %3843
  %3845 = vrot.lane.b32.xlu0 %v3827, 96
  %v3846 = vpop.permute.xlu0 %3845
  %3847 = vrot.lane.b32.xlu0 %v3828, 96
  %v3848 = vpop.permute.xlu0 %3847
  %3849 = vrot.lane.b32.xlu0 %v3829, 96
  %v3850 = vpop.permute.xlu0 %3849
  %3851 = vrot.lane.b32.xlu0 %v3830, 96
  %v3852 = vpop.permute.xlu0 %3851
  %3853 = vrot.lane.b32.xlu0 %v3831, 96
  %v3854 = vpop.permute.xlu0 %3853
  %3855 = vrot.lane.b32.xlu0 %v3832, 96
  %v3856 = vpop.permute.xlu0 %3855
  %v3857 = vsel %vm1570, %v3842, %v3844
  %v3858 = vsel %vm1570, %v3844, %v3846
  %v3859 = vsel %vm1570, %v3846, %v3848
  %v3860 = vsel %vm1570, %v3850, %v3852
  %v3861 = vsel %vm1570, %v3852, %v3854
  %v3862 = vsel %vm1570, %v3854, %v3856
  %v3871 = vadd.f32 %v3817, %v3857
  %v3872 = vadd.f32 %v3818, %v3858
  %v3873 = vadd.f32 %v3819, %v3859
  %v3874 = vadd.f32 %v3820, %v3848
  %v3875 = vadd.f32 %v3821, %v3860
  %v3876 = vadd.f32 %v3822, %v3861
  %v3877 = vadd.f32 %v3823, %v3862
  %v3878 = vadd.f32 %v3824, %v3856
  %v3879 = vmul.f32 %v1261, %v318
  %v3880 = vmul.f32 %v1261, %v319
  %v3881 = vmul.f32 %v1261, %v320
  %v3882 = vmul.f32 %v1261, %v321
  %v3883 = vmul.f32 %v1266, %v318
  %v3884 = vmul.f32 %v1266, %v319
  %v3885 = vmul.f32 %v1266, %v320
  %v3886 = vmul.f32 %v1266, %v321
  %3895 = vrot.lane.b32.xlu0 %v3879, 98
  %v3896 = vpop.permute.xlu0 %3895
  %3897 = vrot.lane.b32.xlu0 %v3880, 98
  %v3898 = vpop.permute.xlu0 %3897
  %3899 = vrot.lane.b32.xlu0 %v3881, 98
  %v3900 = vpop.permute.xlu0 %3899
  %3901 = vrot.lane.b32.xlu0 %v3882, 98
  %v3902 = vpop.permute.xlu0 %3901
  %3903 = vrot.lane.b32.xlu0 %v3883, 98
  %v3904 = vpop.permute.xlu0 %3903
  %3905 = vrot.lane.b32.xlu0 %v3884, 98
  %v3906 = vpop.permute.xlu0 %3905
  %3907 = vrot.lane.b32.xlu0 %v3885, 98
  %v3908 = vpop.permute.xlu0 %3907
  %3909 = vrot.lane.b32.xlu0 %v3886, 98
  %v3910 = vpop.permute.xlu0 %3909
  %v3911 = vsel %vm1300, %v3896, %v3898
  %v3912 = vsel %vm1300, %v3898, %v3900
  %v3913 = vsel %vm1300, %v3900, %v3902
  %v3914 = vsel %vm1300, %v3904, %v3906
  %v3915 = vsel %vm1300, %v3906, %v3908
  %v3916 = vsel %vm1300, %v3908, %v3910
  %v3925 = vadd.f32 %v3871, %v3911
  %v3926 = vadd.f32 %v3872, %v3912
  %v3927 = vadd.f32 %v3873, %v3913
  %v3928 = vadd.f32 %v3874, %v3902
  %v3929 = vadd.f32 %v3875, %v3914
  %v3930 = vadd.f32 %v3876, %v3915
  %v3931 = vadd.f32 %v3877, %v3916
  %v3932 = vadd.f32 %v3878, %v3910
  %v3933 = vmul.f32 %v1329, %v357
  %v3934 = vmul.f32 %v1329, %v358
  %v3935 = vmul.f32 %v1329, %v359
  %v3936 = vmul.f32 %v1329, %v360
  %v3937 = vmul.f32 %v1334, %v357
  %v3938 = vmul.f32 %v1334, %v358
  %v3939 = vmul.f32 %v1334, %v359
  %v3940 = vmul.f32 %v1334, %v360
  %3949 = vrot.lane.b32.xlu0 %v3933, 98
  %v3950 = vpop.permute.xlu0 %3949
  %3951 = vrot.lane.b32.xlu0 %v3934, 98
  %v3952 = vpop.permute.xlu0 %3951
  %3953 = vrot.lane.b32.xlu0 %v3935, 98
  %v3954 = vpop.permute.xlu0 %3953
  %3955 = vrot.lane.b32.xlu0 %v3936, 98
  %v3956 = vpop.permute.xlu0 %3955
  %3957 = vrot.lane.b32.xlu0 %v3937, 98
  %v3958 = vpop.permute.xlu0 %3957
  %3959 = vrot.lane.b32.xlu0 %v3938, 98
  %v3960 = vpop.permute.xlu0 %3959
  %3961 = vrot.lane.b32.xlu0 %v3939, 98
  %v3962 = vpop.permute.xlu0 %3961
  %3963 = vrot.lane.b32.xlu0 %v3940, 98
  %v3964 = vpop.permute.xlu0 %3963
  %v3965 = vsel %vm1300, %v3950, %v3952
  %v3966 = vsel %vm1300, %v3952, %v3954
  %v3967 = vsel %vm1300, %v3954, %v3956
  %v3968 = vsel %vm1300, %v3958, %v3960
  %v3969 = vsel %vm1300, %v3960, %v3962
  %v3970 = vsel %vm1300, %v3962, %v3964
  %v3979 = vadd.f32 %v3925, %v3965
  %v3980 = vadd.f32 %v3926, %v3966
  %v3981 = vadd.f32 %v3927, %v3967
  %v3982 = vadd.f32 %v3928, %v3956
  %v3983 = vadd.f32 %v3929, %v3968
  %v3984 = vadd.f32 %v3930, %v3969
  %v3985 = vadd.f32 %v3931, %v3970
  %v3986 = vadd.f32 %v3932, %v3964
  %v3987 = vmul.f32 %v1396, %v318
  %v3988 = vmul.f32 %v1396, %v319
  %v3989 = vmul.f32 %v1396, %v320
  %v3990 = vmul.f32 %v1396, %v321
  %v3991 = vmul.f32 %v1401, %v318
  %v3992 = vmul.f32 %v1401, %v319
  %v3993 = vmul.f32 %v1401, %v320
  %v3994 = vmul.f32 %v1401, %v321
  %4003 = vrot.lane.b32.xlu0 %v3987, 97
  %v4004 = vpop.permute.xlu0 %4003
  %4005 = vrot.lane.b32.xlu0 %v3988, 97
  %v4006 = vpop.permute.xlu0 %4005
  %4007 = vrot.lane.b32.xlu0 %v3989, 97
  %v4008 = vpop.permute.xlu0 %4007
  %4009 = vrot.lane.b32.xlu0 %v3990, 97
  %v4010 = vpop.permute.xlu0 %4009
  %4011 = vrot.lane.b32.xlu0 %v3991, 97
  %v4012 = vpop.permute.xlu0 %4011
  %4013 = vrot.lane.b32.xlu0 %v3992, 97
  %v4014 = vpop.permute.xlu0 %4013
  %4015 = vrot.lane.b32.xlu0 %v3993, 97
  %v4016 = vpop.permute.xlu0 %4015
  %4017 = vrot.lane.b32.xlu0 %v3994, 97
  %v4018 = vpop.permute.xlu0 %4017
  %v4019 = vsel %vm1435, %v4004, %v4006
  %v4020 = vsel %vm1435, %v4006, %v4008
  %v4021 = vsel %vm1435, %v4008, %v4010
  %v4022 = vsel %vm1435, %v4012, %v4014
  %v4023 = vsel %vm1435, %v4014, %v4016
  %v4024 = vsel %vm1435, %v4016, %v4018
  %v4033 = vadd.f32 %v3979, %v4019
  %v4034 = vadd.f32 %v3980, %v4020
  %v4035 = vadd.f32 %v3981, %v4021
  %v4036 = vadd.f32 %v3982, %v4010
  %v4037 = vadd.f32 %v3983, %v4022
  %v4038 = vadd.f32 %v3984, %v4023
  %v4039 = vadd.f32 %v3985, %v4024
  %v4040 = vadd.f32 %v3986, %v4018
  %v4041 = vmul.f32 %v1464, %v357
  %v4042 = vmul.f32 %v1464, %v358
  %v4043 = vmul.f32 %v1464, %v359
  %v4044 = vmul.f32 %v1464, %v360
  %v4045 = vmul.f32 %v1469, %v357
  %v4046 = vmul.f32 %v1469, %v358
  %v4047 = vmul.f32 %v1469, %v359
  %v4048 = vmul.f32 %v1469, %v360
  %4057 = vrot.lane.b32.xlu0 %v4041, 97
  %v4058 = vpop.permute.xlu0 %4057
  %4059 = vrot.lane.b32.xlu0 %v4042, 97
  %v4060 = vpop.permute.xlu0 %4059
  %4061 = vrot.lane.b32.xlu0 %v4043, 97
  %v4062 = vpop.permute.xlu0 %4061
  %4063 = vrot.lane.b32.xlu0 %v4044, 97
  %v4064 = vpop.permute.xlu0 %4063
  %4065 = vrot.lane.b32.xlu0 %v4045, 97
  %v4066 = vpop.permute.xlu0 %4065
  %4067 = vrot.lane.b32.xlu0 %v4046, 97
  %v4068 = vpop.permute.xlu0 %4067
  %4069 = vrot.lane.b32.xlu0 %v4047, 97
  %v4070 = vpop.permute.xlu0 %4069
  %4071 = vrot.lane.b32.xlu0 %v4048, 97
  %v4072 = vpop.permute.xlu0 %4071
  %v4073 = vsel %vm1435, %v4058, %v4060
  %v4074 = vsel %vm1435, %v4060, %v4062
  %v4075 = vsel %vm1435, %v4062, %v4064
  %v4076 = vsel %vm1435, %v4066, %v4068
  %v4077 = vsel %vm1435, %v4068, %v4070
  %v4078 = vsel %vm1435, %v4070, %v4072
  %v4087 = vadd.f32 %v4033, %v4073
  %v4088 = vadd.f32 %v4034, %v4074
  %v4089 = vadd.f32 %v4035, %v4075
  %v4090 = vadd.f32 %v4036, %v4064
  %v4091 = vadd.f32 %v4037, %v4076
  %v4092 = vadd.f32 %v4038, %v4077
  %v4093 = vadd.f32 %v4039, %v4078
  %v4094 = vadd.f32 %v4040, %v4072
  %v4095 = vmul.f32 %v1531, %v318
  %v4096 = vmul.f32 %v1531, %v319
  %v4097 = vmul.f32 %v1531, %v320
  %v4098 = vmul.f32 %v1531, %v321
  %v4099 = vmul.f32 %v1536, %v318
  %v4100 = vmul.f32 %v1536, %v319
  %v4101 = vmul.f32 %v1536, %v320
  %v4102 = vmul.f32 %v1536, %v321
  %4111 = vrot.lane.b32.xlu0 %v4095, 96
  %v4112 = vpop.permute.xlu0 %4111
  %4113 = vrot.lane.b32.xlu0 %v4096, 96
  %v4114 = vpop.permute.xlu0 %4113
  %4115 = vrot.lane.b32.xlu0 %v4097, 96
  %v4116 = vpop.permute.xlu0 %4115
  %4117 = vrot.lane.b32.xlu0 %v4098, 96
  %v4118 = vpop.permute.xlu0 %4117
  %4119 = vrot.lane.b32.xlu0 %v4099, 96
  %v4120 = vpop.permute.xlu0 %4119
  %4121 = vrot.lane.b32.xlu0 %v4100, 96
  %v4122 = vpop.permute.xlu0 %4121
  %4123 = vrot.lane.b32.xlu0 %v4101, 96
  %v4124 = vpop.permute.xlu0 %4123
  %4125 = vrot.lane.b32.xlu0 %v4102, 96
  %v4126 = vpop.permute.xlu0 %4125
  %v4127 = vsel %vm1570, %v4112, %v4114
  %v4128 = vsel %vm1570, %v4114, %v4116
  %v4129 = vsel %vm1570, %v4116, %v4118
  %v4130 = vsel %vm1570, %v4120, %v4122
  %v4131 = vsel %vm1570, %v4122, %v4124
  %v4132 = vsel %vm1570, %v4124, %v4126
  %v4141 = vadd.f32 %v4087, %v4127
  %v4142 = vadd.f32 %v4088, %v4128
  %v4143 = vadd.f32 %v4089, %v4129
  %v4144 = vadd.f32 %v4090, %v4118
  %v4145 = vadd.f32 %v4091, %v4130
  %v4146 = vadd.f32 %v4092, %v4131
  %v4147 = vadd.f32 %v4093, %v4132
  %v4148 = vadd.f32 %v4094, %v4126
  %v4149 = vmax.f32 %v2867, %v4141
  %v4150 = vmax.f32 %v2868, %v4142
  %v4151 = vmax.f32 %v2869, %v4143
  %v4152 = vmax.f32 %v2870, %v4144
  %v4153 = vmax.f32 %v2871, %v4145
  %v4154 = vmax.f32 %v2872, %v4146
  %v4155 = vmax.f32 %v2873, %v4147
  %v4156 = vmax.f32 %v2874, %v4148
  %v4157 = vmul.f32 %v29, %v357
  %v4158 = vmul.f32 %v29, %v358
  %v4159 = vmul.f32 %v29, %v359
  %v4160 = vmul.f32 %v29, %v360
  %v4161 = vmul.f32 %v34, %v357
  %v4162 = vmul.f32 %v34, %v358
  %v4163 = vmul.f32 %v34, %v359
  %v4164 = vmul.f32 %v34, %v360
  %v4165 = vadd.f32 %v4157, 0.0
  %v4166 = vadd.f32 %v4158, 0.0
  %v4167 = vadd.f32 %v4159, 0.0
  %v4168 = vadd.f32 %v4160, 0.0
  %v4169 = vadd.f32 %v4161, 0.0
  %v4170 = vadd.f32 %v4162, 0.0
  %v4171 = vadd.f32 %v4163, 0.0
  %v4172 = vadd.f32 %v4164, 0.0
  %v4173 = vmul.f32 %v68, %v318
  %v4174 = vmul.f32 %v68, %v319
  %v4175 = vmul.f32 %v68, %v320
  %v4176 = vmul.f32 %v68, %v321
  %v4177 = vmul.f32 %v73, %v318
  %v4178 = vmul.f32 %v73, %v319
  %v4179 = vmul.f32 %v73, %v320
  %v4180 = vmul.f32 %v73, %v321
  %4189 = vrot.lane.b32.xlu0 %v4173, 127
  %v4190 = vpop.permute.xlu0 %4189
  %4191 = vrot.lane.b32.xlu0 %v4174, 127
  %v4192 = vpop.permute.xlu0 %4191
  %4193 = vrot.lane.b32.xlu0 %v4175, 127
  %v4194 = vpop.permute.xlu0 %4193
  %4195 = vrot.lane.b32.xlu0 %v4176, 127
  %v4196 = vpop.permute.xlu0 %4195
  %4197 = vrot.lane.b32.xlu0 %v4177, 127
  %v4198 = vpop.permute.xlu0 %4197
  %4199 = vrot.lane.b32.xlu0 %v4178, 127
  %v4200 = vpop.permute.xlu0 %4199
  %4201 = vrot.lane.b32.xlu0 %v4179, 127
  %v4202 = vpop.permute.xlu0 %4201
  %4203 = vrot.lane.b32.xlu0 %v4180, 127
  %v4204 = vpop.permute.xlu0 %4203
  %v4205 = vsel %vm145, %v4190, %v4192
  %v4206 = vsel %vm145, %v4192, %v4194
  %v4207 = vsel %vm145, %v4194, %v4196
  %v4208 = vsel %vm145, %v4198, %v4200
  %v4209 = vsel %vm145, %v4200, %v4202
  %v4210 = vsel %vm145, %v4202, %v4204
  %v4219 = vadd.f32 %v4165, %v4205
  %v4220 = vadd.f32 %v4166, %v4206
  %v4221 = vadd.f32 %v4167, %v4207
  %v4222 = vadd.f32 %v4168, %v4196
  %v4223 = vadd.f32 %v4169, %v4208
  %v4224 = vadd.f32 %v4170, %v4209
  %v4225 = vadd.f32 %v4171, %v4210
  %v4226 = vadd.f32 %v4172, %v4204
  %v4227 = vmul.f32 %v106, %v357
  %v4228 = vmul.f32 %v106, %v358
  %v4229 = vmul.f32 %v106, %v359
  %v4230 = vmul.f32 %v106, %v360
  %v4231 = vmul.f32 %v111, %v357
  %v4232 = vmul.f32 %v111, %v358
  %v4233 = vmul.f32 %v111, %v359
  %v4234 = vmul.f32 %v111, %v360
  %4243 = vrot.lane.b32.xlu0 %v4227, 127
  %v4244 = vpop.permute.xlu0 %4243
  %4245 = vrot.lane.b32.xlu0 %v4228, 127
  %v4246 = vpop.permute.xlu0 %4245
  %4247 = vrot.lane.b32.xlu0 %v4229, 127
  %v4248 = vpop.permute.xlu0 %4247
  %4249 = vrot.lane.b32.xlu0 %v4230, 127
  %v4250 = vpop.permute.xlu0 %4249
  %4251 = vrot.lane.b32.xlu0 %v4231, 127
  %v4252 = vpop.permute.xlu0 %4251
  %4253 = vrot.lane.b32.xlu0 %v4232, 127
  %v4254 = vpop.permute.xlu0 %4253
  %4255 = vrot.lane.b32.xlu0 %v4233, 127
  %v4256 = vpop.permute.xlu0 %4255
  %4257 = vrot.lane.b32.xlu0 %v4234, 127
  %v4258 = vpop.permute.xlu0 %4257
  %v4259 = vsel %vm145, %v4244, %v4246
  %v4260 = vsel %vm145, %v4246, %v4248
  %v4261 = vsel %vm145, %v4248, %v4250
  %v4262 = vsel %vm145, %v4252, %v4254
  %v4263 = vsel %vm145, %v4254, %v4256
  %v4264 = vsel %vm145, %v4256, %v4258
  %v4273 = vadd.f32 %v4219, %v4259
  %v4274 = vadd.f32 %v4220, %v4260
  %v4275 = vadd.f32 %v4221, %v4261
  %v4276 = vadd.f32 %v4222, %v4250
  %v4277 = vadd.f32 %v4223, %v4262
  %v4278 = vadd.f32 %v4224, %v4263
  %v4279 = vadd.f32 %v4225, %v4264
  %v4280 = vadd.f32 %v4226, %v4258
  %v4281 = vmul.f32 %v174, %v318
  %v4282 = vmul.f32 %v174, %v319
  %v4283 = vmul.f32 %v174, %v320
  %v4284 = vmul.f32 %v174, %v321
  %v4285 = vmul.f32 %v179, %v318
  %v4286 = vmul.f32 %v179, %v319
  %v4287 = vmul.f32 %v179, %v320
  %v4288 = vmul.f32 %v179, %v321
  %4297 = vrot.lane.b32.xlu0 %v4281, 126
  %v4298 = vpop.permute.xlu0 %4297
  %4299 = vrot.lane.b32.xlu0 %v4282, 126
  %v4300 = vpop.permute.xlu0 %4299
  %4301 = vrot.lane.b32.xlu0 %v4283, 126
  %v4302 = vpop.permute.xlu0 %4301
  %4303 = vrot.lane.b32.xlu0 %v4284, 126
  %v4304 = vpop.permute.xlu0 %4303
  %4305 = vrot.lane.b32.xlu0 %v4285, 126
  %v4306 = vpop.permute.xlu0 %4305
  %4307 = vrot.lane.b32.xlu0 %v4286, 126
  %v4308 = vpop.permute.xlu0 %4307
  %4309 = vrot.lane.b32.xlu0 %v4287, 126
  %v4310 = vpop.permute.xlu0 %4309
  %4311 = vrot.lane.b32.xlu0 %v4288, 126
  %v4312 = vpop.permute.xlu0 %4311
  %v4313 = vsel %vm280, %v4298, %v4300
  %v4314 = vsel %vm280, %v4300, %v4302
  %v4315 = vsel %vm280, %v4302, %v4304
  %v4316 = vsel %vm280, %v4306, %v4308
  %v4317 = vsel %vm280, %v4308, %v4310
  %v4318 = vsel %vm280, %v4310, %v4312
  %v4327 = vadd.f32 %v4273, %v4313
  %v4328 = vadd.f32 %v4274, %v4314
  %v4329 = vadd.f32 %v4275, %v4315
  %v4330 = vadd.f32 %v4276, %v4304
  %v4331 = vadd.f32 %v4277, %v4316
  %v4332 = vadd.f32 %v4278, %v4317
  %v4333 = vadd.f32 %v4279, %v4318
  %v4334 = vadd.f32 %v4280, %v4312
  %v4335 = vmul.f32 %v241, %v357
  %v4336 = vmul.f32 %v241, %v358
  %v4337 = vmul.f32 %v241, %v359
  %v4338 = vmul.f32 %v241, %v360
  %v4339 = vmul.f32 %v246, %v357
  %v4340 = vmul.f32 %v246, %v358
  %v4341 = vmul.f32 %v246, %v359
  %v4342 = vmul.f32 %v246, %v360
  %4351 = vrot.lane.b32.xlu0 %v4335, 126
  %v4352 = vpop.permute.xlu0 %4351
  %4353 = vrot.lane.b32.xlu0 %v4336, 126
  %v4354 = vpop.permute.xlu0 %4353
  %4355 = vrot.lane.b32.xlu0 %v4337, 126
  %v4356 = vpop.permute.xlu0 %4355
  %4357 = vrot.lane.b32.xlu0 %v4338, 126
  %v4358 = vpop.permute.xlu0 %4357
  %4359 = vrot.lane.b32.xlu0 %v4339, 126
  %v4360 = vpop.permute.xlu0 %4359
  %4361 = vrot.lane.b32.xlu0 %v4340, 126
  %v4362 = vpop.permute.xlu0 %4361
  %4363 = vrot.lane.b32.xlu0 %v4341, 126
  %v4364 = vpop.permute.xlu0 %4363
  %4365 = vrot.lane.b32.xlu0 %v4342, 126
  %v4366 = vpop.permute.xlu0 %4365
  %v4367 = vsel %vm280, %v4352, %v4354
  %v4368 = vsel %vm280, %v4354, %v4356
  %v4369 = vsel %vm280, %v4356, %v4358
  %v4370 = vsel %vm280, %v4360, %v4362
  %v4371 = vsel %vm280, %v4362, %v4364
  %v4372 = vsel %vm280, %v4364, %v4366
  %v4381 = vadd.f32 %v4327, %v4367
  %v4382 = vadd.f32 %v4328, %v4368
  %v4383 = vadd.f32 %v4329, %v4369
  %v4384 = vadd.f32 %v4330, %v4358
  %v4385 = vadd.f32 %v4331, %v4370
  %v4386 = vadd.f32 %v4332, %v4371
  %v4387 = vadd.f32 %v4333, %v4372
  %v4388 = vadd.f32 %v4334, %v4366
  %v4389 = vmul.f32 %v310, %v76
  %v4390 = vmul.f32 %v310, %v77
  %v4391 = vmul.f32 %v310, %v78
  %v4392 = vmul.f32 %v310, %v79
  %v4393 = vmul.f32 %v315, %v76
  %v4394 = vmul.f32 %v315, %v77
  %v4395 = vmul.f32 %v315, %v78
  %v4396 = vmul.f32 %v315, %v79
  %4405 = vrot.lane.b32.xlu0 %v4389, 113
  %v4406 = vpop.permute.xlu0 %4405
  %4407 = vrot.lane.b32.xlu0 %v4390, 113
  %v4408 = vpop.permute.xlu0 %4407
  %4409 = vrot.lane.b32.xlu0 %v4391, 113
  %v4410 = vpop.permute.xlu0 %4409
  %4411 = vrot.lane.b32.xlu0 %v4392, 113
  %v4412 = vpop.permute.xlu0 %4411
  %4413 = vrot.lane.b32.xlu0 %v4393, 113
  %v4414 = vpop.permute.xlu0 %4413
  %4415 = vrot.lane.b32.xlu0 %v4394, 113
  %v4416 = vpop.permute.xlu0 %4415
  %4417 = vrot.lane.b32.xlu0 %v4395, 113
  %v4418 = vpop.permute.xlu0 %4417
  %4419 = vrot.lane.b32.xlu0 %v4396, 113
  %v4420 = vpop.permute.xlu0 %4419
  %v4421 = vsel %vm627, %v4406, %v4408
  %v4422 = vsel %vm627, %v4408, %v4410
  %v4423 = vsel %vm627, %v4410, %v4412
  %v4424 = vsel %vm627, %v4414, %v4416
  %v4425 = vsel %vm627, %v4416, %v4418
  %v4426 = vsel %vm627, %v4418, %v4420
  %v4435 = vadd.f32 %v4381, %v4421
  %v4436 = vadd.f32 %v4382, %v4422
  %v4437 = vadd.f32 %v4383, %v4423
  %v4438 = vadd.f32 %v4384, %v4412
  %v4439 = vadd.f32 %v4385, %v4424
  %v4440 = vadd.f32 %v4386, %v4425
  %v4441 = vadd.f32 %v4387, %v4426
  %v4442 = vadd.f32 %v4388, %v4420
  %v4443 = vmul.f32 %v349, %v37
  %v4444 = vmul.f32 %v349, %v38
  %v4445 = vmul.f32 %v349, %v39
  %v4446 = vmul.f32 %v349, %v40
  %v4447 = vmul.f32 %v354, %v37
  %v4448 = vmul.f32 %v354, %v38
  %v4449 = vmul.f32 %v354, %v39
  %v4450 = vmul.f32 %v354, %v40
  %4459 = vrot.lane.b32.xlu0 %v4443, 112
  %v4460 = vpop.permute.xlu0 %4459
  %4461 = vrot.lane.b32.xlu0 %v4444, 112
  %v4462 = vpop.permute.xlu0 %4461
  %4463 = vrot.lane.b32.xlu0 %v4445, 112
  %v4464 = vpop.permute.xlu0 %4463
  %4465 = vrot.lane.b32.xlu0 %v4446, 112
  %v4466 = vpop.permute.xlu0 %4465
  %4467 = vrot.lane.b32.xlu0 %v4447, 112
  %v4468 = vpop.permute.xlu0 %4467
  %4469 = vrot.lane.b32.xlu0 %v4448, 112
  %v4470 = vpop.permute.xlu0 %4469
  %4471 = vrot.lane.b32.xlu0 %v4449, 112
  %v4472 = vpop.permute.xlu0 %4471
  %4473 = vrot.lane.b32.xlu0 %v4450, 112
  %v4474 = vpop.permute.xlu0 %4473
  %v4475 = vsel %vm762, %v4460, %v4462
  %v4476 = vsel %vm762, %v4462, %v4464
  %v4477 = vsel %vm762, %v4464, %v4466
  %v4478 = vsel %vm762, %v4468, %v4470
  %v4479 = vsel %vm762, %v4470, %v4472
  %v4480 = vsel %vm762, %v4472, %v4474
  %v4489 = vadd.f32 %v4435, %v4475
  %v4490 = vadd.f32 %v4436, %v4476
  %v4491 = vadd.f32 %v4437, %v4477
  %v4492 = vadd.f32 %v4438, %v4466
  %v4493 = vadd.f32 %v4439, %v4478
  %v4494 = vadd.f32 %v4440, %v4479
  %v4495 = vadd.f32 %v4441, %v4480
  %v4496 = vadd.f32 %v4442, %v4474
  %v4497 = vmul.f32 %v387, %v76
  %v4498 = vmul.f32 %v387, %v77
  %v4499 = vmul.f32 %v387, %v78
  %v4500 = vmul.f32 %v387, %v79
  %v4501 = vmul.f32 %v392, %v76
  %v4502 = vmul.f32 %v392, %v77
  %v4503 = vmul.f32 %v392, %v78
  %v4504 = vmul.f32 %v392, %v79
  %4513 = vrot.lane.b32.xlu0 %v4497, 112
  %v4514 = vpop.permute.xlu0 %4513
  %4515 = vrot.lane.b32.xlu0 %v4498, 112
  %v4516 = vpop.permute.xlu0 %4515
  %4517 = vrot.lane.b32.xlu0 %v4499, 112
  %v4518 = vpop.permute.xlu0 %4517
  %4519 = vrot.lane.b32.xlu0 %v4500, 112
  %v4520 = vpop.permute.xlu0 %4519
  %4521 = vrot.lane.b32.xlu0 %v4501, 112
  %v4522 = vpop.permute.xlu0 %4521
  %4523 = vrot.lane.b32.xlu0 %v4502, 112
  %v4524 = vpop.permute.xlu0 %4523
  %4525 = vrot.lane.b32.xlu0 %v4503, 112
  %v4526 = vpop.permute.xlu0 %4525
  %4527 = vrot.lane.b32.xlu0 %v4504, 112
  %v4528 = vpop.permute.xlu0 %4527
  %v4529 = vsel %vm762, %v4514, %v4516
  %v4530 = vsel %vm762, %v4516, %v4518
  %v4531 = vsel %vm762, %v4518, %v4520
  %v4532 = vsel %vm762, %v4522, %v4524
  %v4533 = vsel %vm762, %v4524, %v4526
  %v4534 = vsel %vm762, %v4526, %v4528
  %v4543 = vadd.f32 %v4489, %v4529
  %v4544 = vadd.f32 %v4490, %v4530
  %v4545 = vadd.f32 %v4491, %v4531
  %v4546 = vadd.f32 %v4492, %v4520
  %v4547 = vadd.f32 %v4493, %v4532
  %v4548 = vadd.f32 %v4494, %v4533
  %v4549 = vadd.f32 %v4495, %v4534
  %v4550 = vadd.f32 %v4496, %v4528
  %v4551 = vmul.f32 %v454, %v37
  %v4552 = vmul.f32 %v454, %v38
  %v4553 = vmul.f32 %v454, %v39
  %v4554 = vmul.f32 %v454, %v40
  %v4555 = vmul.f32 %v459, %v37
  %v4556 = vmul.f32 %v459, %v38
  %v4557 = vmul.f32 %v459, %v39
  %v4558 = vmul.f32 %v459, %v40
  %4567 = vrot.lane.b32.xlu0 %v4551, 111
  %v4568 = vpop.permute.xlu0 %4567
  %4569 = vrot.lane.b32.xlu0 %v4552, 111
  %v4570 = vpop.permute.xlu0 %4569
  %4571 = vrot.lane.b32.xlu0 %v4553, 111
  %v4572 = vpop.permute.xlu0 %4571
  %4573 = vrot.lane.b32.xlu0 %v4554, 111
  %v4574 = vpop.permute.xlu0 %4573
  %4575 = vrot.lane.b32.xlu0 %v4555, 111
  %v4576 = vpop.permute.xlu0 %4575
  %4577 = vrot.lane.b32.xlu0 %v4556, 111
  %v4578 = vpop.permute.xlu0 %4577
  %4579 = vrot.lane.b32.xlu0 %v4557, 111
  %v4580 = vpop.permute.xlu0 %4579
  %4581 = vrot.lane.b32.xlu0 %v4558, 111
  %v4582 = vpop.permute.xlu0 %4581
  %v4583 = vsel %vm897, %v4568, %v4570
  %v4584 = vsel %vm897, %v4570, %v4572
  %v4585 = vsel %vm897, %v4572, %v4574
  %v4586 = vsel %vm897, %v4576, %v4578
  %v4587 = vsel %vm897, %v4578, %v4580
  %v4588 = vsel %vm897, %v4580, %v4582
  %v4597 = vadd.f32 %v4543, %v4583
  %v4598 = vadd.f32 %v4544, %v4584
  %v4599 = vadd.f32 %v4545, %v4585
  %v4600 = vadd.f32 %v4546, %v4574
  %v4601 = vadd.f32 %v4547, %v4586
  %v4602 = vadd.f32 %v4548, %v4587
  %v4603 = vadd.f32 %v4549, %v4588
  %v4604 = vadd.f32 %v4550, %v4582
  %v4605 = vmul.f32 %v521, %v76
  %v4606 = vmul.f32 %v521, %v77
  %v4607 = vmul.f32 %v521, %v78
  %v4608 = vmul.f32 %v521, %v79
  %v4609 = vmul.f32 %v526, %v76
  %v4610 = vmul.f32 %v526, %v77
  %v4611 = vmul.f32 %v526, %v78
  %v4612 = vmul.f32 %v526, %v79
  %4621 = vrot.lane.b32.xlu0 %v4605, 111
  %v4622 = vpop.permute.xlu0 %4621
  %4623 = vrot.lane.b32.xlu0 %v4606, 111
  %v4624 = vpop.permute.xlu0 %4623
  %4625 = vrot.lane.b32.xlu0 %v4607, 111
  %v4626 = vpop.permute.xlu0 %4625
  %4627 = vrot.lane.b32.xlu0 %v4608, 111
  %v4628 = vpop.permute.xlu0 %4627
  %4629 = vrot.lane.b32.xlu0 %v4609, 111
  %v4630 = vpop.permute.xlu0 %4629
  %4631 = vrot.lane.b32.xlu0 %v4610, 111
  %v4632 = vpop.permute.xlu0 %4631
  %4633 = vrot.lane.b32.xlu0 %v4611, 111
  %v4634 = vpop.permute.xlu0 %4633
  %4635 = vrot.lane.b32.xlu0 %v4612, 111
  %v4636 = vpop.permute.xlu0 %4635
  %v4637 = vsel %vm897, %v4622, %v4624
  %v4638 = vsel %vm897, %v4624, %v4626
  %v4639 = vsel %vm897, %v4626, %v4628
  %v4640 = vsel %vm897, %v4630, %v4632
  %v4641 = vsel %vm897, %v4632, %v4634
  %v4642 = vsel %vm897, %v4634, %v4636
  %v4651 = vadd.f32 %v4597, %v4637
  %v4652 = vadd.f32 %v4598, %v4638
  %v4653 = vadd.f32 %v4599, %v4639
  %v4654 = vadd.f32 %v4600, %v4628
  %v4655 = vadd.f32 %v4601, %v4640
  %v4656 = vadd.f32 %v4602, %v4641
  %v4657 = vadd.f32 %v4603, %v4642
  %v4658 = vadd.f32 %v4604, %v4636
  %v4659 = vmul.f32 %v588, %v357
  %v4660 = vmul.f32 %v588, %v358
  %v4661 = vmul.f32 %v588, %v359
  %v4662 = vmul.f32 %v588, %v360
  %v4663 = vmul.f32 %v593, %v357
  %v4664 = vmul.f32 %v593, %v358
  %v4665 = vmul.f32 %v593, %v359
  %v4666 = vmul.f32 %v593, %v360
  %4675 = vrot.lane.b32.xlu0 %v4659, 113
  %v4676 = vpop.permute.xlu0 %4675
  %4677 = vrot.lane.b32.xlu0 %v4660, 113
  %v4678 = vpop.permute.xlu0 %4677
  %4679 = vrot.lane.b32.xlu0 %v4661, 113
  %v4680 = vpop.permute.xlu0 %4679
  %4681 = vrot.lane.b32.xlu0 %v4662, 113
  %v4682 = vpop.permute.xlu0 %4681
  %4683 = vrot.lane.b32.xlu0 %v4663, 113
  %v4684 = vpop.permute.xlu0 %4683
  %4685 = vrot.lane.b32.xlu0 %v4664, 113
  %v4686 = vpop.permute.xlu0 %4685
  %4687 = vrot.lane.b32.xlu0 %v4665, 113
  %v4688 = vpop.permute.xlu0 %4687
  %4689 = vrot.lane.b32.xlu0 %v4666, 113
  %v4690 = vpop.permute.xlu0 %4689
  %v4691 = vsel %vm627, %v4676, %v4678
  %v4692 = vsel %vm627, %v4678, %v4680
  %v4693 = vsel %vm627, %v4680, %v4682
  %v4694 = vsel %vm627, %v4684, %v4686
  %v4695 = vsel %vm627, %v4686, %v4688
  %v4696 = vsel %vm627, %v4688, %v4690
  %v4705 = vadd.f32 %v4651, %v4691
  %v4706 = vadd.f32 %v4652, %v4692
  %v4707 = vadd.f32 %v4653, %v4693
  %v4708 = vadd.f32 %v4654, %v4682
  %v4709 = vadd.f32 %v4655, %v4694
  %v4710 = vadd.f32 %v4656, %v4695
  %v4711 = vadd.f32 %v4657, %v4696
  %v4712 = vadd.f32 %v4658, %v4690
  %v4713 = vmul.f32 %v656, %v318
  %v4714 = vmul.f32 %v656, %v319
  %v4715 = vmul.f32 %v656, %v320
  %v4716 = vmul.f32 %v656, %v321
  %v4717 = vmul.f32 %v661, %v318
  %v4718 = vmul.f32 %v661, %v319
  %v4719 = vmul.f32 %v661, %v320
  %v4720 = vmul.f32 %v661, %v321
  %4729 = vrot.lane.b32.xlu0 %v4713, 112
  %v4730 = vpop.permute.xlu0 %4729
  %4731 = vrot.lane.b32.xlu0 %v4714, 112
  %v4732 = vpop.permute.xlu0 %4731
  %4733 = vrot.lane.b32.xlu0 %v4715, 112
  %v4734 = vpop.permute.xlu0 %4733
  %4735 = vrot.lane.b32.xlu0 %v4716, 112
  %v4736 = vpop.permute.xlu0 %4735
  %4737 = vrot.lane.b32.xlu0 %v4717, 112
  %v4738 = vpop.permute.xlu0 %4737
  %4739 = vrot.lane.b32.xlu0 %v4718, 112
  %v4740 = vpop.permute.xlu0 %4739
  %4741 = vrot.lane.b32.xlu0 %v4719, 112
  %v4742 = vpop.permute.xlu0 %4741
  %4743 = vrot.lane.b32.xlu0 %v4720, 112
  %v4744 = vpop.permute.xlu0 %4743
  %v4745 = vsel %vm762, %v4730, %v4732
  %v4746 = vsel %vm762, %v4732, %v4734
  %v4747 = vsel %vm762, %v4734, %v4736
  %v4748 = vsel %vm762, %v4738, %v4740
  %v4749 = vsel %vm762, %v4740, %v4742
  %v4750 = vsel %vm762, %v4742, %v4744
  %v4759 = vadd.f32 %v4705, %v4745
  %v4760 = vadd.f32 %v4706, %v4746
  %v4761 = vadd.f32 %v4707, %v4747
  %v4762 = vadd.f32 %v4708, %v4736
  %v4763 = vadd.f32 %v4709, %v4748
  %v4764 = vadd.f32 %v4710, %v4749
  %v4765 = vadd.f32 %v4711, %v4750
  %v4766 = vadd.f32 %v4712, %v4744
  %v4767 = vmul.f32 %v723, %v357
  %v4768 = vmul.f32 %v723, %v358
  %v4769 = vmul.f32 %v723, %v359
  %v4770 = vmul.f32 %v723, %v360
  %v4771 = vmul.f32 %v728, %v357
  %v4772 = vmul.f32 %v728, %v358
  %v4773 = vmul.f32 %v728, %v359
  %v4774 = vmul.f32 %v728, %v360
  %4783 = vrot.lane.b32.xlu0 %v4767, 112
  %v4784 = vpop.permute.xlu0 %4783
  %4785 = vrot.lane.b32.xlu0 %v4768, 112
  %v4786 = vpop.permute.xlu0 %4785
  %4787 = vrot.lane.b32.xlu0 %v4769, 112
  %v4788 = vpop.permute.xlu0 %4787
  %4789 = vrot.lane.b32.xlu0 %v4770, 112
  %v4790 = vpop.permute.xlu0 %4789
  %4791 = vrot.lane.b32.xlu0 %v4771, 112
  %v4792 = vpop.permute.xlu0 %4791
  %4793 = vrot.lane.b32.xlu0 %v4772, 112
  %v4794 = vpop.permute.xlu0 %4793
  %4795 = vrot.lane.b32.xlu0 %v4773, 112
  %v4796 = vpop.permute.xlu0 %4795
  %4797 = vrot.lane.b32.xlu0 %v4774, 112
  %v4798 = vpop.permute.xlu0 %4797
  %v4799 = vsel %vm762, %v4784, %v4786
  %v4800 = vsel %vm762, %v4786, %v4788
  %v4801 = vsel %vm762, %v4788, %v4790
  %v4802 = vsel %vm762, %v4792, %v4794
  %v4803 = vsel %vm762, %v4794, %v4796
  %v4804 = vsel %vm762, %v4796, %v4798
  %v4813 = vadd.f32 %v4759, %v4799
  %v4814 = vadd.f32 %v4760, %v4800
  %v4815 = vadd.f32 %v4761, %v4801
  %v4816 = vadd.f32 %v4762, %v4790
  %v4817 = vadd.f32 %v4763, %v4802
  %v4818 = vadd.f32 %v4764, %v4803
  %v4819 = vadd.f32 %v4765, %v4804
  %v4820 = vadd.f32 %v4766, %v4798
  %v4821 = vmul.f32 %v791, %v318
  %v4822 = vmul.f32 %v791, %v319
  %v4823 = vmul.f32 %v791, %v320
  %v4824 = vmul.f32 %v791, %v321
  %v4825 = vmul.f32 %v796, %v318
  %v4826 = vmul.f32 %v796, %v319
  %v4827 = vmul.f32 %v796, %v320
  %v4828 = vmul.f32 %v796, %v321
  %4837 = vrot.lane.b32.xlu0 %v4821, 111
  %v4838 = vpop.permute.xlu0 %4837
  %4839 = vrot.lane.b32.xlu0 %v4822, 111
  %v4840 = vpop.permute.xlu0 %4839
  %4841 = vrot.lane.b32.xlu0 %v4823, 111
  %v4842 = vpop.permute.xlu0 %4841
  %4843 = vrot.lane.b32.xlu0 %v4824, 111
  %v4844 = vpop.permute.xlu0 %4843
  %4845 = vrot.lane.b32.xlu0 %v4825, 111
  %v4846 = vpop.permute.xlu0 %4845
  %4847 = vrot.lane.b32.xlu0 %v4826, 111
  %v4848 = vpop.permute.xlu0 %4847
  %4849 = vrot.lane.b32.xlu0 %v4827, 111
  %v4850 = vpop.permute.xlu0 %4849
  %4851 = vrot.lane.b32.xlu0 %v4828, 111
  %v4852 = vpop.permute.xlu0 %4851
  %v4853 = vsel %vm897, %v4838, %v4840
  %v4854 = vsel %vm897, %v4840, %v4842
  %v4855 = vsel %vm897, %v4842, %v4844
  %v4856 = vsel %vm897, %v4846, %v4848
  %v4857 = vsel %vm897, %v4848, %v4850
  %v4858 = vsel %vm897, %v4850, %v4852
  %v4867 = vadd.f32 %v4813, %v4853
  %v4868 = vadd.f32 %v4814, %v4854
  %v4869 = vadd.f32 %v4815, %v4855
  %v4870 = vadd.f32 %v4816, %v4844
  %v4871 = vadd.f32 %v4817, %v4856
  %v4872 = vadd.f32 %v4818, %v4857
  %v4873 = vadd.f32 %v4819, %v4858
  %v4874 = vadd.f32 %v4820, %v4852
  %v4875 = vmul.f32 %v858, %v357
  %v4876 = vmul.f32 %v858, %v358
  %v4877 = vmul.f32 %v858, %v359
  %v4878 = vmul.f32 %v858, %v360
  %v4879 = vmul.f32 %v863, %v357
  %v4880 = vmul.f32 %v863, %v358
  %v4881 = vmul.f32 %v863, %v359
  %v4882 = vmul.f32 %v863, %v360
  %4891 = vrot.lane.b32.xlu0 %v4875, 111
  %v4892 = vpop.permute.xlu0 %4891
  %4893 = vrot.lane.b32.xlu0 %v4876, 111
  %v4894 = vpop.permute.xlu0 %4893
  %4895 = vrot.lane.b32.xlu0 %v4877, 111
  %v4896 = vpop.permute.xlu0 %4895
  %4897 = vrot.lane.b32.xlu0 %v4878, 111
  %v4898 = vpop.permute.xlu0 %4897
  %4899 = vrot.lane.b32.xlu0 %v4879, 111
  %v4900 = vpop.permute.xlu0 %4899
  %4901 = vrot.lane.b32.xlu0 %v4880, 111
  %v4902 = vpop.permute.xlu0 %4901
  %4903 = vrot.lane.b32.xlu0 %v4881, 111
  %v4904 = vpop.permute.xlu0 %4903
  %4905 = vrot.lane.b32.xlu0 %v4882, 111
  %v4906 = vpop.permute.xlu0 %4905
  %v4907 = vsel %vm897, %v4892, %v4894
  %v4908 = vsel %vm897, %v4894, %v4896
  %v4909 = vsel %vm897, %v4896, %v4898
  %v4910 = vsel %vm897, %v4900, %v4902
  %v4911 = vsel %vm897, %v4902, %v4904
  %v4912 = vsel %vm897, %v4904, %v4906
  %v4921 = vadd.f32 %v4867, %v4907
  %v4922 = vadd.f32 %v4868, %v4908
  %v4923 = vadd.f32 %v4869, %v4909
  %v4924 = vadd.f32 %v4870, %v4898
  %v4925 = vadd.f32 %v4871, %v4910
  %v4926 = vadd.f32 %v4872, %v4911
  %v4927 = vadd.f32 %v4873, %v4912
  %v4928 = vadd.f32 %v4874, %v4906
  %v4929 = vmul.f32 %v926, %v76
  %v4930 = vmul.f32 %v926, %v77
  %v4931 = vmul.f32 %v926, %v78
  %v4932 = vmul.f32 %v926, %v79
  %v4933 = vmul.f32 %v931, %v76
  %v4934 = vmul.f32 %v931, %v77
  %v4935 = vmul.f32 %v931, %v78
  %v4936 = vmul.f32 %v931, %v79
  %4945 = vrot.lane.b32.xlu0 %v4929, 98
  %v4946 = vpop.permute.xlu0 %4945
  %4947 = vrot.lane.b32.xlu0 %v4930, 98
  %v4948 = vpop.permute.xlu0 %4947
  %4949 = vrot.lane.b32.xlu0 %v4931, 98
  %v4950 = vpop.permute.xlu0 %4949
  %4951 = vrot.lane.b32.xlu0 %v4932, 98
  %v4952 = vpop.permute.xlu0 %4951
  %4953 = vrot.lane.b32.xlu0 %v4933, 98
  %v4954 = vpop.permute.xlu0 %4953
  %4955 = vrot.lane.b32.xlu0 %v4934, 98
  %v4956 = vpop.permute.xlu0 %4955
  %4957 = vrot.lane.b32.xlu0 %v4935, 98
  %v4958 = vpop.permute.xlu0 %4957
  %4959 = vrot.lane.b32.xlu0 %v4936, 98
  %v4960 = vpop.permute.xlu0 %4959
  %v4961 = vsel %vm1300, %v4946, %v4948
  %v4962 = vsel %vm1300, %v4948, %v4950
  %v4963 = vsel %vm1300, %v4950, %v4952
  %v4964 = vsel %vm1300, %v4954, %v4956
  %v4965 = vsel %vm1300, %v4956, %v4958
  %v4966 = vsel %vm1300, %v4958, %v4960
  %v4975 = vadd.f32 %v4921, %v4961
  %v4976 = vadd.f32 %v4922, %v4962
  %v4977 = vadd.f32 %v4923, %v4963
  %v4978 = vadd.f32 %v4924, %v4952
  %v4979 = vadd.f32 %v4925, %v4964
  %v4980 = vadd.f32 %v4926, %v4965
  %v4981 = vadd.f32 %v4927, %v4966
  %v4982 = vadd.f32 %v4928, %v4960
  %v4983 = vmul.f32 %v993, %v37
  %v4984 = vmul.f32 %v993, %v38
  %v4985 = vmul.f32 %v993, %v39
  %v4986 = vmul.f32 %v993, %v40
  %v4987 = vmul.f32 %v998, %v37
  %v4988 = vmul.f32 %v998, %v38
  %v4989 = vmul.f32 %v998, %v39
  %v4990 = vmul.f32 %v998, %v40
  %4999 = vrot.lane.b32.xlu0 %v4983, 97
  %v5000 = vpop.permute.xlu0 %4999
  %5001 = vrot.lane.b32.xlu0 %v4984, 97
  %v5002 = vpop.permute.xlu0 %5001
  %5003 = vrot.lane.b32.xlu0 %v4985, 97
  %v5004 = vpop.permute.xlu0 %5003
  %5005 = vrot.lane.b32.xlu0 %v4986, 97
  %v5006 = vpop.permute.xlu0 %5005
  %5007 = vrot.lane.b32.xlu0 %v4987, 97
  %v5008 = vpop.permute.xlu0 %5007
  %5009 = vrot.lane.b32.xlu0 %v4988, 97
  %v5010 = vpop.permute.xlu0 %5009
  %5011 = vrot.lane.b32.xlu0 %v4989, 97
  %v5012 = vpop.permute.xlu0 %5011
  %5013 = vrot.lane.b32.xlu0 %v4990, 97
  %v5014 = vpop.permute.xlu0 %5013
  %v5015 = vsel %vm1435, %v5000, %v5002
  %v5016 = vsel %vm1435, %v5002, %v5004
  %v5017 = vsel %vm1435, %v5004, %v5006
  %v5018 = vsel %vm1435, %v5008, %v5010
  %v5019 = vsel %vm1435, %v5010, %v5012
  %v5020 = vsel %vm1435, %v5012, %v5014
  %v5029 = vadd.f32 %v4975, %v5015
  %v5030 = vadd.f32 %v4976, %v5016
  %v5031 = vadd.f32 %v4977, %v5017
  %v5032 = vadd.f32 %v4978, %v5006
  %v5033 = vadd.f32 %v4979, %v5018
  %v5034 = vadd.f32 %v4980, %v5019
  %v5035 = vadd.f32 %v4981, %v5020
  %v5036 = vadd.f32 %v4982, %v5014
  %v5037 = vmul.f32 %v1060, %v76
  %v5038 = vmul.f32 %v1060, %v77
  %v5039 = vmul.f32 %v1060, %v78
  %v5040 = vmul.f32 %v1060, %v79
  %v5041 = vmul.f32 %v1065, %v76
  %v5042 = vmul.f32 %v1065, %v77
  %v5043 = vmul.f32 %v1065, %v78
  %v5044 = vmul.f32 %v1065, %v79
  %5053 = vrot.lane.b32.xlu0 %v5037, 97
  %v5054 = vpop.permute.xlu0 %5053
  %5055 = vrot.lane.b32.xlu0 %v5038, 97
  %v5056 = vpop.permute.xlu0 %5055
  %5057 = vrot.lane.b32.xlu0 %v5039, 97
  %v5058 = vpop.permute.xlu0 %5057
  %5059 = vrot.lane.b32.xlu0 %v5040, 97
  %v5060 = vpop.permute.xlu0 %5059
  %5061 = vrot.lane.b32.xlu0 %v5041, 97
  %v5062 = vpop.permute.xlu0 %5061
  %5063 = vrot.lane.b32.xlu0 %v5042, 97
  %v5064 = vpop.permute.xlu0 %5063
  %5065 = vrot.lane.b32.xlu0 %v5043, 97
  %v5066 = vpop.permute.xlu0 %5065
  %5067 = vrot.lane.b32.xlu0 %v5044, 97
  %v5068 = vpop.permute.xlu0 %5067
  %v5069 = vsel %vm1435, %v5054, %v5056
  %v5070 = vsel %vm1435, %v5056, %v5058
  %v5071 = vsel %vm1435, %v5058, %v5060
  %v5072 = vsel %vm1435, %v5062, %v5064
  %v5073 = vsel %vm1435, %v5064, %v5066
  %v5074 = vsel %vm1435, %v5066, %v5068
  %v5083 = vadd.f32 %v5029, %v5069
  %v5084 = vadd.f32 %v5030, %v5070
  %v5085 = vadd.f32 %v5031, %v5071
  %v5086 = vadd.f32 %v5032, %v5060
  %v5087 = vadd.f32 %v5033, %v5072
  %v5088 = vadd.f32 %v5034, %v5073
  %v5089 = vadd.f32 %v5035, %v5074
  %v5090 = vadd.f32 %v5036, %v5068
  %v5091 = vmul.f32 %v1127, %v37
  %v5092 = vmul.f32 %v1127, %v38
  %v5093 = vmul.f32 %v1127, %v39
  %v5094 = vmul.f32 %v1127, %v40
  %v5095 = vmul.f32 %v1132, %v37
  %v5096 = vmul.f32 %v1132, %v38
  %v5097 = vmul.f32 %v1132, %v39
  %v5098 = vmul.f32 %v1132, %v40
  %5107 = vrot.lane.b32.xlu0 %v5091, 96
  %v5108 = vpop.permute.xlu0 %5107
  %5109 = vrot.lane.b32.xlu0 %v5092, 96
  %v5110 = vpop.permute.xlu0 %5109
  %5111 = vrot.lane.b32.xlu0 %v5093, 96
  %v5112 = vpop.permute.xlu0 %5111
  %5113 = vrot.lane.b32.xlu0 %v5094, 96
  %v5114 = vpop.permute.xlu0 %5113
  %5115 = vrot.lane.b32.xlu0 %v5095, 96
  %v5116 = vpop.permute.xlu0 %5115
  %5117 = vrot.lane.b32.xlu0 %v5096, 96
  %v5118 = vpop.permute.xlu0 %5117
  %5119 = vrot.lane.b32.xlu0 %v5097, 96
  %v5120 = vpop.permute.xlu0 %5119
  %5121 = vrot.lane.b32.xlu0 %v5098, 96
  %v5122 = vpop.permute.xlu0 %5121
  %v5123 = vsel %vm1570, %v5108, %v5110
  %v5124 = vsel %vm1570, %v5110, %v5112
  %v5125 = vsel %vm1570, %v5112, %v5114
  %v5126 = vsel %vm1570, %v5116, %v5118
  %v5127 = vsel %vm1570, %v5118, %v5120
  %v5128 = vsel %vm1570, %v5120, %v5122
  %v5137 = vadd.f32 %v5083, %v5123
  %v5138 = vadd.f32 %v5084, %v5124
  %v5139 = vadd.f32 %v5085, %v5125
  %v5140 = vadd.f32 %v5086, %v5114
  %v5141 = vadd.f32 %v5087, %v5126
  %v5142 = vadd.f32 %v5088, %v5127
  %v5143 = vadd.f32 %v5089, %v5128
  %v5144 = vadd.f32 %v5090, %v5122
  %v5145 = vmul.f32 %v1194, %v76
  %v5146 = vmul.f32 %v1194, %v77
  %v5147 = vmul.f32 %v1194, %v78
  %v5148 = vmul.f32 %v1194, %v79
  %v5149 = vmul.f32 %v1199, %v76
  %v5150 = vmul.f32 %v1199, %v77
  %v5151 = vmul.f32 %v1199, %v78
  %v5152 = vmul.f32 %v1199, %v79
  %5161 = vrot.lane.b32.xlu0 %v5145, 96
  %v5162 = vpop.permute.xlu0 %5161
  %5163 = vrot.lane.b32.xlu0 %v5146, 96
  %v5164 = vpop.permute.xlu0 %5163
  %5165 = vrot.lane.b32.xlu0 %v5147, 96
  %v5166 = vpop.permute.xlu0 %5165
  %5167 = vrot.lane.b32.xlu0 %v5148, 96
  %v5168 = vpop.permute.xlu0 %5167
  %5169 = vrot.lane.b32.xlu0 %v5149, 96
  %v5170 = vpop.permute.xlu0 %5169
  %5171 = vrot.lane.b32.xlu0 %v5150, 96
  %v5172 = vpop.permute.xlu0 %5171
  %5173 = vrot.lane.b32.xlu0 %v5151, 96
  %v5174 = vpop.permute.xlu0 %5173
  %5175 = vrot.lane.b32.xlu0 %v5152, 96
  %v5176 = vpop.permute.xlu0 %5175
  %v5177 = vsel %vm1570, %v5162, %v5164
  %v5178 = vsel %vm1570, %v5164, %v5166
  %v5179 = vsel %vm1570, %v5166, %v5168
  %v5180 = vsel %vm1570, %v5170, %v5172
  %v5181 = vsel %vm1570, %v5172, %v5174
  %v5182 = vsel %vm1570, %v5174, %v5176
  %v5191 = vadd.f32 %v5137, %v5177
  %v5192 = vadd.f32 %v5138, %v5178
  %v5193 = vadd.f32 %v5139, %v5179
  %v5194 = vadd.f32 %v5140, %v5168
  %v5195 = vadd.f32 %v5141, %v5180
  %v5196 = vadd.f32 %v5142, %v5181
  %v5197 = vadd.f32 %v5143, %v5182
  %v5198 = vadd.f32 %v5144, %v5176
  %v5199 = vmul.f32 %v1261, %v357
  %v5200 = vmul.f32 %v1261, %v358
  %v5201 = vmul.f32 %v1261, %v359
  %v5202 = vmul.f32 %v1261, %v360
  %v5203 = vmul.f32 %v1266, %v357
  %v5204 = vmul.f32 %v1266, %v358
  %v5205 = vmul.f32 %v1266, %v359
  %v5206 = vmul.f32 %v1266, %v360
  %5215 = vrot.lane.b32.xlu0 %v5199, 98
  %v5216 = vpop.permute.xlu0 %5215
  %5217 = vrot.lane.b32.xlu0 %v5200, 98
  %v5218 = vpop.permute.xlu0 %5217
  %5219 = vrot.lane.b32.xlu0 %v5201, 98
  %v5220 = vpop.permute.xlu0 %5219
  %5221 = vrot.lane.b32.xlu0 %v5202, 98
  %v5222 = vpop.permute.xlu0 %5221
  %5223 = vrot.lane.b32.xlu0 %v5203, 98
  %v5224 = vpop.permute.xlu0 %5223
  %5225 = vrot.lane.b32.xlu0 %v5204, 98
  %v5226 = vpop.permute.xlu0 %5225
  %5227 = vrot.lane.b32.xlu0 %v5205, 98
  %v5228 = vpop.permute.xlu0 %5227
  %5229 = vrot.lane.b32.xlu0 %v5206, 98
  %v5230 = vpop.permute.xlu0 %5229
  %v5231 = vsel %vm1300, %v5216, %v5218
  %v5232 = vsel %vm1300, %v5218, %v5220
  %v5233 = vsel %vm1300, %v5220, %v5222
  %v5234 = vsel %vm1300, %v5224, %v5226
  %v5235 = vsel %vm1300, %v5226, %v5228
  %v5236 = vsel %vm1300, %v5228, %v5230
  %v5245 = vadd.f32 %v5191, %v5231
  %v5246 = vadd.f32 %v5192, %v5232
  %v5247 = vadd.f32 %v5193, %v5233
  %v5248 = vadd.f32 %v5194, %v5222
  %v5249 = vadd.f32 %v5195, %v5234
  %v5250 = vadd.f32 %v5196, %v5235
  %v5251 = vadd.f32 %v5197, %v5236
  %v5252 = vadd.f32 %v5198, %v5230
  %v5253 = vmul.f32 %v1329, %v318
  %v5254 = vmul.f32 %v1329, %v319
  %v5255 = vmul.f32 %v1329, %v320
  %v5256 = vmul.f32 %v1329, %v321
  %v5257 = vmul.f32 %v1334, %v318
  %v5258 = vmul.f32 %v1334, %v319
  %v5259 = vmul.f32 %v1334, %v320
  %v5260 = vmul.f32 %v1334, %v321
  %5269 = vrot.lane.b32.xlu0 %v5253, 97
  %v5270 = vpop.permute.xlu0 %5269
  %5271 = vrot.lane.b32.xlu0 %v5254, 97
  %v5272 = vpop.permute.xlu0 %5271
  %5273 = vrot.lane.b32.xlu0 %v5255, 97
  %v5274 = vpop.permute.xlu0 %5273
  %5275 = vrot.lane.b32.xlu0 %v5256, 97
  %v5276 = vpop.permute.xlu0 %5275
  %5277 = vrot.lane.b32.xlu0 %v5257, 97
  %v5278 = vpop.permute.xlu0 %5277
  %5279 = vrot.lane.b32.xlu0 %v5258, 97
  %v5280 = vpop.permute.xlu0 %5279
  %5281 = vrot.lane.b32.xlu0 %v5259, 97
  %v5282 = vpop.permute.xlu0 %5281
  %5283 = vrot.lane.b32.xlu0 %v5260, 97
  %v5284 = vpop.permute.xlu0 %5283
  %v5285 = vsel %vm1435, %v5270, %v5272
  %v5286 = vsel %vm1435, %v5272, %v5274
  %v5287 = vsel %vm1435, %v5274, %v5276
  %v5288 = vsel %vm1435, %v5278, %v5280
  %v5289 = vsel %vm1435, %v5280, %v5282
  %v5290 = vsel %vm1435, %v5282, %v5284
  %v5299 = vadd.f32 %v5245, %v5285
  %v5300 = vadd.f32 %v5246, %v5286
  %v5301 = vadd.f32 %v5247, %v5287
  %v5302 = vadd.f32 %v5248, %v5276
  %v5303 = vadd.f32 %v5249, %v5288
  %v5304 = vadd.f32 %v5250, %v5289
  %v5305 = vadd.f32 %v5251, %v5290
  %v5306 = vadd.f32 %v5252, %v5284
  %v5307 = vmul.f32 %v1396, %v357
  %v5308 = vmul.f32 %v1396, %v358
  %v5309 = vmul.f32 %v1396, %v359
  %v5310 = vmul.f32 %v1396, %v360
  %v5311 = vmul.f32 %v1401, %v357
  %v5312 = vmul.f32 %v1401, %v358
  %v5313 = vmul.f32 %v1401, %v359
  %v5314 = vmul.f32 %v1401, %v360
  %5323 = vrot.lane.b32.xlu0 %v5307, 97
  %v5324 = vpop.permute.xlu0 %5323
  %5325 = vrot.lane.b32.xlu0 %v5308, 97
  %v5326 = vpop.permute.xlu0 %5325
  %5327 = vrot.lane.b32.xlu0 %v5309, 97
  %v5328 = vpop.permute.xlu0 %5327
  %5329 = vrot.lane.b32.xlu0 %v5310, 97
  %v5330 = vpop.permute.xlu0 %5329
  %5331 = vrot.lane.b32.xlu0 %v5311, 97
  %v5332 = vpop.permute.xlu0 %5331
  %5333 = vrot.lane.b32.xlu0 %v5312, 97
  %v5334 = vpop.permute.xlu0 %5333
  %5335 = vrot.lane.b32.xlu0 %v5313, 97
  %v5336 = vpop.permute.xlu0 %5335
  %5337 = vrot.lane.b32.xlu0 %v5314, 97
  %v5338 = vpop.permute.xlu0 %5337
  %v5339 = vsel %vm1435, %v5324, %v5326
  %v5340 = vsel %vm1435, %v5326, %v5328
  %v5341 = vsel %vm1435, %v5328, %v5330
  %v5342 = vsel %vm1435, %v5332, %v5334
  %v5343 = vsel %vm1435, %v5334, %v5336
  %v5344 = vsel %vm1435, %v5336, %v5338
  %v5353 = vadd.f32 %v5299, %v5339
  %v5354 = vadd.f32 %v5300, %v5340
  %v5355 = vadd.f32 %v5301, %v5341
  %v5356 = vadd.f32 %v5302, %v5330
  %v5357 = vadd.f32 %v5303, %v5342
  %v5358 = vadd.f32 %v5304, %v5343
  %v5359 = vadd.f32 %v5305, %v5344
  %v5360 = vadd.f32 %v5306, %v5338
  %v5361 = vmul.f32 %v1464, %v318
  %v5362 = vmul.f32 %v1464, %v319
  %v5363 = vmul.f32 %v1464, %v320
  %v5364 = vmul.f32 %v1464, %v321
  %v5365 = vmul.f32 %v1469, %v318
  %v5366 = vmul.f32 %v1469, %v319
  %v5367 = vmul.f32 %v1469, %v320
  %v5368 = vmul.f32 %v1469, %v321
  %5377 = vrot.lane.b32.xlu0 %v5361, 96
  %v5378 = vpop.permute.xlu0 %5377
  %5379 = vrot.lane.b32.xlu0 %v5362, 96
  %v5380 = vpop.permute.xlu0 %5379
  %5381 = vrot.lane.b32.xlu0 %v5363, 96
  %v5382 = vpop.permute.xlu0 %5381
  %5383 = vrot.lane.b32.xlu0 %v5364, 96
  %v5384 = vpop.permute.xlu0 %5383
  %5385 = vrot.lane.b32.xlu0 %v5365, 96
  %v5386 = vpop.permute.xlu0 %5385
  %5387 = vrot.lane.b32.xlu0 %v5366, 96
  %v5388 = vpop.permute.xlu0 %5387
  %5389 = vrot.lane.b32.xlu0 %v5367, 96
  %v5390 = vpop.permute.xlu0 %5389
  %5391 = vrot.lane.b32.xlu0 %v5368, 96
  %v5392 = vpop.permute.xlu0 %5391
  %v5393 = vsel %vm1570, %v5378, %v5380
  %v5394 = vsel %vm1570, %v5380, %v5382
  %v5395 = vsel %vm1570, %v5382, %v5384
  %v5396 = vsel %vm1570, %v5386, %v5388
  %v5397 = vsel %vm1570, %v5388, %v5390
  %v5398 = vsel %vm1570, %v5390, %v5392
  %v5407 = vadd.f32 %v5353, %v5393
  %v5408 = vadd.f32 %v5354, %v5394
  %v5409 = vadd.f32 %v5355, %v5395
  %v5410 = vadd.f32 %v5356, %v5384
  %v5411 = vadd.f32 %v5357, %v5396
  %v5412 = vadd.f32 %v5358, %v5397
  %v5413 = vadd.f32 %v5359, %v5398
  %v5414 = vadd.f32 %v5360, %v5392
  %v5415 = vmul.f32 %v1531, %v357
  %v5416 = vmul.f32 %v1531, %v358
  %v5417 = vmul.f32 %v1531, %v359
  %v5418 = vmul.f32 %v1531, %v360
  %v5419 = vmul.f32 %v1536, %v357
  %v5420 = vmul.f32 %v1536, %v358
  %v5421 = vmul.f32 %v1536, %v359
  %v5422 = vmul.f32 %v1536, %v360
  %5431 = vrot.lane.b32.xlu0 %v5415, 96
  %v5432 = vpop.permute.xlu0 %5431
  %5433 = vrot.lane.b32.xlu0 %v5416, 96
  %v5434 = vpop.permute.xlu0 %5433
  %5435 = vrot.lane.b32.xlu0 %v5417, 96
  %v5436 = vpop.permute.xlu0 %5435
  %5437 = vrot.lane.b32.xlu0 %v5418, 96
  %v5438 = vpop.permute.xlu0 %5437
  %5439 = vrot.lane.b32.xlu0 %v5419, 96
  %v5440 = vpop.permute.xlu0 %5439
  %5441 = vrot.lane.b32.xlu0 %v5420, 96
  %v5442 = vpop.permute.xlu0 %5441
  %5443 = vrot.lane.b32.xlu0 %v5421, 96
  %v5444 = vpop.permute.xlu0 %5443
  %5445 = vrot.lane.b32.xlu0 %v5422, 96
  %v5446 = vpop.permute.xlu0 %5445
  %v5447 = vsel %vm1570, %v5432, %v5434
  %v5448 = vsel %vm1570, %v5434, %v5436
  %v5449 = vsel %vm1570, %v5436, %v5438
  %v5450 = vsel %vm1570, %v5440, %v5442
  %v5451 = vsel %vm1570, %v5442, %v5444
  %v5452 = vsel %vm1570, %v5444, %v5446
  %v5461 = vadd.f32 %v5407, %v5447
  %v5462 = vadd.f32 %v5408, %v5448
  %v5463 = vadd.f32 %v5409, %v5449
  %v5464 = vadd.f32 %v5410, %v5438
  %v5465 = vadd.f32 %v5411, %v5450
  %v5466 = vadd.f32 %v5412, %v5451
  %v5467 = vadd.f32 %v5413, %v5452
  %v5468 = vadd.f32 %v5414, %v5446
  %v5469 = vmax.f32 %v4149, %v5461
  %v5470 = vmax.f32 %v4150, %v5462
  %v5471 = vmax.f32 %v4151, %v5463
  %v5472 = vmax.f32 %v4152, %v5464
  %v5473 = vmax.f32 %v4153, %v5465
  %v5474 = vmax.f32 %v4154, %v5466
  %v5475 = vmax.f32 %v4155, %v5467
  %v5476 = vmax.f32 %v4156, %v5468
  %v5477 = vld [vmem:[%s5] sm:$0xff]
  %v5478 = vld [vmem:[%s5 + $0x8] sm:$0x3]
  %5480 = vset.pattern.permute.xlu0 0
  %5481 = vperm.xlu0 %5480, %v5477
  %v5482 = vpop.permute.xlu0 %5481
  %5485 = vset.pattern.permute.xlu0 0
  %5486 = vperm.xlu0 %5485, %v5478
  %v5487 = vpop.permute.xlu0 %5486
  %v5489 = vadd.f32 %v5469, %v5482
  %v5490 = vadd.f32 %v5470, %v5482
  %v5491 = vadd.f32 %v5471, %v5482
  %v5492 = vadd.f32 %v5472, %v5482
  %v5493 = vadd.f32 %v5473, %v5487
  %v5494 = vadd.f32 %v5474, %v5487
  %v5495 = vadd.f32 %v5475, %v5487
  %v5496 = vadd.f32 %v5476, %v5487
  %v5497 = vmax.f32 %v5489, 0.0
  %v5498 = vmax.f32 %v5490, 0.0
  %v5499 = vmax.f32 %v5491, 0.0
  %v5500 = vmax.f32 %v5492, 0.0
  %v5501 = vmax.f32 %v5493, 0.0
  %v5502 = vmax.f32 %v5494, 0.0
  %v5503 = vmax.f32 %v5495, 0.0
  %v5504 = vmax.f32 %v5496, 0.0
  %v5505 = vpack.c.bf16 %v5498, %v5497
  %v5506 = vpack.c.bf16 %v5500, %v5499
  %v5507 = vpack.c.bf16 %v5502, %v5501
  %v5508 = vpack.c.bf16 %v5504, %v5503
  %5509 = vst [vmem:[%s6] sm:$0xff] %v5505
  %vm5510 = vcmask 1043456
  %vm5511 = vcmask 539652
  %vm5512 = vmor %vm5511, %vm5510
  %5513 = vst.msk [vmem:[%s6 + $0x8] sm:$0xff] %vm5512, %v5506
  %5514 = vst [vmem:[%s6 + $0x10] sm:$0x11] %v5507
  %vm5515 = vcmask 1040384
  %vm5516 = vcmask 536580
  %vm5517 = vmor %vm5516, %vm5515
  %5518 = vst.msk [vmem:[%s6 + $0x18] sm:$0x11] %vm5517, %v5508
  // Predicated region
  $region26: #{net_forward.3} parent=0 // pred_check
    _
  $region27: #{net_forward.3} parent=0 // pred_check_branch
    %5520 = sbr.rel (0) target = $region29
  $region28: #{net_forward.3} parent=0 // pred_region
    _
  $region29: #{net_forward.3} parent=0 // pred_fallthru
    _
  // Predicated region
  $region30: #{net_forward.3} parent=0 // pred_check
    _
  $region31: #{net_forward.3} parent=0 // pred_check_branch
    %5522 = sbr.rel (0) target = $region33
  $region32: #{net_forward.3} parent=0 // pred_region
    _
  $region33: #{net_forward.3} parent=0 // pred_fallthru
    _

// kernel: net_forward.4
$region0: #{net_forward.4}
  #allocation0 [shape = 'u32[]', space=smem, size = 0x4, offset = 0x4, fixed_abs, tag = 'smem constant byte address 0x4 - core index']
  #allocation1 [shape = 'u32[72,128]{1,0:T(1,128)}', space=vmem, size = 0x9000, scoped, tag = 'internal scratch']
  %s0 = inlined_call_operand.vmem [shape: bf16[10,146], index: 0, kind: input, shape index: {}]
  %s1 = inlined_call_operand.vmem [shape: bf16[10,146], index: 1, kind: input, shape index: {}]
  %s2 = inlined_call_operand.vmem [shape: bf16[10,146], index: 2, kind: input, shape index: {}]
  %s3 = inlined_call_operand.vmem [shape: bf16[10,146], index: 3, kind: input, shape index: {}]
  %s4 = inlined_call_operand.vmem [shape: bf16[25,10,10], index: 4, kind: input, shape index: {}]
  %s5 = inlined_call_operand.vmem [shape: f32[10,1], index: 5, kind: input, shape index: {}]
  %s6 = inlined_call_operand.vmem [shape: bf16[10,128], index: 6, kind: output, shape index: {}]
  %s7 = sld [smem:[#allocation0]]
  $region34: #{net_forward.4} parent=0
    _
  %s9 = ssub.s32 1, %s7
  %s10 = scalar_select 0, %s9, %s7
  // Predicated region
  $region2: #{net_forward.4} parent=0 // pred_check
    _
  $region3: #{net_forward.4} parent=0 // pred_check_branch
    %12 = sbr.rel (0) target = $region5
  $region4: #{net_forward.4} parent=0 // pred_region
    _
  $region5: #{net_forward.4} parent=0 // pred_fallthru
    _
  // Predicated region
  $region6: #{net_forward.4} parent=0 // pred_check
    _
  $region7: #{net_forward.4} parent=0 // pred_check_branch
    %14 = sbr.rel (0) target = $region9
  $region8: #{net_forward.4} parent=0 // pred_region
    _
  $region9: #{net_forward.4} parent=0 // pred_fallthru
    _
  // Predicated region
  $region10: #{net_forward.4} parent=0 // pred_check
    _
  $region11: #{net_forward.4} parent=0 // pred_check_branch
    %16 = sbr.rel (0) target = $region13
  $region12: #{net_forward.4} parent=0 // pred_region
    _
  $region13: #{net_forward.4} parent=0 // pred_fallthru
    _
  // Predicated region
  $region14: #{net_forward.4} parent=0 // pred_check
    _
  $region15: #{net_forward.4} parent=0 // pred_check_branch
    %18 = sbr.rel (0) target = $region17
  $region16: #{net_forward.4} parent=0 // pred_region
    _
  $region17: #{net_forward.4} parent=0 // pred_fallthru
    _
  // Predicated region
  $region18: #{net_forward.4} parent=0 // pred_check
    _
  $region19: #{net_forward.4} parent=0 // pred_check_branch
    %20 = sbr.rel (0) target = $region21
  $region20: #{net_forward.4} parent=0 // pred_region
    _
  $region21: #{net_forward.4} parent=0 // pred_fallthru
    _
  // Predicated region
  $region22: #{net_forward.4} parent=0 // pred_check
    _
  $region23: #{net_forward.4} parent=0 // pred_check_branch
    %22 = sbr.rel (0) target = $region25
  $region24: #{net_forward.4} parent=0 // pred_region
    _
  $region25: #{net_forward.4} parent=0 // pred_fallthru
    _
  %v24 = vld [vmem:[%s4] sm:$0xf]
  %v25 = vld [vmem:[%s4 + $0x4] sm:$0x1]
  %v26 = vld [vmem:[%s0] sm:$0xf]
  %v27 = vld [vmem:[%s0 + $0x8] sm:$0x1]
  %s28 = scalar_lea.vmem %s4, 8
  %v29 = vld [vmem:[%s28] sm:$0xf]
  %v30 = vld [vmem:[%s28 + $0x4] sm:$0x1]
  %v31 = vld [vmem:[%s1] sm:$0xf]
  %v32 = vld [vmem:[%s1 + $0x8] sm:$0x1]
  %v35 = vunpack.c.l.b16 %v29
  %v36 = vunpack.c.l.b16 %v30
  %v37 = vpack.c.b16 %v36, %v35
  %v40 = vunpack.c.l.b16 %v31
  %v41 = vunpack.c.l.b16 %v32
  %v42 = vpack.c.b16 %v41, %v40
  %vm43 = vcmask 80896
  %v45 = vsel %vm43, %v37, 0
  %vm47 = vcmask 1044480
  %v49 = vsel %vm47, %v42, 0
  %51 = vmatpush.bf16.msra.mxu0 0
  %52 = vmatpush.bf16.msra.mxu0 0
  %53 = vmatpush.bf16.msra.mxu0 0
  %54 = vmatpush.bf16.msra.mxu0 0
  %55 = vmatpush.bf16.msra.mxu0 0
  %56 = vmatpush.bf16.msra.mxu0 0
  %57 = vmatpush.bf16.msra.mxu0 0
  %58 = vmatpush.bf16.msra.mxu0 %v49
  %59 = vmatmul.bf16.gmra.mxu0 %v45
  %v60 = vpop.f32.mrf.mxu0
  %v61 = vadd.f32 0.0, %v60
  %v62 = vpop.f32.mrf.mxu0
  %v63 = vadd.f32 0.0, %v62
  %64 = vdwg.mxu0
  %v67 = vunpack.c.l.b16 %v24
  %v68 = vunpack.c.l.b16 %v25
  %v69 = vpack.c.b16 %v68, %v67
  %v72 = vunpack.c.l.b16 %v26
  %v73 = vunpack.c.l.b16 %v27
  %v74 = vpack.c.b16 %v73, %v72
  %v76 = vsel %vm43, %v69, 0
  %v79 = vsel %vm47, %v74, 0
  %81 = vmatpush.bf16.msra.mxu0 0
  %82 = vmatpush.bf16.msra.mxu0 0
  %83 = vmatpush.bf16.msra.mxu0 0
  %84 = vmatpush.bf16.msra.mxu0 0
  %85 = vmatpush.bf16.msra.mxu0 0
  %86 = vmatpush.bf16.msra.mxu0 0
  %87 = vmatpush.bf16.msra.mxu0 0
  %88 = vmatpush.bf16.msra.mxu0 %v79
  %89 = vmatmul.bf16.gmra.mxu0 %v76
  %v90 = vpop.f32.mrf.mxu0
  %v91 = vadd.f32 %v61, %v90
  %v92 = vpop.f32.mrf.mxu0
  %v93 = vadd.f32 %v63, %v92
  %94 = vdwg.mxu0
  %s95 = scalar_lea.vmem %s4, 16
  %v96 = vld [vmem:[%s95] sm:$0xf]
  %v97 = vld [vmem:[%s95 + $0x4] sm:$0x1]
  %v98 = vld [vmem:[%s0] sm:$0xff]
  %v99 = vld [vmem:[%s0 + $0x8] sm:$0x11]
  %v102 = vunpack.c.l.b16 %v96
  %v103 = vunpack.c.l.b16 %v97
  %v104 = vpack.c.b16 %v103, %v102
  %v107 = vunpack.c.l.b16 %v98
  %v108 = vunpack.c.h.b16 %v98
  %v109 = vunpack.c.l.b16 %v99
  %v110 = vunpack.c.h.b16 %v99
  %v111 = vpack.c.b16 %v109, %v107
  %v112 = vpack.c.b16 %v110, %v108
  %113 = vrot.lane.b32.xlu0 %v111, 127
  %v114 = vpop.permute.xlu0 %113
  %115 = vrot.lane.b32.xlu0 %v112, 127
  %v116 = vpop.permute.xlu0 %115
  %vm117 = vcmask 1039360
  %v118 = vsel %vm117, %v114, %v116
  %v120 = vsel %vm43, %v104, 0
  %v123 = vsel %vm47, %v118, 0
  %125 = vmatpush.bf16.msra.mxu0 0
  %126 = vmatpush.bf16.msra.mxu0 0
  %127 = vmatpush.bf16.msra.mxu0 0
  %128 = vmatpush.bf16.msra.mxu0 0
  %129 = vmatpush.bf16.msra.mxu0 0
  %130 = vmatpush.bf16.msra.mxu0 0
  %131 = vmatpush.bf16.msra.mxu0 0
  %132 = vmatpush.bf16.msra.mxu0 %v123
  %133 = vmatmul.bf16.gmra.mxu0 %v120
  %v134 = vpop.f32.mrf.mxu0
  %v135 = vadd.f32 0.0, %v134
  %v136 = vpop.f32.mrf.mxu0
  %v137 = vadd.f32 0.0, %v136
  %138 = vdwg.mxu0
  %v139 = vadd.f32 %v91, %v135
  %v140 = vadd.f32 %v93, %v137
  %s141 = scalar_lea.vmem %s4, 24
  %v142 = vld [vmem:[%s141] sm:$0xf]
  %v143 = vld [vmem:[%s141 + $0x4] sm:$0x1]
  %v144 = vld [vmem:[%s1] sm:$0xff]
  %v145 = vld [vmem:[%s1 + $0x8] sm:$0x11]
  %v148 = vunpack.c.l.b16 %v142
  %v149 = vunpack.c.l.b16 %v143
  %v150 = vpack.c.b16 %v149, %v148
  %v153 = vunpack.c.l.b16 %v144
  %v154 = vunpack.c.h.b16 %v144
  %v155 = vunpack.c.l.b16 %v145
  %v156 = vunpack.c.h.b16 %v145
  %v157 = vpack.c.b16 %v155, %v153
  %v158 = vpack.c.b16 %v156, %v154
  %159 = vrot.lane.b32.xlu0 %v157, 127
  %v160 = vpop.permute.xlu0 %159
  %161 = vrot.lane.b32.xlu0 %v158, 127
  %v162 = vpop.permute.xlu0 %161
  %v163 = vsel %vm117, %v160, %v162
  %v165 = vsel %vm43, %v150, 0
  %v168 = vsel %vm47, %v163, 0
  %170 = vmatpush.bf16.msra.mxu0 0
  %171 = vmatpush.bf16.msra.mxu0 0
  %172 = vmatpush.bf16.msra.mxu0 0
  %173 = vmatpush.bf16.msra.mxu0 0
  %174 = vmatpush.bf16.msra.mxu0 0
  %175 = vmatpush.bf16.msra.mxu0 0
  %176 = vmatpush.bf16.msra.mxu0 0
  %177 = vmatpush.bf16.msra.mxu0 %v168
  %178 = vmatmul.bf16.gmra.mxu0 %v165
  %v179 = vpop.f32.mrf.mxu0
  %v180 = vadd.f32 0.0, %v179
  %v181 = vpop.f32.mrf.mxu0
  %v182 = vadd.f32 0.0, %v181
  %183 = vdwg.mxu0
  %v184 = vadd.f32 %v139, %v180
  %v185 = vadd.f32 %v140, %v182
  %s186 = scalar_lea.vmem %s4, 32
  %v187 = vld [vmem:[%s186] sm:$0xf]
  %v188 = vld [vmem:[%s186 + $0x4] sm:$0x1]
  %v191 = vunpack.c.l.b16 %v187
  %v192 = vunpack.c.l.b16 %v188
  %v193 = vpack.c.b16 %v192, %v191
  %194 = vrot.lane.b32.xlu0 %v111, 126
  %v195 = vpop.permute.xlu0 %194
  %196 = vrot.lane.b32.xlu0 %v112, 126
  %v197 = vpop.permute.xlu0 %196
  %vm198 = vcmask 1031168
  %v199 = vsel %vm198, %v195, %v197
  %v201 = vsel %vm43, %v193, 0
  %v204 = vsel %vm47, %v199, 0
  %206 = vmatpush.bf16.msra.mxu0 0
  %207 = vmatpush.bf16.msra.mxu0 0
  %208 = vmatpush.bf16.msra.mxu0 0
  %209 = vmatpush.bf16.msra.mxu0 0
  %210 = vmatpush.bf16.msra.mxu0 0
  %211 = vmatpush.bf16.msra.mxu0 0
  %212 = vmatpush.bf16.msra.mxu0 0
  %213 = vmatpush.bf16.msra.mxu0 %v204
  %214 = vmatmul.bf16.gmra.mxu0 %v201
  %v215 = vpop.f32.mrf.mxu0
  %v216 = vadd.f32 0.0, %v215
  %v217 = vpop.f32.mrf.mxu0
  %v218 = vadd.f32 0.0, %v217
  %219 = vdwg.mxu0
  %v220 = vadd.f32 %v184, %v216
  %v221 = vadd.f32 %v185, %v218
  %s222 = scalar_lea.vmem %s4, 40
  %v223 = vld [vmem:[%s222] sm:$0xf]
  %v224 = vld [vmem:[%s222 + $0x4] sm:$0x1]
  %v225 = vld [vmem:[%s2] sm:$0xf]
  %v226 = vld [vmem:[%s2 + $0x8] sm:$0x1]
  %v229 = vunpack.c.l.b16 %v223
  %v230 = vunpack.c.l.b16 %v224
  %v231 = vpack.c.b16 %v230, %v229
  %v234 = vunpack.c.l.b16 %v225
  %v235 = vunpack.c.l.b16 %v226
  %v236 = vpack.c.b16 %v235, %v234
  %v238 = vsel %vm43, %v231, 0
  %v241 = vsel %vm47, %v236, 0
  %243 = vmatpush.bf16.msra.mxu0 0
  %244 = vmatpush.bf16.msra.mxu0 0
  %245 = vmatpush.bf16.msra.mxu0 0
  %246 = vmatpush.bf16.msra.mxu0 0
  %247 = vmatpush.bf16.msra.mxu0 0
  %248 = vmatpush.bf16.msra.mxu0 0
  %249 = vmatpush.bf16.msra.mxu0 0
  %250 = vmatpush.bf16.msra.mxu0 %v241
  %251 = vmatmul.bf16.gmra.mxu0 %v238
  %v252 = vpop.f32.mrf.mxu0
  %v253 = vadd.f32 0.0, %v252
  %v254 = vpop.f32.mrf.mxu0
  %v255 = vadd.f32 0.0, %v254
  %256 = vdwg.mxu0
  %v257 = vadd.f32 %v220, %v253
  %v258 = vadd.f32 %v221, %v255
  %s259 = scalar_lea.vmem %s4, 48
  %v260 = vld [vmem:[%s259] sm:$0xf]
  %v261 = vld [vmem:[%s259 + $0x4] sm:$0x1]
  %v262 = vld [vmem:[%s3] sm:$0xf]
  %v263 = vld [vmem:[%s3 + $0x8] sm:$0x1]
  %v266 = vunpack.c.l.b16 %v260
  %v267 = vunpack.c.l.b16 %v261
  %v268 = vpack.c.b16 %v267, %v266
  %v271 = vunpack.c.l.b16 %v262
  %v272 = vunpack.c.l.b16 %v263
  %v273 = vpack.c.b16 %v272, %v271
  %v275 = vsel %vm43, %v268, 0
  %v278 = vsel %vm47, %v273, 0
  %280 = vmatpush.bf16.msra.mxu0 0
  %281 = vmatpush.bf16.msra.mxu0 0
  %282 = vmatpush.bf16.msra.mxu0 0
  %283 = vmatpush.bf16.msra.mxu0 0
  %284 = vmatpush.bf16.msra.mxu0 0
  %285 = vmatpush.bf16.msra.mxu0 0
  %286 = vmatpush.bf16.msra.mxu0 0
  %287 = vmatpush.bf16.msra.mxu0 %v278
  %288 = vmatmul.bf16.gmra.mxu0 %v275
  %v289 = vpop.f32.mrf.mxu0
  %v290 = vadd.f32 0.0, %v289
  %v291 = vpop.f32.mrf.mxu0
  %v292 = vadd.f32 0.0, %v291
  %293 = vdwg.mxu0
  %v294 = vadd.f32 %v257, %v290
  %v295 = vadd.f32 %v258, %v292
  %s296 = scalar_lea.vmem %s4, 56
  %v297 = vld [vmem:[%s296] sm:$0xf]
  %v298 = vld [vmem:[%s296 + $0x4] sm:$0x1]
  %v299 = vld [vmem:[%s2] sm:$0xff]
  %v300 = vld [vmem:[%s2 + $0x8] sm:$0x11]
  %v303 = vunpack.c.l.b16 %v297
  %v304 = vunpack.c.l.b16 %v298
  %v305 = vpack.c.b16 %v304, %v303
  %v308 = vunpack.c.l.b16 %v299
  %v309 = vunpack.c.h.b16 %v299
  %v310 = vunpack.c.l.b16 %v300
  %v311 = vunpack.c.h.b16 %v300
  %v312 = vpack.c.b16 %v310, %v308
  %v313 = vpack.c.b16 %v311, %v309
  %314 = vrot.lane.b32.xlu0 %v312, 127
  %v315 = vpop.permute.xlu0 %314
  %316 = vrot.lane.b32.xlu0 %v313, 127
  %v317 = vpop.permute.xlu0 %316
  %v318 = vsel %vm117, %v315, %v317
  %v320 = vsel %vm43, %v305, 0
  %v323 = vsel %vm47, %v318, 0
  %325 = vmatpush.bf16.msra.mxu0 0
  %326 = vmatpush.bf16.msra.mxu0 0
  %327 = vmatpush.bf16.msra.mxu0 0
  %328 = vmatpush.bf16.msra.mxu0 0
  %329 = vmatpush.bf16.msra.mxu0 0
  %330 = vmatpush.bf16.msra.mxu0 0
  %331 = vmatpush.bf16.msra.mxu0 0
  %332 = vmatpush.bf16.msra.mxu0 %v323
  %333 = vmatmul.bf16.gmra.mxu0 %v320
  %v334 = vpop.f32.mrf.mxu0
  %v335 = vadd.f32 0.0, %v334
  %v336 = vpop.f32.mrf.mxu0
  %v337 = vadd.f32 0.0, %v336
  %338 = vdwg.mxu0
  %v339 = vadd.f32 %v294, %v335
  %v340 = vadd.f32 %v295, %v337
  %s341 = scalar_lea.vmem %s4, 64
  %v342 = vld [vmem:[%s341] sm:$0xf]
  %v343 = vld [vmem:[%s341 + $0x4] sm:$0x1]
  %v344 = vld [vmem:[%s3] sm:$0xff]
  %v345 = vld [vmem:[%s3 + $0x8] sm:$0x11]
  %v348 = vunpack.c.l.b16 %v342
  %v349 = vunpack.c.l.b16 %v343
  %v350 = vpack.c.b16 %v349, %v348
  %v353 = vunpack.c.l.b16 %v344
  %v354 = vunpack.c.h.b16 %v344
  %v355 = vunpack.c.l.b16 %v345
  %v356 = vunpack.c.h.b16 %v345
  %v357 = vpack.c.b16 %v355, %v353
  %v358 = vpack.c.b16 %v356, %v354
  %359 = vrot.lane.b32.xlu0 %v357, 127
  %v360 = vpop.permute.xlu0 %359
  %361 = vrot.lane.b32.xlu0 %v358, 127
  %v362 = vpop.permute.xlu0 %361
  %v363 = vsel %vm117, %v360, %v362
  %v365 = vsel %vm43, %v350, 0
  %v368 = vsel %vm47, %v363, 0
  %370 = vmatpush.bf16.msra.mxu0 0
  %371 = vmatpush.bf16.msra.mxu0 0
  %372 = vmatpush.bf16.msra.mxu0 0
  %373 = vmatpush.bf16.msra.mxu0 0
  %374 = vmatpush.bf16.msra.mxu0 0
  %375 = vmatpush.bf16.msra.mxu0 0
  %376 = vmatpush.bf16.msra.mxu0 0
  %377 = vmatpush.bf16.msra.mxu0 %v368
  %378 = vmatmul.bf16.gmra.mxu0 %v365
  %v379 = vpop.f32.mrf.mxu0
  %v380 = vadd.f32 0.0, %v379
  %v381 = vpop.f32.mrf.mxu0
  %v382 = vadd.f32 0.0, %v381
  %383 = vdwg.mxu0
  %v384 = vadd.f32 %v339, %v380
  %v385 = vadd.f32 %v340, %v382
  %s386 = scalar_lea.vmem %s4, 72
  %v387 = vld [vmem:[%s386] sm:$0xf]
  %v388 = vld [vmem:[%s386 + $0x4] sm:$0x1]
  %v391 = vunpack.c.l.b16 %v387
  %v392 = vunpack.c.l.b16 %v388
  %v393 = vpack.c.b16 %v392, %v391
  %394 = vrot.lane.b32.xlu0 %v312, 126
  %v395 = vpop.permute.xlu0 %394
  %396 = vrot.lane.b32.xlu0 %v313, 126
  %v397 = vpop.permute.xlu0 %396
  %v398 = vsel %vm198, %v395, %v397
  %v400 = vsel %vm43, %v393, 0
  %v403 = vsel %vm47, %v398, 0
  %405 = vmatpush.bf16.msra.mxu0 0
  %406 = vmatpush.bf16.msra.mxu0 0
  %407 = vmatpush.bf16.msra.mxu0 0
  %408 = vmatpush.bf16.msra.mxu0 0
  %409 = vmatpush.bf16.msra.mxu0 0
  %410 = vmatpush.bf16.msra.mxu0 0
  %411 = vmatpush.bf16.msra.mxu0 0
  %412 = vmatpush.bf16.msra.mxu0 %v403
  %413 = vmatmul.bf16.gmra.mxu0 %v400
  %v414 = vpop.f32.mrf.mxu0
  %v415 = vadd.f32 0.0, %v414
  %v416 = vpop.f32.mrf.mxu0
  %v417 = vadd.f32 0.0, %v416
  %418 = vdwg.mxu0
  %v419 = vadd.f32 %v384, %v415
  %v420 = vadd.f32 %v385, %v417
  %s421 = scalar_lea.vmem %s4, 80
  %v422 = vld [vmem:[%s421] sm:$0xf]
  %v423 = vld [vmem:[%s421 + $0x4] sm:$0x1]
  %v426 = vunpack.c.l.b16 %v422
  %v427 = vunpack.c.l.b16 %v423
  %v428 = vpack.c.b16 %v427, %v426
  %429 = vrot.lane.b32.xlu0 %v111, 120
  %v430 = vpop.permute.xlu0 %429
  %431 = vrot.lane.b32.xlu0 %v112, 120
  %v432 = vpop.permute.xlu0 %431
  %vm433 = vcmask 982016
  %v434 = vsel %vm433, %v430, %v432
  %v436 = vsel %vm43, %v428, 0
  %v439 = vsel %vm47, %v434, 0
  %441 = vmatpush.bf16.msra.mxu0 0
  %442 = vmatpush.bf16.msra.mxu0 0
  %443 = vmatpush.bf16.msra.mxu0 0
  %444 = vmatpush.bf16.msra.mxu0 0
  %445 = vmatpush.bf16.msra.mxu0 0
  %446 = vmatpush.bf16.msra.mxu0 0
  %447 = vmatpush.bf16.msra.mxu0 0
  %448 = vmatpush.bf16.msra.mxu0 %v439
  %449 = vmatmul.bf16.gmra.mxu0 %v436
  %v450 = vpop.f32.mrf.mxu0
  %v451 = vadd.f32 0.0, %v450
  %v452 = vpop.f32.mrf.mxu0
  %v453 = vadd.f32 0.0, %v452
  %454 = vdwg.mxu0
  %v455 = vadd.f32 %v419, %v451
  %v456 = vadd.f32 %v420, %v453
  %s457 = scalar_lea.vmem %s4, 88
  %v458 = vld [vmem:[%s457] sm:$0xf]
  %v459 = vld [vmem:[%s457 + $0x4] sm:$0x1]
  %v462 = vunpack.c.l.b16 %v458
  %v463 = vunpack.c.l.b16 %v459
  %v464 = vpack.c.b16 %v463, %v462
  %465 = vrot.lane.b32.xlu0 %v157, 120
  %v466 = vpop.permute.xlu0 %465
  %467 = vrot.lane.b32.xlu0 %v158, 120
  %v468 = vpop.permute.xlu0 %467
  %v469 = vsel %vm433, %v466, %v468
  %v471 = vsel %vm43, %v464, 0
  %v474 = vsel %vm47, %v469, 0
  %476 = vmatpush.bf16.msra.mxu0 0
  %477 = vmatpush.bf16.msra.mxu0 0
  %478 = vmatpush.bf16.msra.mxu0 0
  %479 = vmatpush.bf16.msra.mxu0 0
  %480 = vmatpush.bf16.msra.mxu0 0
  %481 = vmatpush.bf16.msra.mxu0 0
  %482 = vmatpush.bf16.msra.mxu0 0
  %483 = vmatpush.bf16.msra.mxu0 %v474
  %484 = vmatmul.bf16.gmra.mxu0 %v471
  %v485 = vpop.f32.mrf.mxu0
  %v486 = vadd.f32 0.0, %v485
  %v487 = vpop.f32.mrf.mxu0
  %v488 = vadd.f32 0.0, %v487
  %489 = vdwg.mxu0
  %v490 = vadd.f32 %v455, %v486
  %v491 = vadd.f32 %v456, %v488
  %s492 = scalar_lea.vmem %s4, 96
  %v493 = vld [vmem:[%s492] sm:$0xf]
  %v494 = vld [vmem:[%s492 + $0x4] sm:$0x1]
  %v497 = vunpack.c.l.b16 %v493
  %v498 = vunpack.c.l.b16 %v494
  %v499 = vpack.c.b16 %v498, %v497
  %500 = vrot.lane.b32.xlu0 %v111, 119
  %v501 = vpop.permute.xlu0 %500
  %502 = vrot.lane.b32.xlu0 %v112, 119
  %v503 = vpop.permute.xlu0 %502
  %vm504 = vcmask 973824
  %v505 = vsel %vm504, %v501, %v503
  %v507 = vsel %vm43, %v499, 0
  %v510 = vsel %vm47, %v505, 0
  %512 = vmatpush.bf16.msra.mxu0 0
  %513 = vmatpush.bf16.msra.mxu0 0
  %514 = vmatpush.bf16.msra.mxu0 0
  %515 = vmatpush.bf16.msra.mxu0 0
  %516 = vmatpush.bf16.msra.mxu0 0
  %517 = vmatpush.bf16.msra.mxu0 0
  %518 = vmatpush.bf16.msra.mxu0 0
  %519 = vmatpush.bf16.msra.mxu0 %v510
  %520 = vmatmul.bf16.gmra.mxu0 %v507
  %v521 = vpop.f32.mrf.mxu0
  %v522 = vadd.f32 0.0, %v521
  %v523 = vpop.f32.mrf.mxu0
  %v524 = vadd.f32 0.0, %v523
  %525 = vdwg.mxu0
  %v526 = vadd.f32 %v490, %v522
  %v527 = vadd.f32 %v491, %v524
  %s528 = scalar_lea.vmem %s4, 104
  %v529 = vld [vmem:[%s528] sm:$0xf]
  %v530 = vld [vmem:[%s528 + $0x4] sm:$0x1]
  %v533 = vunpack.c.l.b16 %v529
  %v534 = vunpack.c.l.b16 %v530
  %v535 = vpack.c.b16 %v534, %v533
  %536 = vrot.lane.b32.xlu0 %v157, 119
  %v537 = vpop.permute.xlu0 %536
  %538 = vrot.lane.b32.xlu0 %v158, 119
  %v539 = vpop.permute.xlu0 %538
  %v540 = vsel %vm504, %v537, %v539
  %v542 = vsel %vm43, %v535, 0
  %v545 = vsel %vm47, %v540, 0
  %547 = vmatpush.bf16.msra.mxu0 0
  %548 = vmatpush.bf16.msra.mxu0 0
  %549 = vmatpush.bf16.msra.mxu0 0
  %550 = vmatpush.bf16.msra.mxu0 0
  %551 = vmatpush.bf16.msra.mxu0 0
  %552 = vmatpush.bf16.msra.mxu0 0
  %553 = vmatpush.bf16.msra.mxu0 0
  %554 = vmatpush.bf16.msra.mxu0 %v545
  %555 = vmatmul.bf16.gmra.mxu0 %v542
  %v556 = vpop.f32.mrf.mxu0
  %v557 = vadd.f32 0.0, %v556
  %v558 = vpop.f32.mrf.mxu0
  %v559 = vadd.f32 0.0, %v558
  %560 = vdwg.mxu0
  %v561 = vadd.f32 %v526, %v557
  %v562 = vadd.f32 %v527, %v559
  %s563 = scalar_lea.vmem %s4, 112
  %v564 = vld [vmem:[%s563] sm:$0xf]
  %v565 = vld [vmem:[%s563 + $0x4] sm:$0x1]
  %v568 = vunpack.c.l.b16 %v564
  %v569 = vunpack.c.l.b16 %v565
  %v570 = vpack.c.b16 %v569, %v568
  %571 = vrot.lane.b32.xlu0 %v111, 118
  %v572 = vpop.permute.xlu0 %571
  %573 = vrot.lane.b32.xlu0 %v112, 118
  %v574 = vpop.permute.xlu0 %573
  %vm575 = vcmask 965632
  %v576 = vsel %vm575, %v572, %v574
  %v578 = vsel %vm43, %v570, 0
  %v581 = vsel %vm47, %v576, 0
  %583 = vmatpush.bf16.msra.mxu0 0
  %584 = vmatpush.bf16.msra.mxu0 0
  %585 = vmatpush.bf16.msra.mxu0 0
  %586 = vmatpush.bf16.msra.mxu0 0
  %587 = vmatpush.bf16.msra.mxu0 0
  %588 = vmatpush.bf16.msra.mxu0 0
  %589 = vmatpush.bf16.msra.mxu0 0
  %590 = vmatpush.bf16.msra.mxu0 %v581
  %591 = vmatmul.bf16.gmra.mxu0 %v578
  %v592 = vpop.f32.mrf.mxu0
  %v593 = vadd.f32 0.0, %v592
  %v594 = vpop.f32.mrf.mxu0
  %v595 = vadd.f32 0.0, %v594
  %596 = vdwg.mxu0
  %v597 = vadd.f32 %v561, %v593
  %v598 = vadd.f32 %v562, %v595
  %s599 = scalar_lea.vmem %s4, 120
  %v600 = vld [vmem:[%s599] sm:$0xf]
  %v601 = vld [vmem:[%s599 + $0x4] sm:$0x1]
  %v604 = vunpack.c.l.b16 %v600
  %v605 = vunpack.c.l.b16 %v601
  %v606 = vpack.c.b16 %v605, %v604
  %607 = vrot.lane.b32.xlu0 %v312, 120
  %v608 = vpop.permute.xlu0 %607
  %609 = vrot.lane.b32.xlu0 %v313, 120
  %v610 = vpop.permute.xlu0 %609
  %v611 = vsel %vm433, %v608, %v610
  %v613 = vsel %vm43, %v606, 0
  %v616 = vsel %vm47, %v611, 0
  %618 = vmatpush.bf16.msra.mxu0 0
  %619 = vmatpush.bf16.msra.mxu0 0
  %620 = vmatpush.bf16.msra.mxu0 0
  %621 = vmatpush.bf16.msra.mxu0 0
  %622 = vmatpush.bf16.msra.mxu0 0
  %623 = vmatpush.bf16.msra.mxu0 0
  %624 = vmatpush.bf16.msra.mxu0 0
  %625 = vmatpush.bf16.msra.mxu0 %v616
  %626 = vmatmul.bf16.gmra.mxu0 %v613
  %v627 = vpop.f32.mrf.mxu0
  %v628 = vadd.f32 0.0, %v627
  %v629 = vpop.f32.mrf.mxu0
  %v630 = vadd.f32 0.0, %v629
  %631 = vdwg.mxu0
  %v632 = vadd.f32 %v597, %v628
  %v633 = vadd.f32 %v598, %v630
  %s634 = scalar_lea.vmem %s4, 128
  %v635 = vld [vmem:[%s634] sm:$0xf]
  %v636 = vld [vmem:[%s634 + $0x4] sm:$0x1]
  %v639 = vunpack.c.l.b16 %v635
  %v640 = vunpack.c.l.b16 %v636
  %v641 = vpack.c.b16 %v640, %v639
  %642 = vrot.lane.b32.xlu0 %v357, 120
  %v643 = vpop.permute.xlu0 %642
  %644 = vrot.lane.b32.xlu0 %v358, 120
  %v645 = vpop.permute.xlu0 %644
  %v646 = vsel %vm433, %v643, %v645
  %v648 = vsel %vm43, %v641, 0
  %v651 = vsel %vm47, %v646, 0
  %653 = vmatpush.bf16.msra.mxu0 0
  %654 = vmatpush.bf16.msra.mxu0 0
  %655 = vmatpush.bf16.msra.mxu0 0
  %656 = vmatpush.bf16.msra.mxu0 0
  %657 = vmatpush.bf16.msra.mxu0 0
  %658 = vmatpush.bf16.msra.mxu0 0
  %659 = vmatpush.bf16.msra.mxu0 0
  %660 = vmatpush.bf16.msra.mxu0 %v651
  %661 = vmatmul.bf16.gmra.mxu0 %v648
  %v662 = vpop.f32.mrf.mxu0
  %v663 = vadd.f32 0.0, %v662
  %v664 = vpop.f32.mrf.mxu0
  %v665 = vadd.f32 0.0, %v664
  %666 = vdwg.mxu0
  %v667 = vadd.f32 %v632, %v663
  %v668 = vadd.f32 %v633, %v665
  %s669 = scalar_lea.vmem %s4, 136
  %v670 = vld [vmem:[%s669] sm:$0xf]
  %v671 = vld [vmem:[%s669 + $0x4] sm:$0x1]
  %v674 = vunpack.c.l.b16 %v670
  %v675 = vunpack.c.l.b16 %v671
  %v676 = vpack.c.b16 %v675, %v674
  %677 = vrot.lane.b32.xlu0 %v312, 119
  %v678 = vpop.permute.xlu0 %677
  %679 = vrot.lane.b32.xlu0 %v313, 119
  %v680 = vpop.permute.xlu0 %679
  %v681 = vsel %vm504, %v678, %v680
  %v683 = vsel %vm43, %v676, 0
  %v686 = vsel %vm47, %v681, 0
  %688 = vmatpush.bf16.msra.mxu0 0
  %689 = vmatpush.bf16.msra.mxu0 0
  %690 = vmatpush.bf16.msra.mxu0 0
  %691 = vmatpush.bf16.msra.mxu0 0
  %692 = vmatpush.bf16.msra.mxu0 0
  %693 = vmatpush.bf16.msra.mxu0 0
  %694 = vmatpush.bf16.msra.mxu0 0
  %695 = vmatpush.bf16.msra.mxu0 %v686
  %696 = vmatmul.bf16.gmra.mxu0 %v683
  %v697 = vpop.f32.mrf.mxu0
  %v698 = vadd.f32 0.0, %v697
  %v699 = vpop.f32.mrf.mxu0
  %v700 = vadd.f32 0.0, %v699
  %701 = vdwg.mxu0
  %v702 = vadd.f32 %v667, %v698
  %v703 = vadd.f32 %v668, %v700
  %s704 = scalar_lea.vmem %s4, 144
  %v705 = vld [vmem:[%s704] sm:$0xf]
  %v706 = vld [vmem:[%s704 + $0x4] sm:$0x1]
  %v709 = vunpack.c.l.b16 %v705
  %v710 = vunpack.c.l.b16 %v706
  %v711 = vpack.c.b16 %v710, %v709
  %712 = vrot.lane.b32.xlu0 %v357, 119
  %v713 = vpop.permute.xlu0 %712
  %714 = vrot.lane.b32.xlu0 %v358, 119
  %v715 = vpop.permute.xlu0 %714
  %v716 = vsel %vm504, %v713, %v715
  %v718 = vsel %vm43, %v711, 0
  %v721 = vsel %vm47, %v716, 0
  %723 = vmatpush.bf16.msra.mxu0 0
  %724 = vmatpush.bf16.msra.mxu0 0
  %725 = vmatpush.bf16.msra.mxu0 0
  %726 = vmatpush.bf16.msra.mxu0 0
  %727 = vmatpush.bf16.msra.mxu0 0
  %728 = vmatpush.bf16.msra.mxu0 0
  %729 = vmatpush.bf16.msra.mxu0 0
  %730 = vmatpush.bf16.msra.mxu0 %v721
  %731 = vmatmul.bf16.gmra.mxu0 %v718
  %v732 = vpop.f32.mrf.mxu0
  %v733 = vadd.f32 0.0, %v732
  %v734 = vpop.f32.mrf.mxu0
  %v735 = vadd.f32 0.0, %v734
  %736 = vdwg.mxu0
  %v737 = vadd.f32 %v702, %v733
  %v738 = vadd.f32 %v703, %v735
  %s739 = scalar_lea.vmem %s4, 152
  %v740 = vld [vmem:[%s739] sm:$0xf]
  %v741 = vld [vmem:[%s739 + $0x4] sm:$0x1]
  %v744 = vunpack.c.l.b16 %v740
  %v745 = vunpack.c.l.b16 %v741
  %v746 = vpack.c.b16 %v745, %v744
  %747 = vrot.lane.b32.xlu0 %v312, 118
  %v748 = vpop.permute.xlu0 %747
  %749 = vrot.lane.b32.xlu0 %v313, 118
  %v750 = vpop.permute.xlu0 %749
  %v751 = vsel %vm575, %v748, %v750
  %v753 = vsel %vm43, %v746, 0
  %v756 = vsel %vm47, %v751, 0
  %758 = vmatpush.bf16.msra.mxu0 0
  %759 = vmatpush.bf16.msra.mxu0 0
  %760 = vmatpush.bf16.msra.mxu0 0
  %761 = vmatpush.bf16.msra.mxu0 0
  %762 = vmatpush.bf16.msra.mxu0 0
  %763 = vmatpush.bf16.msra.mxu0 0
  %764 = vmatpush.bf16.msra.mxu0 0
  %765 = vmatpush.bf16.msra.mxu0 %v756
  %766 = vmatmul.bf16.gmra.mxu0 %v753
  %v767 = vpop.f32.mrf.mxu0
  %v768 = vadd.f32 0.0, %v767
  %v769 = vpop.f32.mrf.mxu0
  %v770 = vadd.f32 0.0, %v769
  %771 = vdwg.mxu0
  %v772 = vadd.f32 %v737, %v768
  %v773 = vadd.f32 %v738, %v770
  %s774 = scalar_lea.vmem %s4, 160
  %v775 = vld [vmem:[%s774] sm:$0xf]
  %v776 = vld [vmem:[%s774 + $0x4] sm:$0x1]
  %v779 = vunpack.c.l.b16 %v775
  %v780 = vunpack.c.l.b16 %v776
  %v781 = vpack.c.b16 %v780, %v779
  %782 = vrot.lane.b32.xlu0 %v111, 112
  %v783 = vpop.permute.xlu0 %782
  %784 = vrot.lane.b32.xlu0 %v112, 112
  %v785 = vpop.permute.xlu0 %784
  %vm786 = vcmask 916480
  %v787 = vsel %vm786, %v783, %v785
  %v789 = vsel %vm43, %v781, 0
  %v792 = vsel %vm47, %v787, 0
  %794 = vmatpush.bf16.msra.mxu0 0
  %795 = vmatpush.bf16.msra.mxu0 0
  %796 = vmatpush.bf16.msra.mxu0 0
  %797 = vmatpush.bf16.msra.mxu0 0
  %798 = vmatpush.bf16.msra.mxu0 0
  %799 = vmatpush.bf16.msra.mxu0 0
  %800 = vmatpush.bf16.msra.mxu0 0
  %801 = vmatpush.bf16.msra.mxu0 %v792
  %802 = vmatmul.bf16.gmra.mxu0 %v789
  %v803 = vpop.f32.mrf.mxu0
  %v804 = vadd.f32 0.0, %v803
  %v805 = vpop.f32.mrf.mxu0
  %v806 = vadd.f32 0.0, %v805
  %807 = vdwg.mxu0
  %v808 = vadd.f32 %v772, %v804
  %v809 = vadd.f32 %v773, %v806
  %s810 = scalar_lea.vmem %s4, 168
  %v811 = vld [vmem:[%s810] sm:$0xf]
  %v812 = vld [vmem:[%s810 + $0x4] sm:$0x1]
  %v815 = vunpack.c.l.b16 %v811
  %v816 = vunpack.c.l.b16 %v812
  %v817 = vpack.c.b16 %v816, %v815
  %818 = vrot.lane.b32.xlu0 %v157, 112
  %v819 = vpop.permute.xlu0 %818
  %820 = vrot.lane.b32.xlu0 %v158, 112
  %v821 = vpop.permute.xlu0 %820
  %v822 = vsel %vm786, %v819, %v821
  %v824 = vsel %vm43, %v817, 0
  %v827 = vsel %vm47, %v822, 0
  %829 = vmatpush.bf16.msra.mxu0 0
  %830 = vmatpush.bf16.msra.mxu0 0
  %831 = vmatpush.bf16.msra.mxu0 0
  %832 = vmatpush.bf16.msra.mxu0 0
  %833 = vmatpush.bf16.msra.mxu0 0
  %834 = vmatpush.bf16.msra.mxu0 0
  %835 = vmatpush.bf16.msra.mxu0 0
  %836 = vmatpush.bf16.msra.mxu0 %v827
  %837 = vmatmul.bf16.gmra.mxu0 %v824
  %v838 = vpop.f32.mrf.mxu0
  %v839 = vadd.f32 0.0, %v838
  %v840 = vpop.f32.mrf.mxu0
  %v841 = vadd.f32 0.0, %v840
  %842 = vdwg.mxu0
  %v843 = vadd.f32 %v808, %v839
  %v844 = vadd.f32 %v809, %v841
  %s845 = scalar_lea.vmem %s4, 176
  %v846 = vld [vmem:[%s845] sm:$0xf]
  %v847 = vld [vmem:[%s845 + $0x4] sm:$0x1]
  %v850 = vunpack.c.l.b16 %v846
  %v851 = vunpack.c.l.b16 %v847
  %v852 = vpack.c.b16 %v851, %v850
  %853 = vrot.lane.b32.xlu0 %v111, 111
  %v854 = vpop.permute.xlu0 %853
  %855 = vrot.lane.b32.xlu0 %v112, 111
  %v856 = vpop.permute.xlu0 %855
  %vm857 = vcmask 908288
  %v858 = vsel %vm857, %v854, %v856
  %v860 = vsel %vm43, %v852, 0
  %v863 = vsel %vm47, %v858, 0
  %865 = vmatpush.bf16.msra.mxu0 0
  %866 = vmatpush.bf16.msra.mxu0 0
  %867 = vmatpush.bf16.msra.mxu0 0
  %868 = vmatpush.bf16.msra.mxu0 0
  %869 = vmatpush.bf16.msra.mxu0 0
  %870 = vmatpush.bf16.msra.mxu0 0
  %871 = vmatpush.bf16.msra.mxu0 0
  %872 = vmatpush.bf16.msra.mxu0 %v863
  %873 = vmatmul.bf16.gmra.mxu0 %v860
  %v874 = vpop.f32.mrf.mxu0
  %v875 = vadd.f32 0.0, %v874
  %v876 = vpop.f32.mrf.mxu0
  %v877 = vadd.f32 0.0, %v876
  %878 = vdwg.mxu0
  %v879 = vadd.f32 %v843, %v875
  %v880 = vadd.f32 %v844, %v877
  %s881 = scalar_lea.vmem %s4, 184
  %v882 = vld [vmem:[%s881] sm:$0xf]
  %v883 = vld [vmem:[%s881 + $0x4] sm:$0x1]
  %v886 = vunpack.c.l.b16 %v882
  %v887 = vunpack.c.l.b16 %v883
  %v888 = vpack.c.b16 %v887, %v886
  %889 = vrot.lane.b32.xlu0 %v157, 111
  %v890 = vpop.permute.xlu0 %889
  %891 = vrot.lane.b32.xlu0 %v158, 111
  %v892 = vpop.permute.xlu0 %891
  %v893 = vsel %vm857, %v890, %v892
  %v895 = vsel %vm43, %v888, 0
  %v898 = vsel %vm47, %v893, 0
  %900 = vmatpush.bf16.msra.mxu0 0
  %901 = vmatpush.bf16.msra.mxu0 0
  %902 = vmatpush.bf16.msra.mxu0 0
  %903 = vmatpush.bf16.msra.mxu0 0
  %904 = vmatpush.bf16.msra.mxu0 0
  %905 = vmatpush.bf16.msra.mxu0 0
  %906 = vmatpush.bf16.msra.mxu0 0
  %907 = vmatpush.bf16.msra.mxu0 %v898
  %908 = vmatmul.bf16.gmra.mxu0 %v895
  %v909 = vpop.f32.mrf.mxu0
  %v910 = vadd.f32 0.0, %v909
  %v911 = vpop.f32.mrf.mxu0
  %v912 = vadd.f32 0.0, %v911
  %913 = vdwg.mxu0
  %v914 = vadd.f32 %v879, %v910
  %v915 = vadd.f32 %v880, %v912
  %s916 = scalar_lea.vmem %s4, 192
  %v917 = vld [vmem:[%s916] sm:$0xf]
  %v918 = vld [vmem:[%s916 + $0x4] sm:$0x1]
  %v921 = vunpack.c.l.b16 %v917
  %v922 = vunpack.c.l.b16 %v918
  %v923 = vpack.c.b16 %v922, %v921
  %924 = vrot.lane.b32.xlu0 %v111, 110
  %v925 = vpop.permute.xlu0 %924
  %926 = vrot.lane.b32.xlu0 %v112, 110
  %v927 = vpop.permute.xlu0 %926
  %vm928 = vcmask 900096
  %v929 = vsel %vm928, %v925, %v927
  %v931 = vsel %vm43, %v923, 0
  %v934 = vsel %vm47, %v929, 0
  %936 = vmatpush.bf16.msra.mxu0 0
  %937 = vmatpush.bf16.msra.mxu0 0
  %938 = vmatpush.bf16.msra.mxu0 0
  %939 = vmatpush.bf16.msra.mxu0 0
  %940 = vmatpush.bf16.msra.mxu0 0
  %941 = vmatpush.bf16.msra.mxu0 0
  %942 = vmatpush.bf16.msra.mxu0 0
  %943 = vmatpush.bf16.msra.mxu0 %v934
  %944 = vmatmul.bf16.gmra.mxu0 %v931
  %v945 = vpop.f32.mrf.mxu0
  %v946 = vadd.f32 0.0, %v945
  %v947 = vpop.f32.mrf.mxu0
  %v948 = vadd.f32 0.0, %v947
  %949 = vdwg.mxu0
  %v950 = vadd.f32 %v914, %v946
  %v951 = vadd.f32 %v915, %v948
  %952 = vmatpush.bf16.msra.mxu0 0
  %953 = vmatpush.bf16.msra.mxu0 0
  %954 = vmatpush.bf16.msra.mxu0 0
  %955 = vmatpush.bf16.msra.mxu0 0
  %956 = vmatpush.bf16.msra.mxu0 0
  %957 = vmatpush.bf16.msra.mxu0 0
  %958 = vmatpush.bf16.msra.mxu0 0
  %959 = vmatpush.bf16.msra.mxu0 %v123
  %960 = vmatmul.bf16.gmra.mxu0 %v45
  %v961 = vpop.f32.mrf.mxu0
  %v962 = vadd.f32 0.0, %v961
  %v963 = vpop.f32.mrf.mxu0
  %v964 = vadd.f32 0.0, %v963
  %965 = vdwg.mxu0
  %966 = vmatpush.bf16.msra.mxu0 0
  %967 = vmatpush.bf16.msra.mxu0 0
  %968 = vmatpush.bf16.msra.mxu0 0
  %969 = vmatpush.bf16.msra.mxu0 0
  %970 = vmatpush.bf16.msra.mxu0 0
  %971 = vmatpush.bf16.msra.mxu0 0
  %972 = vmatpush.bf16.msra.mxu0 0
  %973 = vmatpush.bf16.msra.mxu0 %v49
  %974 = vmatmul.bf16.gmra.mxu0 %v76
  %v975 = vpop.f32.mrf.mxu0
  %v976 = vadd.f32 %v962, %v975
  %v977 = vpop.f32.mrf.mxu0
  %v978 = vadd.f32 %v964, %v977
  %979 = vdwg.mxu0
  %980 = vmatpush.bf16.msra.mxu0 0
  %981 = vmatpush.bf16.msra.mxu0 0
  %982 = vmatpush.bf16.msra.mxu0 0
  %983 = vmatpush.bf16.msra.mxu0 0
  %984 = vmatpush.bf16.msra.mxu0 0
  %985 = vmatpush.bf16.msra.mxu0 0
  %986 = vmatpush.bf16.msra.mxu0 0
  %987 = vmatpush.bf16.msra.mxu0 %v168
  %988 = vmatmul.bf16.gmra.mxu0 %v120
  %v989 = vpop.f32.mrf.mxu0
  %v990 = vadd.f32 0.0, %v989
  %v991 = vpop.f32.mrf.mxu0
  %v992 = vadd.f32 0.0, %v991
  %993 = vdwg.mxu0
  %v994 = vadd.f32 %v976, %v990
  %v995 = vadd.f32 %v978, %v992
  %996 = vmatpush.bf16.msra.mxu0 0
  %997 = vmatpush.bf16.msra.mxu0 0
  %998 = vmatpush.bf16.msra.mxu0 0
  %999 = vmatpush.bf16.msra.mxu0 0
  %1000 = vmatpush.bf16.msra.mxu0 0
  %1001 = vmatpush.bf16.msra.mxu0 0
  %1002 = vmatpush.bf16.msra.mxu0 0
  %1003 = vmatpush.bf16.msra.mxu0 %v204
  %1004 = vmatmul.bf16.gmra.mxu0 %v165
  %v1005 = vpop.f32.mrf.mxu0
  %v1006 = vadd.f32 0.0, %v1005
  %v1007 = vpop.f32.mrf.mxu0
  %v1008 = vadd.f32 0.0, %v1007
  %1009 = vdwg.mxu0
  %v1010 = vadd.f32 %v994, %v1006
  %v1011 = vadd.f32 %v995, %v1008
  %1012 = vrot.lane.b32.xlu0 %v157, 126
  %v1013 = vpop.permute.xlu0 %1012
  %1014 = vrot.lane.b32.xlu0 %v158, 126
  %v1015 = vpop.permute.xlu0 %1014
  %v1016 = vsel %vm198, %v1013, %v1015
  %v1018 = vsel %vm47, %v1016, 0
  %1020 = vmatpush.bf16.msra.mxu0 0
  %1021 = vmatpush.bf16.msra.mxu0 0
  %1022 = vmatpush.bf16.msra.mxu0 0
  %1023 = vmatpush.bf16.msra.mxu0 0
  %1024 = vmatpush.bf16.msra.mxu0 0
  %1025 = vmatpush.bf16.msra.mxu0 0
  %1026 = vmatpush.bf16.msra.mxu0 0
  %1027 = vmatpush.bf16.msra.mxu0 %v1018
  %1028 = vmatmul.bf16.gmra.mxu0 %v201
  %v1029 = vpop.f32.mrf.mxu0
  %v1030 = vadd.f32 0.0, %v1029
  %v1031 = vpop.f32.mrf.mxu0
  %v1032 = vadd.f32 0.0, %v1031
  %1033 = vdwg.mxu0
  %v1034 = vadd.f32 %v1010, %v1030
  %v1035 = vadd.f32 %v1011, %v1032
  %1036 = vmatpush.bf16.msra.mxu0 0
  %1037 = vmatpush.bf16.msra.mxu0 0
  %1038 = vmatpush.bf16.msra.mxu0 0
  %1039 = vmatpush.bf16.msra.mxu0 0
  %1040 = vmatpush.bf16.msra.mxu0 0
  %1041 = vmatpush.bf16.msra.mxu0 0
  %1042 = vmatpush.bf16.msra.mxu0 0
  %1043 = vmatpush.bf16.msra.mxu0 %v278
  %1044 = vmatmul.bf16.gmra.mxu0 %v238
  %v1045 = vpop.f32.mrf.mxu0
  %v1046 = vadd.f32 0.0, %v1045
  %v1047 = vpop.f32.mrf.mxu0
  %v1048 = vadd.f32 0.0, %v1047
  %1049 = vdwg.mxu0
  %v1050 = vadd.f32 %v1034, %v1046
  %v1051 = vadd.f32 %v1035, %v1048
  %1052 = vmatpush.bf16.msra.mxu0 0
  %1053 = vmatpush.bf16.msra.mxu0 0
  %1054 = vmatpush.bf16.msra.mxu0 0
  %1055 = vmatpush.bf16.msra.mxu0 0
  %1056 = vmatpush.bf16.msra.mxu0 0
  %1057 = vmatpush.bf16.msra.mxu0 0
  %1058 = vmatpush.bf16.msra.mxu0 0
  %1059 = vmatpush.bf16.msra.mxu0 %v323
  %1060 = vmatmul.bf16.gmra.mxu0 %v275
  %v1061 = vpop.f32.mrf.mxu0
  %v1062 = vadd.f32 0.0, %v1061
  %v1063 = vpop.f32.mrf.mxu0
  %v1064 = vadd.f32 0.0, %v1063
  %1065 = vdwg.mxu0
  %v1066 = vadd.f32 %v1050, %v1062
  %v1067 = vadd.f32 %v1051, %v1064
  %1068 = vmatpush.bf16.msra.mxu0 0
  %1069 = vmatpush.bf16.msra.mxu0 0
  %1070 = vmatpush.bf16.msra.mxu0 0
  %1071 = vmatpush.bf16.msra.mxu0 0
  %1072 = vmatpush.bf16.msra.mxu0 0
  %1073 = vmatpush.bf16.msra.mxu0 0
  %1074 = vmatpush.bf16.msra.mxu0 0
  %1075 = vmatpush.bf16.msra.mxu0 %v368
  %1076 = vmatmul.bf16.gmra.mxu0 %v320
  %v1077 = vpop.f32.mrf.mxu0
  %v1078 = vadd.f32 0.0, %v1077
  %v1079 = vpop.f32.mrf.mxu0
  %v1080 = vadd.f32 0.0, %v1079
  %1081 = vdwg.mxu0
  %v1082 = vadd.f32 %v1066, %v1078
  %v1083 = vadd.f32 %v1067, %v1080
  %1084 = vmatpush.bf16.msra.mxu0 0
  %1085 = vmatpush.bf16.msra.mxu0 0
  %1086 = vmatpush.bf16.msra.mxu0 0
  %1087 = vmatpush.bf16.msra.mxu0 0
  %1088 = vmatpush.bf16.msra.mxu0 0
  %1089 = vmatpush.bf16.msra.mxu0 0
  %1090 = vmatpush.bf16.msra.mxu0 0
  %1091 = vmatpush.bf16.msra.mxu0 %v403
  %1092 = vmatmul.bf16.gmra.mxu0 %v365
  %v1093 = vpop.f32.mrf.mxu0
  %v1094 = vadd.f32 0.0, %v1093
  %v1095 = vpop.f32.mrf.mxu0
  %v1096 = vadd.f32 0.0, %v1095
  %1097 = vdwg.mxu0
  %v1098 = vadd.f32 %v1082, %v1094
  %v1099 = vadd.f32 %v1083, %v1096
  %1100 = vrot.lane.b32.xlu0 %v357, 126
  %v1101 = vpop.permute.xlu0 %1100
  %1102 = vrot.lane.b32.xlu0 %v358, 126
  %v1103 = vpop.permute.xlu0 %1102
  %v1104 = vsel %vm198, %v1101, %v1103
  %v1106 = vsel %vm47, %v1104, 0
  %1108 = vmatpush.bf16.msra.mxu0 0
  %1109 = vmatpush.bf16.msra.mxu0 0
  %1110 = vmatpush.bf16.msra.mxu0 0
  %1111 = vmatpush.bf16.msra.mxu0 0
  %1112 = vmatpush.bf16.msra.mxu0 0
  %1113 = vmatpush.bf16.msra.mxu0 0
  %1114 = vmatpush.bf16.msra.mxu0 0
  %1115 = vmatpush.bf16.msra.mxu0 %v1106
  %1116 = vmatmul.bf16.gmra.mxu0 %v400
  %v1117 = vpop.f32.mrf.mxu0
  %v1118 = vadd.f32 0.0, %v1117
  %v1119 = vpop.f32.mrf.mxu0
  %v1120 = vadd.f32 0.0, %v1119
  %1121 = vdwg.mxu0
  %v1122 = vadd.f32 %v1098, %v1118
  %v1123 = vadd.f32 %v1099, %v1120
  %1124 = vmatpush.bf16.msra.mxu0 0
  %1125 = vmatpush.bf16.msra.mxu0 0
  %1126 = vmatpush.bf16.msra.mxu0 0
  %1127 = vmatpush.bf16.msra.mxu0 0
  %1128 = vmatpush.bf16.msra.mxu0 0
  %1129 = vmatpush.bf16.msra.mxu0 0
  %1130 = vmatpush.bf16.msra.mxu0 0
  %1131 = vmatpush.bf16.msra.mxu0 %v474
  %1132 = vmatmul.bf16.gmra.mxu0 %v436
  %v1133 = vpop.f32.mrf.mxu0
  %v1134 = vadd.f32 0.0, %v1133
  %v1135 = vpop.f32.mrf.mxu0
  %v1136 = vadd.f32 0.0, %v1135
  %1137 = vdwg.mxu0
  %v1138 = vadd.f32 %v1122, %v1134
  %v1139 = vadd.f32 %v1123, %v1136
  %1140 = vmatpush.bf16.msra.mxu0 0
  %1141 = vmatpush.bf16.msra.mxu0 0
  %1142 = vmatpush.bf16.msra.mxu0 0
  %1143 = vmatpush.bf16.msra.mxu0 0
  %1144 = vmatpush.bf16.msra.mxu0 0
  %1145 = vmatpush.bf16.msra.mxu0 0
  %1146 = vmatpush.bf16.msra.mxu0 0
  %1147 = vmatpush.bf16.msra.mxu0 %v510
  %1148 = vmatmul.bf16.gmra.mxu0 %v471
  %v1149 = vpop.f32.mrf.mxu0
  %v1150 = vadd.f32 0.0, %v1149
  %v1151 = vpop.f32.mrf.mxu0
  %v1152 = vadd.f32 0.0, %v1151
  %1153 = vdwg.mxu0
  %v1154 = vadd.f32 %v1138, %v1150
  %v1155 = vadd.f32 %v1139, %v1152
  %1156 = vmatpush.bf16.msra.mxu0 0
  %1157 = vmatpush.bf16.msra.mxu0 0
  %1158 = vmatpush.bf16.msra.mxu0 0
  %1159 = vmatpush.bf16.msra.mxu0 0
  %1160 = vmatpush.bf16.msra.mxu0 0
  %1161 = vmatpush.bf16.msra.mxu0 0
  %1162 = vmatpush.bf16.msra.mxu0 0
  %1163 = vmatpush.bf16.msra.mxu0 %v545
  %1164 = vmatmul.bf16.gmra.mxu0 %v507
  %v1165 = vpop.f32.mrf.mxu0
  %v1166 = vadd.f32 0.0, %v1165
  %v1167 = vpop.f32.mrf.mxu0
  %v1168 = vadd.f32 0.0, %v1167
  %1169 = vdwg.mxu0
  %v1170 = vadd.f32 %v1154, %v1166
  %v1171 = vadd.f32 %v1155, %v1168
  %1172 = vmatpush.bf16.msra.mxu0 0
  %1173 = vmatpush.bf16.msra.mxu0 0
  %1174 = vmatpush.bf16.msra.mxu0 0
  %1175 = vmatpush.bf16.msra.mxu0 0
  %1176 = vmatpush.bf16.msra.mxu0 0
  %1177 = vmatpush.bf16.msra.mxu0 0
  %1178 = vmatpush.bf16.msra.mxu0 0
  %1179 = vmatpush.bf16.msra.mxu0 %v581
  %1180 = vmatmul.bf16.gmra.mxu0 %v542
  %v1181 = vpop.f32.mrf.mxu0
  %v1182 = vadd.f32 0.0, %v1181
  %v1183 = vpop.f32.mrf.mxu0
  %v1184 = vadd.f32 0.0, %v1183
  %1185 = vdwg.mxu0
  %v1186 = vadd.f32 %v1170, %v1182
  %v1187 = vadd.f32 %v1171, %v1184
  %1188 = vrot.lane.b32.xlu0 %v157, 118
  %v1189 = vpop.permute.xlu0 %1188
  %1190 = vrot.lane.b32.xlu0 %v158, 118
  %v1191 = vpop.permute.xlu0 %1190
  %v1192 = vsel %vm575, %v1189, %v1191
  %v1194 = vsel %vm47, %v1192, 0
  %1196 = vmatpush.bf16.msra.mxu0 0
  %1197 = vmatpush.bf16.msra.mxu0 0
  %1198 = vmatpush.bf16.msra.mxu0 0
  %1199 = vmatpush.bf16.msra.mxu0 0
  %1200 = vmatpush.bf16.msra.mxu0 0
  %1201 = vmatpush.bf16.msra.mxu0 0
  %1202 = vmatpush.bf16.msra.mxu0 0
  %1203 = vmatpush.bf16.msra.mxu0 %v1194
  %1204 = vmatmul.bf16.gmra.mxu0 %v578
  %v1205 = vpop.f32.mrf.mxu0
  %v1206 = vadd.f32 0.0, %v1205
  %v1207 = vpop.f32.mrf.mxu0
  %v1208 = vadd.f32 0.0, %v1207
  %1209 = vdwg.mxu0
  %v1210 = vadd.f32 %v1186, %v1206
  %v1211 = vadd.f32 %v1187, %v1208
  %1212 = vmatpush.bf16.msra.mxu0 0
  %1213 = vmatpush.bf16.msra.mxu0 0
  %1214 = vmatpush.bf16.msra.mxu0 0
  %1215 = vmatpush.bf16.msra.mxu0 0
  %1216 = vmatpush.bf16.msra.mxu0 0
  %1217 = vmatpush.bf16.msra.mxu0 0
  %1218 = vmatpush.bf16.msra.mxu0 0
  %1219 = vmatpush.bf16.msra.mxu0 %v651
  %1220 = vmatmul.bf16.gmra.mxu0 %v613
  %v1221 = vpop.f32.mrf.mxu0
  %v1222 = vadd.f32 0.0, %v1221
  %v1223 = vpop.f32.mrf.mxu0
  %v1224 = vadd.f32 0.0, %v1223
  %1225 = vdwg.mxu0
  %v1226 = vadd.f32 %v1210, %v1222
  %v1227 = vadd.f32 %v1211, %v1224
  %1228 = vmatpush.bf16.msra.mxu0 0
  %1229 = vmatpush.bf16.msra.mxu0 0
  %1230 = vmatpush.bf16.msra.mxu0 0
  %1231 = vmatpush.bf16.msra.mxu0 0
  %1232 = vmatpush.bf16.msra.mxu0 0
  %1233 = vmatpush.bf16.msra.mxu0 0
  %1234 = vmatpush.bf16.msra.mxu0 0
  %1235 = vmatpush.bf16.msra.mxu0 %v686
  %1236 = vmatmul.bf16.gmra.mxu0 %v648
  %v1237 = vpop.f32.mrf.mxu0
  %v1238 = vadd.f32 0.0, %v1237
  %v1239 = vpop.f32.mrf.mxu0
  %v1240 = vadd.f32 0.0, %v1239
  %1241 = vdwg.mxu0
  %v1242 = vadd.f32 %v1226, %v1238
  %v1243 = vadd.f32 %v1227, %v1240
  %1244 = vmatpush.bf16.msra.mxu0 0
  %1245 = vmatpush.bf16.msra.mxu0 0
  %1246 = vmatpush.bf16.msra.mxu0 0
  %1247 = vmatpush.bf16.msra.mxu0 0
  %1248 = vmatpush.bf16.msra.mxu0 0
  %1249 = vmatpush.bf16.msra.mxu0 0
  %1250 = vmatpush.bf16.msra.mxu0 0
  %1251 = vmatpush.bf16.msra.mxu0 %v721
  %1252 = vmatmul.bf16.gmra.mxu0 %v683
  %v1253 = vpop.f32.mrf.mxu0
  %v1254 = vadd.f32 0.0, %v1253
  %v1255 = vpop.f32.mrf.mxu0
  %v1256 = vadd.f32 0.0, %v1255
  %1257 = vdwg.mxu0
  %v1258 = vadd.f32 %v1242, %v1254
  %v1259 = vadd.f32 %v1243, %v1256
  %1260 = vmatpush.bf16.msra.mxu0 0
  %1261 = vmatpush.bf16.msra.mxu0 0
  %1262 = vmatpush.bf16.msra.mxu0 0
  %1263 = vmatpush.bf16.msra.mxu0 0
  %1264 = vmatpush.bf16.msra.mxu0 0
  %1265 = vmatpush.bf16.msra.mxu0 0
  %1266 = vmatpush.bf16.msra.mxu0 0
  %1267 = vmatpush.bf16.msra.mxu0 %v756
  %1268 = vmatmul.bf16.gmra.mxu0 %v718
  %v1269 = vpop.f32.mrf.mxu0
  %v1270 = vadd.f32 0.0, %v1269
  %v1271 = vpop.f32.mrf.mxu0
  %v1272 = vadd.f32 0.0, %v1271
  %1273 = vdwg.mxu0
  %v1274 = vadd.f32 %v1258, %v1270
  %v1275 = vadd.f32 %v1259, %v1272
  %1276 = vrot.lane.b32.xlu0 %v357, 118
  %v1277 = vpop.permute.xlu0 %1276
  %1278 = vrot.lane.b32.xlu0 %v358, 118
  %v1279 = vpop.permute.xlu0 %1278
  %v1280 = vsel %vm575, %v1277, %v1279
  %v1282 = vsel %vm47, %v1280, 0
  %1284 = vmatpush.bf16.msra.mxu0 0
  %1285 = vmatpush.bf16.msra.mxu0 0
  %1286 = vmatpush.bf16.msra.mxu0 0
  %1287 = vmatpush.bf16.msra.mxu0 0
  %1288 = vmatpush.bf16.msra.mxu0 0
  %1289 = vmatpush.bf16.msra.mxu0 0
  %1290 = vmatpush.bf16.msra.mxu0 0
  %1291 = vmatpush.bf16.msra.mxu0 %v1282
  %1292 = vmatmul.bf16.gmra.mxu0 %v753
  %v1293 = vpop.f32.mrf.mxu0
  %v1294 = vadd.f32 0.0, %v1293
  %v1295 = vpop.f32.mrf.mxu0
  %v1296 = vadd.f32 0.0, %v1295
  %1297 = vdwg.mxu0
  %v1298 = vadd.f32 %v1274, %v1294
  %v1299 = vadd.f32 %v1275, %v1296
  %1300 = vmatpush.bf16.msra.mxu0 0
  %1301 = vmatpush.bf16.msra.mxu0 0
  %1302 = vmatpush.bf16.msra.mxu0 0
  %1303 = vmatpush.bf16.msra.mxu0 0
  %1304 = vmatpush.bf16.msra.mxu0 0
  %1305 = vmatpush.bf16.msra.mxu0 0
  %1306 = vmatpush.bf16.msra.mxu0 0
  %1307 = vmatpush.bf16.msra.mxu0 %v827
  %1308 = vmatmul.bf16.gmra.mxu0 %v789
  %v1309 = vpop.f32.mrf.mxu0
  %v1310 = vadd.f32 0.0, %v1309
  %v1311 = vpop.f32.mrf.mxu0
  %v1312 = vadd.f32 0.0, %v1311
  %1313 = vdwg.mxu0
  %v1314 = vadd.f32 %v1298, %v1310
  %v1315 = vadd.f32 %v1299, %v1312
  %1316 = vmatpush.bf16.msra.mxu0 0
  %1317 = vmatpush.bf16.msra.mxu0 0
  %1318 = vmatpush.bf16.msra.mxu0 0
  %1319 = vmatpush.bf16.msra.mxu0 0
  %1320 = vmatpush.bf16.msra.mxu0 0
  %1321 = vmatpush.bf16.msra.mxu0 0
  %1322 = vmatpush.bf16.msra.mxu0 0
  %1323 = vmatpush.bf16.msra.mxu0 %v863
  %1324 = vmatmul.bf16.gmra.mxu0 %v824
  %v1325 = vpop.f32.mrf.mxu0
  %v1326 = vadd.f32 0.0, %v1325
  %v1327 = vpop.f32.mrf.mxu0
  %v1328 = vadd.f32 0.0, %v1327
  %1329 = vdwg.mxu0
  %v1330 = vadd.f32 %v1314, %v1326
  %v1331 = vadd.f32 %v1315, %v1328
  %1332 = vmatpush.bf16.msra.mxu0 0
  %1333 = vmatpush.bf16.msra.mxu0 0
  %1334 = vmatpush.bf16.msra.mxu0 0
  %1335 = vmatpush.bf16.msra.mxu0 0
  %1336 = vmatpush.bf16.msra.mxu0 0
  %1337 = vmatpush.bf16.msra.mxu0 0
  %1338 = vmatpush.bf16.msra.mxu0 0
  %1339 = vmatpush.bf16.msra.mxu0 %v898
  %1340 = vmatmul.bf16.gmra.mxu0 %v860
  %v1341 = vpop.f32.mrf.mxu0
  %v1342 = vadd.f32 0.0, %v1341
  %v1343 = vpop.f32.mrf.mxu0
  %v1344 = vadd.f32 0.0, %v1343
  %1345 = vdwg.mxu0
  %v1346 = vadd.f32 %v1330, %v1342
  %v1347 = vadd.f32 %v1331, %v1344
  %1348 = vmatpush.bf16.msra.mxu0 0
  %1349 = vmatpush.bf16.msra.mxu0 0
  %1350 = vmatpush.bf16.msra.mxu0 0
  %1351 = vmatpush.bf16.msra.mxu0 0
  %1352 = vmatpush.bf16.msra.mxu0 0
  %1353 = vmatpush.bf16.msra.mxu0 0
  %1354 = vmatpush.bf16.msra.mxu0 0
  %1355 = vmatpush.bf16.msra.mxu0 %v934
  %1356 = vmatmul.bf16.gmra.mxu0 %v895
  %v1357 = vpop.f32.mrf.mxu0
  %v1358 = vadd.f32 0.0, %v1357
  %v1359 = vpop.f32.mrf.mxu0
  %v1360 = vadd.f32 0.0, %v1359
  %1361 = vdwg.mxu0
  %v1362 = vadd.f32 %v1346, %v1358
  %v1363 = vadd.f32 %v1347, %v1360
  %1364 = vrot.lane.b32.xlu0 %v157, 110
  %v1365 = vpop.permute.xlu0 %1364
  %1366 = vrot.lane.b32.xlu0 %v158, 110
  %v1367 = vpop.permute.xlu0 %1366
  %v1368 = vsel %vm928, %v1365, %v1367
  %v1370 = vsel %vm47, %v1368, 0
  %1372 = vmatpush.bf16.msra.mxu0 0
  %1373 = vmatpush.bf16.msra.mxu0 0
  %1374 = vmatpush.bf16.msra.mxu0 0
  %1375 = vmatpush.bf16.msra.mxu0 0
  %1376 = vmatpush.bf16.msra.mxu0 0
  %1377 = vmatpush.bf16.msra.mxu0 0
  %1378 = vmatpush.bf16.msra.mxu0 0
  %1379 = vmatpush.bf16.msra.mxu0 %v1370
  %1380 = vmatmul.bf16.gmra.mxu0 %v931
  %v1381 = vpop.f32.mrf.mxu0
  %v1382 = vadd.f32 0.0, %v1381
  %v1383 = vpop.f32.mrf.mxu0
  %v1384 = vadd.f32 0.0, %v1383
  %1385 = vdwg.mxu0
  %v1386 = vadd.f32 %v1362, %v1382
  %v1387 = vadd.f32 %v1363, %v1384
  %v1388 = vmax.f32 %v950, %v1386
  %v1389 = vmax.f32 %v951, %v1387
  %1390 = vmatpush.bf16.msra.mxu0 0
  %1391 = vmatpush.bf16.msra.mxu0 0
  %1392 = vmatpush.bf16.msra.mxu0 0
  %1393 = vmatpush.bf16.msra.mxu0 0
  %1394 = vmatpush.bf16.msra.mxu0 0
  %1395 = vmatpush.bf16.msra.mxu0 0
  %1396 = vmatpush.bf16.msra.mxu0 0
  %1397 = vmatpush.bf16.msra.mxu0 %v278
  %1398 = vmatmul.bf16.gmra.mxu0 %v45
  %v1399 = vpop.f32.mrf.mxu0
  %v1400 = vadd.f32 0.0, %v1399
  %v1401 = vpop.f32.mrf.mxu0
  %v1402 = vadd.f32 0.0, %v1401
  %1403 = vdwg.mxu0
  %1404 = vmatpush.bf16.msra.mxu0 0
  %1405 = vmatpush.bf16.msra.mxu0 0
  %1406 = vmatpush.bf16.msra.mxu0 0
  %1407 = vmatpush.bf16.msra.mxu0 0
  %1408 = vmatpush.bf16.msra.mxu0 0
  %1409 = vmatpush.bf16.msra.mxu0 0
  %1410 = vmatpush.bf16.msra.mxu0 0
  %1411 = vmatpush.bf16.msra.mxu0 %v241
  %1412 = vmatmul.bf16.gmra.mxu0 %v76
  %v1413 = vpop.f32.mrf.mxu0
  %v1414 = vadd.f32 %v1400, %v1413
  %v1415 = vpop.f32.mrf.mxu0
  %v1416 = vadd.f32 %v1402, %v1415
  %1417 = vdwg.mxu0
  %1418 = vmatpush.bf16.msra.mxu0 0
  %1419 = vmatpush.bf16.msra.mxu0 0
  %1420 = vmatpush.bf16.msra.mxu0 0
  %1421 = vmatpush.bf16.msra.mxu0 0
  %1422 = vmatpush.bf16.msra.mxu0 0
  %1423 = vmatpush.bf16.msra.mxu0 0
  %1424 = vmatpush.bf16.msra.mxu0 0
  %1425 = vmatpush.bf16.msra.mxu0 %v323
  %1426 = vmatmul.bf16.gmra.mxu0 %v120
  %v1427 = vpop.f32.mrf.mxu0
  %v1428 = vadd.f32 0.0, %v1427
  %v1429 = vpop.f32.mrf.mxu0
  %v1430 = vadd.f32 0.0, %v1429
  %1431 = vdwg.mxu0
  %v1432 = vadd.f32 %v1414, %v1428
  %v1433 = vadd.f32 %v1416, %v1430
  %1434 = vmatpush.bf16.msra.mxu0 0
  %1435 = vmatpush.bf16.msra.mxu0 0
  %1436 = vmatpush.bf16.msra.mxu0 0
  %1437 = vmatpush.bf16.msra.mxu0 0
  %1438 = vmatpush.bf16.msra.mxu0 0
  %1439 = vmatpush.bf16.msra.mxu0 0
  %1440 = vmatpush.bf16.msra.mxu0 0
  %1441 = vmatpush.bf16.msra.mxu0 %v368
  %1442 = vmatmul.bf16.gmra.mxu0 %v165
  %v1443 = vpop.f32.mrf.mxu0
  %v1444 = vadd.f32 0.0, %v1443
  %v1445 = vpop.f32.mrf.mxu0
  %v1446 = vadd.f32 0.0, %v1445
  %1447 = vdwg.mxu0
  %v1448 = vadd.f32 %v1432, %v1444
  %v1449 = vadd.f32 %v1433, %v1446
  %1450 = vmatpush.bf16.msra.mxu0 0
  %1451 = vmatpush.bf16.msra.mxu0 0
  %1452 = vmatpush.bf16.msra.mxu0 0
  %1453 = vmatpush.bf16.msra.mxu0 0
  %1454 = vmatpush.bf16.msra.mxu0 0
  %1455 = vmatpush.bf16.msra.mxu0 0
  %1456 = vmatpush.bf16.msra.mxu0 0
  %1457 = vmatpush.bf16.msra.mxu0 %v403
  %1458 = vmatmul.bf16.gmra.mxu0 %v201
  %v1459 = vpop.f32.mrf.mxu0
  %v1460 = vadd.f32 0.0, %v1459
  %v1461 = vpop.f32.mrf.mxu0
  %v1462 = vadd.f32 0.0, %v1461
  %1463 = vdwg.mxu0
  %v1464 = vadd.f32 %v1448, %v1460
  %v1465 = vadd.f32 %v1449, %v1462
  %1466 = vmatpush.bf16.msra.mxu0 0
  %1467 = vmatpush.bf16.msra.mxu0 0
  %1468 = vmatpush.bf16.msra.mxu0 0
  %1469 = vmatpush.bf16.msra.mxu0 0
  %1470 = vmatpush.bf16.msra.mxu0 0
  %1471 = vmatpush.bf16.msra.mxu0 0
  %1472 = vmatpush.bf16.msra.mxu0 0
  %1473 = vmatpush.bf16.msra.mxu0 %v439
  %1474 = vmatmul.bf16.gmra.mxu0 %v238
  %v1475 = vpop.f32.mrf.mxu0
  %v1476 = vadd.f32 0.0, %v1475
  %v1477 = vpop.f32.mrf.mxu0
  %v1478 = vadd.f32 0.0, %v1477
  %1479 = vdwg.mxu0
  %v1480 = vadd.f32 %v1464, %v1476
  %v1481 = vadd.f32 %v1465, %v1478
  %1482 = vmatpush.bf16.msra.mxu0 0
  %1483 = vmatpush.bf16.msra.mxu0 0
  %1484 = vmatpush.bf16.msra.mxu0 0
  %1485 = vmatpush.bf16.msra.mxu0 0
  %1486 = vmatpush.bf16.msra.mxu0 0
  %1487 = vmatpush.bf16.msra.mxu0 0
  %1488 = vmatpush.bf16.msra.mxu0 0
  %1489 = vmatpush.bf16.msra.mxu0 %v474
  %1490 = vmatmul.bf16.gmra.mxu0 %v275
  %v1491 = vpop.f32.mrf.mxu0
  %v1492 = vadd.f32 0.0, %v1491
  %v1493 = vpop.f32.mrf.mxu0
  %v1494 = vadd.f32 0.0, %v1493
  %1495 = vdwg.mxu0
  %v1496 = vadd.f32 %v1480, %v1492
  %v1497 = vadd.f32 %v1481, %v1494
  %1498 = vmatpush.bf16.msra.mxu0 0
  %1499 = vmatpush.bf16.msra.mxu0 0
  %1500 = vmatpush.bf16.msra.mxu0 0
  %1501 = vmatpush.bf16.msra.mxu0 0
  %1502 = vmatpush.bf16.msra.mxu0 0
  %1503 = vmatpush.bf16.msra.mxu0 0
  %1504 = vmatpush.bf16.msra.mxu0 0
  %1505 = vmatpush.bf16.msra.mxu0 %v510
  %1506 = vmatmul.bf16.gmra.mxu0 %v320
  %v1507 = vpop.f32.mrf.mxu0
  %v1508 = vadd.f32 0.0, %v1507
  %v1509 = vpop.f32.mrf.mxu0
  %v1510 = vadd.f32 0.0, %v1509
  %1511 = vdwg.mxu0
  %v1512 = vadd.f32 %v1496, %v1508
  %v1513 = vadd.f32 %v1497, %v1510
  %1514 = vmatpush.bf16.msra.mxu0 0
  %1515 = vmatpush.bf16.msra.mxu0 0
  %1516 = vmatpush.bf16.msra.mxu0 0
  %1517 = vmatpush.bf16.msra.mxu0 0
  %1518 = vmatpush.bf16.msra.mxu0 0
  %1519 = vmatpush.bf16.msra.mxu0 0
  %1520 = vmatpush.bf16.msra.mxu0 0
  %1521 = vmatpush.bf16.msra.mxu0 %v545
  %1522 = vmatmul.bf16.gmra.mxu0 %v365
  %v1523 = vpop.f32.mrf.mxu0
  %v1524 = vadd.f32 0.0, %v1523
  %v1525 = vpop.f32.mrf.mxu0
  %v1526 = vadd.f32 0.0, %v1525
  %1527 = vdwg.mxu0
  %v1528 = vadd.f32 %v1512, %v1524
  %v1529 = vadd.f32 %v1513, %v1526
  %1530 = vmatpush.bf16.msra.mxu0 0
  %1531 = vmatpush.bf16.msra.mxu0 0
  %1532 = vmatpush.bf16.msra.mxu0 0
  %1533 = vmatpush.bf16.msra.mxu0 0
  %1534 = vmatpush.bf16.msra.mxu0 0
  %1535 = vmatpush.bf16.msra.mxu0 0
  %1536 = vmatpush.bf16.msra.mxu0 0
  %1537 = vmatpush.bf16.msra.mxu0 %v581
  %1538 = vmatmul.bf16.gmra.mxu0 %v400
  %v1539 = vpop.f32.mrf.mxu0
  %v1540 = vadd.f32 0.0, %v1539
  %v1541 = vpop.f32.mrf.mxu0
  %v1542 = vadd.f32 0.0, %v1541
  %1543 = vdwg.mxu0
  %v1544 = vadd.f32 %v1528, %v1540
  %v1545 = vadd.f32 %v1529, %v1542
  %1546 = vmatpush.bf16.msra.mxu0 0
  %1547 = vmatpush.bf16.msra.mxu0 0
  %1548 = vmatpush.bf16.msra.mxu0 0
  %1549 = vmatpush.bf16.msra.mxu0 0
  %1550 = vmatpush.bf16.msra.mxu0 0
  %1551 = vmatpush.bf16.msra.mxu0 0
  %1552 = vmatpush.bf16.msra.mxu0 0
  %1553 = vmatpush.bf16.msra.mxu0 %v616
  %1554 = vmatmul.bf16.gmra.mxu0 %v436
  %v1555 = vpop.f32.mrf.mxu0
  %v1556 = vadd.f32 0.0, %v1555
  %v1557 = vpop.f32.mrf.mxu0
  %v1558 = vadd.f32 0.0, %v1557
  %1559 = vdwg.mxu0
  %v1560 = vadd.f32 %v1544, %v1556
  %v1561 = vadd.f32 %v1545, %v1558
  %1562 = vmatpush.bf16.msra.mxu0 0
  %1563 = vmatpush.bf16.msra.mxu0 0
  %1564 = vmatpush.bf16.msra.mxu0 0
  %1565 = vmatpush.bf16.msra.mxu0 0
  %1566 = vmatpush.bf16.msra.mxu0 0
  %1567 = vmatpush.bf16.msra.mxu0 0
  %1568 = vmatpush.bf16.msra.mxu0 0
  %1569 = vmatpush.bf16.msra.mxu0 %v651
  %1570 = vmatmul.bf16.gmra.mxu0 %v471
  %v1571 = vpop.f32.mrf.mxu0
  %v1572 = vadd.f32 0.0, %v1571
  %v1573 = vpop.f32.mrf.mxu0
  %v1574 = vadd.f32 0.0, %v1573
  %1575 = vdwg.mxu0
  %v1576 = vadd.f32 %v1560, %v1572
  %v1577 = vadd.f32 %v1561, %v1574
  %1578 = vmatpush.bf16.msra.mxu0 0
  %1579 = vmatpush.bf16.msra.mxu0 0
  %1580 = vmatpush.bf16.msra.mxu0 0
  %1581 = vmatpush.bf16.msra.mxu0 0
  %1582 = vmatpush.bf16.msra.mxu0 0
  %1583 = vmatpush.bf16.msra.mxu0 0
  %1584 = vmatpush.bf16.msra.mxu0 0
  %1585 = vmatpush.bf16.msra.mxu0 %v686
  %1586 = vmatmul.bf16.gmra.mxu0 %v507
  %v1587 = vpop.f32.mrf.mxu0
  %v1588 = vadd.f32 0.0, %v1587
  %v1589 = vpop.f32.mrf.mxu0
  %v1590 = vadd.f32 0.0, %v1589
  %1591 = vdwg.mxu0
  %v1592 = vadd.f32 %v1576, %v1588
  %v1593 = vadd.f32 %v1577, %v1590
  %1594 = vmatpush.bf16.msra.mxu0 0
  %1595 = vmatpush.bf16.msra.mxu0 0
  %1596 = vmatpush.bf16.msra.mxu0 0
  %1597 = vmatpush.bf16.msra.mxu0 0
  %1598 = vmatpush.bf16.msra.mxu0 0
  %1599 = vmatpush.bf16.msra.mxu0 0
  %1600 = vmatpush.bf16.msra.mxu0 0
  %1601 = vmatpush.bf16.msra.mxu0 %v721
  %1602 = vmatmul.bf16.gmra.mxu0 %v542
  %v1603 = vpop.f32.mrf.mxu0
  %v1604 = vadd.f32 0.0, %v1603
  %v1605 = vpop.f32.mrf.mxu0
  %v1606 = vadd.f32 0.0, %v1605
  %1607 = vdwg.mxu0
  %v1608 = vadd.f32 %v1592, %v1604
  %v1609 = vadd.f32 %v1593, %v1606
  %1610 = vmatpush.bf16.msra.mxu0 0
  %1611 = vmatpush.bf16.msra.mxu0 0
  %1612 = vmatpush.bf16.msra.mxu0 0
  %1613 = vmatpush.bf16.msra.mxu0 0
  %1614 = vmatpush.bf16.msra.mxu0 0
  %1615 = vmatpush.bf16.msra.mxu0 0
  %1616 = vmatpush.bf16.msra.mxu0 0
  %1617 = vmatpush.bf16.msra.mxu0 %v756
  %1618 = vmatmul.bf16.gmra.mxu0 %v578
  %v1619 = vpop.f32.mrf.mxu0
  %v1620 = vadd.f32 0.0, %v1619
  %v1621 = vpop.f32.mrf.mxu0
  %v1622 = vadd.f32 0.0, %v1621
  %1623 = vdwg.mxu0
  %v1624 = vadd.f32 %v1608, %v1620
  %v1625 = vadd.f32 %v1609, %v1622
  %1626 = vmatpush.bf16.msra.mxu0 0
  %1627 = vmatpush.bf16.msra.mxu0 0
  %1628 = vmatpush.bf16.msra.mxu0 0
  %1629 = vmatpush.bf16.msra.mxu0 0
  %1630 = vmatpush.bf16.msra.mxu0 0
  %1631 = vmatpush.bf16.msra.mxu0 0
  %1632 = vmatpush.bf16.msra.mxu0 0
  %1633 = vmatpush.bf16.msra.mxu0 %v792
  %1634 = vmatmul.bf16.gmra.mxu0 %v613
  %v1635 = vpop.f32.mrf.mxu0
  %v1636 = vadd.f32 0.0, %v1635
  %v1637 = vpop.f32.mrf.mxu0
  %v1638 = vadd.f32 0.0, %v1637
  %1639 = vdwg.mxu0
  %v1640 = vadd.f32 %v1624, %v1636
  %v1641 = vadd.f32 %v1625, %v1638
  %1642 = vmatpush.bf16.msra.mxu0 0
  %1643 = vmatpush.bf16.msra.mxu0 0
  %1644 = vmatpush.bf16.msra.mxu0 0
  %1645 = vmatpush.bf16.msra.mxu0 0
  %1646 = vmatpush.bf16.msra.mxu0 0
  %1647 = vmatpush.bf16.msra.mxu0 0
  %1648 = vmatpush.bf16.msra.mxu0 0
  %1649 = vmatpush.bf16.msra.mxu0 %v827
  %1650 = vmatmul.bf16.gmra.mxu0 %v648
  %v1651 = vpop.f32.mrf.mxu0
  %v1652 = vadd.f32 0.0, %v1651
  %v1653 = vpop.f32.mrf.mxu0
  %v1654 = vadd.f32 0.0, %v1653
  %1655 = vdwg.mxu0
  %v1656 = vadd.f32 %v1640, %v1652
  %v1657 = vadd.f32 %v1641, %v1654
  %1658 = vmatpush.bf16.msra.mxu0 0
  %1659 = vmatpush.bf16.msra.mxu0 0
  %1660 = vmatpush.bf16.msra.mxu0 0
  %1661 = vmatpush.bf16.msra.mxu0 0
  %1662 = vmatpush.bf16.msra.mxu0 0
  %1663 = vmatpush.bf16.msra.mxu0 0
  %1664 = vmatpush.bf16.msra.mxu0 0
  %1665 = vmatpush.bf16.msra.mxu0 %v863
  %1666 = vmatmul.bf16.gmra.mxu0 %v683
  %v1667 = vpop.f32.mrf.mxu0
  %v1668 = vadd.f32 0.0, %v1667
  %v1669 = vpop.f32.mrf.mxu0
  %v1670 = vadd.f32 0.0, %v1669
  %1671 = vdwg.mxu0
  %v1672 = vadd.f32 %v1656, %v1668
  %v1673 = vadd.f32 %v1657, %v1670
  %1674 = vmatpush.bf16.msra.mxu0 0
  %1675 = vmatpush.bf16.msra.mxu0 0
  %1676 = vmatpush.bf16.msra.mxu0 0
  %1677 = vmatpush.bf16.msra.mxu0 0
  %1678 = vmatpush.bf16.msra.mxu0 0
  %1679 = vmatpush.bf16.msra.mxu0 0
  %1680 = vmatpush.bf16.msra.mxu0 0
  %1681 = vmatpush.bf16.msra.mxu0 %v898
  %1682 = vmatmul.bf16.gmra.mxu0 %v718
  %v1683 = vpop.f32.mrf.mxu0
  %v1684 = vadd.f32 0.0, %v1683
  %v1685 = vpop.f32.mrf.mxu0
  %v1686 = vadd.f32 0.0, %v1685
  %1687 = vdwg.mxu0
  %v1688 = vadd.f32 %v1672, %v1684
  %v1689 = vadd.f32 %v1673, %v1686
  %1690 = vmatpush.bf16.msra.mxu0 0
  %1691 = vmatpush.bf16.msra.mxu0 0
  %1692 = vmatpush.bf16.msra.mxu0 0
  %1693 = vmatpush.bf16.msra.mxu0 0
  %1694 = vmatpush.bf16.msra.mxu0 0
  %1695 = vmatpush.bf16.msra.mxu0 0
  %1696 = vmatpush.bf16.msra.mxu0 0
  %1697 = vmatpush.bf16.msra.mxu0 %v934
  %1698 = vmatmul.bf16.gmra.mxu0 %v753
  %v1699 = vpop.f32.mrf.mxu0
  %v1700 = vadd.f32 0.0, %v1699
  %v1701 = vpop.f32.mrf.mxu0
  %v1702 = vadd.f32 0.0, %v1701
  %1703 = vdwg.mxu0
  %v1704 = vadd.f32 %v1688, %v1700
  %v1705 = vadd.f32 %v1689, %v1702
  %1706 = vrot.lane.b32.xlu0 %v312, 112
  %v1707 = vpop.permute.xlu0 %1706
  %1708 = vrot.lane.b32.xlu0 %v313, 112
  %v1709 = vpop.permute.xlu0 %1708
  %v1710 = vsel %vm786, %v1707, %v1709
  %v1712 = vsel %vm47, %v1710, 0
  %1714 = vmatpush.bf16.msra.mxu0 0
  %1715 = vmatpush.bf16.msra.mxu0 0
  %1716 = vmatpush.bf16.msra.mxu0 0
  %1717 = vmatpush.bf16.msra.mxu0 0
  %1718 = vmatpush.bf16.msra.mxu0 0
  %1719 = vmatpush.bf16.msra.mxu0 0
  %1720 = vmatpush.bf16.msra.mxu0 0
  %1721 = vmatpush.bf16.msra.mxu0 %v1712
  %1722 = vmatmul.bf16.gmra.mxu0 %v789
  %v1723 = vpop.f32.mrf.mxu0
  %v1724 = vadd.f32 0.0, %v1723
  %v1725 = vpop.f32.mrf.mxu0
  %v1726 = vadd.f32 0.0, %v1725
  %1727 = vdwg.mxu0
  %v1728 = vadd.f32 %v1704, %v1724
  %v1729 = vadd.f32 %v1705, %v1726
  %1730 = vrot.lane.b32.xlu0 %v357, 112
  %v1731 = vpop.permute.xlu0 %1730
  %1732 = vrot.lane.b32.xlu0 %v358, 112
  %v1733 = vpop.permute.xlu0 %1732
  %v1734 = vsel %vm786, %v1731, %v1733
  %v1736 = vsel %vm47, %v1734, 0
  %1738 = vmatpush.bf16.msra.mxu0 0
  %1739 = vmatpush.bf16.msra.mxu0 0
  %1740 = vmatpush.bf16.msra.mxu0 0
  %1741 = vmatpush.bf16.msra.mxu0 0
  %1742 = vmatpush.bf16.msra.mxu0 0
  %1743 = vmatpush.bf16.msra.mxu0 0
  %1744 = vmatpush.bf16.msra.mxu0 0
  %1745 = vmatpush.bf16.msra.mxu0 %v1736
  %1746 = vmatmul.bf16.gmra.mxu0 %v824
  %v1747 = vpop.f32.mrf.mxu0
  %v1748 = vadd.f32 0.0, %v1747
  %v1749 = vpop.f32.mrf.mxu0
  %v1750 = vadd.f32 0.0, %v1749
  %1751 = vdwg.mxu0
  %v1752 = vadd.f32 %v1728, %v1748
  %v1753 = vadd.f32 %v1729, %v1750
  %1754 = vrot.lane.b32.xlu0 %v312, 111
  %v1755 = vpop.permute.xlu0 %1754
  %1756 = vrot.lane.b32.xlu0 %v313, 111
  %v1757 = vpop.permute.xlu0 %1756
  %v1758 = vsel %vm857, %v1755, %v1757
  %v1760 = vsel %vm47, %v1758, 0
  %1762 = vmatpush.bf16.msra.mxu0 0
  %1763 = vmatpush.bf16.msra.mxu0 0
  %1764 = vmatpush.bf16.msra.mxu0 0
  %1765 = vmatpush.bf16.msra.mxu0 0
  %1766 = vmatpush.bf16.msra.mxu0 0
  %1767 = vmatpush.bf16.msra.mxu0 0
  %1768 = vmatpush.bf16.msra.mxu0 0
  %1769 = vmatpush.bf16.msra.mxu0 %v1760
  %1770 = vmatmul.bf16.gmra.mxu0 %v860
  %v1771 = vpop.f32.mrf.mxu0
  %v1772 = vadd.f32 0.0, %v1771
  %v1773 = vpop.f32.mrf.mxu0
  %v1774 = vadd.f32 0.0, %v1773
  %1775 = vdwg.mxu0
  %v1776 = vadd.f32 %v1752, %v1772
  %v1777 = vadd.f32 %v1753, %v1774
  %1778 = vrot.lane.b32.xlu0 %v357, 111
  %v1779 = vpop.permute.xlu0 %1778
  %1780 = vrot.lane.b32.xlu0 %v358, 111
  %v1781 = vpop.permute.xlu0 %1780
  %v1782 = vsel %vm857, %v1779, %v1781
  %v1784 = vsel %vm47, %v1782, 0
  %1786 = vmatpush.bf16.msra.mxu0 0
  %1787 = vmatpush.bf16.msra.mxu0 0
  %1788 = vmatpush.bf16.msra.mxu0 0
  %1789 = vmatpush.bf16.msra.mxu0 0
  %1790 = vmatpush.bf16.msra.mxu0 0
  %1791 = vmatpush.bf16.msra.mxu0 0
  %1792 = vmatpush.bf16.msra.mxu0 0
  %1793 = vmatpush.bf16.msra.mxu0 %v1784
  %1794 = vmatmul.bf16.gmra.mxu0 %v895
  %v1795 = vpop.f32.mrf.mxu0
  %v1796 = vadd.f32 0.0, %v1795
  %v1797 = vpop.f32.mrf.mxu0
  %v1798 = vadd.f32 0.0, %v1797
  %1799 = vdwg.mxu0
  %v1800 = vadd.f32 %v1776, %v1796
  %v1801 = vadd.f32 %v1777, %v1798
  %1802 = vrot.lane.b32.xlu0 %v312, 110
  %v1803 = vpop.permute.xlu0 %1802
  %1804 = vrot.lane.b32.xlu0 %v313, 110
  %v1805 = vpop.permute.xlu0 %1804
  %v1806 = vsel %vm928, %v1803, %v1805
  %v1808 = vsel %vm47, %v1806, 0
  %1810 = vmatpush.bf16.msra.mxu0 0
  %1811 = vmatpush.bf16.msra.mxu0 0
  %1812 = vmatpush.bf16.msra.mxu0 0
  %1813 = vmatpush.bf16.msra.mxu0 0
  %1814 = vmatpush.bf16.msra.mxu0 0
  %1815 = vmatpush.bf16.msra.mxu0 0
  %1816 = vmatpush.bf16.msra.mxu0 0
  %1817 = vmatpush.bf16.msra.mxu0 %v1808
  %1818 = vmatmul.bf16.gmra.mxu0 %v931
  %v1819 = vpop.f32.mrf.mxu0
  %v1820 = vadd.f32 0.0, %v1819
  %v1821 = vpop.f32.mrf.mxu0
  %v1822 = vadd.f32 0.0, %v1821
  %1823 = vdwg.mxu0
  %v1824 = vadd.f32 %v1800, %v1820
  %v1825 = vadd.f32 %v1801, %v1822
  %v1826 = vmax.f32 %v1388, %v1824
  %v1827 = vmax.f32 %v1389, %v1825
  %1828 = vmatpush.bf16.msra.mxu0 0
  %1829 = vmatpush.bf16.msra.mxu0 0
  %1830 = vmatpush.bf16.msra.mxu0 0
  %1831 = vmatpush.bf16.msra.mxu0 0
  %1832 = vmatpush.bf16.msra.mxu0 0
  %1833 = vmatpush.bf16.msra.mxu0 0
  %1834 = vmatpush.bf16.msra.mxu0 0
  %1835 = vmatpush.bf16.msra.mxu0 %v323
  %1836 = vmatmul.bf16.gmra.mxu0 %v45
  %v1837 = vpop.f32.mrf.mxu0
  %v1838 = vadd.f32 0.0, %v1837
  %v1839 = vpop.f32.mrf.mxu0
  %v1840 = vadd.f32 0.0, %v1839
  %1841 = vdwg.mxu0
  %1842 = vmatpush.bf16.msra.mxu0 0
  %1843 = vmatpush.bf16.msra.mxu0 0
  %1844 = vmatpush.bf16.msra.mxu0 0
  %1845 = vmatpush.bf16.msra.mxu0 0
  %1846 = vmatpush.bf16.msra.mxu0 0
  %1847 = vmatpush.bf16.msra.mxu0 0
  %1848 = vmatpush.bf16.msra.mxu0 0
  %1849 = vmatpush.bf16.msra.mxu0 %v278
  %1850 = vmatmul.bf16.gmra.mxu0 %v76
  %v1851 = vpop.f32.mrf.mxu0
  %v1852 = vadd.f32 %v1838, %v1851
  %v1853 = vpop.f32.mrf.mxu0
  %v1854 = vadd.f32 %v1840, %v1853
  %1855 = vdwg.mxu0
  %1856 = vmatpush.bf16.msra.mxu0 0
  %1857 = vmatpush.bf16.msra.mxu0 0
  %1858 = vmatpush.bf16.msra.mxu0 0
  %1859 = vmatpush.bf16.msra.mxu0 0
  %1860 = vmatpush.bf16.msra.mxu0 0
  %1861 = vmatpush.bf16.msra.mxu0 0
  %1862 = vmatpush.bf16.msra.mxu0 0
  %1863 = vmatpush.bf16.msra.mxu0 %v368
  %1864 = vmatmul.bf16.gmra.mxu0 %v120
  %v1865 = vpop.f32.mrf.mxu0
  %v1866 = vadd.f32 0.0, %v1865
  %v1867 = vpop.f32.mrf.mxu0
  %v1868 = vadd.f32 0.0, %v1867
  %1869 = vdwg.mxu0
  %v1870 = vadd.f32 %v1852, %v1866
  %v1871 = vadd.f32 %v1854, %v1868
  %1872 = vmatpush.bf16.msra.mxu0 0
  %1873 = vmatpush.bf16.msra.mxu0 0
  %1874 = vmatpush.bf16.msra.mxu0 0
  %1875 = vmatpush.bf16.msra.mxu0 0
  %1876 = vmatpush.bf16.msra.mxu0 0
  %1877 = vmatpush.bf16.msra.mxu0 0
  %1878 = vmatpush.bf16.msra.mxu0 0
  %1879 = vmatpush.bf16.msra.mxu0 %v403
  %1880 = vmatmul.bf16.gmra.mxu0 %v165
  %v1881 = vpop.f32.mrf.mxu0
  %v1882 = vadd.f32 0.0, %v1881
  %v1883 = vpop.f32.mrf.mxu0
  %v1884 = vadd.f32 0.0, %v1883
  %1885 = vdwg.mxu0
  %v1886 = vadd.f32 %v1870, %v1882
  %v1887 = vadd.f32 %v1871, %v1884
  %1888 = vmatpush.bf16.msra.mxu0 0
  %1889 = vmatpush.bf16.msra.mxu0 0
  %1890 = vmatpush.bf16.msra.mxu0 0
  %1891 = vmatpush.bf16.msra.mxu0 0
  %1892 = vmatpush.bf16.msra.mxu0 0
  %1893 = vmatpush.bf16.msra.mxu0 0
  %1894 = vmatpush.bf16.msra.mxu0 0
  %1895 = vmatpush.bf16.msra.mxu0 %v1106
  %1896 = vmatmul.bf16.gmra.mxu0 %v201
  %v1897 = vpop.f32.mrf.mxu0
  %v1898 = vadd.f32 0.0, %v1897
  %v1899 = vpop.f32.mrf.mxu0
  %v1900 = vadd.f32 0.0, %v1899
  %1901 = vdwg.mxu0
  %v1902 = vadd.f32 %v1886, %v1898
  %v1903 = vadd.f32 %v1887, %v1900
  %1904 = vmatpush.bf16.msra.mxu0 0
  %1905 = vmatpush.bf16.msra.mxu0 0
  %1906 = vmatpush.bf16.msra.mxu0 0
  %1907 = vmatpush.bf16.msra.mxu0 0
  %1908 = vmatpush.bf16.msra.mxu0 0
  %1909 = vmatpush.bf16.msra.mxu0 0
  %1910 = vmatpush.bf16.msra.mxu0 0
  %1911 = vmatpush.bf16.msra.mxu0 %v474
  %1912 = vmatmul.bf16.gmra.mxu0 %v238
  %v1913 = vpop.f32.mrf.mxu0
  %v1914 = vadd.f32 0.0, %v1913
  %v1915 = vpop.f32.mrf.mxu0
  %v1916 = vadd.f32 0.0, %v1915
  %1917 = vdwg.mxu0
  %v1918 = vadd.f32 %v1902, %v1914
  %v1919 = vadd.f32 %v1903, %v1916
  %1920 = vmatpush.bf16.msra.mxu0 0
  %1921 = vmatpush.bf16.msra.mxu0 0
  %1922 = vmatpush.bf16.msra.mxu0 0
  %1923 = vmatpush.bf16.msra.mxu0 0
  %1924 = vmatpush.bf16.msra.mxu0 0
  %1925 = vmatpush.bf16.msra.mxu0 0
  %1926 = vmatpush.bf16.msra.mxu0 0
  %1927 = vmatpush.bf16.msra.mxu0 %v510
  %1928 = vmatmul.bf16.gmra.mxu0 %v275
  %v1929 = vpop.f32.mrf.mxu0
  %v1930 = vadd.f32 0.0, %v1929
  %v1931 = vpop.f32.mrf.mxu0
  %v1932 = vadd.f32 0.0, %v1931
  %1933 = vdwg.mxu0
  %v1934 = vadd.f32 %v1918, %v1930
  %v1935 = vadd.f32 %v1919, %v1932
  %1936 = vmatpush.bf16.msra.mxu0 0
  %1937 = vmatpush.bf16.msra.mxu0 0
  %1938 = vmatpush.bf16.msra.mxu0 0
  %1939 = vmatpush.bf16.msra.mxu0 0
  %1940 = vmatpush.bf16.msra.mxu0 0
  %1941 = vmatpush.bf16.msra.mxu0 0
  %1942 = vmatpush.bf16.msra.mxu0 0
  %1943 = vmatpush.bf16.msra.mxu0 %v545
  %1944 = vmatmul.bf16.gmra.mxu0 %v320
  %v1945 = vpop.f32.mrf.mxu0
  %v1946 = vadd.f32 0.0, %v1945
  %v1947 = vpop.f32.mrf.mxu0
  %v1948 = vadd.f32 0.0, %v1947
  %1949 = vdwg.mxu0
  %v1950 = vadd.f32 %v1934, %v1946
  %v1951 = vadd.f32 %v1935, %v1948
  %1952 = vmatpush.bf16.msra.mxu0 0
  %1953 = vmatpush.bf16.msra.mxu0 0
  %1954 = vmatpush.bf16.msra.mxu0 0
  %1955 = vmatpush.bf16.msra.mxu0 0
  %1956 = vmatpush.bf16.msra.mxu0 0
  %1957 = vmatpush.bf16.msra.mxu0 0
  %1958 = vmatpush.bf16.msra.mxu0 0
  %1959 = vmatpush.bf16.msra.mxu0 %v581
  %1960 = vmatmul.bf16.gmra.mxu0 %v365
  %v1961 = vpop.f32.mrf.mxu0
  %v1962 = vadd.f32 0.0, %v1961
  %v1963 = vpop.f32.mrf.mxu0
  %v1964 = vadd.f32 0.0, %v1963
  %1965 = vdwg.mxu0
  %v1966 = vadd.f32 %v1950, %v1962
  %v1967 = vadd.f32 %v1951, %v1964
  %1968 = vmatpush.bf16.msra.mxu0 0
  %1969 = vmatpush.bf16.msra.mxu0 0
  %1970 = vmatpush.bf16.msra.mxu0 0
  %1971 = vmatpush.bf16.msra.mxu0 0
  %1972 = vmatpush.bf16.msra.mxu0 0
  %1973 = vmatpush.bf16.msra.mxu0 0
  %1974 = vmatpush.bf16.msra.mxu0 0
  %1975 = vmatpush.bf16.msra.mxu0 %v1194
  %1976 = vmatmul.bf16.gmra.mxu0 %v400
  %v1977 = vpop.f32.mrf.mxu0
  %v1978 = vadd.f32 0.0, %v1977
  %v1979 = vpop.f32.mrf.mxu0
  %v1980 = vadd.f32 0.0, %v1979
  %1981 = vdwg.mxu0
  %v1982 = vadd.f32 %v1966, %v1978
  %v1983 = vadd.f32 %v1967, %v1980
  %1984 = vmatpush.bf16.msra.mxu0 0
  %1985 = vmatpush.bf16.msra.mxu0 0
  %1986 = vmatpush.bf16.msra.mxu0 0
  %1987 = vmatpush.bf16.msra.mxu0 0
  %1988 = vmatpush.bf16.msra.mxu0 0
  %1989 = vmatpush.bf16.msra.mxu0 0
  %1990 = vmatpush.bf16.msra.mxu0 0
  %1991 = vmatpush.bf16.msra.mxu0 %v651
  %1992 = vmatmul.bf16.gmra.mxu0 %v436
  %v1993 = vpop.f32.mrf.mxu0
  %v1994 = vadd.f32 0.0, %v1993
  %v1995 = vpop.f32.mrf.mxu0
  %v1996 = vadd.f32 0.0, %v1995
  %1997 = vdwg.mxu0
  %v1998 = vadd.f32 %v1982, %v1994
  %v1999 = vadd.f32 %v1983, %v1996
  %2000 = vmatpush.bf16.msra.mxu0 0
  %2001 = vmatpush.bf16.msra.mxu0 0
  %2002 = vmatpush.bf16.msra.mxu0 0
  %2003 = vmatpush.bf16.msra.mxu0 0
  %2004 = vmatpush.bf16.msra.mxu0 0
  %2005 = vmatpush.bf16.msra.mxu0 0
  %2006 = vmatpush.bf16.msra.mxu0 0
  %2007 = vmatpush.bf16.msra.mxu0 %v686
  %2008 = vmatmul.bf16.gmra.mxu0 %v471
  %v2009 = vpop.f32.mrf.mxu0
  %v2010 = vadd.f32 0.0, %v2009
  %v2011 = vpop.f32.mrf.mxu0
  %v2012 = vadd.f32 0.0, %v2011
  %2013 = vdwg.mxu0
  %v2014 = vadd.f32 %v1998, %v2010
  %v2015 = vadd.f32 %v1999, %v2012
  %2016 = vmatpush.bf16.msra.mxu0 0
  %2017 = vmatpush.bf16.msra.mxu0 0
  %2018 = vmatpush.bf16.msra.mxu0 0
  %2019 = vmatpush.bf16.msra.mxu0 0
  %2020 = vmatpush.bf16.msra.mxu0 0
  %2021 = vmatpush.bf16.msra.mxu0 0
  %2022 = vmatpush.bf16.msra.mxu0 0
  %2023 = vmatpush.bf16.msra.mxu0 %v721
  %2024 = vmatmul.bf16.gmra.mxu0 %v507
  %v2025 = vpop.f32.mrf.mxu0
  %v2026 = vadd.f32 0.0, %v2025
  %v2027 = vpop.f32.mrf.mxu0
  %v2028 = vadd.f32 0.0, %v2027
  %2029 = vdwg.mxu0
  %v2030 = vadd.f32 %v2014, %v2026
  %v2031 = vadd.f32 %v2015, %v2028
  %2032 = vmatpush.bf16.msra.mxu0 0
  %2033 = vmatpush.bf16.msra.mxu0 0
  %2034 = vmatpush.bf16.msra.mxu0 0
  %2035 = vmatpush.bf16.msra.mxu0 0
  %2036 = vmatpush.bf16.msra.mxu0 0
  %2037 = vmatpush.bf16.msra.mxu0 0
  %2038 = vmatpush.bf16.msra.mxu0 0
  %2039 = vmatpush.bf16.msra.mxu0 %v756
  %2040 = vmatmul.bf16.gmra.mxu0 %v542
  %v2041 = vpop.f32.mrf.mxu0
  %v2042 = vadd.f32 0.0, %v2041
  %v2043 = vpop.f32.mrf.mxu0
  %v2044 = vadd.f32 0.0, %v2043
  %2045 = vdwg.mxu0
  %v2046 = vadd.f32 %v2030, %v2042
  %v2047 = vadd.f32 %v2031, %v2044
  %2048 = vmatpush.bf16.msra.mxu0 0
  %2049 = vmatpush.bf16.msra.mxu0 0
  %2050 = vmatpush.bf16.msra.mxu0 0
  %2051 = vmatpush.bf16.msra.mxu0 0
  %2052 = vmatpush.bf16.msra.mxu0 0
  %2053 = vmatpush.bf16.msra.mxu0 0
  %2054 = vmatpush.bf16.msra.mxu0 0
  %2055 = vmatpush.bf16.msra.mxu0 %v1282
  %2056 = vmatmul.bf16.gmra.mxu0 %v578
  %v2057 = vpop.f32.mrf.mxu0
  %v2058 = vadd.f32 0.0, %v2057
  %v2059 = vpop.f32.mrf.mxu0
  %v2060 = vadd.f32 0.0, %v2059
  %2061 = vdwg.mxu0
  %v2062 = vadd.f32 %v2046, %v2058
  %v2063 = vadd.f32 %v2047, %v2060
  %2064 = vmatpush.bf16.msra.mxu0 0
  %2065 = vmatpush.bf16.msra.mxu0 0
  %2066 = vmatpush.bf16.msra.mxu0 0
  %2067 = vmatpush.bf16.msra.mxu0 0
  %2068 = vmatpush.bf16.msra.mxu0 0
  %2069 = vmatpush.bf16.msra.mxu0 0
  %2070 = vmatpush.bf16.msra.mxu0 0
  %2071 = vmatpush.bf16.msra.mxu0 %v827
  %2072 = vmatmul.bf16.gmra.mxu0 %v613
  %v2073 = vpop.f32.mrf.mxu0
  %v2074 = vadd.f32 0.0, %v2073
  %v2075 = vpop.f32.mrf.mxu0
  %v2076 = vadd.f32 0.0, %v2075
  %2077 = vdwg.mxu0
  %v2078 = vadd.f32 %v2062, %v2074
  %v2079 = vadd.f32 %v2063, %v2076
  %2080 = vmatpush.bf16.msra.mxu0 0
  %2081 = vmatpush.bf16.msra.mxu0 0
  %2082 = vmatpush.bf16.msra.mxu0 0
  %2083 = vmatpush.bf16.msra.mxu0 0
  %2084 = vmatpush.bf16.msra.mxu0 0
  %2085 = vmatpush.bf16.msra.mxu0 0
  %2086 = vmatpush.bf16.msra.mxu0 0
  %2087 = vmatpush.bf16.msra.mxu0 %v863
  %2088 = vmatmul.bf16.gmra.mxu0 %v648
  %v2089 = vpop.f32.mrf.mxu0
  %v2090 = vadd.f32 0.0, %v2089
  %v2091 = vpop.f32.mrf.mxu0
  %v2092 = vadd.f32 0.0, %v2091
  %2093 = vdwg.mxu0
  %v2094 = vadd.f32 %v2078, %v2090
  %v2095 = vadd.f32 %v2079, %v2092
  %2096 = vmatpush.bf16.msra.mxu0 0
  %2097 = vmatpush.bf16.msra.mxu0 0
  %2098 = vmatpush.bf16.msra.mxu0 0
  %2099 = vmatpush.bf16.msra.mxu0 0
  %2100 = vmatpush.bf16.msra.mxu0 0
  %2101 = vmatpush.bf16.msra.mxu0 0
  %2102 = vmatpush.bf16.msra.mxu0 0
  %2103 = vmatpush.bf16.msra.mxu0 %v898
  %2104 = vmatmul.bf16.gmra.mxu0 %v683
  %v2105 = vpop.f32.mrf.mxu0
  %v2106 = vadd.f32 0.0, %v2105
  %v2107 = vpop.f32.mrf.mxu0
  %v2108 = vadd.f32 0.0, %v2107
  %2109 = vdwg.mxu0
  %v2110 = vadd.f32 %v2094, %v2106
  %v2111 = vadd.f32 %v2095, %v2108
  %2112 = vmatpush.bf16.msra.mxu0 0
  %2113 = vmatpush.bf16.msra.mxu0 0
  %2114 = vmatpush.bf16.msra.mxu0 0
  %2115 = vmatpush.bf16.msra.mxu0 0
  %2116 = vmatpush.bf16.msra.mxu0 0
  %2117 = vmatpush.bf16.msra.mxu0 0
  %2118 = vmatpush.bf16.msra.mxu0 0
  %2119 = vmatpush.bf16.msra.mxu0 %v934
  %2120 = vmatmul.bf16.gmra.mxu0 %v718
  %v2121 = vpop.f32.mrf.mxu0
  %v2122 = vadd.f32 0.0, %v2121
  %v2123 = vpop.f32.mrf.mxu0
  %v2124 = vadd.f32 0.0, %v2123
  %2125 = vdwg.mxu0
  %v2126 = vadd.f32 %v2110, %v2122
  %v2127 = vadd.f32 %v2111, %v2124
  %2128 = vmatpush.bf16.msra.mxu0 0
  %2129 = vmatpush.bf16.msra.mxu0 0
  %2130 = vmatpush.bf16.msra.mxu0 0
  %2131 = vmatpush.bf16.msra.mxu0 0
  %2132 = vmatpush.bf16.msra.mxu0 0
  %2133 = vmatpush.bf16.msra.mxu0 0
  %2134 = vmatpush.bf16.msra.mxu0 0
  %2135 = vmatpush.bf16.msra.mxu0 %v1370
  %2136 = vmatmul.bf16.gmra.mxu0 %v753
  %v2137 = vpop.f32.mrf.mxu0
  %v2138 = vadd.f32 0.0, %v2137
  %v2139 = vpop.f32.mrf.mxu0
  %v2140 = vadd.f32 0.0, %v2139
  %2141 = vdwg.mxu0
  %v2142 = vadd.f32 %v2126, %v2138
  %v2143 = vadd.f32 %v2127, %v2140
  %2144 = vmatpush.bf16.msra.mxu0 0
  %2145 = vmatpush.bf16.msra.mxu0 0
  %2146 = vmatpush.bf16.msra.mxu0 0
  %2147 = vmatpush.bf16.msra.mxu0 0
  %2148 = vmatpush.bf16.msra.mxu0 0
  %2149 = vmatpush.bf16.msra.mxu0 0
  %2150 = vmatpush.bf16.msra.mxu0 0
  %2151 = vmatpush.bf16.msra.mxu0 %v1736
  %2152 = vmatmul.bf16.gmra.mxu0 %v789
  %v2153 = vpop.f32.mrf.mxu0
  %v2154 = vadd.f32 0.0, %v2153
  %v2155 = vpop.f32.mrf.mxu0
  %v2156 = vadd.f32 0.0, %v2155
  %2157 = vdwg.mxu0
  %v2158 = vadd.f32 %v2142, %v2154
  %v2159 = vadd.f32 %v2143, %v2156
  %2160 = vmatpush.bf16.msra.mxu0 0
  %2161 = vmatpush.bf16.msra.mxu0 0
  %2162 = vmatpush.bf16.msra.mxu0 0
  %2163 = vmatpush.bf16.msra.mxu0 0
  %2164 = vmatpush.bf16.msra.mxu0 0
  %2165 = vmatpush.bf16.msra.mxu0 0
  %2166 = vmatpush.bf16.msra.mxu0 0
  %2167 = vmatpush.bf16.msra.mxu0 %v1760
  %2168 = vmatmul.bf16.gmra.mxu0 %v824
  %v2169 = vpop.f32.mrf.mxu0
  %v2170 = vadd.f32 0.0, %v2169
  %v2171 = vpop.f32.mrf.mxu0
  %v2172 = vadd.f32 0.0, %v2171
  %2173 = vdwg.mxu0
  %v2174 = vadd.f32 %v2158, %v2170
  %v2175 = vadd.f32 %v2159, %v2172
  %2176 = vmatpush.bf16.msra.mxu0 0
  %2177 = vmatpush.bf16.msra.mxu0 0
  %2178 = vmatpush.bf16.msra.mxu0 0
  %2179 = vmatpush.bf16.msra.mxu0 0
  %2180 = vmatpush.bf16.msra.mxu0 0
  %2181 = vmatpush.bf16.msra.mxu0 0
  %2182 = vmatpush.bf16.msra.mxu0 0
  %2183 = vmatpush.bf16.msra.mxu0 %v1784
  %2184 = vmatmul.bf16.gmra.mxu0 %v860
  %v2185 = vpop.f32.mrf.mxu0
  %v2186 = vadd.f32 0.0, %v2185
  %v2187 = vpop.f32.mrf.mxu0
  %v2188 = vadd.f32 0.0, %v2187
  %2189 = vdwg.mxu0
  %v2190 = vadd.f32 %v2174, %v2186
  %v2191 = vadd.f32 %v2175, %v2188
  %2192 = vmatpush.bf16.msra.mxu0 0
  %2193 = vmatpush.bf16.msra.mxu0 0
  %2194 = vmatpush.bf16.msra.mxu0 0
  %2195 = vmatpush.bf16.msra.mxu0 0
  %2196 = vmatpush.bf16.msra.mxu0 0
  %2197 = vmatpush.bf16.msra.mxu0 0
  %2198 = vmatpush.bf16.msra.mxu0 0
  %2199 = vmatpush.bf16.msra.mxu0 %v1808
  %2200 = vmatmul.bf16.gmra.mxu0 %v895
  %v2201 = vpop.f32.mrf.mxu0
  %v2202 = vadd.f32 0.0, %v2201
  %v2203 = vpop.f32.mrf.mxu0
  %v2204 = vadd.f32 0.0, %v2203
  %2205 = vdwg.mxu0
  %v2206 = vadd.f32 %v2190, %v2202
  %v2207 = vadd.f32 %v2191, %v2204
  %2208 = vrot.lane.b32.xlu0 %v357, 110
  %v2209 = vpop.permute.xlu0 %2208
  %2210 = vrot.lane.b32.xlu0 %v358, 110
  %v2211 = vpop.permute.xlu0 %2210
  %v2212 = vsel %vm928, %v2209, %v2211
  %v2214 = vsel %vm47, %v2212, 0
  %2216 = vmatpush.bf16.msra.mxu0 0
  %2217 = vmatpush.bf16.msra.mxu0 0
  %2218 = vmatpush.bf16.msra.mxu0 0
  %2219 = vmatpush.bf16.msra.mxu0 0
  %2220 = vmatpush.bf16.msra.mxu0 0
  %2221 = vmatpush.bf16.msra.mxu0 0
  %2222 = vmatpush.bf16.msra.mxu0 0
  %2223 = vmatpush.bf16.msra.mxu0 %v2214
  %2224 = vmatmul.bf16.gmra.mxu0 %v931
  %v2225 = vpop.f32.mrf.mxu0
  %v2226 = vadd.f32 0.0, %v2225
  %v2227 = vpop.f32.mrf.mxu0
  %v2228 = vadd.f32 0.0, %v2227
  %2229 = vdwg.mxu0
  %v2230 = vadd.f32 %v2206, %v2226
  %v2231 = vadd.f32 %v2207, %v2228
  %v2232 = vmax.f32 %v1826, %v2230
  %v2233 = vmax.f32 %v1827, %v2231
  %v2234 = vld [vmem:[%s5] sm:$0xff]
  %v2235 = vld [vmem:[%s5 + $0x8] sm:$0x3]
  %2237 = vset.pattern.permute.xlu0 0
  %2238 = vperm.xlu0 %2237, %v2234
  %v2239 = vpop.permute.xlu0 %2238
  %2242 = vset.pattern.permute.xlu0 0
  %2243 = vperm.xlu0 %2242, %v2235
  %v2244 = vpop.permute.xlu0 %2243
  %v2246 = vadd.f32 %v2232, %v2239
  %v2247 = vadd.f32 %v2233, %v2244
  %v2248 = vmax.f32 %v2246, 0.0
  %v2249 = vmax.f32 %v2247, 0.0
  %v2250 = vpack.c.bf16 %v2248, %v2248
  %v2251 = vpack.c.bf16 %v2249, %v2249
  %2252 = vst [vmem:[%s6] sm:$0xf] %v2250
  %2253 = vst [vmem:[%s6 + $0x4] sm:$0x1] %v2251
  // Predicated region
  $region26: #{net_forward.4} parent=0 // pred_check
    _
  $region27: #{net_forward.4} parent=0 // pred_check_branch
    %2255 = sbr.rel (0) target = $region29
  $region28: #{net_forward.4} parent=0 // pred_region
    _
  $region29: #{net_forward.4} parent=0 // pred_fallthru
    _
  // Predicated region
  $region30: #{net_forward.4} parent=0 // pred_check
    _
  $region31: #{net_forward.4} parent=0 // pred_check_branch
    %2257 = sbr.rel (0) target = $region33
  $region32: #{net_forward.4} parent=0 // pred_region
    _
  $region33: #{net_forward.4} parent=0 // pred_fallthru
    _

</llo_original>
